<compile_context>
chip_gen: v5e
topology: v5e:2x2
jax: 0.10.0
libtpu: 0.0.40
codegen_flags: <defaults>
</compile_context>

<pallas_src>
import functools

import jax
import jax.numpy as jnp
from jax.experimental import pallas as pl
from jax.experimental.pallas import tpu as pltpu


_BN_EPS = 1e-5
_NEG_SLOPE = 0.2
_LANE = 128
_VMEM_BUDGET = 28 * 1024 * 1024    # tile budget (safe for v7x's 64 MiB VMEM)
_VMEM_LIMIT = 48 * 1024 * 1024     # explicit scoped-VMEM limit

# Static layer hyper-parameters:      k, stride, pad, dil, lrelu, bn
_LAYER_SPECS = (
    ("conv1", 5, 2, 2, 2, False, False),
    ("conv2", 5, 4, 2, 2, True,  True),
    ("conv3", 4, 4, 1, 1, True,  True),
    ("conv4", 4, 2, 1, 1, True,  True),
    ("conv5", 4, 2, 1, 1, True,  True),
)


def _cdiv(a, b):
    return -(-a // b)


def _round_up(x, m):
    return _cdiv(x, m) * m


def _out_hw(h, w, k, s, p, d):
    eff = d * (k - 1) + 1
    return (h + 2 * p - eff) // s + 1, (w + 2 * p - eff) // s + 1


def _leaky(x):
    return jnp.where(x >= 0, x, _NEG_SLOPE * x)


# ---------------------------------------------------------------------------
# Pallas kernel 1: fused (optional pre-LeakyReLU) matmul + bias epilogue.
#   A (bf16), W (bf16, BN scale pre-folded), bias (f32), f32 accumulator.
# ---------------------------------------------------------------------------
def _conv_matmul_kernel(a_ref, w_ref, b_ref, o_ref, acc_ref, *, pre_lrelu):
    k = pl.program_id(2)

    @pl.when(k == 0)
    def _():
        acc_ref[...] = jnp.zeros_like(acc_ref)

    a = a_ref[...]
    if pre_lrelu:
        # LeakyReLU in f32 (no bf16 VPU on v5e); lrelu(0)=0 so padding is safe.
        a = _leaky(a.astype(jnp.float32)).astype(jnp.bfloat16)
    acc_ref[...] += jnp.dot(a, w_ref[...], preferred_element_type=jnp.float32)

    @pl.when(k == pl.num_programs(2) - 1)
    def _():
        o_ref[...] = (acc_ref[...] + b_ref[...]).astype(o_ref.dtype)


def conv_matmul(a, w, bias, *, pre_lrelu, tm_max=2048, tm_single=1024):
    """out = (leaky_relu(a) if pre_lrelu else a) @ w + bias   (f32 output).

    a: (M, K) bf16 patches, w: (K, N) bf16 (scale folded), bias: (N,) f32.
    Uses a single full-K block whenever it fits VMEM (always true here), big
    M tiles with >= 2 blocks for large M, and never pads N.
    """
    M, K = a.shape
    K2, N = w.shape
    assert K == K2

    # N tiling: never pad N (lane-dense or full-dim output stores).
    if N % _LANE == 0:
        tn = next(c for c in (512, 256, 128) if N % c == 0)
    else:
        tn = N

    # M tiling: biggest tiles that still give >= 2 blocks for large M
    # (so v7x's two TensorCores both get work), minimal padding.
    Mp8 = _round_up(M, 8)
    if Mp8 <= tm_single:
        tm, n_m = Mp8, 1
    else:
        n_m = max(2, _cdiv(Mp8, tm_max))
        tm = _round_up(_cdiv(Mp8, n_m), 16)
    Mp = tm * n_m

    # K: single full-K block if the tiles fit the VMEM budget, else split.
    Kp = _round_up(K, 16)

    def _est(tk_):
        return (2 * tm * tk_ * 2        # A blocks (bf16, double-buffered)
                + 2 * tk_ * tn * 2      # W blocks (bf16)
                + 2 * tm * tn * 4       # output blocks (f32)
                + tm * tn * 4           # accumulator
                + 2 * tn * 8)           # bias
    if _est(Kp) <= _VMEM_BUDGET:
        tk = Kp
    else:
        tk = 1024
        Kp = _round_up(K, tk)
    n_k = Kp // tk

    # Conditional padding (skipped entirely when already aligned).
    if (Mp, Kp) != (M, K):
        a = jnp.pad(a, ((0, Mp - M), (0, Kp - K)))
    if Kp != K:
        w = jnp.pad(w, ((0, Kp - K), (0, 0)))
    bias2 = bias.reshape(1, N).astype(jnp.float32)

    out = pl.pallas_call(
        functools.partial(_conv_matmul_kernel, pre_lrelu=pre_lrelu),
        out_shape=jax.ShapeDtypeStruct((Mp, N), jnp.float32),
        grid_spec=pltpu.PrefetchScalarGridSpec(
            num_scalar_prefetch=0,
            grid=(n_m, N // tn, n_k),
            in_specs=[
                pl.BlockSpec((tm, tk), lambda i, j, k: (i, k)),
                pl.BlockSpec((tk, tn), lambda i, j, k: (k, j)),
                pl.BlockSpec((1, tn), lambda i, j, k: (0, j)),
            ],
            out_specs=pl.BlockSpec((tm, tn), lambda i, j, k: (i, j)),
            scratch_shapes=[pltpu.VMEM((tm, tn), jnp.float32)],
        ),
        compiler_params=pltpu.CompilerParams(
            dimension_semantics=("parallel", "parallel", "arbitrary"),
            vmem_limit_bytes=_VMEM_LIMIT),
    )(a, w, bias2)
    return out[:M] if Mp != M else out


# ---------------------------------------------------------------------------
# Pallas kernel 2: fused conv4 -> LeakyReLU -> conv5 tail (conv5 out = 1x1).
# conv5 collapses to a sum over its valid kernel taps of small matmuls on
# conv4's output, which never leaves the kernel.
# ---------------------------------------------------------------------------
def _tail_kernel(a4_ref, w4_ref, b4_ref, w5_ref, b5_ref, o_ref, *,
                 spatial_ids, group, lrelu4, lrelu5):
    a4 = a4_ref[...].astype(jnp.float32)
    if lrelu4:
        a4 = _leaky(a4)
    e4 = jnp.dot(a4.astype(jnp.bfloat16), w4_ref[...],
                 preferred_element_type=jnp.float32) + b4_ref[...]
    # Round-trip through bf16 so the fused path matches the unfused one bit-wise.
    e4 = e4.astype(jnp.bfloat16).astype(jnp.float32)
    if lrelu5:
        e4 = _leaky(e4)

    acc = jnp.zeros(o_ref.shape, jnp.float32)
    for p, s in enumerate(spatial_ids):          # static python loop
        rows = e4[s * group:(s + 1) * group, :].astype(jnp.bfloat16)
        acc = acc + jnp.dot(rows, w5_ref[p], preferred_element_type=jnp.float32)
    o_ref[...] = acc + b5_ref[...]


# ---------------------------------------------------------------------------
# Host-side glue: im2col, BN folding, layer wrappers.
# ---------------------------------------------------------------------------
def _im2col_5d(x, k, stride, pad, dilation):
    """x: (B,H,W,C) -> patches (B,Ho,Wo,k*k,C), (kh,kw) major to match OIHW."""
    B, H, W, C = x.shape
    xp = jnp.pad(x, ((0, 0), (pad, pad), (pad, pad), (0, 0)))
    Ho, Wo = _out_hw(H, W, k, stride, pad, dilation)
    cols = []
    for i in range(k):
        for j in range(k):
            cols.append(
                xp[:, i * dilation: i * dilation + stride * (Ho - 1) + 1: stride,
                      j * dilation: j * dilation + stride * (Wo - 1) + 1: stride, :])
    return jnp.stack(cols, axis=3), Ho, Wo


def _fold_bn(arrs, bn):
    cout = arrs["w"].shape[0]
    if bn:
        sc = arrs["gamma"] * jax.lax.rsqrt(arrs["var"] + _BN_EPS)
        return sc, sc * (arrs["b"] - arrs["mean"]) + arrs["beta"]
    return jnp.ones((cout,), jnp.float32), arrs["b"]


def _fold_weight(w_oihw, eff_scale):
    """OIHW -> (k*k*Cin, Cout) bf16 with the BN scale folded in."""
    cout, cin, kh, kw = w_oihw.shape
    w2d = jnp.transpose(w_oihw, (2, 3, 1, 0)).reshape(kh * kw * cin, cout)
    return (w2d * eff_scale[None, :]).astype(jnp.bfloat16)


def conv_block(x, arrs, spec):
    _, k, s, p, d, lrelu, bn = spec
    B, H, W, Cin = x.shape
    eff_scale, eff_bias = _fold_bn(arrs, bn)
    patches, Ho, Wo = _im2col_5d(x.astype(jnp.bfloat16), k, s, p, d)
    A = patches.reshape(B * Ho * Wo, k * k * Cin)
    w2d = _fold_weight(arrs["w"], eff_scale)
    y = conv_matmul(A, w2d, eff_bias, pre_lrelu=lrelu)
    return y.reshape(B, Ho, Wo, w2d.shape[1])


def _tail_fusable(x3_shape, spec4, spec5):
    _, H3, W3, _ = x3_shape
    _, k4, s4, p4, d4, _, _ = spec4
    _, k5, s5, p5, d5, _, _ = spec5
    Ho4, Wo4 = _out_hw(H3, W3, k4, s4, p4, d4)
    if Ho4 < 1 or Wo4 < 1:
        return False
    Ho5, Wo5 = _out_hw(Ho4, Wo4, k5, s5, p5, d5)
    return Ho5 == 1 and Wo5 == 1


def fused_tail(x3, arrs4, spec4, arrs5, spec5):
    """conv4 -> conv5 in one pallas_call; returns (B, C5out) or None."""
    _, k4, s4, p4, d4, lrelu4, bn4 = spec4
    _, k5, s5, p5, d5, lrelu5, bn5 = spec5
    B, H3, W3, C3 = x3.shape
    sc4, eb4 = _fold_bn(arrs4, bn4)
    sc5, eb5 = _fold_bn(arrs5, bn5)
    C4 = arrs4["w"].shape[0]
    C5 = arrs5["w"].shape[0]

    patches, Ho4, Wo4 = _im2col_5d(x3.astype(jnp.bfloat16), k4, s4, p4, d4)
    # Spatial-major rows with the batch group padded to a multiple of 8 so the
    # per-tap row slices inside the kernel are sublane-aligned.
    Bp = _round_up(B, 8)
    pt = jnp.transpose(patches, (1, 2, 0, 3, 4))        # (Ho4,Wo4,B,kk,C3)
    if Bp != B:
        pt = jnp.pad(pt, ((0, 0), (0, 0), (0, Bp - B), (0, 0), (0, 0)))
    K4 = k4 * k4 * C3
    A4 = pt.reshape(Ho4 * Wo4 * Bp, K4)

    W4 = _fold_weight(arrs4["w"], sc4)                  # (K4, C4) bf16
    b4 = eb4.reshape(1, C4).astype(jnp.float32)
    b5 = eb5.reshape(1, C5).astype(jnp.float32)

    # conv5 kernel taps that land on the (zero-padded) conv4 output.
    taps = []
    for kh in range(k5):
        h = kh * d5 - p5
        if not 0 <= h < Ho4:
            continue
        for kw in range(k5):
            w_ = kw * d5 - p5
            if not 0 <= w_ < Wo4:
                continue
            taps.append((h * Wo4 + w_, kh, kw))
    spatial_ids = tuple(s for s, _, _ in taps)
    w5_blocks = jnp.stack(
        [jnp.transpose(arrs5["w"][:, :, kh, kw], (1, 0)) * sc5[None, :]
         for _, kh, kw in taps], axis=0).astype(jnp.bfloat16)   # (taps, C4, C5)

    est = 2 * (A4.size + W4.size + w5_blocks.size) * 2 + 2 * Bp * C5 * 4
    if est > _VMEM_BUDGET:
        return None   # operands too big to hold at once -> per-layer fallback

    out = pl.pallas_call(
        functools.partial(_tail_kernel, spatial_ids=spatial_ids, group=Bp,
                          lrelu4=lrelu4, lrelu5=lrelu5),
        out_shape=jax.ShapeDtypeStruct((Bp, C5), jnp.float32),
        grid_spec=pltpu.PrefetchScalarGridSpec(
            num_scalar_prefetch=0,
            grid=(1,),
            in_specs=[
                pl.BlockSpec(A4.shape, lambda i: (0, 0)),
                pl.BlockSpec(W4.shape, lambda i: (0, 0)),
                pl.BlockSpec((1, C4), lambda i: (0, 0)),
                pl.BlockSpec(w5_blocks.shape, lambda i: (0, 0, 0)),
                pl.BlockSpec((1, C5), lambda i: (0, 0)),
            ],
            out_specs=pl.BlockSpec((Bp, C5), lambda i: (0, 0)),
        ),
        compiler_params=pltpu.CompilerParams(
            dimension_semantics=("arbitrary",),
            vmem_limit_bytes=_VMEM_LIMIT),
    )(A4, W4, b4, w5_blocks, b5)
    return out[:B]


# ---------------------------------------------------------------------------
# Parameters (deterministic synthetic init) and forward pass
# ---------------------------------------------------------------------------
def init_params(key, img_dim=1, conv_dim=16):
    chans = {
        "conv1": (img_dim, conv_dim),
        "conv2": (conv_dim, conv_dim * 2),
        "conv3": (conv_dim * 2, conv_dim * 4),
        "conv4": (conv_dim * 4, conv_dim * 8),
        "conv5": (conv_dim * 8, conv_dim * 8),
    }
    params = {}
    for name, k, s, p, d, lrelu, bn in _LAYER_SPECS:
        cin, cout = chans[name]
        key, k1, k2, k3, k4, k5, k6 = jax.random.split(key, 7)
        layer = {
            "w": 0.05 * jax.random.normal(k1, (cout, cin, k, k), jnp.float32),
            "b": 0.05 * jax.random.normal(k2, (cout,), jnp.float32),
        }
        if bn:
            layer["gamma"] = 1.0 + 0.1 * jax.random.normal(k3, (cout,), jnp.float32)
            layer["beta"] = 0.05 * jax.random.normal(k4, (cout,), jnp.float32)
            layer["mean"] = 0.01 * jax.random.normal(k5, (cout,), jnp.float32)
            layer["var"] = 1.0 + 0.1 * jax.random.uniform(k6, (cout,), jnp.float32)
        params[name] = layer
    return params


def encoder_conv_base_forward(images, params):
    """Pallas implementation. `images` is NCHW (B,C,H,W) or (B,H,W); returns e5 NCHW."""
    if images.ndim == 3:
        images = images[:, None, :, :]
    x = jnp.transpose(images, (0, 2, 3, 1)).astype(jnp.float32)   # NHWC

    specs = {s[0]: s for s in _LAYER_SPECS}
    for name in ("conv1", "conv2", "conv3"):
        x = conv_block(x, params[name], specs[name])

    e5 = None
    if _tail_fusable(x.shape, specs["conv4"], specs["conv5"]):
        e5 = fused_tail(x, params["conv4"], specs["conv4"],
                        params["conv5"], specs["conv5"])
    if e5 is not None:
        out_nhwc = e5.reshape(e5.shape[0], 1, 1, e5.shape[1])
    else:  # generic fallback (e.g. inputs whose conv5 output is not 1x1)
        x = conv_block(x, params["conv4"], specs["conv4"])
        x = conv_block(x, params["conv5"], specs["conv5"])
        out_nhwc = x
    return jnp.transpose(out_nhwc, (0, 3, 1, 2))                  # NCHW


# ---------------------------------------------------------------------------
# Pure-JAX reference with matched mixed precision (for correctness check)
# ---------------------------------------------------------------------------
def ref_forward(images, params):
    if images.ndim == 3:
        images = images[:, None, :, :]
    x = jnp.transpose(images, (0, 2, 3, 1)).astype(jnp.float32)
    for name, k, s, p, d, lrelu, bn in _LAYER_SPECS:
        arrs = params[name]
        sc, eb = _fold_bn(arrs, bn)
        a = x.astype(jnp.bfloat16).astype(jnp.float32)
        if lrelu:
            a = _leaky(a)
        w_hwio = (jnp.transpose(arrs["w"], (2, 3, 1, 0)) * sc).astype(jnp.bfloat16)
        y = jax.lax.conv_general_dilated(
            a.astype(jnp.bfloat16), w_hwio,
            window_strides=(s, s), padding=[(p, p), (p, p)],
            rhs_dilation=(d, d),
            dimension_numbers=("NHWC", "HWIO", "NHWC"),
            preferred_element_type=jnp.float32)
        x = y + eb
    return jnp.transpose(x, (0, 3, 1, 2))


if __name__ == "__main__":
    key = jax.random.PRNGKey(0)
    k_params, k_img = jax.random.split(key)

    img_dim, conv_dim = 1, 16            # small version of the default (1, 128)
    # Spatial 128 keeps every layer's output >= 1 pixel (128->62->15->4->2->1).
    images = jax.random.normal(k_img, (2, img_dim, 128, 128), jnp.float32)
    params = init_params(k_params, img_dim=img_dim, conv_dim=conv_dim)

    fwd = jax.jit(encoder_conv_base_forward)
    e5 = jax.block_until_ready(fwd(images, params))

    e5_ref = jax.block_until_ready(jax.jit(ref_forward)(images, params))
    assert e5.shape == (2, conv_dim * 8, 1, 1), e5.shape
    assert jnp.allclose(e5, e5_ref, atol=1e-2, rtol=1e-2), (
        float(jnp.max(jnp.abs(e5 - e5_ref))))
    print("KERNEL_OK")
</pallas_src>

<mosaic_0001>
module attributes {stable_mosaic.version = 11 : i64} {
  func.func @_conv_matmul_kernel(%arg0: i32, %arg1: i32, %arg2: i32, %arg3: memref<1936x32xbf16, #tpu.memory_space<vmem>>, %arg4: memref<32x16xbf16, #tpu.memory_space<vmem>>, %arg5: memref<1x16xf32, #tpu.memory_space<vmem>>, %arg6: memref<1936x16xf32, #tpu.memory_space<vmem>>, %arg7: memref<1936x16xf32, #tpu.memory_space<vmem>>) attributes {dimension_semantics = [#tpu.dimension_semantics<parallel>, #tpu.dimension_semantics<parallel>, #tpu.dimension_semantics<arbitrary>], iteration_bounds = array<i64: 4, 1, 1>, scalar_prefetch = 0 : i64, scratch_operands = 1 : i64, tpu.core_type = #tpu.core_type<tc>, window_params = [{transform_indices = @transform_0, window_bounds = array<i64: 1936, 32>}, {transform_indices = @transform_1, window_bounds = array<i64: 32, 16>}, {transform_indices = @transform_2, window_bounds = array<i64: 1, 16>}, {transform_indices = @transform_3, window_bounds = array<i64: 1936, 16>}]} {
    %c0_i32 = arith.constant 0 : i32
    %0 = arith.cmpi eq, %arg2, %c0_i32 : i32
    %1 = arith.extui %0 : i1 to i32
    %c0_i32_0 = arith.constant 0 : i32
    %2 = arith.cmpi ne, %1, %c0_i32_0 : i32
    scf.if %2 {
      %cst_10 = arith.constant 0.000000e+00 : f32
      %12 = vector.broadcast %cst_10 : f32 to vector<1936x16xf32>
      %c0_11 = arith.constant 0 : index
      %c0_12 = arith.constant 0 : index
      %13 = vector.load %arg7[%c0_11, %c0_12] : memref<1936x16xf32, #tpu.memory_space<vmem>>, vector<1936x16xf32>
      tpu.vector_store %arg7[%c0_11, %c0_12], %12 {strides = array<i32>} : memref<1936x16xf32, #tpu.memory_space<vmem>>, vector<1936x16xf32>,
    } else {
    }
    %c0 = arith.constant 0 : index
    %c0_1 = arith.constant 0 : index
    %3 = vector.load %arg3[%c0, %c0_1] : memref<1936x32xbf16, #tpu.memory_space<vmem>>, vector<1936x32xbf16>
    %c0_2 = arith.constant 0 : index
    %c0_3 = arith.constant 0 : index
    %4 = vector.load %arg7[%c0_2, %c0_3] : memref<1936x16xf32, #tpu.memory_space<vmem>>, vector<1936x16xf32>
    %c0_4 = arith.constant 0 : index
    %c0_5 = arith.constant 0 : index
    %5 = vector.load %arg4[%c0_4, %c0_5] : memref<32x16xbf16, #tpu.memory_space<vmem>>, vector<32x16xbf16>
    %cst = arith.constant dense<0.000000e+00> : vector<1936x16xf32>
    %6 = tpu.matmul %3, %5, %cst {dimension_numbers = #tpu.dot_dimension_numbers<[1], [0], [0], [1], [0, 0, 1, 1], [], []>} : vector<1936x32xbf16>, vector<32x16xbf16>, vector<1936x16xf32> -> vector<1936x16xf32>
    %7 = arith.addf %4, %6 : vector<1936x16xf32>
    %c0_6 = arith.constant 0 : index
    %c0_7 = arith.constant 0 : index
    %8 = vector.load %arg7[%c0_6, %c0_7] : memref<1936x16xf32, #tpu.memory_space<vmem>>, vector<1936x16xf32>
    tpu.vector_store %arg7[%c0_6, %c0_7], %7 {strides = array<i32>} : memref<1936x16xf32, #tpu.memory_space<vmem>>, vector<1936x16xf32>,
    %c0_i32_8 = arith.constant 0 : i32
    %9 = arith.cmpi eq, %arg2, %c0_i32_8 : i32
    %10 = arith.extui %9 : i1 to i32
    %c0_i32_9 = arith.constant 0 : i32
    %11 = arith.cmpi ne, %10, %c0_i32_9 : i32
    scf.if %11 {
      %c0_10 = arith.constant 0 : index
      %c0_11 = arith.constant 0 : index
      %12 = vector.load %arg7[%c0_10, %c0_11] : memref<1936x16xf32, #tpu.memory_space<vmem>>, vector<1936x16xf32>
      %c0_12 = arith.constant 0 : index
      %c0_13 = arith.constant 0 : index
      %13 = vector.load %arg5[%c0_12, %c0_13] : memref<1x16xf32, #tpu.memory_space<vmem>>, vector<1x16xf32>
      %14 = vector.broadcast %13 : vector<1x16xf32> to vector<1936x16xf32>
      %15 = arith.addf %12, %14 : vector<1936x16xf32>
      %c0_14 = arith.constant 0 : index
      %c0_15 = arith.constant 0 : index
      %16 = vector.load %arg6[%c0_14, %c0_15] : memref<1936x16xf32, #tpu.memory_space<vmem>>, vector<1936x16xf32>
      tpu.vector_store %arg6[%c0_14, %c0_15], %15 {strides = array<i32>} : memref<1936x16xf32, #tpu.memory_space<vmem>>, vector<1936x16xf32>,
    } else {
    }
    return
  }
  func.func @transform_0(%arg0: i32, %arg1: i32, %arg2: i32) -> (i32, i32) {
    %c0_i32 = arith.constant 0 : i32
    return %arg0, %arg2 : i32, i32
  }
  func.func @transform_1(%arg0: i32, %arg1: i32, %arg2: i32) -> (i32, i32) {
    %c0_i32 = arith.constant 0 : i32
    return %arg2, %arg1 : i32, i32
  }
  func.func @transform_2(%arg0: i32, %arg1: i32, %arg2: i32) -> (i32, i32) {
    %c0_i32 = arith.constant 0 : i32
    %c0_i32_0 = arith.constant 0 : i32
    return %c0_i32, %arg1 : i32, i32
  }
  func.func @transform_3(%arg0: i32, %arg1: i32, %arg2: i32) -> (i32, i32) {
    %c0_i32 = arith.constant 0 : i32
    return %arg0, %arg1 : i32, i32
  }
}

module attributes {stable_mosaic.version = 11 : i64} {
  func.func @_conv_matmul_kernel(%arg0: i32, %arg1: i32, %arg2: i32, %arg3: memref<456x400xbf16, #tpu.memory_space<vmem>>, %arg4: memref<400x32xbf16, #tpu.memory_space<vmem>>, %arg5: memref<1x32xf32, #tpu.memory_space<vmem>>, %arg6: memref<456x32xf32, #tpu.memory_space<vmem>>, %arg7: memref<456x32xf32, #tpu.memory_space<vmem>>) attributes {dimension_semantics = [#tpu.dimension_semantics<parallel>, #tpu.dimension_semantics<parallel>, #tpu.dimension_semantics<arbitrary>], iteration_bounds = array<i64: 1, 1, 1>, scalar_prefetch = 0 : i64, scratch_operands = 1 : i64, tpu.core_type = #tpu.core_type<tc>, window_params = [{transform_indices = @transform_0, window_bounds = array<i64: 456, 400>}, {transform_indices = @transform_1, window_bounds = array<i64: 400, 32>}, {transform_indices = @transform_2, window_bounds = array<i64: 1, 32>}, {transform_indices = @transform_3, window_bounds = array<i64: 456, 32>}]} {
    %c0_i32 = arith.constant 0 : i32
    %0 = arith.cmpi eq, %arg2, %c0_i32 : i32
    %1 = arith.extui %0 : i1 to i32
    %c0_i32_0 = arith.constant 0 : i32
    %2 = arith.cmpi ne, %1, %c0_i32_0 : i32
    scf.if %2 {
      %cst_12 = arith.constant 0.000000e+00 : f32
      %19 = vector.broadcast %cst_12 : f32 to vector<456x32xf32>
      %c0_13 = arith.constant 0 : index
      %c0_14 = arith.constant 0 : index
      %20 = vector.load %arg7[%c0_13, %c0_14] : memref<456x32xf32, #tpu.memory_space<vmem>>, vector<456x32xf32>
      tpu.vector_store %arg7[%c0_13, %c0_14], %19 {strides = array<i32>} : memref<456x32xf32, #tpu.memory_space<vmem>>, vector<456x32xf32>,
    } else {
    }
    %c0 = arith.constant 0 : index
    %c0_1 = arith.constant 0 : index
    %3 = vector.load %arg3[%c0, %c0_1] : memref<456x400xbf16, #tpu.memory_space<vmem>>, vector<456x400xbf16>
    %4 = arith.extf %3 : vector<456x400xbf16> to vector<456x400xf32>
    %cst = arith.constant 0.000000e+00 : f32
    %5 = vector.broadcast %cst : f32 to vector<456x400xf32>
    %6 = arith.cmpf oge, %4, %5 : vector<456x400xf32>
    %cst_2 = arith.constant 2.000000e-01 : f32
    %7 = vector.broadcast %cst_2 : f32 to vector<456x400xf32>
    %8 = arith.mulf %7, %4 : vector<456x400xf32>
    %9 = arith.select %6, %4, %8 : vector<456x400xi1>, vector<456x400xf32>
    %10 = arith.truncf %9 : vector<456x400xf32> to vector<456x400xbf16>
    %c0_3 = arith.constant 0 : index
    %c0_4 = arith.constant 0 : index
    %11 = vector.load %arg7[%c0_3, %c0_4] : memref<456x32xf32, #tpu.memory_space<vmem>>, vector<456x32xf32>
    %c0_5 = arith.constant 0 : index
    %c0_6 = arith.constant 0 : index
    %12 = vector.load %arg4[%c0_5, %c0_6] : memref<400x32xbf16, #tpu.memory_space<vmem>>, vector<400x32xbf16>
    %cst_7 = arith.constant dense<0.000000e+00> : vector<456x32xf32>
    %13 = tpu.matmul %10, %12, %cst_7 {dimension_numbers = #tpu.dot_dimension_numbers<[1], [0], [0], [1], [0, 0, 1, 1], [], []>} : vector<456x400xbf16>, vector<400x32xbf16>, vector<456x32xf32> -> vector<456x32xf32>
    %14 = arith.addf %11, %13 : vector<456x32xf32>
    %c0_8 = arith.constant 0 : index
    %c0_9 = arith.constant 0 : index
    %15 = vector.load %arg7[%c0_8, %c0_9] : memref<456x32xf32, #tpu.memory_space<vmem>>, vector<456x32xf32>
    tpu.vector_store %arg7[%c0_8, %c0_9], %14 {strides = array<i32>} : memref<456x32xf32, #tpu.memory_space<vmem>>, vector<456x32xf32>,
    %c0_i32_10 = arith.constant 0 : i32
    %16 = arith.cmpi eq, %arg2, %c0_i32_10 : i32
    %17 = arith.extui %16 : i1 to i32
    %c0_i32_11 = arith.constant 0 : i32
    %18 = arith.cmpi ne, %17, %c0_i32_11 : i32
    scf.if %18 {
      %c0_12 = arith.constant 0 : index
      %c0_13 = arith.constant 0 : index
      %19 = vector.load %arg7[%c0_12, %c0_13] : memref<456x32xf32, #tpu.memory_space<vmem>>, vector<456x32xf32>
      %c0_14 = arith.constant 0 : index
      %c0_15 = arith.constant 0 : index
      %20 = vector.load %arg5[%c0_14, %c0_15] : memref<1x32xf32, #tpu.memory_space<vmem>>, vector<1x32xf32>
      %21 = vector.broadcast %20 : vector<1x32xf32> to vector<456x32xf32>
      %22 = arith.addf %19, %21 : vector<456x32xf32>
      %c0_16 = arith.constant 0 : index
      %c0_17 = arith.constant 0 : index
      %23 = vector.load %arg6[%c0_16, %c0_17] : memref<456x32xf32, #tpu.memory_space<vmem>>, vector<456x32xf32>
      tpu.vector_store %arg6[%c0_16, %c0_17], %22 {strides = array<i32>} : memref<456x32xf32, #tpu.memory_space<vmem>>, vector<456x32xf32>,
    } else {
    }
    return
  }
  func.func @transform_0(%arg0: i32, %arg1: i32, %arg2: i32) -> (i32, i32) {
    %c0_i32 = arith.constant 0 : i32
    return %arg0, %arg2 : i32, i32
  }
  func.func @transform_1(%arg0: i32, %arg1: i32, %arg2: i32) -> (i32, i32) {
    %c0_i32 = arith.constant 0 : i32
    return %arg2, %arg1 : i32, i32
  }
  func.func @transform_2(%arg0: i32, %arg1: i32, %arg2: i32) -> (i32, i32) {
    %c0_i32 = arith.constant 0 : i32
    %c0_i32_0 = arith.constant 0 : i32
    return %c0_i32, %arg1 : i32, i32
  }
  func.func @transform_3(%arg0: i32, %arg1: i32, %arg2: i32) -> (i32, i32) {
    %c0_i32 = arith.constant 0 : i32
    return %arg0, %arg1 : i32, i32
  }
}

module attributes {stable_mosaic.version = 11 : i64} {
  func.func @_conv_matmul_kernel(%arg0: i32, %arg1: i32, %arg2: i32, %arg3: memref<32x512xbf16, #tpu.memory_space<vmem>>, %arg4: memref<512x64xbf16, #tpu.memory_space<vmem>>, %arg5: memref<1x64xf32, #tpu.memory_space<vmem>>, %arg6: memref<32x64xf32, #tpu.memory_space<vmem>>, %arg7: memref<32x64xf32, #tpu.memory_space<vmem>>) attributes {dimension_semantics = [#tpu.dimension_semantics<parallel>, #tpu.dimension_semantics<parallel>, #tpu.dimension_semantics<arbitrary>], iteration_bounds = array<i64: 1, 1, 1>, scalar_prefetch = 0 : i64, scratch_operands = 1 : i64, tpu.core_type = #tpu.core_type<tc>, window_params = [{transform_indices = @transform_0, window_bounds = array<i64: 32, 512>}, {transform_indices = @transform_1, window_bounds = array<i64: 512, 64>}, {transform_indices = @transform_2, window_bounds = array<i64: 1, 64>}, {transform_indices = @transform_3, window_bounds = array<i64: 32, 64>}]} {
    %c0_i32 = arith.constant 0 : i32
    %0 = arith.cmpi eq, %arg2, %c0_i32 : i32
    %1 = arith.extui %0 : i1 to i32
    %c0_i32_0 = arith.constant 0 : i32
    %2 = arith.cmpi ne, %1, %c0_i32_0 : i32
    scf.if %2 {
      %cst_12 = arith.constant 0.000000e+00 : f32
      %19 = vector.broadcast %cst_12 : f32 to vector<32x64xf32>
      %c0_13 = arith.constant 0 : index
      %c0_14 = arith.constant 0 : index
      %20 = vector.load %arg7[%c0_13, %c0_14] : memref<32x64xf32, #tpu.memory_space<vmem>>, vector<32x64xf32>
      tpu.vector_store %arg7[%c0_13, %c0_14], %19 {strides = array<i32>} : memref<32x64xf32, #tpu.memory_space<vmem>>, vector<32x64xf32>,
    } else {
    }
    %c0 = arith.constant 0 : index
    %c0_1 = arith.constant 0 : index
    %3 = vector.load %arg3[%c0, %c0_1] : memref<32x512xbf16, #tpu.memory_space<vmem>>, vector<32x512xbf16>
    %4 = arith.extf %3 : vector<32x512xbf16> to vector<32x512xf32>
    %cst = arith.constant 0.000000e+00 : f32
    %5 = vector.broadcast %cst : f32 to vector<32x512xf32>
    %6 = arith.cmpf oge, %4, %5 : vector<32x512xf32>
    %cst_2 = arith.constant 2.000000e-01 : f32
    %7 = vector.broadcast %cst_2 : f32 to vector<32x512xf32>
    %8 = arith.mulf %7, %4 : vector<32x512xf32>
    %9 = arith.select %6, %4, %8 : vector<32x512xi1>, vector<32x512xf32>
    %10 = arith.truncf %9 : vector<32x512xf32> to vector<32x512xbf16>
    %c0_3 = arith.constant 0 : index
    %c0_4 = arith.constant 0 : index
    %11 = vector.load %arg7[%c0_3, %c0_4] : memref<32x64xf32, #tpu.memory_space<vmem>>, vector<32x64xf32>
    %c0_5 = arith.constant 0 : index
    %c0_6 = arith.constant 0 : index
    %12 = vector.load %arg4[%c0_5, %c0_6] : memref<512x64xbf16, #tpu.memory_space<vmem>>, vector<512x64xbf16>
    %cst_7 = arith.constant dense<0.000000e+00> : vector<32x64xf32>
    %13 = tpu.matmul %10, %12, %cst_7 {dimension_numbers = #tpu.dot_dimension_numbers<[1], [0], [0], [1], [0, 0, 1, 1], [], []>} : vector<32x512xbf16>, vector<512x64xbf16>, vector<32x64xf32> -> vector<32x64xf32>
    %14 = arith.addf %11, %13 : vector<32x64xf32>
    %c0_8 = arith.constant 0 : index
    %c0_9 = arith.constant 0 : index
    %15 = vector.load %arg7[%c0_8, %c0_9] : memref<32x64xf32, #tpu.memory_space<vmem>>, vector<32x64xf32>
    tpu.vector_store %arg7[%c0_8, %c0_9], %14 {strides = array<i32>} : memref<32x64xf32, #tpu.memory_space<vmem>>, vector<32x64xf32>,
    %c0_i32_10 = arith.constant 0 : i32
    %16 = arith.cmpi eq, %arg2, %c0_i32_10 : i32
    %17 = arith.extui %16 : i1 to i32
    %c0_i32_11 = arith.constant 0 : i32
    %18 = arith.cmpi ne, %17, %c0_i32_11 : i32
    scf.if %18 {
      %c0_12 = arith.constant 0 : index
      %c0_13 = arith.constant 0 : index
      %19 = vector.load %arg7[%c0_12, %c0_13] : memref<32x64xf32, #tpu.memory_space<vmem>>, vector<32x64xf32>
      %c0_14 = arith.constant 0 : index
      %c0_15 = arith.constant 0 : index
      %20 = vector.load %arg5[%c0_14, %c0_15] : memref<1x64xf32, #tpu.memory_space<vmem>>, vector<1x64xf32>
      %21 = vector.broadcast %20 : vector<1x64xf32> to vector<32x64xf32>
      %22 = arith.addf %19, %21 : vector<32x64xf32>
      %c0_16 = arith.constant 0 : index
      %c0_17 = arith.constant 0 : index
      %23 = vector.load %arg6[%c0_16, %c0_17] : memref<32x64xf32, #tpu.memory_space<vmem>>, vector<32x64xf32>
      tpu.vector_store %arg6[%c0_16, %c0_17], %22 {strides = array<i32>} : memref<32x64xf32, #tpu.memory_space<vmem>>, vector<32x64xf32>,
    } else {
    }
    return
  }
  func.func @transform_0(%arg0: i32, %arg1: i32, %arg2: i32) -> (i32, i32) {
    %c0_i32 = arith.constant 0 : i32
    return %arg0, %arg2 : i32, i32
  }
  func.func @transform_1(%arg0: i32, %arg1: i32, %arg2: i32) -> (i32, i32) {
    %c0_i32 = arith.constant 0 : i32
    return %arg2, %arg1 : i32, i32
  }
  func.func @transform_2(%arg0: i32, %arg1: i32, %arg2: i32) -> (i32, i32) {
    %c0_i32 = arith.constant 0 : i32
    %c0_i32_0 = arith.constant 0 : i32
    return %c0_i32, %arg1 : i32, i32
  }
  func.func @transform_3(%arg0: i32, %arg1: i32, %arg2: i32) -> (i32, i32) {
    %c0_i32 = arith.constant 0 : i32
    return %arg0, %arg1 : i32, i32
  }
}

module attributes {stable_mosaic.version = 11 : i64} {
  func.func @_tail_kernel(%arg0: i32, %arg1: memref<32x1024xbf16, #tpu.memory_space<vmem>>, %arg2: memref<1024x128xbf16, #tpu.memory_space<vmem>>, %arg3: memref<1x128xf32, #tpu.memory_space<vmem>>, %arg4: memref<4x128x128xbf16, #tpu.memory_space<vmem>>, %arg5: memref<1x128xf32, #tpu.memory_space<vmem>>, %arg6: memref<8x128xf32, #tpu.memory_space<vmem>>) attributes {dimension_semantics = [#tpu.dimension_semantics<arbitrary>], iteration_bounds = array<i64: 1>, scalar_prefetch = 0 : i64, scratch_operands = 0 : i64, tpu.core_type = #tpu.core_type<tc>, window_params = [{pipeline_mode = #tpu.pipeline_mode<synchronous>, transform_indices = @transform_0, window_bounds = array<i64: 32, 1024>}, {pipeline_mode = #tpu.pipeline_mode<synchronous>, transform_indices = @transform_1, window_bounds = array<i64: 1024, 128>}, {pipeline_mode = #tpu.pipeline_mode<synchronous>, transform_indices = @transform_2, window_bounds = array<i64: 1, 128>}, {pipeline_mode = #tpu.pipeline_mode<synchronous>, transform_indices = @transform_3, window_bounds = array<i64: 4, 128, 128>}, {pipeline_mode = #tpu.pipeline_mode<synchronous>, transform_indices = @transform_4, window_bounds = array<i64: 1, 128>}, {pipeline_mode = #tpu.pipeline_mode<synchronous>, transform_indices = @transform_5, window_bounds = array<i64: 8, 128>}]} {
    %c0 = arith.constant 0 : index
    %c0_0 = arith.constant 0 : index
    %0 = vector.load %arg1[%c0, %c0_0] : memref<32x1024xbf16, #tpu.memory_space<vmem>>, vector<32x1024xbf16>
    %1 = arith.extf %0 : vector<32x1024xbf16> to vector<32x1024xf32>
    %cst = arith.constant 0.000000e+00 : f32
    %2 = vector.broadcast %cst : f32 to vector<32x1024xf32>
    %3 = arith.cmpf oge, %1, %2 : vector<32x1024xf32>
    %cst_1 = arith.constant 2.000000e-01 : f32
    %4 = vector.broadcast %cst_1 : f32 to vector<32x1024xf32>
    %5 = arith.mulf %4, %1 : vector<32x1024xf32>
    %6 = arith.select %3, %1, %5 : vector<32x1024xi1>, vector<32x1024xf32>
    %7 = arith.truncf %6 : vector<32x1024xf32> to vector<32x1024xbf16>
    %c0_2 = arith.constant 0 : index
    %c0_3 = arith.constant 0 : index
    %8 = vector.load %arg2[%c0_2, %c0_3] : memref<1024x128xbf16, #tpu.memory_space<vmem>>, vector<1024x128xbf16>
    %cst_4 = arith.constant dense<0.000000e+00> : vector<32x128xf32>
    %9 = tpu.matmul %7, %8, %cst_4 {dimension_numbers = #tpu.dot_dimension_numbers<[1], [0], [0], [1], [0, 0, 1, 1], [], []>} : vector<32x1024xbf16>, vector<1024x128xbf16>, vector<32x128xf32> -> vector<32x128xf32>
    %c0_5 = arith.constant 0 : index
    %c0_6 = arith.constant 0 : index
    %10 = vector.load %arg3[%c0_5, %c0_6] : memref<1x128xf32, #tpu.memory_space<vmem>>, vector<1x128xf32>
    %11 = vector.broadcast %10 : vector<1x128xf32> to vector<32x128xf32>
    %12 = arith.addf %9, %11 : vector<32x128xf32>
    %13 = arith.truncf %12 : vector<32x128xf32> to vector<32x128xbf16>
    %14 = arith.extf %13 : vector<32x128xbf16> to vector<32x128xf32>
    %cst_7 = arith.constant 0.000000e+00 : f32
    %15 = vector.broadcast %cst_7 : f32 to vector<32x128xf32>
    %16 = arith.cmpf oge, %14, %15 : vector<32x128xf32>
    %cst_8 = arith.constant 2.000000e-01 : f32
    %17 = vector.broadcast %cst_8 : f32 to vector<32x128xf32>
    %18 = arith.mulf %17, %14 : vector<32x128xf32>
    %19 = arith.select %16, %14, %18 : vector<32x128xi1>, vector<32x128xf32>
    %cst_9 = arith.constant 0.000000e+00 : f32
    %20 = vector.broadcast %cst_9 : f32 to vector<8x128xf32>
    %21 = vector.extract_strided_slice %19 {offsets = [0, 0], sizes = [8, 128], strides = [1, 1]} : vector<32x128xf32> to vector<8x128xf32>
    %22 = arith.truncf %21 : vector<8x128xf32> to vector<8x128xbf16>
    %c0_10 = arith.constant 0 : index
    %c0_11 = arith.constant 0 : index
    %c0_12 = arith.constant 0 : index
    %23 = vector.load %arg4[%c0_10, %c0_11, %c0_12] : memref<4x128x128xbf16, #tpu.memory_space<vmem>>, vector<1x128x128xbf16>
    %24 = vector.shape_cast %23 : vector<1x128x128xbf16> to vector<128x128xbf16>
    %cst_13 = arith.constant dense<0.000000e+00> : vector<8x128xf32>
    %25 = tpu.matmul %22, %24, %cst_13 {dimension_numbers = #tpu.dot_dimension_numbers<[1], [0], [0], [1], [0, 0, 1, 1], [], []>} : vector<8x128xbf16>, vector<128x128xbf16>, vector<8x128xf32> -> vector<8x128xf32>
    %26 = arith.addf %20, %25 : vector<8x128xf32>
    %27 = vector.extract_strided_slice %19 {offsets = [8, 0], sizes = [8, 128], strides = [1, 1]} : vector<32x128xf32> to vector<8x128xf32>
    %28 = arith.truncf %27 : vector<8x128xf32> to vector<8x128xbf16>
    %c1 = arith.constant 1 : index
    %c0_14 = arith.constant 0 : index
    %c0_15 = arith.constant 0 : index
    %29 = vector.load %arg4[%c1, %c0_14, %c0_15] : memref<4x128x128xbf16, #tpu.memory_space<vmem>>, vector<1x128x128xbf16>
    %30 = vector.shape_cast %29 : vector<1x128x128xbf16> to vector<128x128xbf16>
    %cst_16 = arith.constant dense<0.000000e+00> : vector<8x128xf32>
    %31 = tpu.matmul %28, %30, %cst_16 {dimension_numbers = #tpu.dot_dimension_numbers<[1], [0], [0], [1], [0, 0, 1, 1], [], []>} : vector<8x128xbf16>, vector<128x128xbf16>, vector<8x128xf32> -> vector<8x128xf32>
    %32 = arith.addf %26, %31 : vector<8x128xf32>
    %33 = vector.extract_strided_slice %19 {offsets = [16, 0], sizes = [8, 128], strides = [1, 1]} : vector<32x128xf32> to vector<8x128xf32>
    %34 = arith.truncf %33 : vector<8x128xf32> to vector<8x128xbf16>
    %c2 = arith.constant 2 : index
    %c0_17 = arith.constant 0 : index
    %c0_18 = arith.constant 0 : index
    %35 = vector.load %arg4[%c2, %c0_17, %c0_18] : memref<4x128x128xbf16, #tpu.memory_space<vmem>>, vector<1x128x128xbf16>
    %36 = vector.shape_cast %35 : vector<1x128x128xbf16> to vector<128x128xbf16>
    %cst_19 = arith.constant dense<0.000000e+00> : vector<8x128xf32>
    %37 = tpu.matmul %34, %36, %cst_19 {dimension_numbers = #tpu.dot_dimension_numbers<[1], [0], [0], [1], [0, 0, 1, 1], [], []>} : vector<8x128xbf16>, vector<128x128xbf16>, vector<8x128xf32> -> vector<8x128xf32>
    %38 = arith.addf %32, %37 : vector<8x128xf32>
    %39 = vector.extract_strided_slice %19 {offsets = [24, 0], sizes = [8, 128], strides = [1, 1]} : vector<32x128xf32> to vector<8x128xf32>
    %40 = arith.truncf %39 : vector<8x128xf32> to vector<8x128xbf16>
    %c3 = arith.constant 3 : index
    %c0_20 = arith.constant 0 : index
    %c0_21 = arith.constant 0 : index
    %41 = vector.load %arg4[%c3, %c0_20, %c0_21] : memref<4x128x128xbf16, #tpu.memory_space<vmem>>, vector<1x128x128xbf16>
    %42 = vector.shape_cast %41 : vector<1x128x128xbf16> to vector<128x128xbf16>
    %cst_22 = arith.constant dense<0.000000e+00> : vector<8x128xf32>
    %43 = tpu.matmul %40, %42, %cst_22 {dimension_numbers = #tpu.dot_dimension_numbers<[1], [0], [0], [1], [0, 0, 1, 1], [], []>} : vector<8x128xbf16>, vector<128x128xbf16>, vector<8x128xf32> -> vector<8x128xf32>
    %44 = arith.addf %38, %43 : vector<8x128xf32>
    %c0_23 = arith.constant 0 : index
    %c0_24 = arith.constant 0 : index
    %45 = vector.load %arg5[%c0_23, %c0_24] : memref<1x128xf32, #tpu.memory_space<vmem>>, vector<1x128xf32>
    %46 = vector.broadcast %45 : vector<1x128xf32> to vector<8x128xf32>
    %47 = arith.addf %44, %46 : vector<8x128xf32>
    %c0_25 = arith.constant 0 : index
    %c0_26 = arith.constant 0 : index
    %48 = vector.load %arg6[%c0_25, %c0_26] : memref<8x128xf32, #tpu.memory_space<vmem>>, vector<8x128xf32>
    tpu.vector_store %arg6[%c0_25, %c0_26], %47 {strides = array<i32>} : memref<8x128xf32, #tpu.memory_space<vmem>>, vector<8x128xf32>,
    return
  }
  func.func @transform_0(%arg0: i32) -> (i32, i32) {
    %c0_i32 = arith.constant 0 : i32
    %c0_i32_0 = arith.constant 0 : i32
    %c0_i32_1 = arith.constant 0 : i32
    return %c0_i32, %c0_i32_0 : i32, i32
  }
  func.func @transform_1(%arg0: i32) -> (i32, i32) {
    %c0_i32 = arith.constant 0 : i32
    %c0_i32_0 = arith.constant 0 : i32
    %c0_i32_1 = arith.constant 0 : i32
    return %c0_i32, %c0_i32_0 : i32, i32
  }
  func.func @transform_2(%arg0: i32) -> (i32, i32) {
    %c0_i32 = arith.constant 0 : i32
    %c0_i32_0 = arith.constant 0 : i32
    %c0_i32_1 = arith.constant 0 : i32
    return %c0_i32, %c0_i32_0 : i32, i32
  }
  func.func @transform_3(%arg0: i32) -> (i32, i32, i32) {
    %c0_i32 = arith.constant 0 : i32
    %c0_i32_0 = arith.constant 0 : i32
    %c0_i32_1 = arith.constant 0 : i32
    %c0_i32_2 = arith.constant 0 : i32
    return %c0_i32, %c0_i32_0, %c0_i32_1 : i32, i32, i32
  }
  func.func @transform_4(%arg0: i32) -> (i32, i32) {
    %c0_i32 = arith.constant 0 : i32
    %c0_i32_0 = arith.constant 0 : i32
    %c0_i32_1 = arith.constant 0 : i32
    return %c0_i32, %c0_i32_0 : i32, i32
  }
  func.func @transform_5(%arg0: i32) -> (i32, i32) {
    %c0_i32 = arith.constant 0 : i32
    %c0_i32_0 = arith.constant 0 : i32
    %c0_i32_1 = arith.constant 0 : i32
    return %c0_i32, %c0_i32_0 : i32, i32
  }
}

</mosaic_0001>

<llo_original>
// kernel: encoder_conv_base_forward.4
$region0: #{encoder_conv_base_forward.4}
  #allocation0 [shape = 'u32[]', space=smem, size = 0x4, offset = 0x4, fixed_abs, tag = 'smem constant byte address 0x4 - core index']
  #allocation1 [shape = 'u32[72,128]{1,0:T(1,128)}', space=vmem, size = 0x9000, scoped, tag = 'internal scratch']
  #allocation2 [shape = 'f32[1936,16]{1,0:T(8,128)}', space=vmem, size = 0xf2000, scoped, tag = 'scratch operand']
  %s0 = inlined_call_operand.vmem [shape: bf16[7744,32], index: 0, kind: input, shape index: {}]
  %s1 = inlined_call_operand.vmem [shape: bf16[32,16], index: 1, kind: input, shape index: {}]
  %s2 = inlined_call_operand.vmem [shape: f32[1,16], index: 2, kind: input, shape index: {}]
  %s3 = inlined_call_operand.vmem [shape: f32[7744,16], index: 3, kind: output, shape index: {}]
  %s4 = sld [smem:[#allocation0]]
  $region53: #{encoder_conv_base_forward.4} parent=0
    _
  %s6 = ssub.s32 1, %s4
  %s7 = scalar_select 0, %s6, %s4
  loop: start=0, step=1, limit=6
  $region2: #{encoder_conv_base_forward.4} parent=0 // loop_pre_header
    _
  $region3: #{encoder_conv_base_forward.4} parent=0 // loop_header
    %s9 = sphi 0, %s13
    %p10 = scmp.ge.s32.totalorder %s9, 6
    %s16 = sphi 0, %s35
    %s17 = sphi 0, %s31
    %s18 = sphi 0, %s27
    %s19 = sphi 0, %s16
    %s20 = sphi 0, %s17
    %s21 = sphi 0, %s18
    %s22 = sphi 0, %s19
    %s23 = sphi 0, %s20
    %s24 = sphi 0, %s21
    %s40 = sphi 0, %s42
    %s43 = sphi 0, %s40
    %s44 = sphi 0, %s43
    %s60 = sphi 0, %s44
    %s68 = sphi 0, %s70
    %s71 = sphi 0, %s68
    %s72 = sphi 0, %s71
    %s88 = sphi 0, %s72
    %s94 = sphi 0, %s96
    %s97 = sphi 0, %s94
    %s98 = sphi 0, %s97
    %s114 = sphi 0, %s98
    %s122 = sphi 0, %s124
    %s125 = sphi 0, %s122
    %s126 = sphi 0, %s125
    %s142 = sphi 0, %s126
  $region4: #{encoder_conv_base_forward.4} parent=0 // loop_header_branch
    %12 = sbr.rel (%p10) target = $region8
  $region5: #{encoder_conv_base_forward.4} parent=0 // loop_body
    %s14 = ssub.s32 %s9, 1
    %s15 = ssub.s32 %s9, 2
    %s25 = sadd.s32 1, %s18
    %p26 = scmp.ge.s32.totalorder %s25, 1
    %s27 = scalar_select %p26, 0, %s25
    %s28 = sadd.s32 1, %s17
    %s29 = scalar_select %p26, %s28, %s17
    %p30 = scmp.ge.s32.totalorder %s29, 1
    %s31 = scalar_select %p30, 0, %s29
    %s32 = sadd.s32 1, %s16
    %s33 = scalar_select %p30, %s32, %s16
    %p34 = scmp.ge.s32.totalorder %s33, 4
    %s35 = scalar_select %p34, 0, %s33
    %s36 = ssub.s32 %s16, %s35
    %s37 = ssub.s32 %s18, %s27
    %s38 = sor.u32 %s36, %s37
    %p39 = scmp.eq.s32.totalorder %s38, 0
    %s41 = sadd.s32 %s40, 1
    %s42 = scalar_select %p39, %s40, %s41
    %p45 = pneg %p39
    %p46 = scmp.eq.s32.totalorder %s9, 3
    %p47 = por %p45, %p46
    %p48 = scmp.ne.s32.totalorder %s40, %s43
    %p49 = scmp.eq.s32.totalorder %s9, 0
    %p50 = por %p48, %p49
    %p51 = scmp.ne.s32.totalorder %s40, %s43
    %p52 = scmp.eq.s32.totalorder %s14, 3
    %p53 = por %p51, %p52
    %p54 = scmp.ne.s32.totalorder %s43, %s44
    %p55 = scmp.eq.s32.totalorder %s14, 0
    %p56 = por %p54, %p55
    %p57 = scmp.ne.s32.totalorder %s43, %s44
    %p58 = scmp.eq.s32.totalorder %s15, 3
    %p59 = por %p57, %p58
    %p61 = scmp.ne.s32.totalorder %s44, %s60
    %p62 = scmp.eq.s32.totalorder %s15, 0
    %p63 = por %p61, %p62
    %s64 = ssub.s32 %s18, %s27
    %s65 = ssub.s32 %s17, %s31
    %s66 = sor.u32 %s64, %s65
    %p67 = scmp.eq.s32.totalorder %s66, 0
    %s69 = sadd.s32 %s68, 1
    %s70 = scalar_select %p67, %s68, %s69
    %p73 = pneg %p67
    %p74 = scmp.eq.s32.totalorder %s9, 3
    %p75 = por %p73, %p74
    %p76 = scmp.ne.s32.totalorder %s68, %s71
    %p77 = scmp.eq.s32.totalorder %s9, 0
    %p78 = por %p76, %p77
    %p79 = scmp.ne.s32.totalorder %s68, %s71
    %p80 = scmp.eq.s32.totalorder %s14, 3
    %p81 = por %p79, %p80
    %p82 = scmp.ne.s32.totalorder %s71, %s72
    %p83 = scmp.eq.s32.totalorder %s14, 0
    %p84 = por %p82, %p83
    %p85 = scmp.ne.s32.totalorder %s71, %s72
    %p86 = scmp.eq.s32.totalorder %s15, 3
    %p87 = por %p85, %p86
    %p89 = scmp.ne.s32.totalorder %s72, %s88
    %p90 = scmp.eq.s32.totalorder %s15, 0
    %p91 = por %p89, %p90
    %s92 = ssub.s32 %s17, %s31
    %p93 = scmp.eq.s32.totalorder %s92, 0
    %s95 = sadd.s32 %s94, 1
    %s96 = scalar_select %p93, %s94, %s95
    %p99 = pneg %p93
    %p100 = scmp.eq.s32.totalorder %s9, 3
    %p101 = por %p99, %p100
    %p102 = scmp.ne.s32.totalorder %s94, %s97
    %p103 = scmp.eq.s32.totalorder %s9, 0
    %p104 = por %p102, %p103
    %p105 = scmp.ne.s32.totalorder %s94, %s97
    %p106 = scmp.eq.s32.totalorder %s14, 3
    %p107 = por %p105, %p106
    %p108 = scmp.ne.s32.totalorder %s97, %s98
    %p109 = scmp.eq.s32.totalorder %s14, 0
    %p110 = por %p108, %p109
    %p111 = scmp.ne.s32.totalorder %s97, %s98
    %p112 = scmp.eq.s32.totalorder %s15, 3
    %p113 = por %p111, %p112
    %p115 = scmp.ne.s32.totalorder %s98, %s114
    %p116 = scmp.eq.s32.totalorder %s15, 0
    %p117 = por %p115, %p116
    %s118 = ssub.s32 %s16, %s35
    %s119 = ssub.s32 %s17, %s31
    %s120 = sor.u32 %s118, %s119
    %p121 = scmp.eq.s32.totalorder %s120, 0
    %s123 = sadd.s32 %s122, 1
    %s124 = scalar_select %p121, %s122, %s123
    %p127 = pneg %p121
    %p128 = scmp.eq.s32.totalorder %s9, 3
    %p129 = por %p127, %p128
    %p130 = scmp.ne.s32.totalorder %s122, %s125
    %p131 = scmp.eq.s32.totalorder %s9, 0
    %p132 = por %p130, %p131
    %p133 = scmp.ne.s32.totalorder %s122, %s125
    %p134 = scmp.eq.s32.totalorder %s14, 3
    %p135 = por %p133, %p134
    %p136 = scmp.ne.s32.totalorder %s125, %s126
    %p137 = scmp.eq.s32.totalorder %s14, 0
    %p138 = por %p136, %p137
    %p139 = scmp.ne.s32.totalorder %s125, %s126
    %p140 = scmp.eq.s32.totalorder %s15, 3
    %p141 = por %p139, %p140
    %p143 = scmp.ne.s32.totalorder %s126, %s142
    %p144 = scmp.eq.s32.totalorder %s15, 0
    %p145 = por %p143, %p144
    %p146 = scmp.le.s32.totalorder 1, %s9
    %p147 = scmp.lt.s32.totalorder %s9, 5
    %p148 = pnand %p146, %p147
    %p149 = pneg %p148
    // Predicated region
    $region9: #{encoder_conv_base_forward.4} parent=5 // pred_check
      _
    $region10: #{encoder_conv_base_forward.4} parent=5 // pred_check_branch
      %151 = sbr.rel (%p148) target = $region12
    $region11: #{encoder_conv_base_forward.4} parent=5 // pred_region
      %s152 = ssub.s32 %s9, 1
      // Predicated region
      $region13: #{encoder_conv_base_forward.4} parent=11 // pred_check
        %p153 = pneg %p84
      $region14: #{encoder_conv_base_forward.4} parent=11 // pred_check_branch
        %155 = sbr.rel (%p153) target = $region16
      $region15: #{encoder_conv_base_forward.4} parent=11 // pred_region
        %s156 = smul.u32 4, %s21
        %p157 = scmp.lt.s32.totalorder %s156, 3
        %s158 = scalar_select %p157, %s156, 3
        %p159 = scmp.lt.s32.totalorder %s20, 0
        %s160 = scalar_select %p159, %s20, 0
        %s161 = sadd.s32 %s160, %s158
        %s162 = smul.addr %s161, 4
        %s163 = scalar_lea.vmem %s1, %s162
        %s164 = smul.u32 4, %s21
      $region16: #{encoder_conv_base_forward.4} parent=11 // pred_fallthru
        _
      // Predicated region
      $region17: #{encoder_conv_base_forward.4} parent=11 // pred_check
        %p165 = pneg %p110
      $region18: #{encoder_conv_base_forward.4} parent=11 // pred_check_branch
        %167 = sbr.rel (%p165) target = $region20
      $region19: #{encoder_conv_base_forward.4} parent=11 // pred_region
        %p168 = scmp.lt.s32.totalorder %s20, 0
        %s169 = scalar_select %p168, %s20, 0
        %s170 = scalar_lea.vmem %s2, %s169
      $region20: #{encoder_conv_base_forward.4} parent=11 // pred_fallthru
        _
    $region12: #{encoder_conv_base_forward.4} parent=5 // pred_fallthru
      _
    %p171 = scmp.lt.s32.totalorder %s9, 4
    // Predicated region
    $region21: #{encoder_conv_base_forward.4} parent=5 // pred_check
      %p172 = pneg %p171
    $region22: #{encoder_conv_base_forward.4} parent=5 // pred_check_branch
      %174 = sbr.rel (%p172) target = $region24
    $region23: #{encoder_conv_base_forward.4} parent=5 // pred_region
      // Predicated region
      $region25: #{encoder_conv_base_forward.4} parent=23 // pred_check
        %p175 = pneg %p50
      $region26: #{encoder_conv_base_forward.4} parent=23 // pred_check_branch
        %177 = sbr.rel (%p175) target = $region28
      $region27: #{encoder_conv_base_forward.4} parent=23 // pred_region
        %s178 = smul.u32 242, %s16
        %p179 = scmp.lt.s32.totalorder %s178, 967
        %s180 = scalar_select %p179, %s178, 967
        %p181 = scmp.lt.s32.totalorder %s18, 0
        %s182 = scalar_select %p181, %s18, 0
        %s183 = sadd.s32 %s182, %s180
        %s184 = smul.addr %s183, 4
        %s185 = scalar_lea.vmem %s0, %s184
        %s186 = smul.u32 242, %s16
      $region28: #{encoder_conv_base_forward.4} parent=23 // pred_fallthru
        _
    $region24: #{encoder_conv_base_forward.4} parent=5 // pred_fallthru
      _
    %p187 = scmp.le.s32.totalorder 1, %s9
    %p188 = scmp.lt.s32.totalorder %s9, 5
    %p189 = pnand %p187, %p188
    %p190 = pneg %p189
    // Predicated region
    $region29: #{encoder_conv_base_forward.4} parent=5 // pred_check
      _
    $region30: #{encoder_conv_base_forward.4} parent=5 // pred_check_branch
      %192 = sbr.rel (%p189) target = $region32
    $region31: #{encoder_conv_base_forward.4} parent=5 // pred_region
      %s193 = ssub.s32 %s9, 1
      %s194 = smul.u32 242, %s19
      %p195 = scmp.lt.s32.totalorder %s194, 967
      %s196 = scalar_select %p195, %s194, 967
      %p197 = scmp.lt.s32.totalorder %s21, 0
      %s198 = scalar_select %p197, %s21, 0
      %s199 = sadd.s32 %s198, %s196
      %s200 = smul.addr %s199, 4
      %s201 = scalar_lea.vmem %s0, %s200
      %p202 = pneg %p56
      %p203 = pneg %p53
      %s204 = smul.u32 4, %s21
      %p205 = scmp.lt.s32.totalorder %s204, 3
      %s206 = scalar_select %p205, %s204, 3
      %p207 = scmp.lt.s32.totalorder %s20, 0
      %s208 = scalar_select %p207, %s20, 0
      %s209 = sadd.s32 %s208, %s206
      %s210 = smul.addr %s209, 4
      %s211 = scalar_lea.vmem %s1, %s210
      %p212 = pneg %p84
      %p213 = pneg %p81
      %p214 = scmp.lt.s32.totalorder %s20, 0
      %s215 = scalar_select %p214, %s20, 0
      %s216 = scalar_lea.vmem %s2, %s215
      %p217 = pneg %p110
      %p218 = pneg %p107
      %p219 = pneg %p138
      %p220 = pneg %p135
      %s221 = smul.u32 242, %s19
      %p222 = scmp.lt.s32.totalorder %s221, 967
      %s223 = scalar_select %p222, %s221, 967
      %p224 = scmp.lt.s32.totalorder %s20, 0
      %s225 = scalar_select %p224, %s20, 0
      %s226 = sadd.s32 %s225, %s223
      %s227 = smul.addr %s226, 8
      %s228 = scalar_lea.vmem %s3, %s227
      %s229 = smul.u32 242, %s19
      %p230 = scmp.lt.s32.totalorder %s229, 967
      %s231 = scalar_select %p230, %s229, 967
      %p232 = scmp.lt.s32.totalorder %s21, 0
      %s233 = scalar_select %p232, %s21, 0
      %s234 = sadd.s32 %s233, %s231
      %s235 = smul.addr %s234, 4
      %s236 = scalar_lea.vmem %s0, %s235
      %s237 = smul.u32 242, %s19
      %s238 = smul.u32 4, %s21
      %p239 = scmp.lt.s32.totalorder %s238, 3
      %s240 = scalar_select %p239, %s238, 3
      %p241 = scmp.lt.s32.totalorder %s20, 0
      %s242 = scalar_select %p241, %s20, 0
      %s243 = sadd.s32 %s242, %s240
      %s244 = smul.addr %s243, 4
      %s245 = scalar_lea.vmem %s1, %s244
      %s246 = smul.u32 4, %s21
      %p247 = scmp.lt.s32.totalorder %s20, 0
      %s248 = scalar_select %p247, %s20, 0
      %s249 = scalar_lea.vmem %s2, %s248
      %s250 = smul.u32 242, %s19
      %p251 = scmp.lt.s32.totalorder %s250, 967
      %s252 = scalar_select %p251, %s250, 967
      %p253 = scmp.lt.s32.totalorder %s20, 0
      %s254 = scalar_select %p253, %s20, 0
      %s255 = sadd.s32 %s254, %s252
      %s256 = smul.addr %s255, 8
      %s257 = scalar_lea.vmem %s3, %s256
      %s258 = smul.u32 242, %s19
      %p260 = scmp.eq.s32.totalorder %s21, 0
      // Predicated region
      $region33: #{encoder_conv_base_forward.4} parent=31 // pred_check
        %p261 = pneg %p260
      $region34: #{encoder_conv_base_forward.4} parent=31 // pred_check_branch
        %263 = sbr.rel (%p261) target = $region36
      $region35: #{encoder_conv_base_forward.4} parent=31 // pred_region
        %vm264 = vcmask 130048
        %265 = vst.msk [vmem:[#allocation2] sm:$0xff] %vm264, 0.0
        %266 = vst.msk [vmem:[#allocation2 + $0x8] sm:$0xff] %vm264, 0.0
        %267 = vst.msk [vmem:[#allocation2 + $0x10] sm:$0xff] %vm264, 0.0
        %268 = vst.msk [vmem:[#allocation2 + $0x18] sm:$0xff] %vm264, 0.0
        %269 = vst.msk [vmem:[#allocation2 + $0x20] sm:$0xff] %vm264, 0.0
        %270 = vst.msk [vmem:[#allocation2 + $0x28] sm:$0xff] %vm264, 0.0
        %271 = vst.msk [vmem:[#allocation2 + $0x30] sm:$0xff] %vm264, 0.0
        %272 = vst.msk [vmem:[#allocation2 + $0x38] sm:$0xff] %vm264, 0.0
        %273 = vst.msk [vmem:[#allocation2 + $0x40] sm:$0xff] %vm264, 0.0
        %274 = vst.msk [vmem:[#allocation2 + $0x48] sm:$0xff] %vm264, 0.0
        %275 = vst.msk [vmem:[#allocation2 + $0x50] sm:$0xff] %vm264, 0.0
        %276 = vst.msk [vmem:[#allocation2 + $0x58] sm:$0xff] %vm264, 0.0
        %277 = vst.msk [vmem:[#allocation2 + $0x60] sm:$0xff] %vm264, 0.0
        %278 = vst.msk [vmem:[#allocation2 + $0x68] sm:$0xff] %vm264, 0.0
        %279 = vst.msk [vmem:[#allocation2 + $0x70] sm:$0xff] %vm264, 0.0
        %280 = vst.msk [vmem:[#allocation2 + $0x78] sm:$0xff] %vm264, 0.0
        %281 = vst.msk [vmem:[#allocation2 + $0x80] sm:$0xff] %vm264, 0.0
        %282 = vst.msk [vmem:[#allocation2 + $0x88] sm:$0xff] %vm264, 0.0
        %283 = vst.msk [vmem:[#allocation2 + $0x90] sm:$0xff] %vm264, 0.0
        %284 = vst.msk [vmem:[#allocation2 + $0x98] sm:$0xff] %vm264, 0.0
        %285 = vst.msk [vmem:[#allocation2 + $0xa0] sm:$0xff] %vm264, 0.0
        %286 = vst.msk [vmem:[#allocation2 + $0xa8] sm:$0xff] %vm264, 0.0
        %287 = vst.msk [vmem:[#allocation2 + $0xb0] sm:$0xff] %vm264, 0.0
        %288 = vst.msk [vmem:[#allocation2 + $0xb8] sm:$0xff] %vm264, 0.0
        %289 = vst.msk [vmem:[#allocation2 + $0xc0] sm:$0xff] %vm264, 0.0
        %290 = vst.msk [vmem:[#allocation2 + $0xc8] sm:$0xff] %vm264, 0.0
        %291 = vst.msk [vmem:[#allocation2 + $0xd0] sm:$0xff] %vm264, 0.0
        %292 = vst.msk [vmem:[#allocation2 + $0xd8] sm:$0xff] %vm264, 0.0
        %293 = vst.msk [vmem:[#allocation2 + $0xe0] sm:$0xff] %vm264, 0.0
        %294 = vst.msk [vmem:[#allocation2 + $0xe8] sm:$0xff] %vm264, 0.0
        %295 = vst.msk [vmem:[#allocation2 + $0xf0] sm:$0xff] %vm264, 0.0
        %296 = vst.msk [vmem:[#allocation2 + $0xf8] sm:$0xff] %vm264, 0.0
        %297 = vst.msk [vmem:[#allocation2 + $0x100] sm:$0xff] %vm264, 0.0
        %298 = vst.msk [vmem:[#allocation2 + $0x108] sm:$0xff] %vm264, 0.0
        %299 = vst.msk [vmem:[#allocation2 + $0x110] sm:$0xff] %vm264, 0.0
        %300 = vst.msk [vmem:[#allocation2 + $0x118] sm:$0xff] %vm264, 0.0
        %301 = vst.msk [vmem:[#allocation2 + $0x120] sm:$0xff] %vm264, 0.0
        %302 = vst.msk [vmem:[#allocation2 + $0x128] sm:$0xff] %vm264, 0.0
        %303 = vst.msk [vmem:[#allocation2 + $0x130] sm:$0xff] %vm264, 0.0
        %304 = vst.msk [vmem:[#allocation2 + $0x138] sm:$0xff] %vm264, 0.0
        %305 = vst.msk [vmem:[#allocation2 + $0x140] sm:$0xff] %vm264, 0.0
        %306 = vst.msk [vmem:[#allocation2 + $0x148] sm:$0xff] %vm264, 0.0
        %307 = vst.msk [vmem:[#allocation2 + $0x150] sm:$0xff] %vm264, 0.0
        %308 = vst.msk [vmem:[#allocation2 + $0x158] sm:$0xff] %vm264, 0.0
        %309 = vst.msk [vmem:[#allocation2 + $0x160] sm:$0xff] %vm264, 0.0
        %310 = vst.msk [vmem:[#allocation2 + $0x168] sm:$0xff] %vm264, 0.0
        %311 = vst.msk [vmem:[#allocation2 + $0x170] sm:$0xff] %vm264, 0.0
        %312 = vst.msk [vmem:[#allocation2 + $0x178] sm:$0xff] %vm264, 0.0
        %313 = vst.msk [vmem:[#allocation2 + $0x180] sm:$0xff] %vm264, 0.0
        %314 = vst.msk [vmem:[#allocation2 + $0x188] sm:$0xff] %vm264, 0.0
        %315 = vst.msk [vmem:[#allocation2 + $0x190] sm:$0xff] %vm264, 0.0
        %316 = vst.msk [vmem:[#allocation2 + $0x198] sm:$0xff] %vm264, 0.0
        %317 = vst.msk [vmem:[#allocation2 + $0x1a0] sm:$0xff] %vm264, 0.0
        %318 = vst.msk [vmem:[#allocation2 + $0x1a8] sm:$0xff] %vm264, 0.0
        %319 = vst.msk [vmem:[#allocation2 + $0x1b0] sm:$0xff] %vm264, 0.0
        %320 = vst.msk [vmem:[#allocation2 + $0x1b8] sm:$0xff] %vm264, 0.0
        %321 = vst.msk [vmem:[#allocation2 + $0x1c0] sm:$0xff] %vm264, 0.0
        %322 = vst.msk [vmem:[#allocation2 + $0x1c8] sm:$0xff] %vm264, 0.0
        %323 = vst.msk [vmem:[#allocation2 + $0x1d0] sm:$0xff] %vm264, 0.0
        %324 = vst.msk [vmem:[#allocation2 + $0x1d8] sm:$0xff] %vm264, 0.0
        %325 = vst.msk [vmem:[#allocation2 + $0x1e0] sm:$0xff] %vm264, 0.0
        %326 = vst.msk [vmem:[#allocation2 + $0x1e8] sm:$0xff] %vm264, 0.0
        %327 = vst.msk [vmem:[#allocation2 + $0x1f0] sm:$0xff] %vm264, 0.0
        %328 = vst.msk [vmem:[#allocation2 + $0x1f8] sm:$0xff] %vm264, 0.0
        %329 = vst.msk [vmem:[#allocation2 + $0x200] sm:$0xff] %vm264, 0.0
        %330 = vst.msk [vmem:[#allocation2 + $0x208] sm:$0xff] %vm264, 0.0
        %331 = vst.msk [vmem:[#allocation2 + $0x210] sm:$0xff] %vm264, 0.0
        %332 = vst.msk [vmem:[#allocation2 + $0x218] sm:$0xff] %vm264, 0.0
        %333 = vst.msk [vmem:[#allocation2 + $0x220] sm:$0xff] %vm264, 0.0
        %334 = vst.msk [vmem:[#allocation2 + $0x228] sm:$0xff] %vm264, 0.0
        %335 = vst.msk [vmem:[#allocation2 + $0x230] sm:$0xff] %vm264, 0.0
        %336 = vst.msk [vmem:[#allocation2 + $0x238] sm:$0xff] %vm264, 0.0
        %337 = vst.msk [vmem:[#allocation2 + $0x240] sm:$0xff] %vm264, 0.0
        %338 = vst.msk [vmem:[#allocation2 + $0x248] sm:$0xff] %vm264, 0.0
        %339 = vst.msk [vmem:[#allocation2 + $0x250] sm:$0xff] %vm264, 0.0
        %340 = vst.msk [vmem:[#allocation2 + $0x258] sm:$0xff] %vm264, 0.0
        %341 = vst.msk [vmem:[#allocation2 + $0x260] sm:$0xff] %vm264, 0.0
        %342 = vst.msk [vmem:[#allocation2 + $0x268] sm:$0xff] %vm264, 0.0
        %343 = vst.msk [vmem:[#allocation2 + $0x270] sm:$0xff] %vm264, 0.0
        %344 = vst.msk [vmem:[#allocation2 + $0x278] sm:$0xff] %vm264, 0.0
        %345 = vst.msk [vmem:[#allocation2 + $0x280] sm:$0xff] %vm264, 0.0
        %346 = vst.msk [vmem:[#allocation2 + $0x288] sm:$0xff] %vm264, 0.0
        %347 = vst.msk [vmem:[#allocation2 + $0x290] sm:$0xff] %vm264, 0.0
        %348 = vst.msk [vmem:[#allocation2 + $0x298] sm:$0xff] %vm264, 0.0
        %349 = vst.msk [vmem:[#allocation2 + $0x2a0] sm:$0xff] %vm264, 0.0
        %350 = vst.msk [vmem:[#allocation2 + $0x2a8] sm:$0xff] %vm264, 0.0
        %351 = vst.msk [vmem:[#allocation2 + $0x2b0] sm:$0xff] %vm264, 0.0
        %352 = vst.msk [vmem:[#allocation2 + $0x2b8] sm:$0xff] %vm264, 0.0
        %353 = vst.msk [vmem:[#allocation2 + $0x2c0] sm:$0xff] %vm264, 0.0
        %354 = vst.msk [vmem:[#allocation2 + $0x2c8] sm:$0xff] %vm264, 0.0
        %355 = vst.msk [vmem:[#allocation2 + $0x2d0] sm:$0xff] %vm264, 0.0
        %356 = vst.msk [vmem:[#allocation2 + $0x2d8] sm:$0xff] %vm264, 0.0
        %357 = vst.msk [vmem:[#allocation2 + $0x2e0] sm:$0xff] %vm264, 0.0
        %358 = vst.msk [vmem:[#allocation2 + $0x2e8] sm:$0xff] %vm264, 0.0
        %359 = vst.msk [vmem:[#allocation2 + $0x2f0] sm:$0xff] %vm264, 0.0
        %360 = vst.msk [vmem:[#allocation2 + $0x2f8] sm:$0xff] %vm264, 0.0
        %361 = vst.msk [vmem:[#allocation2 + $0x300] sm:$0xff] %vm264, 0.0
        %362 = vst.msk [vmem:[#allocation2 + $0x308] sm:$0xff] %vm264, 0.0
        %363 = vst.msk [vmem:[#allocation2 + $0x310] sm:$0xff] %vm264, 0.0
        %364 = vst.msk [vmem:[#allocation2 + $0x318] sm:$0xff] %vm264, 0.0
        %365 = vst.msk [vmem:[#allocation2 + $0x320] sm:$0xff] %vm264, 0.0
        %366 = vst.msk [vmem:[#allocation2 + $0x328] sm:$0xff] %vm264, 0.0
        %367 = vst.msk [vmem:[#allocation2 + $0x330] sm:$0xff] %vm264, 0.0
        %368 = vst.msk [vmem:[#allocation2 + $0x338] sm:$0xff] %vm264, 0.0
        %369 = vst.msk [vmem:[#allocation2 + $0x340] sm:$0xff] %vm264, 0.0
        %370 = vst.msk [vmem:[#allocation2 + $0x348] sm:$0xff] %vm264, 0.0
        %371 = vst.msk [vmem:[#allocation2 + $0x350] sm:$0xff] %vm264, 0.0
        %372 = vst.msk [vmem:[#allocation2 + $0x358] sm:$0xff] %vm264, 0.0
        %373 = vst.msk [vmem:[#allocation2 + $0x360] sm:$0xff] %vm264, 0.0
        %374 = vst.msk [vmem:[#allocation2 + $0x368] sm:$0xff] %vm264, 0.0
        %375 = vst.msk [vmem:[#allocation2 + $0x370] sm:$0xff] %vm264, 0.0
        %376 = vst.msk [vmem:[#allocation2 + $0x378] sm:$0xff] %vm264, 0.0
        %377 = vst.msk [vmem:[#allocation2 + $0x380] sm:$0xff] %vm264, 0.0
        %378 = vst.msk [vmem:[#allocation2 + $0x388] sm:$0xff] %vm264, 0.0
        %379 = vst.msk [vmem:[#allocation2 + $0x390] sm:$0xff] %vm264, 0.0
        %380 = vst.msk [vmem:[#allocation2 + $0x398] sm:$0xff] %vm264, 0.0
        %381 = vst.msk [vmem:[#allocation2 + $0x3a0] sm:$0xff] %vm264, 0.0
        %382 = vst.msk [vmem:[#allocation2 + $0x3a8] sm:$0xff] %vm264, 0.0
        %383 = vst.msk [vmem:[#allocation2 + $0x3b0] sm:$0xff] %vm264, 0.0
        %384 = vst.msk [vmem:[#allocation2 + $0x3b8] sm:$0xff] %vm264, 0.0
        %385 = vst.msk [vmem:[#allocation2 + $0x3c0] sm:$0xff] %vm264, 0.0
        %386 = vst.msk [vmem:[#allocation2 + $0x3c8] sm:$0xff] %vm264, 0.0
        %387 = vst.msk [vmem:[#allocation2 + $0x3d0] sm:$0xff] %vm264, 0.0
        %388 = vst.msk [vmem:[#allocation2 + $0x3d8] sm:$0xff] %vm264, 0.0
        %389 = vst.msk [vmem:[#allocation2 + $0x3e0] sm:$0xff] %vm264, 0.0
        %390 = vst.msk [vmem:[#allocation2 + $0x3e8] sm:$0xff] %vm264, 0.0
        %391 = vst.msk [vmem:[#allocation2 + $0x3f0] sm:$0xff] %vm264, 0.0
        %392 = vst.msk [vmem:[#allocation2 + $0x3f8] sm:$0xff] %vm264, 0.0
        %393 = vst.msk [vmem:[#allocation2 + $0x400] sm:$0xff] %vm264, 0.0
        %394 = vst.msk [vmem:[#allocation2 + $0x408] sm:$0xff] %vm264, 0.0
        %395 = vst.msk [vmem:[#allocation2 + $0x410] sm:$0xff] %vm264, 0.0
        %396 = vst.msk [vmem:[#allocation2 + $0x418] sm:$0xff] %vm264, 0.0
        %397 = vst.msk [vmem:[#allocation2 + $0x420] sm:$0xff] %vm264, 0.0
        %398 = vst.msk [vmem:[#allocation2 + $0x428] sm:$0xff] %vm264, 0.0
        %399 = vst.msk [vmem:[#allocation2 + $0x430] sm:$0xff] %vm264, 0.0
        %400 = vst.msk [vmem:[#allocation2 + $0x438] sm:$0xff] %vm264, 0.0
        %401 = vst.msk [vmem:[#allocation2 + $0x440] sm:$0xff] %vm264, 0.0
        %402 = vst.msk [vmem:[#allocation2 + $0x448] sm:$0xff] %vm264, 0.0
        %403 = vst.msk [vmem:[#allocation2 + $0x450] sm:$0xff] %vm264, 0.0
        %404 = vst.msk [vmem:[#allocation2 + $0x458] sm:$0xff] %vm264, 0.0
        %405 = vst.msk [vmem:[#allocation2 + $0x460] sm:$0xff] %vm264, 0.0
        %406 = vst.msk [vmem:[#allocation2 + $0x468] sm:$0xff] %vm264, 0.0
        %407 = vst.msk [vmem:[#allocation2 + $0x470] sm:$0xff] %vm264, 0.0
        %408 = vst.msk [vmem:[#allocation2 + $0x478] sm:$0xff] %vm264, 0.0
        %409 = vst.msk [vmem:[#allocation2 + $0x480] sm:$0xff] %vm264, 0.0
        %410 = vst.msk [vmem:[#allocation2 + $0x488] sm:$0xff] %vm264, 0.0
        %411 = vst.msk [vmem:[#allocation2 + $0x490] sm:$0xff] %vm264, 0.0
        %412 = vst.msk [vmem:[#allocation2 + $0x498] sm:$0xff] %vm264, 0.0
        %413 = vst.msk [vmem:[#allocation2 + $0x4a0] sm:$0xff] %vm264, 0.0
        %414 = vst.msk [vmem:[#allocation2 + $0x4a8] sm:$0xff] %vm264, 0.0
        %415 = vst.msk [vmem:[#allocation2 + $0x4b0] sm:$0xff] %vm264, 0.0
        %416 = vst.msk [vmem:[#allocation2 + $0x4b8] sm:$0xff] %vm264, 0.0
        %417 = vst.msk [vmem:[#allocation2 + $0x4c0] sm:$0xff] %vm264, 0.0
        %418 = vst.msk [vmem:[#allocation2 + $0x4c8] sm:$0xff] %vm264, 0.0
        %419 = vst.msk [vmem:[#allocation2 + $0x4d0] sm:$0xff] %vm264, 0.0
        %420 = vst.msk [vmem:[#allocation2 + $0x4d8] sm:$0xff] %vm264, 0.0
        %421 = vst.msk [vmem:[#allocation2 + $0x4e0] sm:$0xff] %vm264, 0.0
        %422 = vst.msk [vmem:[#allocation2 + $0x4e8] sm:$0xff] %vm264, 0.0
        %423 = vst.msk [vmem:[#allocation2 + $0x4f0] sm:$0xff] %vm264, 0.0
        %424 = vst.msk [vmem:[#allocation2 + $0x4f8] sm:$0xff] %vm264, 0.0
        %425 = vst.msk [vmem:[#allocation2 + $0x500] sm:$0xff] %vm264, 0.0
        %426 = vst.msk [vmem:[#allocation2 + $0x508] sm:$0xff] %vm264, 0.0
        %427 = vst.msk [vmem:[#allocation2 + $0x510] sm:$0xff] %vm264, 0.0
        %428 = vst.msk [vmem:[#allocation2 + $0x518] sm:$0xff] %vm264, 0.0
        %429 = vst.msk [vmem:[#allocation2 + $0x520] sm:$0xff] %vm264, 0.0
        %430 = vst.msk [vmem:[#allocation2 + $0x528] sm:$0xff] %vm264, 0.0
        %431 = vst.msk [vmem:[#allocation2 + $0x530] sm:$0xff] %vm264, 0.0
        %432 = vst.msk [vmem:[#allocation2 + $0x538] sm:$0xff] %vm264, 0.0
        %433 = vst.msk [vmem:[#allocation2 + $0x540] sm:$0xff] %vm264, 0.0
        %434 = vst.msk [vmem:[#allocation2 + $0x548] sm:$0xff] %vm264, 0.0
        %435 = vst.msk [vmem:[#allocation2 + $0x550] sm:$0xff] %vm264, 0.0
        %436 = vst.msk [vmem:[#allocation2 + $0x558] sm:$0xff] %vm264, 0.0
        %437 = vst.msk [vmem:[#allocation2 + $0x560] sm:$0xff] %vm264, 0.0
        %438 = vst.msk [vmem:[#allocation2 + $0x568] sm:$0xff] %vm264, 0.0
        %439 = vst.msk [vmem:[#allocation2 + $0x570] sm:$0xff] %vm264, 0.0
        %440 = vst.msk [vmem:[#allocation2 + $0x578] sm:$0xff] %vm264, 0.0
        %441 = vst.msk [vmem:[#allocation2 + $0x580] sm:$0xff] %vm264, 0.0
        %442 = vst.msk [vmem:[#allocation2 + $0x588] sm:$0xff] %vm264, 0.0
        %443 = vst.msk [vmem:[#allocation2 + $0x590] sm:$0xff] %vm264, 0.0
        %444 = vst.msk [vmem:[#allocation2 + $0x598] sm:$0xff] %vm264, 0.0
        %445 = vst.msk [vmem:[#allocation2 + $0x5a0] sm:$0xff] %vm264, 0.0
        %446 = vst.msk [vmem:[#allocation2 + $0x5a8] sm:$0xff] %vm264, 0.0
        %447 = vst.msk [vmem:[#allocation2 + $0x5b0] sm:$0xff] %vm264, 0.0
        %448 = vst.msk [vmem:[#allocation2 + $0x5b8] sm:$0xff] %vm264, 0.0
        %449 = vst.msk [vmem:[#allocation2 + $0x5c0] sm:$0xff] %vm264, 0.0
        %450 = vst.msk [vmem:[#allocation2 + $0x5c8] sm:$0xff] %vm264, 0.0
        %451 = vst.msk [vmem:[#allocation2 + $0x5d0] sm:$0xff] %vm264, 0.0
        %452 = vst.msk [vmem:[#allocation2 + $0x5d8] sm:$0xff] %vm264, 0.0
        %453 = vst.msk [vmem:[#allocation2 + $0x5e0] sm:$0xff] %vm264, 0.0
        %454 = vst.msk [vmem:[#allocation2 + $0x5e8] sm:$0xff] %vm264, 0.0
        %455 = vst.msk [vmem:[#allocation2 + $0x5f0] sm:$0xff] %vm264, 0.0
        %456 = vst.msk [vmem:[#allocation2 + $0x5f8] sm:$0xff] %vm264, 0.0
        %457 = vst.msk [vmem:[#allocation2 + $0x600] sm:$0xff] %vm264, 0.0
        %458 = vst.msk [vmem:[#allocation2 + $0x608] sm:$0xff] %vm264, 0.0
        %459 = vst.msk [vmem:[#allocation2 + $0x610] sm:$0xff] %vm264, 0.0
        %460 = vst.msk [vmem:[#allocation2 + $0x618] sm:$0xff] %vm264, 0.0
        %461 = vst.msk [vmem:[#allocation2 + $0x620] sm:$0xff] %vm264, 0.0
        %462 = vst.msk [vmem:[#allocation2 + $0x628] sm:$0xff] %vm264, 0.0
        %463 = vst.msk [vmem:[#allocation2 + $0x630] sm:$0xff] %vm264, 0.0
        %464 = vst.msk [vmem:[#allocation2 + $0x638] sm:$0xff] %vm264, 0.0
        %465 = vst.msk [vmem:[#allocation2 + $0x640] sm:$0xff] %vm264, 0.0
        %466 = vst.msk [vmem:[#allocation2 + $0x648] sm:$0xff] %vm264, 0.0
        %467 = vst.msk [vmem:[#allocation2 + $0x650] sm:$0xff] %vm264, 0.0
        %468 = vst.msk [vmem:[#allocation2 + $0x658] sm:$0xff] %vm264, 0.0
        %469 = vst.msk [vmem:[#allocation2 + $0x660] sm:$0xff] %vm264, 0.0
        %470 = vst.msk [vmem:[#allocation2 + $0x668] sm:$0xff] %vm264, 0.0
        %471 = vst.msk [vmem:[#allocation2 + $0x670] sm:$0xff] %vm264, 0.0
        %472 = vst.msk [vmem:[#allocation2 + $0x678] sm:$0xff] %vm264, 0.0
        %473 = vst.msk [vmem:[#allocation2 + $0x680] sm:$0xff] %vm264, 0.0
        %474 = vst.msk [vmem:[#allocation2 + $0x688] sm:$0xff] %vm264, 0.0
        %475 = vst.msk [vmem:[#allocation2 + $0x690] sm:$0xff] %vm264, 0.0
        %476 = vst.msk [vmem:[#allocation2 + $0x698] sm:$0xff] %vm264, 0.0
        %477 = vst.msk [vmem:[#allocation2 + $0x6a0] sm:$0xff] %vm264, 0.0
        %478 = vst.msk [vmem:[#allocation2 + $0x6a8] sm:$0xff] %vm264, 0.0
        %479 = vst.msk [vmem:[#allocation2 + $0x6b0] sm:$0xff] %vm264, 0.0
        %480 = vst.msk [vmem:[#allocation2 + $0x6b8] sm:$0xff] %vm264, 0.0
        %481 = vst.msk [vmem:[#allocation2 + $0x6c0] sm:$0xff] %vm264, 0.0
        %482 = vst.msk [vmem:[#allocation2 + $0x6c8] sm:$0xff] %vm264, 0.0
        %483 = vst.msk [vmem:[#allocation2 + $0x6d0] sm:$0xff] %vm264, 0.0
        %484 = vst.msk [vmem:[#allocation2 + $0x6d8] sm:$0xff] %vm264, 0.0
        %485 = vst.msk [vmem:[#allocation2 + $0x6e0] sm:$0xff] %vm264, 0.0
        %486 = vst.msk [vmem:[#allocation2 + $0x6e8] sm:$0xff] %vm264, 0.0
        %487 = vst.msk [vmem:[#allocation2 + $0x6f0] sm:$0xff] %vm264, 0.0
        %488 = vst.msk [vmem:[#allocation2 + $0x6f8] sm:$0xff] %vm264, 0.0
        %489 = vst.msk [vmem:[#allocation2 + $0x700] sm:$0xff] %vm264, 0.0
        %490 = vst.msk [vmem:[#allocation2 + $0x708] sm:$0xff] %vm264, 0.0
        %491 = vst.msk [vmem:[#allocation2 + $0x710] sm:$0xff] %vm264, 0.0
        %492 = vst.msk [vmem:[#allocation2 + $0x718] sm:$0xff] %vm264, 0.0
        %493 = vst.msk [vmem:[#allocation2 + $0x720] sm:$0xff] %vm264, 0.0
        %494 = vst.msk [vmem:[#allocation2 + $0x728] sm:$0xff] %vm264, 0.0
        %495 = vst.msk [vmem:[#allocation2 + $0x730] sm:$0xff] %vm264, 0.0
        %496 = vst.msk [vmem:[#allocation2 + $0x738] sm:$0xff] %vm264, 0.0
        %497 = vst.msk [vmem:[#allocation2 + $0x740] sm:$0xff] %vm264, 0.0
        %498 = vst.msk [vmem:[#allocation2 + $0x748] sm:$0xff] %vm264, 0.0
        %499 = vst.msk [vmem:[#allocation2 + $0x750] sm:$0xff] %vm264, 0.0
        %500 = vst.msk [vmem:[#allocation2 + $0x758] sm:$0xff] %vm264, 0.0
        %501 = vst.msk [vmem:[#allocation2 + $0x760] sm:$0xff] %vm264, 0.0
        %502 = vst.msk [vmem:[#allocation2 + $0x768] sm:$0xff] %vm264, 0.0
        %503 = vst.msk [vmem:[#allocation2 + $0x770] sm:$0xff] %vm264, 0.0
        %504 = vst.msk [vmem:[#allocation2 + $0x778] sm:$0xff] %vm264, 0.0
        %505 = vst.msk [vmem:[#allocation2 + $0x780] sm:$0xff] %vm264, 0.0
        %506 = vst.msk [vmem:[#allocation2 + $0x788] sm:$0xff] %vm264, 0.0
      $region36: #{encoder_conv_base_forward.4} parent=31 // pred_fallthru
        _
      %v507 = vld [vmem:[%s236] sm:$0xf]
      %v508 = vld [vmem:[%s236 + $0x4] sm:$0xf]
      %v509 = vld [vmem:[%s236 + $0x8] sm:$0xf]
      %v510 = vld [vmem:[%s236 + $0xc] sm:$0xf]
      %v511 = vld [vmem:[%s236 + $0x10] sm:$0xf]
      %v512 = vld [vmem:[%s236 + $0x14] sm:$0xf]
      %v513 = vld [vmem:[%s236 + $0x18] sm:$0xf]
      %v514 = vld [vmem:[%s236 + $0x1c] sm:$0xf]
      %v515 = vld [vmem:[%s236 + $0x20] sm:$0xf]
      %v516 = vld [vmem:[%s236 + $0x24] sm:$0xf]
      %v517 = vld [vmem:[%s236 + $0x28] sm:$0xf]
      %v518 = vld [vmem:[%s236 + $0x2c] sm:$0xf]
      %v519 = vld [vmem:[%s236 + $0x30] sm:$0xf]
      %v520 = vld [vmem:[%s236 + $0x34] sm:$0xf]
      %v521 = vld [vmem:[%s236 + $0x38] sm:$0xf]
      %v522 = vld [vmem:[%s236 + $0x3c] sm:$0xf]
      %v523 = vld [vmem:[%s236 + $0x40] sm:$0xf]
      %v524 = vld [vmem:[%s236 + $0x44] sm:$0xf]
      %v525 = vld [vmem:[%s236 + $0x48] sm:$0xf]
      %v526 = vld [vmem:[%s236 + $0x4c] sm:$0xf]
      %v527 = vld [vmem:[%s236 + $0x50] sm:$0xf]
      %v528 = vld [vmem:[%s236 + $0x54] sm:$0xf]
      %v529 = vld [vmem:[%s236 + $0x58] sm:$0xf]
      %v530 = vld [vmem:[%s236 + $0x5c] sm:$0xf]
      %v531 = vld [vmem:[%s236 + $0x60] sm:$0xf]
      %v532 = vld [vmem:[%s236 + $0x64] sm:$0xf]
      %v533 = vld [vmem:[%s236 + $0x68] sm:$0xf]
      %v534 = vld [vmem:[%s236 + $0x6c] sm:$0xf]
      %v535 = vld [vmem:[%s236 + $0x70] sm:$0xf]
      %v536 = vld [vmem:[%s236 + $0x74] sm:$0xf]
      %v537 = vld [vmem:[%s236 + $0x78] sm:$0xf]
      %v538 = vld [vmem:[%s236 + $0x7c] sm:$0xf]
      %v539 = vld [vmem:[%s236 + $0x80] sm:$0xf]
      %v540 = vld [vmem:[%s236 + $0x84] sm:$0xf]
      %v541 = vld [vmem:[%s236 + $0x88] sm:$0xf]
      %v542 = vld [vmem:[%s236 + $0x8c] sm:$0xf]
      %v543 = vld [vmem:[%s236 + $0x90] sm:$0xf]
      %v544 = vld [vmem:[%s236 + $0x94] sm:$0xf]
      %v545 = vld [vmem:[%s236 + $0x98] sm:$0xf]
      %v546 = vld [vmem:[%s236 + $0x9c] sm:$0xf]
      %v547 = vld [vmem:[%s236 + $0xa0] sm:$0xf]
      %v548 = vld [vmem:[%s236 + $0xa4] sm:$0xf]
      %v549 = vld [vmem:[%s236 + $0xa8] sm:$0xf]
      %v550 = vld [vmem:[%s236 + $0xac] sm:$0xf]
      %v551 = vld [vmem:[%s236 + $0xb0] sm:$0xf]
      %v552 = vld [vmem:[%s236 + $0xb4] sm:$0xf]
      %v553 = vld [vmem:[%s236 + $0xb8] sm:$0xf]
      %v554 = vld [vmem:[%s236 + $0xbc] sm:$0xf]
      %v555 = vld [vmem:[%s236 + $0xc0] sm:$0xf]
      %v556 = vld [vmem:[%s236 + $0xc4] sm:$0xf]
      %v557 = vld [vmem:[%s236 + $0xc8] sm:$0xf]
      %v558 = vld [vmem:[%s236 + $0xcc] sm:$0xf]
      %v559 = vld [vmem:[%s236 + $0xd0] sm:$0xf]
      %v560 = vld [vmem:[%s236 + $0xd4] sm:$0xf]
      %v561 = vld [vmem:[%s236 + $0xd8] sm:$0xf]
      %v562 = vld [vmem:[%s236 + $0xdc] sm:$0xf]
      %v563 = vld [vmem:[%s236 + $0xe0] sm:$0xf]
      %v564 = vld [vmem:[%s236 + $0xe4] sm:$0xf]
      %v565 = vld [vmem:[%s236 + $0xe8] sm:$0xf]
      %v566 = vld [vmem:[%s236 + $0xec] sm:$0xf]
      %v567 = vld [vmem:[%s236 + $0xf0] sm:$0xf]
      %v568 = vld [vmem:[%s236 + $0xf4] sm:$0xf]
      %v569 = vld [vmem:[%s236 + $0xf8] sm:$0xf]
      %v570 = vld [vmem:[%s236 + $0xfc] sm:$0xf]
      %v571 = vld [vmem:[%s236 + $0x100] sm:$0xf]
      %v572 = vld [vmem:[%s236 + $0x104] sm:$0xf]
      %v573 = vld [vmem:[%s236 + $0x108] sm:$0xf]
      %v574 = vld [vmem:[%s236 + $0x10c] sm:$0xf]
      %v575 = vld [vmem:[%s236 + $0x110] sm:$0xf]
      %v576 = vld [vmem:[%s236 + $0x114] sm:$0xf]
      %v577 = vld [vmem:[%s236 + $0x118] sm:$0xf]
      %v578 = vld [vmem:[%s236 + $0x11c] sm:$0xf]
      %v579 = vld [vmem:[%s236 + $0x120] sm:$0xf]
      %v580 = vld [vmem:[%s236 + $0x124] sm:$0xf]
      %v581 = vld [vmem:[%s236 + $0x128] sm:$0xf]
      %v582 = vld [vmem:[%s236 + $0x12c] sm:$0xf]
      %v583 = vld [vmem:[%s236 + $0x130] sm:$0xf]
      %v584 = vld [vmem:[%s236 + $0x134] sm:$0xf]
      %v585 = vld [vmem:[%s236 + $0x138] sm:$0xf]
      %v586 = vld [vmem:[%s236 + $0x13c] sm:$0xf]
      %v587 = vld [vmem:[%s236 + $0x140] sm:$0xf]
      %v588 = vld [vmem:[%s236 + $0x144] sm:$0xf]
      %v589 = vld [vmem:[%s236 + $0x148] sm:$0xf]
      %v590 = vld [vmem:[%s236 + $0x14c] sm:$0xf]
      %v591 = vld [vmem:[%s236 + $0x150] sm:$0xf]
      %v592 = vld [vmem:[%s236 + $0x154] sm:$0xf]
      %v593 = vld [vmem:[%s236 + $0x158] sm:$0xf]
      %v594 = vld [vmem:[%s236 + $0x15c] sm:$0xf]
      %v595 = vld [vmem:[%s236 + $0x160] sm:$0xf]
      %v596 = vld [vmem:[%s236 + $0x164] sm:$0xf]
      %v597 = vld [vmem:[%s236 + $0x168] sm:$0xf]
      %v598 = vld [vmem:[%s236 + $0x16c] sm:$0xf]
      %v599 = vld [vmem:[%s236 + $0x170] sm:$0xf]
      %v600 = vld [vmem:[%s236 + $0x174] sm:$0xf]
      %v601 = vld [vmem:[%s236 + $0x178] sm:$0xf]
      %v602 = vld [vmem:[%s236 + $0x17c] sm:$0xf]
      %v603 = vld [vmem:[%s236 + $0x180] sm:$0xf]
      %v604 = vld [vmem:[%s236 + $0x184] sm:$0xf]
      %v605 = vld [vmem:[%s236 + $0x188] sm:$0xf]
      %v606 = vld [vmem:[%s236 + $0x18c] sm:$0xf]
      %v607 = vld [vmem:[%s236 + $0x190] sm:$0xf]
      %v608 = vld [vmem:[%s236 + $0x194] sm:$0xf]
      %v609 = vld [vmem:[%s236 + $0x198] sm:$0xf]
      %v610 = vld [vmem:[%s236 + $0x19c] sm:$0xf]
      %v611 = vld [vmem:[%s236 + $0x1a0] sm:$0xf]
      %v612 = vld [vmem:[%s236 + $0x1a4] sm:$0xf]
      %v613 = vld [vmem:[%s236 + $0x1a8] sm:$0xf]
      %v614 = vld [vmem:[%s236 + $0x1ac] sm:$0xf]
      %v615 = vld [vmem:[%s236 + $0x1b0] sm:$0xf]
      %v616 = vld [vmem:[%s236 + $0x1b4] sm:$0xf]
      %v617 = vld [vmem:[%s236 + $0x1b8] sm:$0xf]
      %v618 = vld [vmem:[%s236 + $0x1bc] sm:$0xf]
      %v619 = vld [vmem:[%s236 + $0x1c0] sm:$0xf]
      %v620 = vld [vmem:[%s236 + $0x1c4] sm:$0xf]
      %v621 = vld [vmem:[%s236 + $0x1c8] sm:$0xf]
      %v622 = vld [vmem:[%s236 + $0x1cc] sm:$0xf]
      %v623 = vld [vmem:[%s236 + $0x1d0] sm:$0xf]
      %v624 = vld [vmem:[%s236 + $0x1d4] sm:$0xf]
      %v625 = vld [vmem:[%s236 + $0x1d8] sm:$0xf]
      %v626 = vld [vmem:[%s236 + $0x1dc] sm:$0xf]
      %v627 = vld [vmem:[%s236 + $0x1e0] sm:$0xf]
      %v628 = vld [vmem:[%s236 + $0x1e4] sm:$0xf]
      %v629 = vld [vmem:[%s236 + $0x1e8] sm:$0xf]
      %v630 = vld [vmem:[%s236 + $0x1ec] sm:$0xf]
      %v631 = vld [vmem:[%s236 + $0x1f0] sm:$0xf]
      %v632 = vld [vmem:[%s236 + $0x1f4] sm:$0xf]
      %v633 = vld [vmem:[%s236 + $0x1f8] sm:$0xf]
      %v634 = vld [vmem:[%s236 + $0x1fc] sm:$0xf]
      %v635 = vld [vmem:[%s236 + $0x200] sm:$0xf]
      %v636 = vld [vmem:[%s236 + $0x204] sm:$0xf]
      %v637 = vld [vmem:[%s236 + $0x208] sm:$0xf]
      %v638 = vld [vmem:[%s236 + $0x20c] sm:$0xf]
      %v639 = vld [vmem:[%s236 + $0x210] sm:$0xf]
      %v640 = vld [vmem:[%s236 + $0x214] sm:$0xf]
      %v641 = vld [vmem:[%s236 + $0x218] sm:$0xf]
      %v642 = vld [vmem:[%s236 + $0x21c] sm:$0xf]
      %v643 = vld [vmem:[%s236 + $0x220] sm:$0xf]
      %v644 = vld [vmem:[%s236 + $0x224] sm:$0xf]
      %v645 = vld [vmem:[%s236 + $0x228] sm:$0xf]
      %v646 = vld [vmem:[%s236 + $0x22c] sm:$0xf]
      %v647 = vld [vmem:[%s236 + $0x230] sm:$0xf]
      %v648 = vld [vmem:[%s236 + $0x234] sm:$0xf]
      %v649 = vld [vmem:[%s236 + $0x238] sm:$0xf]
      %v650 = vld [vmem:[%s236 + $0x23c] sm:$0xf]
      %v651 = vld [vmem:[%s236 + $0x240] sm:$0xf]
      %v652 = vld [vmem:[%s236 + $0x244] sm:$0xf]
      %v653 = vld [vmem:[%s236 + $0x248] sm:$0xf]
      %v654 = vld [vmem:[%s236 + $0x24c] sm:$0xf]
      %v655 = vld [vmem:[%s236 + $0x250] sm:$0xf]
      %v656 = vld [vmem:[%s236 + $0x254] sm:$0xf]
      %v657 = vld [vmem:[%s236 + $0x258] sm:$0xf]
      %v658 = vld [vmem:[%s236 + $0x25c] sm:$0xf]
      %v659 = vld [vmem:[%s236 + $0x260] sm:$0xf]
      %v660 = vld [vmem:[%s236 + $0x264] sm:$0xf]
      %v661 = vld [vmem:[%s236 + $0x268] sm:$0xf]
      %v662 = vld [vmem:[%s236 + $0x26c] sm:$0xf]
      %v663 = vld [vmem:[%s236 + $0x270] sm:$0xf]
      %v664 = vld [vmem:[%s236 + $0x274] sm:$0xf]
      %v665 = vld [vmem:[%s236 + $0x278] sm:$0xf]
      %v666 = vld [vmem:[%s236 + $0x27c] sm:$0xf]
      %v667 = vld [vmem:[%s236 + $0x280] sm:$0xf]
      %v668 = vld [vmem:[%s236 + $0x284] sm:$0xf]
      %v669 = vld [vmem:[%s236 + $0x288] sm:$0xf]
      %v670 = vld [vmem:[%s236 + $0x28c] sm:$0xf]
      %v671 = vld [vmem:[%s236 + $0x290] sm:$0xf]
      %v672 = vld [vmem:[%s236 + $0x294] sm:$0xf]
      %v673 = vld [vmem:[%s236 + $0x298] sm:$0xf]
      %v674 = vld [vmem:[%s236 + $0x29c] sm:$0xf]
      %v675 = vld [vmem:[%s236 + $0x2a0] sm:$0xf]
      %v676 = vld [vmem:[%s236 + $0x2a4] sm:$0xf]
      %v677 = vld [vmem:[%s236 + $0x2a8] sm:$0xf]
      %v678 = vld [vmem:[%s236 + $0x2ac] sm:$0xf]
      %v679 = vld [vmem:[%s236 + $0x2b0] sm:$0xf]
      %v680 = vld [vmem:[%s236 + $0x2b4] sm:$0xf]
      %v681 = vld [vmem:[%s236 + $0x2b8] sm:$0xf]
      %v682 = vld [vmem:[%s236 + $0x2bc] sm:$0xf]
      %v683 = vld [vmem:[%s236 + $0x2c0] sm:$0xf]
      %v684 = vld [vmem:[%s236 + $0x2c4] sm:$0xf]
      %v685 = vld [vmem:[%s236 + $0x2c8] sm:$0xf]
      %v686 = vld [vmem:[%s236 + $0x2cc] sm:$0xf]
      %v687 = vld [vmem:[%s236 + $0x2d0] sm:$0xf]
      %v688 = vld [vmem:[%s236 + $0x2d4] sm:$0xf]
      %v689 = vld [vmem:[%s236 + $0x2d8] sm:$0xf]
      %v690 = vld [vmem:[%s236 + $0x2dc] sm:$0xf]
      %v691 = vld [vmem:[%s236 + $0x2e0] sm:$0xf]
      %v692 = vld [vmem:[%s236 + $0x2e4] sm:$0xf]
      %v693 = vld [vmem:[%s236 + $0x2e8] sm:$0xf]
      %v694 = vld [vmem:[%s236 + $0x2ec] sm:$0xf]
      %v695 = vld [vmem:[%s236 + $0x2f0] sm:$0xf]
      %v696 = vld [vmem:[%s236 + $0x2f4] sm:$0xf]
      %v697 = vld [vmem:[%s236 + $0x2f8] sm:$0xf]
      %v698 = vld [vmem:[%s236 + $0x2fc] sm:$0xf]
      %v699 = vld [vmem:[%s236 + $0x300] sm:$0xf]
      %v700 = vld [vmem:[%s236 + $0x304] sm:$0xf]
      %v701 = vld [vmem:[%s236 + $0x308] sm:$0xf]
      %v702 = vld [vmem:[%s236 + $0x30c] sm:$0xf]
      %v703 = vld [vmem:[%s236 + $0x310] sm:$0xf]
      %v704 = vld [vmem:[%s236 + $0x314] sm:$0xf]
      %v705 = vld [vmem:[%s236 + $0x318] sm:$0xf]
      %v706 = vld [vmem:[%s236 + $0x31c] sm:$0xf]
      %v707 = vld [vmem:[%s236 + $0x320] sm:$0xf]
      %v708 = vld [vmem:[%s236 + $0x324] sm:$0xf]
      %v709 = vld [vmem:[%s236 + $0x328] sm:$0xf]
      %v710 = vld [vmem:[%s236 + $0x32c] sm:$0xf]
      %v711 = vld [vmem:[%s236 + $0x330] sm:$0xf]
      %v712 = vld [vmem:[%s236 + $0x334] sm:$0xf]
      %v713 = vld [vmem:[%s236 + $0x338] sm:$0xf]
      %v714 = vld [vmem:[%s236 + $0x33c] sm:$0xf]
      %v715 = vld [vmem:[%s236 + $0x340] sm:$0xf]
      %v716 = vld [vmem:[%s236 + $0x344] sm:$0xf]
      %v717 = vld [vmem:[%s236 + $0x348] sm:$0xf]
      %v718 = vld [vmem:[%s236 + $0x34c] sm:$0xf]
      %v719 = vld [vmem:[%s236 + $0x350] sm:$0xf]
      %v720 = vld [vmem:[%s236 + $0x354] sm:$0xf]
      %v721 = vld [vmem:[%s236 + $0x358] sm:$0xf]
      %v722 = vld [vmem:[%s236 + $0x35c] sm:$0xf]
      %v723 = vld [vmem:[%s236 + $0x360] sm:$0xf]
      %v724 = vld [vmem:[%s236 + $0x364] sm:$0xf]
      %v725 = vld [vmem:[%s236 + $0x368] sm:$0xf]
      %v726 = vld [vmem:[%s236 + $0x36c] sm:$0xf]
      %v727 = vld [vmem:[%s236 + $0x370] sm:$0xf]
      %v728 = vld [vmem:[%s236 + $0x374] sm:$0xf]
      %v729 = vld [vmem:[%s236 + $0x378] sm:$0xf]
      %v730 = vld [vmem:[%s236 + $0x37c] sm:$0xf]
      %v731 = vld [vmem:[%s236 + $0x380] sm:$0xf]
      %v732 = vld [vmem:[%s236 + $0x384] sm:$0xf]
      %v733 = vld [vmem:[%s236 + $0x388] sm:$0xf]
      %v734 = vld [vmem:[%s236 + $0x38c] sm:$0xf]
      %v735 = vld [vmem:[%s236 + $0x390] sm:$0xf]
      %v736 = vld [vmem:[%s236 + $0x394] sm:$0xf]
      %v737 = vld [vmem:[%s236 + $0x398] sm:$0xf]
      %v738 = vld [vmem:[%s236 + $0x39c] sm:$0xf]
      %v739 = vld [vmem:[%s236 + $0x3a0] sm:$0xf]
      %v740 = vld [vmem:[%s236 + $0x3a4] sm:$0xf]
      %v741 = vld [vmem:[%s236 + $0x3a8] sm:$0xf]
      %v742 = vld [vmem:[%s236 + $0x3ac] sm:$0xf]
      %v743 = vld [vmem:[%s236 + $0x3b0] sm:$0xf]
      %v744 = vld [vmem:[%s236 + $0x3b4] sm:$0xf]
      %v745 = vld [vmem:[%s236 + $0x3b8] sm:$0xf]
      %v746 = vld [vmem:[%s236 + $0x3bc] sm:$0xf]
      %v747 = vld [vmem:[%s236 + $0x3c0] sm:$0xf]
      %v748 = vld [vmem:[%s236 + $0x3c4] sm:$0xf]
      %v749 = vld [vmem:[#allocation2] sm:$0xff]
      %v750 = vld [vmem:[#allocation2 + $0x8] sm:$0xff]
      %v751 = vld [vmem:[#allocation2 + $0x10] sm:$0xff]
      %v752 = vld [vmem:[#allocation2 + $0x18] sm:$0xff]
      %v753 = vld [vmem:[#allocation2 + $0x20] sm:$0xff]
      %v754 = vld [vmem:[#allocation2 + $0x28] sm:$0xff]
      %v755 = vld [vmem:[#allocation2 + $0x30] sm:$0xff]
      %v756 = vld [vmem:[#allocation2 + $0x38] sm:$0xff]
      %v757 = vld [vmem:[#allocation2 + $0x40] sm:$0xff]
      %v758 = vld [vmem:[#allocation2 + $0x48] sm:$0xff]
      %v759 = vld [vmem:[#allocation2 + $0x50] sm:$0xff]
      %v760 = vld [vmem:[#allocation2 + $0x58] sm:$0xff]
      %v761 = vld [vmem:[#allocation2 + $0x60] sm:$0xff]
      %v762 = vld [vmem:[#allocation2 + $0x68] sm:$0xff]
      %v763 = vld [vmem:[#allocation2 + $0x70] sm:$0xff]
      %v764 = vld [vmem:[#allocation2 + $0x78] sm:$0xff]
      %v765 = vld [vmem:[#allocation2 + $0x80] sm:$0xff]
      %v766 = vld [vmem:[#allocation2 + $0x88] sm:$0xff]
      %v767 = vld [vmem:[#allocation2 + $0x90] sm:$0xff]
      %v768 = vld [vmem:[#allocation2 + $0x98] sm:$0xff]
      %v769 = vld [vmem:[#allocation2 + $0xa0] sm:$0xff]
      %v770 = vld [vmem:[#allocation2 + $0xa8] sm:$0xff]
      %v771 = vld [vmem:[#allocation2 + $0xb0] sm:$0xff]
      %v772 = vld [vmem:[#allocation2 + $0xb8] sm:$0xff]
      %v773 = vld [vmem:[#allocation2 + $0xc0] sm:$0xff]
      %v774 = vld [vmem:[#allocation2 + $0xc8] sm:$0xff]
      %v775 = vld [vmem:[#allocation2 + $0xd0] sm:$0xff]
      %v776 = vld [vmem:[#allocation2 + $0xd8] sm:$0xff]
      %v777 = vld [vmem:[#allocation2 + $0xe0] sm:$0xff]
      %v778 = vld [vmem:[#allocation2 + $0xe8] sm:$0xff]
      %v779 = vld [vmem:[#allocation2 + $0xf0] sm:$0xff]
      %v780 = vld [vmem:[#allocation2 + $0xf8] sm:$0xff]
      %v781 = vld [vmem:[#allocation2 + $0x100] sm:$0xff]
      %v782 = vld [vmem:[#allocation2 + $0x108] sm:$0xff]
      %v783 = vld [vmem:[#allocation2 + $0x110] sm:$0xff]
      %v784 = vld [vmem:[#allocation2 + $0x118] sm:$0xff]
      %v785 = vld [vmem:[#allocation2 + $0x120] sm:$0xff]
      %v786 = vld [vmem:[#allocation2 + $0x128] sm:$0xff]
      %v787 = vld [vmem:[#allocation2 + $0x130] sm:$0xff]
      %v788 = vld [vmem:[#allocation2 + $0x138] sm:$0xff]
      %v789 = vld [vmem:[#allocation2 + $0x140] sm:$0xff]
      %v790 = vld [vmem:[#allocation2 + $0x148] sm:$0xff]
      %v791 = vld [vmem:[#allocation2 + $0x150] sm:$0xff]
      %v792 = vld [vmem:[#allocation2 + $0x158] sm:$0xff]
      %v793 = vld [vmem:[#allocation2 + $0x160] sm:$0xff]
      %v794 = vld [vmem:[#allocation2 + $0x168] sm:$0xff]
      %v795 = vld [vmem:[#allocation2 + $0x170] sm:$0xff]
      %v796 = vld [vmem:[#allocation2 + $0x178] sm:$0xff]
      %v797 = vld [vmem:[#allocation2 + $0x180] sm:$0xff]
      %v798 = vld [vmem:[#allocation2 + $0x188] sm:$0xff]
      %v799 = vld [vmem:[#allocation2 + $0x190] sm:$0xff]
      %v800 = vld [vmem:[#allocation2 + $0x198] sm:$0xff]
      %v801 = vld [vmem:[#allocation2 + $0x1a0] sm:$0xff]
      %v802 = vld [vmem:[#allocation2 + $0x1a8] sm:$0xff]
      %v803 = vld [vmem:[#allocation2 + $0x1b0] sm:$0xff]
      %v804 = vld [vmem:[#allocation2 + $0x1b8] sm:$0xff]
      %v805 = vld [vmem:[#allocation2 + $0x1c0] sm:$0xff]
      %v806 = vld [vmem:[#allocation2 + $0x1c8] sm:$0xff]
      %v807 = vld [vmem:[#allocation2 + $0x1d0] sm:$0xff]
      %v808 = vld [vmem:[#allocation2 + $0x1d8] sm:$0xff]
      %v809 = vld [vmem:[#allocation2 + $0x1e0] sm:$0xff]
      %v810 = vld [vmem:[#allocation2 + $0x1e8] sm:$0xff]
      %v811 = vld [vmem:[#allocation2 + $0x1f0] sm:$0xff]
      %v812 = vld [vmem:[#allocation2 + $0x1f8] sm:$0xff]
      %v813 = vld [vmem:[#allocation2 + $0x200] sm:$0xff]
      %v814 = vld [vmem:[#allocation2 + $0x208] sm:$0xff]
      %v815 = vld [vmem:[#allocation2 + $0x210] sm:$0xff]
      %v816 = vld [vmem:[#allocation2 + $0x218] sm:$0xff]
      %v817 = vld [vmem:[#allocation2 + $0x220] sm:$0xff]
      %v818 = vld [vmem:[#allocation2 + $0x228] sm:$0xff]
      %v819 = vld [vmem:[#allocation2 + $0x230] sm:$0xff]
      %v820 = vld [vmem:[#allocation2 + $0x238] sm:$0xff]
      %v821 = vld [vmem:[#allocation2 + $0x240] sm:$0xff]
      %v822 = vld [vmem:[#allocation2 + $0x248] sm:$0xff]
      %v823 = vld [vmem:[#allocation2 + $0x250] sm:$0xff]
      %v824 = vld [vmem:[#allocation2 + $0x258] sm:$0xff]
      %v825 = vld [vmem:[#allocation2 + $0x260] sm:$0xff]
      %v826 = vld [vmem:[#allocation2 + $0x268] sm:$0xff]
      %v827 = vld [vmem:[#allocation2 + $0x270] sm:$0xff]
      %v828 = vld [vmem:[#allocation2 + $0x278] sm:$0xff]
      %v829 = vld [vmem:[#allocation2 + $0x280] sm:$0xff]
      %v830 = vld [vmem:[#allocation2 + $0x288] sm:$0xff]
      %v831 = vld [vmem:[#allocation2 + $0x290] sm:$0xff]
      %v832 = vld [vmem:[#allocation2 + $0x298] sm:$0xff]
      %v833 = vld [vmem:[#allocation2 + $0x2a0] sm:$0xff]
      %v834 = vld [vmem:[#allocation2 + $0x2a8] sm:$0xff]
      %v835 = vld [vmem:[#allocation2 + $0x2b0] sm:$0xff]
      %v836 = vld [vmem:[#allocation2 + $0x2b8] sm:$0xff]
      %v837 = vld [vmem:[#allocation2 + $0x2c0] sm:$0xff]
      %v838 = vld [vmem:[#allocation2 + $0x2c8] sm:$0xff]
      %v839 = vld [vmem:[#allocation2 + $0x2d0] sm:$0xff]
      %v840 = vld [vmem:[#allocation2 + $0x2d8] sm:$0xff]
      %v841 = vld [vmem:[#allocation2 + $0x2e0] sm:$0xff]
      %v842 = vld [vmem:[#allocation2 + $0x2e8] sm:$0xff]
      %v843 = vld [vmem:[#allocation2 + $0x2f0] sm:$0xff]
      %v844 = vld [vmem:[#allocation2 + $0x2f8] sm:$0xff]
      %v845 = vld [vmem:[#allocation2 + $0x300] sm:$0xff]
      %v846 = vld [vmem:[#allocation2 + $0x308] sm:$0xff]
      %v847 = vld [vmem:[#allocation2 + $0x310] sm:$0xff]
      %v848 = vld [vmem:[#allocation2 + $0x318] sm:$0xff]
      %v849 = vld [vmem:[#allocation2 + $0x320] sm:$0xff]
      %v850 = vld [vmem:[#allocation2 + $0x328] sm:$0xff]
      %v851 = vld [vmem:[#allocation2 + $0x330] sm:$0xff]
      %v852 = vld [vmem:[#allocation2 + $0x338] sm:$0xff]
      %v853 = vld [vmem:[#allocation2 + $0x340] sm:$0xff]
      %v854 = vld [vmem:[#allocation2 + $0x348] sm:$0xff]
      %v855 = vld [vmem:[#allocation2 + $0x350] sm:$0xff]
      %v856 = vld [vmem:[#allocation2 + $0x358] sm:$0xff]
      %v857 = vld [vmem:[#allocation2 + $0x360] sm:$0xff]
      %v858 = vld [vmem:[#allocation2 + $0x368] sm:$0xff]
      %v859 = vld [vmem:[#allocation2 + $0x370] sm:$0xff]
      %v860 = vld [vmem:[#allocation2 + $0x378] sm:$0xff]
      %v861 = vld [vmem:[#allocation2 + $0x380] sm:$0xff]
      %v862 = vld [vmem:[#allocation2 + $0x388] sm:$0xff]
      %v863 = vld [vmem:[#allocation2 + $0x390] sm:$0xff]
      %v864 = vld [vmem:[#allocation2 + $0x398] sm:$0xff]
      %v865 = vld [vmem:[#allocation2 + $0x3a0] sm:$0xff]
      %v866 = vld [vmem:[#allocation2 + $0x3a8] sm:$0xff]
      %v867 = vld [vmem:[#allocation2 + $0x3b0] sm:$0xff]
      %v868 = vld [vmem:[#allocation2 + $0x3b8] sm:$0xff]
      %v869 = vld [vmem:[#allocation2 + $0x3c0] sm:$0xff]
      %v870 = vld [vmem:[#allocation2 + $0x3c8] sm:$0xff]
      %v871 = vld [vmem:[#allocation2 + $0x3d0] sm:$0xff]
      %v872 = vld [vmem:[#allocation2 + $0x3d8] sm:$0xff]
      %v873 = vld [vmem:[#allocation2 + $0x3e0] sm:$0xff]
      %v874 = vld [vmem:[#allocation2 + $0x3e8] sm:$0xff]
      %v875 = vld [vmem:[#allocation2 + $0x3f0] sm:$0xff]
      %v876 = vld [vmem:[#allocation2 + $0x3f8] sm:$0xff]
      %v877 = vld [vmem:[#allocation2 + $0x400] sm:$0xff]
      %v878 = vld [vmem:[#allocation2 + $0x408] sm:$0xff]
      %v879 = vld [vmem:[#allocation2 + $0x410] sm:$0xff]
      %v880 = vld [vmem:[#allocation2 + $0x418] sm:$0xff]
      %v881 = vld [vmem:[#allocation2 + $0x420] sm:$0xff]
      %v882 = vld [vmem:[#allocation2 + $0x428] sm:$0xff]
      %v883 = vld [vmem:[#allocation2 + $0x430] sm:$0xff]
      %v884 = vld [vmem:[#allocation2 + $0x438] sm:$0xff]
      %v885 = vld [vmem:[#allocation2 + $0x440] sm:$0xff]
      %v886 = vld [vmem:[#allocation2 + $0x448] sm:$0xff]
      %v887 = vld [vmem:[#allocation2 + $0x450] sm:$0xff]
      %v888 = vld [vmem:[#allocation2 + $0x458] sm:$0xff]
      %v889 = vld [vmem:[#allocation2 + $0x460] sm:$0xff]
      %v890 = vld [vmem:[#allocation2 + $0x468] sm:$0xff]
      %v891 = vld [vmem:[#allocation2 + $0x470] sm:$0xff]
      %v892 = vld [vmem:[#allocation2 + $0x478] sm:$0xff]
      %v893 = vld [vmem:[#allocation2 + $0x480] sm:$0xff]
      %v894 = vld [vmem:[#allocation2 + $0x488] sm:$0xff]
      %v895 = vld [vmem:[#allocation2 + $0x490] sm:$0xff]
      %v896 = vld [vmem:[#allocation2 + $0x498] sm:$0xff]
      %v897 = vld [vmem:[#allocation2 + $0x4a0] sm:$0xff]
      %v898 = vld [vmem:[#allocation2 + $0x4a8] sm:$0xff]
      %v899 = vld [vmem:[#allocation2 + $0x4b0] sm:$0xff]
      %v900 = vld [vmem:[#allocation2 + $0x4b8] sm:$0xff]
      %v901 = vld [vmem:[#allocation2 + $0x4c0] sm:$0xff]
      %v902 = vld [vmem:[#allocation2 + $0x4c8] sm:$0xff]
      %v903 = vld [vmem:[#allocation2 + $0x4d0] sm:$0xff]
      %v904 = vld [vmem:[#allocation2 + $0x4d8] sm:$0xff]
      %v905 = vld [vmem:[#allocation2 + $0x4e0] sm:$0xff]
      %v906 = vld [vmem:[#allocation2 + $0x4e8] sm:$0xff]
      %v907 = vld [vmem:[#allocation2 + $0x4f0] sm:$0xff]
      %v908 = vld [vmem:[#allocation2 + $0x4f8] sm:$0xff]
      %v909 = vld [vmem:[#allocation2 + $0x500] sm:$0xff]
      %v910 = vld [vmem:[#allocation2 + $0x508] sm:$0xff]
      %v911 = vld [vmem:[#allocation2 + $0x510] sm:$0xff]
      %v912 = vld [vmem:[#allocation2 + $0x518] sm:$0xff]
      %v913 = vld [vmem:[#allocation2 + $0x520] sm:$0xff]
      %v914 = vld [vmem:[#allocation2 + $0x528] sm:$0xff]
      %v915 = vld [vmem:[#allocation2 + $0x530] sm:$0xff]
      %v916 = vld [vmem:[#allocation2 + $0x538] sm:$0xff]
      %v917 = vld [vmem:[#allocation2 + $0x540] sm:$0xff]
      %v918 = vld [vmem:[#allocation2 + $0x548] sm:$0xff]
      %v919 = vld [vmem:[#allocation2 + $0x550] sm:$0xff]
      %v920 = vld [vmem:[#allocation2 + $0x558] sm:$0xff]
      %v921 = vld [vmem:[#allocation2 + $0x560] sm:$0xff]
      %v922 = vld [vmem:[#allocation2 + $0x568] sm:$0xff]
      %v923 = vld [vmem:[#allocation2 + $0x570] sm:$0xff]
      %v924 = vld [vmem:[#allocation2 + $0x578] sm:$0xff]
      %v925 = vld [vmem:[#allocation2 + $0x580] sm:$0xff]
      %v926 = vld [vmem:[#allocation2 + $0x588] sm:$0xff]
      %v927 = vld [vmem:[#allocation2 + $0x590] sm:$0xff]
      %v928 = vld [vmem:[#allocation2 + $0x598] sm:$0xff]
      %v929 = vld [vmem:[#allocation2 + $0x5a0] sm:$0xff]
      %v930 = vld [vmem:[#allocation2 + $0x5a8] sm:$0xff]
      %v931 = vld [vmem:[#allocation2 + $0x5b0] sm:$0xff]
      %v932 = vld [vmem:[#allocation2 + $0x5b8] sm:$0xff]
      %v933 = vld [vmem:[#allocation2 + $0x5c0] sm:$0xff]
      %v934 = vld [vmem:[#allocation2 + $0x5c8] sm:$0xff]
      %v935 = vld [vmem:[#allocation2 + $0x5d0] sm:$0xff]
      %v936 = vld [vmem:[#allocation2 + $0x5d8] sm:$0xff]
      %v937 = vld [vmem:[#allocation2 + $0x5e0] sm:$0xff]
      %v938 = vld [vmem:[#allocation2 + $0x5e8] sm:$0xff]
      %v939 = vld [vmem:[#allocation2 + $0x5f0] sm:$0xff]
      %v940 = vld [vmem:[#allocation2 + $0x5f8] sm:$0xff]
      %v941 = vld [vmem:[#allocation2 + $0x600] sm:$0xff]
      %v942 = vld [vmem:[#allocation2 + $0x608] sm:$0xff]
      %v943 = vld [vmem:[#allocation2 + $0x610] sm:$0xff]
      %v944 = vld [vmem:[#allocation2 + $0x618] sm:$0xff]
      %v945 = vld [vmem:[#allocation2 + $0x620] sm:$0xff]
      %v946 = vld [vmem:[#allocation2 + $0x628] sm:$0xff]
      %v947 = vld [vmem:[#allocation2 + $0x630] sm:$0xff]
      %v948 = vld [vmem:[#allocation2 + $0x638] sm:$0xff]
      %v949 = vld [vmem:[#allocation2 + $0x640] sm:$0xff]
      %v950 = vld [vmem:[#allocation2 + $0x648] sm:$0xff]
      %v951 = vld [vmem:[#allocation2 + $0x650] sm:$0xff]
      %v952 = vld [vmem:[#allocation2 + $0x658] sm:$0xff]
      %v953 = vld [vmem:[#allocation2 + $0x660] sm:$0xff]
      %v954 = vld [vmem:[#allocation2 + $0x668] sm:$0xff]
      %v955 = vld [vmem:[#allocation2 + $0x670] sm:$0xff]
      %v956 = vld [vmem:[#allocation2 + $0x678] sm:$0xff]
      %v957 = vld [vmem:[#allocation2 + $0x680] sm:$0xff]
      %v958 = vld [vmem:[#allocation2 + $0x688] sm:$0xff]
      %v959 = vld [vmem:[#allocation2 + $0x690] sm:$0xff]
      %v960 = vld [vmem:[#allocation2 + $0x698] sm:$0xff]
      %v961 = vld [vmem:[#allocation2 + $0x6a0] sm:$0xff]
      %v962 = vld [vmem:[#allocation2 + $0x6a8] sm:$0xff]
      %v963 = vld [vmem:[#allocation2 + $0x6b0] sm:$0xff]
      %v964 = vld [vmem:[#allocation2 + $0x6b8] sm:$0xff]
      %v965 = vld [vmem:[#allocation2 + $0x6c0] sm:$0xff]
      %v966 = vld [vmem:[#allocation2 + $0x6c8] sm:$0xff]
      %v967 = vld [vmem:[#allocation2 + $0x6d0] sm:$0xff]
      %v968 = vld [vmem:[#allocation2 + $0x6d8] sm:$0xff]
      %v969 = vld [vmem:[#allocation2 + $0x6e0] sm:$0xff]
      %v970 = vld [vmem:[#allocation2 + $0x6e8] sm:$0xff]
      %v971 = vld [vmem:[#allocation2 + $0x6f0] sm:$0xff]
      %v972 = vld [vmem:[#allocation2 + $0x6f8] sm:$0xff]
      %v973 = vld [vmem:[#allocation2 + $0x700] sm:$0xff]
      %v974 = vld [vmem:[#allocation2 + $0x708] sm:$0xff]
      %v975 = vld [vmem:[#allocation2 + $0x710] sm:$0xff]
      %v976 = vld [vmem:[#allocation2 + $0x718] sm:$0xff]
      %v977 = vld [vmem:[#allocation2 + $0x720] sm:$0xff]
      %v978 = vld [vmem:[#allocation2 + $0x728] sm:$0xff]
      %v979 = vld [vmem:[#allocation2 + $0x730] sm:$0xff]
      %v980 = vld [vmem:[#allocation2 + $0x738] sm:$0xff]
      %v981 = vld [vmem:[#allocation2 + $0x740] sm:$0xff]
      %v982 = vld [vmem:[#allocation2 + $0x748] sm:$0xff]
      %v983 = vld [vmem:[#allocation2 + $0x750] sm:$0xff]
      %v984 = vld [vmem:[#allocation2 + $0x758] sm:$0xff]
      %v985 = vld [vmem:[#allocation2 + $0x760] sm:$0xff]
      %v986 = vld [vmem:[#allocation2 + $0x768] sm:$0xff]
      %v987 = vld [vmem:[#allocation2 + $0x770] sm:$0xff]
      %v988 = vld [vmem:[#allocation2 + $0x778] sm:$0xff]
      %v989 = vld [vmem:[#allocation2 + $0x780] sm:$0xff]
      %v990 = vld [vmem:[#allocation2 + $0x788] sm:$0xff]
      %v991 = vld [vmem:[%s245] sm:$0xf]
      %v992 = vld [vmem:[%s245 + $0x4] sm:$0xf]
      %v993 = vld [vmem:[%s245 + $0x8] sm:$0xf]
      %v994 = vld [vmem:[%s245 + $0xc] sm:$0xf]
      %v1237 = vunpack.c.l.b16 %v507
      %v1238 = vunpack.c.l.b16 %v508
      %v1239 = vunpack.c.l.b16 %v509
      %v1240 = vunpack.c.l.b16 %v510
      %v1241 = vunpack.c.l.b16 %v511
      %v1242 = vunpack.c.l.b16 %v512
      %v1243 = vunpack.c.l.b16 %v513
      %v1244 = vunpack.c.l.b16 %v514
      %v1245 = vunpack.c.l.b16 %v515
      %v1246 = vunpack.c.l.b16 %v516
      %v1247 = vunpack.c.l.b16 %v517
      %v1248 = vunpack.c.l.b16 %v518
      %v1249 = vunpack.c.l.b16 %v519
      %v1250 = vunpack.c.l.b16 %v520
      %v1251 = vunpack.c.l.b16 %v521
      %v1252 = vunpack.c.l.b16 %v522
      %v1253 = vunpack.c.l.b16 %v523
      %v1254 = vunpack.c.l.b16 %v524
      %v1255 = vunpack.c.l.b16 %v525
      %v1256 = vunpack.c.l.b16 %v526
      %v1257 = vunpack.c.l.b16 %v527
      %v1258 = vunpack.c.l.b16 %v528
      %v1259 = vunpack.c.l.b16 %v529
      %v1260 = vunpack.c.l.b16 %v530
      %v1261 = vunpack.c.l.b16 %v531
      %v1262 = vunpack.c.l.b16 %v532
      %v1263 = vunpack.c.l.b16 %v533
      %v1264 = vunpack.c.l.b16 %v534
      %v1265 = vunpack.c.l.b16 %v535
      %v1266 = vunpack.c.l.b16 %v536
      %v1267 = vunpack.c.l.b16 %v537
      %v1268 = vunpack.c.l.b16 %v538
      %v1269 = vunpack.c.l.b16 %v539
      %v1270 = vunpack.c.l.b16 %v540
      %v1271 = vunpack.c.l.b16 %v541
      %v1272 = vunpack.c.l.b16 %v542
      %v1273 = vunpack.c.l.b16 %v543
      %v1274 = vunpack.c.l.b16 %v544
      %v1275 = vunpack.c.l.b16 %v545
      %v1276 = vunpack.c.l.b16 %v546
      %v1277 = vunpack.c.l.b16 %v547
      %v1278 = vunpack.c.l.b16 %v548
      %v1279 = vunpack.c.l.b16 %v549
      %v1280 = vunpack.c.l.b16 %v550
      %v1281 = vunpack.c.l.b16 %v551
      %v1282 = vunpack.c.l.b16 %v552
      %v1283 = vunpack.c.l.b16 %v553
      %v1284 = vunpack.c.l.b16 %v554
      %v1285 = vunpack.c.l.b16 %v555
      %v1286 = vunpack.c.l.b16 %v556
      %v1287 = vunpack.c.l.b16 %v557
      %v1288 = vunpack.c.l.b16 %v558
      %v1289 = vunpack.c.l.b16 %v559
      %v1290 = vunpack.c.l.b16 %v560
      %v1291 = vunpack.c.l.b16 %v561
      %v1292 = vunpack.c.l.b16 %v562
      %v1293 = vunpack.c.l.b16 %v563
      %v1294 = vunpack.c.l.b16 %v564
      %v1295 = vunpack.c.l.b16 %v565
      %v1296 = vunpack.c.l.b16 %v566
      %v1297 = vunpack.c.l.b16 %v567
      %v1298 = vunpack.c.l.b16 %v568
      %v1299 = vunpack.c.l.b16 %v569
      %v1300 = vunpack.c.l.b16 %v570
      %v1301 = vunpack.c.l.b16 %v571
      %v1302 = vunpack.c.l.b16 %v572
      %v1303 = vunpack.c.l.b16 %v573
      %v1304 = vunpack.c.l.b16 %v574
      %v1305 = vunpack.c.l.b16 %v575
      %v1306 = vunpack.c.l.b16 %v576
      %v1307 = vunpack.c.l.b16 %v577
      %v1308 = vunpack.c.l.b16 %v578
      %v1309 = vunpack.c.l.b16 %v579
      %v1310 = vunpack.c.l.b16 %v580
      %v1311 = vunpack.c.l.b16 %v581
      %v1312 = vunpack.c.l.b16 %v582
      %v1313 = vunpack.c.l.b16 %v583
      %v1314 = vunpack.c.l.b16 %v584
      %v1315 = vunpack.c.l.b16 %v585
      %v1316 = vunpack.c.l.b16 %v586
      %v1317 = vunpack.c.l.b16 %v587
      %v1318 = vunpack.c.l.b16 %v588
      %v1319 = vunpack.c.l.b16 %v589
      %v1320 = vunpack.c.l.b16 %v590
      %v1321 = vunpack.c.l.b16 %v591
      %v1322 = vunpack.c.l.b16 %v592
      %v1323 = vunpack.c.l.b16 %v593
      %v1324 = vunpack.c.l.b16 %v594
      %v1325 = vunpack.c.l.b16 %v595
      %v1326 = vunpack.c.l.b16 %v596
      %v1327 = vunpack.c.l.b16 %v597
      %v1328 = vunpack.c.l.b16 %v598
      %v1329 = vunpack.c.l.b16 %v599
      %v1330 = vunpack.c.l.b16 %v600
      %v1331 = vunpack.c.l.b16 %v601
      %v1332 = vunpack.c.l.b16 %v602
      %v1333 = vunpack.c.l.b16 %v603
      %v1334 = vunpack.c.l.b16 %v604
      %v1335 = vunpack.c.l.b16 %v605
      %v1336 = vunpack.c.l.b16 %v606
      %v1337 = vunpack.c.l.b16 %v607
      %v1338 = vunpack.c.l.b16 %v608
      %v1339 = vunpack.c.l.b16 %v609
      %v1340 = vunpack.c.l.b16 %v610
      %v1341 = vunpack.c.l.b16 %v611
      %v1342 = vunpack.c.l.b16 %v612
      %v1343 = vunpack.c.l.b16 %v613
      %v1344 = vunpack.c.l.b16 %v614
      %v1345 = vunpack.c.l.b16 %v615
      %v1346 = vunpack.c.l.b16 %v616
      %v1347 = vunpack.c.l.b16 %v617
      %v1348 = vunpack.c.l.b16 %v618
      %v1349 = vunpack.c.l.b16 %v619
      %v1350 = vunpack.c.l.b16 %v620
      %v1351 = vunpack.c.l.b16 %v621
      %v1352 = vunpack.c.l.b16 %v622
      %v1353 = vunpack.c.l.b16 %v623
      %v1354 = vunpack.c.l.b16 %v624
      %v1355 = vunpack.c.l.b16 %v625
      %v1356 = vunpack.c.l.b16 %v626
      %v1357 = vunpack.c.l.b16 %v627
      %v1358 = vunpack.c.l.b16 %v628
      %v1359 = vunpack.c.l.b16 %v629
      %v1360 = vunpack.c.l.b16 %v630
      %v1361 = vunpack.c.l.b16 %v631
      %v1362 = vunpack.c.l.b16 %v632
      %v1363 = vunpack.c.l.b16 %v633
      %v1364 = vunpack.c.l.b16 %v634
      %v1365 = vunpack.c.l.b16 %v635
      %v1366 = vunpack.c.l.b16 %v636
      %v1367 = vunpack.c.l.b16 %v637
      %v1368 = vunpack.c.l.b16 %v638
      %v1369 = vunpack.c.l.b16 %v639
      %v1370 = vunpack.c.l.b16 %v640
      %v1371 = vunpack.c.l.b16 %v641
      %v1372 = vunpack.c.l.b16 %v642
      %v1373 = vunpack.c.l.b16 %v643
      %v1374 = vunpack.c.l.b16 %v644
      %v1375 = vunpack.c.l.b16 %v645
      %v1376 = vunpack.c.l.b16 %v646
      %v1377 = vunpack.c.l.b16 %v647
      %v1378 = vunpack.c.l.b16 %v648
      %v1379 = vunpack.c.l.b16 %v649
      %v1380 = vunpack.c.l.b16 %v650
      %v1381 = vunpack.c.l.b16 %v651
      %v1382 = vunpack.c.l.b16 %v652
      %v1383 = vunpack.c.l.b16 %v653
      %v1384 = vunpack.c.l.b16 %v654
      %v1385 = vunpack.c.l.b16 %v655
      %v1386 = vunpack.c.l.b16 %v656
      %v1387 = vunpack.c.l.b16 %v657
      %v1388 = vunpack.c.l.b16 %v658
      %v1389 = vunpack.c.l.b16 %v659
      %v1390 = vunpack.c.l.b16 %v660
      %v1391 = vunpack.c.l.b16 %v661
      %v1392 = vunpack.c.l.b16 %v662
      %v1393 = vunpack.c.l.b16 %v663
      %v1394 = vunpack.c.l.b16 %v664
      %v1395 = vunpack.c.l.b16 %v665
      %v1396 = vunpack.c.l.b16 %v666
      %v1397 = vunpack.c.l.b16 %v667
      %v1398 = vunpack.c.l.b16 %v668
      %v1399 = vunpack.c.l.b16 %v669
      %v1400 = vunpack.c.l.b16 %v670
      %v1401 = vunpack.c.l.b16 %v671
      %v1402 = vunpack.c.l.b16 %v672
      %v1403 = vunpack.c.l.b16 %v673
      %v1404 = vunpack.c.l.b16 %v674
      %v1405 = vunpack.c.l.b16 %v675
      %v1406 = vunpack.c.l.b16 %v676
      %v1407 = vunpack.c.l.b16 %v677
      %v1408 = vunpack.c.l.b16 %v678
      %v1409 = vunpack.c.l.b16 %v679
      %v1410 = vunpack.c.l.b16 %v680
      %v1411 = vunpack.c.l.b16 %v681
      %v1412 = vunpack.c.l.b16 %v682
      %v1413 = vunpack.c.l.b16 %v683
      %v1414 = vunpack.c.l.b16 %v684
      %v1415 = vunpack.c.l.b16 %v685
      %v1416 = vunpack.c.l.b16 %v686
      %v1417 = vunpack.c.l.b16 %v687
      %v1418 = vunpack.c.l.b16 %v688
      %v1419 = vunpack.c.l.b16 %v689
      %v1420 = vunpack.c.l.b16 %v690
      %v1421 = vunpack.c.l.b16 %v691
      %v1422 = vunpack.c.l.b16 %v692
      %v1423 = vunpack.c.l.b16 %v693
      %v1424 = vunpack.c.l.b16 %v694
      %v1425 = vunpack.c.l.b16 %v695
      %v1426 = vunpack.c.l.b16 %v696
      %v1427 = vunpack.c.l.b16 %v697
      %v1428 = vunpack.c.l.b16 %v698
      %v1429 = vunpack.c.l.b16 %v699
      %v1430 = vunpack.c.l.b16 %v700
      %v1431 = vunpack.c.l.b16 %v701
      %v1432 = vunpack.c.l.b16 %v702
      %v1433 = vunpack.c.l.b16 %v703
      %v1434 = vunpack.c.l.b16 %v704
      %v1435 = vunpack.c.l.b16 %v705
      %v1436 = vunpack.c.l.b16 %v706
      %v1437 = vunpack.c.l.b16 %v707
      %v1438 = vunpack.c.l.b16 %v708
      %v1439 = vunpack.c.l.b16 %v709
      %v1440 = vunpack.c.l.b16 %v710
      %v1441 = vunpack.c.l.b16 %v711
      %v1442 = vunpack.c.l.b16 %v712
      %v1443 = vunpack.c.l.b16 %v713
      %v1444 = vunpack.c.l.b16 %v714
      %v1445 = vunpack.c.l.b16 %v715
      %v1446 = vunpack.c.l.b16 %v716
      %v1447 = vunpack.c.l.b16 %v717
      %v1448 = vunpack.c.l.b16 %v718
      %v1449 = vunpack.c.l.b16 %v719
      %v1450 = vunpack.c.l.b16 %v720
      %v1451 = vunpack.c.l.b16 %v721
      %v1452 = vunpack.c.l.b16 %v722
      %v1453 = vunpack.c.l.b16 %v723
      %v1454 = vunpack.c.l.b16 %v724
      %v1455 = vunpack.c.l.b16 %v725
      %v1456 = vunpack.c.l.b16 %v726
      %v1457 = vunpack.c.l.b16 %v727
      %v1458 = vunpack.c.l.b16 %v728
      %v1459 = vunpack.c.l.b16 %v729
      %v1460 = vunpack.c.l.b16 %v730
      %v1461 = vunpack.c.l.b16 %v731
      %v1462 = vunpack.c.l.b16 %v732
      %v1463 = vunpack.c.l.b16 %v733
      %v1464 = vunpack.c.l.b16 %v734
      %v1465 = vunpack.c.l.b16 %v735
      %v1466 = vunpack.c.l.b16 %v736
      %v1467 = vunpack.c.l.b16 %v737
      %v1468 = vunpack.c.l.b16 %v738
      %v1469 = vunpack.c.l.b16 %v739
      %v1470 = vunpack.c.l.b16 %v740
      %v1471 = vunpack.c.l.b16 %v741
      %v1472 = vunpack.c.l.b16 %v742
      %v1473 = vunpack.c.l.b16 %v743
      %v1474 = vunpack.c.l.b16 %v744
      %v1475 = vunpack.c.l.b16 %v745
      %v1476 = vunpack.c.l.b16 %v746
      %v1477 = vunpack.c.l.b16 %v747
      %v1478 = vunpack.c.l.b16 %v748
      %v1479 = vpack.c.b16 %v1238, %v1237
      %v1480 = vpack.c.b16 %v1240, %v1239
      %v1481 = vpack.c.b16 %v1242, %v1241
      %v1482 = vpack.c.b16 %v1244, %v1243
      %v1483 = vpack.c.b16 %v1246, %v1245
      %v1484 = vpack.c.b16 %v1248, %v1247
      %v1485 = vpack.c.b16 %v1250, %v1249
      %v1486 = vpack.c.b16 %v1252, %v1251
      %v1487 = vpack.c.b16 %v1254, %v1253
      %v1488 = vpack.c.b16 %v1256, %v1255
      %v1489 = vpack.c.b16 %v1258, %v1257
      %v1490 = vpack.c.b16 %v1260, %v1259
      %v1491 = vpack.c.b16 %v1262, %v1261
      %v1492 = vpack.c.b16 %v1264, %v1263
      %v1493 = vpack.c.b16 %v1266, %v1265
      %v1494 = vpack.c.b16 %v1268, %v1267
      %v1495 = vpack.c.b16 %v1270, %v1269
      %v1496 = vpack.c.b16 %v1272, %v1271
      %v1497 = vpack.c.b16 %v1274, %v1273
      %v1498 = vpack.c.b16 %v1276, %v1275
      %v1499 = vpack.c.b16 %v1278, %v1277
      %v1500 = vpack.c.b16 %v1280, %v1279
      %v1501 = vpack.c.b16 %v1282, %v1281
      %v1502 = vpack.c.b16 %v1284, %v1283
      %v1503 = vpack.c.b16 %v1286, %v1285
      %v1504 = vpack.c.b16 %v1288, %v1287
      %v1505 = vpack.c.b16 %v1290, %v1289
      %v1506 = vpack.c.b16 %v1292, %v1291
      %v1507 = vpack.c.b16 %v1294, %v1293
      %v1508 = vpack.c.b16 %v1296, %v1295
      %v1509 = vpack.c.b16 %v1298, %v1297
      %v1510 = vpack.c.b16 %v1300, %v1299
      %v1511 = vpack.c.b16 %v1302, %v1301
      %v1512 = vpack.c.b16 %v1304, %v1303
      %v1513 = vpack.c.b16 %v1306, %v1305
      %v1514 = vpack.c.b16 %v1308, %v1307
      %v1515 = vpack.c.b16 %v1310, %v1309
      %v1516 = vpack.c.b16 %v1312, %v1311
      %v1517 = vpack.c.b16 %v1314, %v1313
      %v1518 = vpack.c.b16 %v1316, %v1315
      %v1519 = vpack.c.b16 %v1318, %v1317
      %v1520 = vpack.c.b16 %v1320, %v1319
      %v1521 = vpack.c.b16 %v1322, %v1321
      %v1522 = vpack.c.b16 %v1324, %v1323
      %v1523 = vpack.c.b16 %v1326, %v1325
      %v1524 = vpack.c.b16 %v1328, %v1327
      %v1525 = vpack.c.b16 %v1330, %v1329
      %v1526 = vpack.c.b16 %v1332, %v1331
      %v1527 = vpack.c.b16 %v1334, %v1333
      %v1528 = vpack.c.b16 %v1336, %v1335
      %v1529 = vpack.c.b16 %v1338, %v1337
      %v1530 = vpack.c.b16 %v1340, %v1339
      %v1531 = vpack.c.b16 %v1342, %v1341
      %v1532 = vpack.c.b16 %v1344, %v1343
      %v1533 = vpack.c.b16 %v1346, %v1345
      %v1534 = vpack.c.b16 %v1348, %v1347
      %v1535 = vpack.c.b16 %v1350, %v1349
      %v1536 = vpack.c.b16 %v1352, %v1351
      %v1537 = vpack.c.b16 %v1354, %v1353
      %v1538 = vpack.c.b16 %v1356, %v1355
      %v1539 = vpack.c.b16 %v1358, %v1357
      %v1540 = vpack.c.b16 %v1360, %v1359
      %v1541 = vpack.c.b16 %v1362, %v1361
      %v1542 = vpack.c.b16 %v1364, %v1363
      %v1543 = vpack.c.b16 %v1366, %v1365
      %v1544 = vpack.c.b16 %v1368, %v1367
      %v1545 = vpack.c.b16 %v1370, %v1369
      %v1546 = vpack.c.b16 %v1372, %v1371
      %v1547 = vpack.c.b16 %v1374, %v1373
      %v1548 = vpack.c.b16 %v1376, %v1375
      %v1549 = vpack.c.b16 %v1378, %v1377
      %v1550 = vpack.c.b16 %v1380, %v1379
      %v1551 = vpack.c.b16 %v1382, %v1381
      %v1552 = vpack.c.b16 %v1384, %v1383
      %v1553 = vpack.c.b16 %v1386, %v1385
      %v1554 = vpack.c.b16 %v1388, %v1387
      %v1555 = vpack.c.b16 %v1390, %v1389
      %v1556 = vpack.c.b16 %v1392, %v1391
      %v1557 = vpack.c.b16 %v1394, %v1393
      %v1558 = vpack.c.b16 %v1396, %v1395
      %v1559 = vpack.c.b16 %v1398, %v1397
      %v1560 = vpack.c.b16 %v1400, %v1399
      %v1561 = vpack.c.b16 %v1402, %v1401
      %v1562 = vpack.c.b16 %v1404, %v1403
      %v1563 = vpack.c.b16 %v1406, %v1405
      %v1564 = vpack.c.b16 %v1408, %v1407
      %v1565 = vpack.c.b16 %v1410, %v1409
      %v1566 = vpack.c.b16 %v1412, %v1411
      %v1567 = vpack.c.b16 %v1414, %v1413
      %v1568 = vpack.c.b16 %v1416, %v1415
      %v1569 = vpack.c.b16 %v1418, %v1417
      %v1570 = vpack.c.b16 %v1420, %v1419
      %v1571 = vpack.c.b16 %v1422, %v1421
      %v1572 = vpack.c.b16 %v1424, %v1423
      %v1573 = vpack.c.b16 %v1426, %v1425
      %v1574 = vpack.c.b16 %v1428, %v1427
      %v1575 = vpack.c.b16 %v1430, %v1429
      %v1576 = vpack.c.b16 %v1432, %v1431
      %v1577 = vpack.c.b16 %v1434, %v1433
      %v1578 = vpack.c.b16 %v1436, %v1435
      %v1579 = vpack.c.b16 %v1438, %v1437
      %v1580 = vpack.c.b16 %v1440, %v1439
      %v1581 = vpack.c.b16 %v1442, %v1441
      %v1582 = vpack.c.b16 %v1444, %v1443
      %v1583 = vpack.c.b16 %v1446, %v1445
      %v1584 = vpack.c.b16 %v1448, %v1447
      %v1585 = vpack.c.b16 %v1450, %v1449
      %v1586 = vpack.c.b16 %v1452, %v1451
      %v1587 = vpack.c.b16 %v1454, %v1453
      %v1588 = vpack.c.b16 %v1456, %v1455
      %v1589 = vpack.c.b16 %v1458, %v1457
      %v1590 = vpack.c.b16 %v1460, %v1459
      %v1591 = vpack.c.b16 %v1462, %v1461
      %v1592 = vpack.c.b16 %v1464, %v1463
      %v1593 = vpack.c.b16 %v1466, %v1465
      %v1594 = vpack.c.b16 %v1468, %v1467
      %v1595 = vpack.c.b16 %v1470, %v1469
      %v1596 = vpack.c.b16 %v1472, %v1471
      %v1597 = vpack.c.b16 %v1474, %v1473
      %v1598 = vpack.c.b16 %v1476, %v1475
      %v1599 = vpack.c.b16 %v1478, %v1477
      %v1604 = vunpack.c.l.b16 %v991
      %v1605 = vunpack.c.l.b16 %v992
      %v1606 = vunpack.c.l.b16 %v993
      %v1607 = vunpack.c.l.b16 %v994
      %v1608 = vpack.c.b16 %v1605, %v1604
      %v1609 = vpack.c.b16 %v1607, %v1606
      %vm1612 = vcmask 261120
      %v1614 = vsel %vm1612, %v1479, 0
      %v1617 = vsel %vm1612, %v1480, 0
      %v1620 = vsel %vm1612, %v1481, 0
      %v1623 = vsel %vm1612, %v1482, 0
      %v1626 = vsel %vm1612, %v1483, 0
      %v1629 = vsel %vm1612, %v1484, 0
      %v1632 = vsel %vm1612, %v1485, 0
      %v1635 = vsel %vm1612, %v1486, 0
      %v1638 = vsel %vm1612, %v1487, 0
      %v1641 = vsel %vm1612, %v1488, 0
      %v1644 = vsel %vm1612, %v1489, 0
      %v1647 = vsel %vm1612, %v1490, 0
      %v1650 = vsel %vm1612, %v1491, 0
      %v1653 = vsel %vm1612, %v1492, 0
      %v1656 = vsel %vm1612, %v1493, 0
      %v1659 = vsel %vm1612, %v1494, 0
      %v1662 = vsel %vm1612, %v1495, 0
      %v1665 = vsel %vm1612, %v1496, 0
      %v1668 = vsel %vm1612, %v1497, 0
      %v1671 = vsel %vm1612, %v1498, 0
      %v1674 = vsel %vm1612, %v1499, 0
      %v1677 = vsel %vm1612, %v1500, 0
      %v1680 = vsel %vm1612, %v1501, 0
      %v1683 = vsel %vm1612, %v1502, 0
      %v1686 = vsel %vm1612, %v1503, 0
      %v1689 = vsel %vm1612, %v1504, 0
      %v1692 = vsel %vm1612, %v1505, 0
      %v1695 = vsel %vm1612, %v1506, 0
      %v1698 = vsel %vm1612, %v1507, 0
      %v1701 = vsel %vm1612, %v1508, 0
      %v1704 = vsel %vm1612, %v1509, 0
      %v1707 = vsel %vm1612, %v1510, 0
      %v1710 = vsel %vm1612, %v1511, 0
      %v1713 = vsel %vm1612, %v1512, 0
      %v1716 = vsel %vm1612, %v1513, 0
      %v1719 = vsel %vm1612, %v1514, 0
      %v1722 = vsel %vm1612, %v1515, 0
      %v1725 = vsel %vm1612, %v1516, 0
      %v1728 = vsel %vm1612, %v1517, 0
      %v1731 = vsel %vm1612, %v1518, 0
      %v1734 = vsel %vm1612, %v1519, 0
      %v1737 = vsel %vm1612, %v1520, 0
      %v1740 = vsel %vm1612, %v1521, 0
      %v1743 = vsel %vm1612, %v1522, 0
      %v1746 = vsel %vm1612, %v1523, 0
      %v1749 = vsel %vm1612, %v1524, 0
      %v1752 = vsel %vm1612, %v1525, 0
      %v1755 = vsel %vm1612, %v1526, 0
      %v1758 = vsel %vm1612, %v1527, 0
      %v1761 = vsel %vm1612, %v1528, 0
      %v1764 = vsel %vm1612, %v1529, 0
      %v1767 = vsel %vm1612, %v1530, 0
      %v1770 = vsel %vm1612, %v1531, 0
      %v1773 = vsel %vm1612, %v1532, 0
      %v1776 = vsel %vm1612, %v1533, 0
      %v1779 = vsel %vm1612, %v1534, 0
      %v1782 = vsel %vm1612, %v1535, 0
      %v1785 = vsel %vm1612, %v1536, 0
      %v1788 = vsel %vm1612, %v1537, 0
      %v1791 = vsel %vm1612, %v1538, 0
      %v1794 = vsel %vm1612, %v1539, 0
      %v1797 = vsel %vm1612, %v1540, 0
      %v1800 = vsel %vm1612, %v1541, 0
      %v1803 = vsel %vm1612, %v1542, 0
      %v1806 = vsel %vm1612, %v1543, 0
      %v1809 = vsel %vm1612, %v1544, 0
      %v1812 = vsel %vm1612, %v1545, 0
      %v1815 = vsel %vm1612, %v1546, 0
      %v1818 = vsel %vm1612, %v1547, 0
      %v1821 = vsel %vm1612, %v1548, 0
      %v1824 = vsel %vm1612, %v1549, 0
      %v1827 = vsel %vm1612, %v1550, 0
      %v1830 = vsel %vm1612, %v1551, 0
      %v1833 = vsel %vm1612, %v1552, 0
      %v1836 = vsel %vm1612, %v1553, 0
      %v1839 = vsel %vm1612, %v1554, 0
      %v1842 = vsel %vm1612, %v1555, 0
      %v1845 = vsel %vm1612, %v1556, 0
      %v1848 = vsel %vm1612, %v1557, 0
      %v1851 = vsel %vm1612, %v1558, 0
      %v1854 = vsel %vm1612, %v1559, 0
      %v1857 = vsel %vm1612, %v1560, 0
      %v1860 = vsel %vm1612, %v1561, 0
      %v1863 = vsel %vm1612, %v1562, 0
      %v1866 = vsel %vm1612, %v1563, 0
      %v1869 = vsel %vm1612, %v1564, 0
      %v1872 = vsel %vm1612, %v1565, 0
      %v1875 = vsel %vm1612, %v1566, 0
      %v1878 = vsel %vm1612, %v1567, 0
      %v1881 = vsel %vm1612, %v1568, 0
      %v1884 = vsel %vm1612, %v1569, 0
      %v1887 = vsel %vm1612, %v1570, 0
      %v1890 = vsel %vm1612, %v1571, 0
      %v1893 = vsel %vm1612, %v1572, 0
      %v1896 = vsel %vm1612, %v1573, 0
      %v1899 = vsel %vm1612, %v1574, 0
      %v1902 = vsel %vm1612, %v1575, 0
      %v1905 = vsel %vm1612, %v1576, 0
      %v1908 = vsel %vm1612, %v1577, 0
      %v1911 = vsel %vm1612, %v1578, 0
      %v1914 = vsel %vm1612, %v1579, 0
      %v1917 = vsel %vm1612, %v1580, 0
      %v1920 = vsel %vm1612, %v1581, 0
      %v1923 = vsel %vm1612, %v1582, 0
      %v1926 = vsel %vm1612, %v1583, 0
      %v1929 = vsel %vm1612, %v1584, 0
      %v1932 = vsel %vm1612, %v1585, 0
      %v1935 = vsel %vm1612, %v1586, 0
      %v1938 = vsel %vm1612, %v1587, 0
      %v1941 = vsel %vm1612, %v1588, 0
      %v1944 = vsel %vm1612, %v1589, 0
      %v1947 = vsel %vm1612, %v1590, 0
      %v1950 = vsel %vm1612, %v1591, 0
      %v1953 = vsel %vm1612, %v1592, 0
      %v1956 = vsel %vm1612, %v1593, 0
      %v1959 = vsel %vm1612, %v1594, 0
      %v1962 = vsel %vm1612, %v1595, 0
      %v1965 = vsel %vm1612, %v1596, 0
      %v1968 = vsel %vm1612, %v1597, 0
      %v1971 = vsel %vm1612, %v1598, 0
      %v1974 = vsel %vm1612, %v1599, 0
      %1976 = vmatpush.bf16.msra.mxu0 0
      %1977 = vmatpush.bf16.msra.mxu0 0
      %1978 = vmatpush.bf16.msra.mxu0 0
      %1979 = vmatpush.bf16.msra.mxu0 0
      %1980 = vmatpush.bf16.msra.mxu0 0
      %1981 = vmatpush.bf16.msra.mxu0 0
      %1982 = vmatpush.bf16.msra.mxu0 %v1609
      %1983 = vmatpush.bf16.msra.mxu0 %v1608
      %1984 = vmatmul.bf16.gmra.mxu0 %v1614
      %v1985 = vpop.f32.mrf.mxu0
      %v1986 = vadd.f32 0.0, %v1985
      %v1987 = vpop.f32.mrf.mxu0
      %v1988 = vadd.f32 0.0, %v1987
      %1989 = vmatmul.bf16.gmra.mxu0 %v1617
      %v1990 = vpop.f32.mrf.mxu0
      %v1991 = vadd.f32 0.0, %v1990
      %v1992 = vpop.f32.mrf.mxu0
      %v1993 = vadd.f32 0.0, %v1992
      %1994 = vmatmul.bf16.gmra.mxu0 %v1620
      %v1995 = vpop.f32.mrf.mxu0
      %v1996 = vadd.f32 0.0, %v1995
      %v1997 = vpop.f32.mrf.mxu0
      %v1998 = vadd.f32 0.0, %v1997
      %1999 = vmatmul.bf16.gmra.mxu0 %v1623
      %v2000 = vpop.f32.mrf.mxu0
      %v2001 = vadd.f32 0.0, %v2000
      %v2002 = vpop.f32.mrf.mxu0
      %v2003 = vadd.f32 0.0, %v2002
      %2004 = vmatmul.bf16.gmra.mxu0 %v1626
      %v2005 = vpop.f32.mrf.mxu0
      %v2006 = vadd.f32 0.0, %v2005
      %v2007 = vpop.f32.mrf.mxu0
      %v2008 = vadd.f32 0.0, %v2007
      %2009 = vmatmul.bf16.gmra.mxu0 %v1629
      %v2010 = vpop.f32.mrf.mxu0
      %v2011 = vadd.f32 0.0, %v2010
      %v2012 = vpop.f32.mrf.mxu0
      %v2013 = vadd.f32 0.0, %v2012
      %2014 = vmatmul.bf16.gmra.mxu0 %v1632
      %v2015 = vpop.f32.mrf.mxu0
      %v2016 = vadd.f32 0.0, %v2015
      %v2017 = vpop.f32.mrf.mxu0
      %v2018 = vadd.f32 0.0, %v2017
      %2019 = vmatmul.bf16.gmra.mxu0 %v1635
      %v2020 = vpop.f32.mrf.mxu0
      %v2021 = vadd.f32 0.0, %v2020
      %v2022 = vpop.f32.mrf.mxu0
      %v2023 = vadd.f32 0.0, %v2022
      %2024 = vmatmul.bf16.gmra.mxu0 %v1638
      %v2025 = vpop.f32.mrf.mxu0
      %v2026 = vadd.f32 0.0, %v2025
      %v2027 = vpop.f32.mrf.mxu0
      %v2028 = vadd.f32 0.0, %v2027
      %2029 = vmatmul.bf16.gmra.mxu0 %v1641
      %v2030 = vpop.f32.mrf.mxu0
      %v2031 = vadd.f32 0.0, %v2030
      %v2032 = vpop.f32.mrf.mxu0
      %v2033 = vadd.f32 0.0, %v2032
      %2034 = vmatmul.bf16.gmra.mxu0 %v1644
      %v2035 = vpop.f32.mrf.mxu0
      %v2036 = vadd.f32 0.0, %v2035
      %v2037 = vpop.f32.mrf.mxu0
      %v2038 = vadd.f32 0.0, %v2037
      %2039 = vmatmul.bf16.gmra.mxu0 %v1647
      %v2040 = vpop.f32.mrf.mxu0
      %v2041 = vadd.f32 0.0, %v2040
      %v2042 = vpop.f32.mrf.mxu0
      %v2043 = vadd.f32 0.0, %v2042
      %2044 = vmatmul.bf16.gmra.mxu0 %v1650
      %v2045 = vpop.f32.mrf.mxu0
      %v2046 = vadd.f32 0.0, %v2045
      %v2047 = vpop.f32.mrf.mxu0
      %v2048 = vadd.f32 0.0, %v2047
      %2049 = vmatmul.bf16.gmra.mxu0 %v1653
      %v2050 = vpop.f32.mrf.mxu0
      %v2051 = vadd.f32 0.0, %v2050
      %v2052 = vpop.f32.mrf.mxu0
      %v2053 = vadd.f32 0.0, %v2052
      %2054 = vmatmul.bf16.gmra.mxu0 %v1656
      %v2055 = vpop.f32.mrf.mxu0
      %v2056 = vadd.f32 0.0, %v2055
      %v2057 = vpop.f32.mrf.mxu0
      %v2058 = vadd.f32 0.0, %v2057
      %2059 = vmatmul.bf16.gmra.mxu0 %v1659
      %v2060 = vpop.f32.mrf.mxu0
      %v2061 = vadd.f32 0.0, %v2060
      %v2062 = vpop.f32.mrf.mxu0
      %v2063 = vadd.f32 0.0, %v2062
      %2064 = vmatmul.bf16.gmra.mxu0 %v1662
      %v2065 = vpop.f32.mrf.mxu0
      %v2066 = vadd.f32 0.0, %v2065
      %v2067 = vpop.f32.mrf.mxu0
      %v2068 = vadd.f32 0.0, %v2067
      %2069 = vmatmul.bf16.gmra.mxu0 %v1665
      %v2070 = vpop.f32.mrf.mxu0
      %v2071 = vadd.f32 0.0, %v2070
      %v2072 = vpop.f32.mrf.mxu0
      %v2073 = vadd.f32 0.0, %v2072
      %2074 = vmatmul.bf16.gmra.mxu0 %v1668
      %v2075 = vpop.f32.mrf.mxu0
      %v2076 = vadd.f32 0.0, %v2075
      %v2077 = vpop.f32.mrf.mxu0
      %v2078 = vadd.f32 0.0, %v2077
      %2079 = vmatmul.bf16.gmra.mxu0 %v1671
      %v2080 = vpop.f32.mrf.mxu0
      %v2081 = vadd.f32 0.0, %v2080
      %v2082 = vpop.f32.mrf.mxu0
      %v2083 = vadd.f32 0.0, %v2082
      %2084 = vmatmul.bf16.gmra.mxu0 %v1674
      %v2085 = vpop.f32.mrf.mxu0
      %v2086 = vadd.f32 0.0, %v2085
      %v2087 = vpop.f32.mrf.mxu0
      %v2088 = vadd.f32 0.0, %v2087
      %2089 = vmatmul.bf16.gmra.mxu0 %v1677
      %v2090 = vpop.f32.mrf.mxu0
      %v2091 = vadd.f32 0.0, %v2090
      %v2092 = vpop.f32.mrf.mxu0
      %v2093 = vadd.f32 0.0, %v2092
      %2094 = vmatmul.bf16.gmra.mxu0 %v1680
      %v2095 = vpop.f32.mrf.mxu0
      %v2096 = vadd.f32 0.0, %v2095
      %v2097 = vpop.f32.mrf.mxu0
      %v2098 = vadd.f32 0.0, %v2097
      %2099 = vmatmul.bf16.gmra.mxu0 %v1683
      %v2100 = vpop.f32.mrf.mxu0
      %v2101 = vadd.f32 0.0, %v2100
      %v2102 = vpop.f32.mrf.mxu0
      %v2103 = vadd.f32 0.0, %v2102
      %2104 = vmatmul.bf16.gmra.mxu0 %v1686
      %v2105 = vpop.f32.mrf.mxu0
      %v2106 = vadd.f32 0.0, %v2105
      %v2107 = vpop.f32.mrf.mxu0
      %v2108 = vadd.f32 0.0, %v2107
      %2109 = vmatmul.bf16.gmra.mxu0 %v1689
      %v2110 = vpop.f32.mrf.mxu0
      %v2111 = vadd.f32 0.0, %v2110
      %v2112 = vpop.f32.mrf.mxu0
      %v2113 = vadd.f32 0.0, %v2112
      %2114 = vmatmul.bf16.gmra.mxu0 %v1692
      %v2115 = vpop.f32.mrf.mxu0
      %v2116 = vadd.f32 0.0, %v2115
      %v2117 = vpop.f32.mrf.mxu0
      %v2118 = vadd.f32 0.0, %v2117
      %2119 = vmatmul.bf16.gmra.mxu0 %v1695
      %v2120 = vpop.f32.mrf.mxu0
      %v2121 = vadd.f32 0.0, %v2120
      %v2122 = vpop.f32.mrf.mxu0
      %v2123 = vadd.f32 0.0, %v2122
      %2124 = vmatmul.bf16.gmra.mxu0 %v1698
      %v2125 = vpop.f32.mrf.mxu0
      %v2126 = vadd.f32 0.0, %v2125
      %v2127 = vpop.f32.mrf.mxu0
      %v2128 = vadd.f32 0.0, %v2127
      %2129 = vmatmul.bf16.gmra.mxu0 %v1701
      %v2130 = vpop.f32.mrf.mxu0
      %v2131 = vadd.f32 0.0, %v2130
      %v2132 = vpop.f32.mrf.mxu0
      %v2133 = vadd.f32 0.0, %v2132
      %2134 = vmatmul.bf16.gmra.mxu0 %v1704
      %v2135 = vpop.f32.mrf.mxu0
      %v2136 = vadd.f32 0.0, %v2135
      %v2137 = vpop.f32.mrf.mxu0
      %v2138 = vadd.f32 0.0, %v2137
      %2139 = vmatmul.bf16.gmra.mxu0 %v1707
      %v2140 = vpop.f32.mrf.mxu0
      %v2141 = vadd.f32 0.0, %v2140
      %v2142 = vpop.f32.mrf.mxu0
      %v2143 = vadd.f32 0.0, %v2142
      %2144 = vmatmul.bf16.gmra.mxu0 %v1710
      %v2145 = vpop.f32.mrf.mxu0
      %v2146 = vadd.f32 0.0, %v2145
      %v2147 = vpop.f32.mrf.mxu0
      %v2148 = vadd.f32 0.0, %v2147
      %2149 = vmatmul.bf16.gmra.mxu0 %v1713
      %v2150 = vpop.f32.mrf.mxu0
      %v2151 = vadd.f32 0.0, %v2150
      %v2152 = vpop.f32.mrf.mxu0
      %v2153 = vadd.f32 0.0, %v2152
      %2154 = vmatmul.bf16.gmra.mxu0 %v1716
      %v2155 = vpop.f32.mrf.mxu0
      %v2156 = vadd.f32 0.0, %v2155
      %v2157 = vpop.f32.mrf.mxu0
      %v2158 = vadd.f32 0.0, %v2157
      %2159 = vmatmul.bf16.gmra.mxu0 %v1719
      %v2160 = vpop.f32.mrf.mxu0
      %v2161 = vadd.f32 0.0, %v2160
      %v2162 = vpop.f32.mrf.mxu0
      %v2163 = vadd.f32 0.0, %v2162
      %2164 = vmatmul.bf16.gmra.mxu0 %v1722
      %v2165 = vpop.f32.mrf.mxu0
      %v2166 = vadd.f32 0.0, %v2165
      %v2167 = vpop.f32.mrf.mxu0
      %v2168 = vadd.f32 0.0, %v2167
      %2169 = vmatmul.bf16.gmra.mxu0 %v1725
      %v2170 = vpop.f32.mrf.mxu0
      %v2171 = vadd.f32 0.0, %v2170
      %v2172 = vpop.f32.mrf.mxu0
      %v2173 = vadd.f32 0.0, %v2172
      %2174 = vmatmul.bf16.gmra.mxu0 %v1728
      %v2175 = vpop.f32.mrf.mxu0
      %v2176 = vadd.f32 0.0, %v2175
      %v2177 = vpop.f32.mrf.mxu0
      %v2178 = vadd.f32 0.0, %v2177
      %2179 = vmatmul.bf16.gmra.mxu0 %v1731
      %v2180 = vpop.f32.mrf.mxu0
      %v2181 = vadd.f32 0.0, %v2180
      %v2182 = vpop.f32.mrf.mxu0
      %v2183 = vadd.f32 0.0, %v2182
      %2184 = vmatmul.bf16.gmra.mxu0 %v1734
      %v2185 = vpop.f32.mrf.mxu0
      %v2186 = vadd.f32 0.0, %v2185
      %v2187 = vpop.f32.mrf.mxu0
      %v2188 = vadd.f32 0.0, %v2187
      %2189 = vmatmul.bf16.gmra.mxu0 %v1737
      %v2190 = vpop.f32.mrf.mxu0
      %v2191 = vadd.f32 0.0, %v2190
      %v2192 = vpop.f32.mrf.mxu0
      %v2193 = vadd.f32 0.0, %v2192
      %2194 = vmatmul.bf16.gmra.mxu0 %v1740
      %v2195 = vpop.f32.mrf.mxu0
      %v2196 = vadd.f32 0.0, %v2195
      %v2197 = vpop.f32.mrf.mxu0
      %v2198 = vadd.f32 0.0, %v2197
      %2199 = vmatmul.bf16.gmra.mxu0 %v1743
      %v2200 = vpop.f32.mrf.mxu0
      %v2201 = vadd.f32 0.0, %v2200
      %v2202 = vpop.f32.mrf.mxu0
      %v2203 = vadd.f32 0.0, %v2202
      %2204 = vmatmul.bf16.gmra.mxu0 %v1746
      %v2205 = vpop.f32.mrf.mxu0
      %v2206 = vadd.f32 0.0, %v2205
      %v2207 = vpop.f32.mrf.mxu0
      %v2208 = vadd.f32 0.0, %v2207
      %2209 = vmatmul.bf16.gmra.mxu0 %v1749
      %v2210 = vpop.f32.mrf.mxu0
      %v2211 = vadd.f32 0.0, %v2210
      %v2212 = vpop.f32.mrf.mxu0
      %v2213 = vadd.f32 0.0, %v2212
      %2214 = vmatmul.bf16.gmra.mxu0 %v1752
      %v2215 = vpop.f32.mrf.mxu0
      %v2216 = vadd.f32 0.0, %v2215
      %v2217 = vpop.f32.mrf.mxu0
      %v2218 = vadd.f32 0.0, %v2217
      %2219 = vmatmul.bf16.gmra.mxu0 %v1755
      %v2220 = vpop.f32.mrf.mxu0
      %v2221 = vadd.f32 0.0, %v2220
      %v2222 = vpop.f32.mrf.mxu0
      %v2223 = vadd.f32 0.0, %v2222
      %2224 = vmatmul.bf16.gmra.mxu0 %v1758
      %v2225 = vpop.f32.mrf.mxu0
      %v2226 = vadd.f32 0.0, %v2225
      %v2227 = vpop.f32.mrf.mxu0
      %v2228 = vadd.f32 0.0, %v2227
      %2229 = vmatmul.bf16.gmra.mxu0 %v1761
      %v2230 = vpop.f32.mrf.mxu0
      %v2231 = vadd.f32 0.0, %v2230
      %v2232 = vpop.f32.mrf.mxu0
      %v2233 = vadd.f32 0.0, %v2232
      %2234 = vmatmul.bf16.gmra.mxu0 %v1764
      %v2235 = vpop.f32.mrf.mxu0
      %v2236 = vadd.f32 0.0, %v2235
      %v2237 = vpop.f32.mrf.mxu0
      %v2238 = vadd.f32 0.0, %v2237
      %2239 = vmatmul.bf16.gmra.mxu0 %v1767
      %v2240 = vpop.f32.mrf.mxu0
      %v2241 = vadd.f32 0.0, %v2240
      %v2242 = vpop.f32.mrf.mxu0
      %v2243 = vadd.f32 0.0, %v2242
      %2244 = vmatmul.bf16.gmra.mxu0 %v1770
      %v2245 = vpop.f32.mrf.mxu0
      %v2246 = vadd.f32 0.0, %v2245
      %v2247 = vpop.f32.mrf.mxu0
      %v2248 = vadd.f32 0.0, %v2247
      %2249 = vmatmul.bf16.gmra.mxu0 %v1773
      %v2250 = vpop.f32.mrf.mxu0
      %v2251 = vadd.f32 0.0, %v2250
      %v2252 = vpop.f32.mrf.mxu0
      %v2253 = vadd.f32 0.0, %v2252
      %2254 = vmatmul.bf16.gmra.mxu0 %v1776
      %v2255 = vpop.f32.mrf.mxu0
      %v2256 = vadd.f32 0.0, %v2255
      %v2257 = vpop.f32.mrf.mxu0
      %v2258 = vadd.f32 0.0, %v2257
      %2259 = vmatmul.bf16.gmra.mxu0 %v1779
      %v2260 = vpop.f32.mrf.mxu0
      %v2261 = vadd.f32 0.0, %v2260
      %v2262 = vpop.f32.mrf.mxu0
      %v2263 = vadd.f32 0.0, %v2262
      %2264 = vmatmul.bf16.gmra.mxu0 %v1782
      %v2265 = vpop.f32.mrf.mxu0
      %v2266 = vadd.f32 0.0, %v2265
      %v2267 = vpop.f32.mrf.mxu0
      %v2268 = vadd.f32 0.0, %v2267
      %2269 = vmatmul.bf16.gmra.mxu0 %v1785
      %v2270 = vpop.f32.mrf.mxu0
      %v2271 = vadd.f32 0.0, %v2270
      %v2272 = vpop.f32.mrf.mxu0
      %v2273 = vadd.f32 0.0, %v2272
      %2274 = vmatmul.bf16.gmra.mxu0 %v1788
      %v2275 = vpop.f32.mrf.mxu0
      %v2276 = vadd.f32 0.0, %v2275
      %v2277 = vpop.f32.mrf.mxu0
      %v2278 = vadd.f32 0.0, %v2277
      %2279 = vmatmul.bf16.gmra.mxu0 %v1791
      %v2280 = vpop.f32.mrf.mxu0
      %v2281 = vadd.f32 0.0, %v2280
      %v2282 = vpop.f32.mrf.mxu0
      %v2283 = vadd.f32 0.0, %v2282
      %2284 = vmatmul.bf16.gmra.mxu0 %v1794
      %v2285 = vpop.f32.mrf.mxu0
      %v2286 = vadd.f32 0.0, %v2285
      %v2287 = vpop.f32.mrf.mxu0
      %v2288 = vadd.f32 0.0, %v2287
      %2289 = vmatmul.bf16.gmra.mxu0 %v1797
      %v2290 = vpop.f32.mrf.mxu0
      %v2291 = vadd.f32 0.0, %v2290
      %v2292 = vpop.f32.mrf.mxu0
      %v2293 = vadd.f32 0.0, %v2292
      %2294 = vmatmul.bf16.gmra.mxu0 %v1800
      %v2295 = vpop.f32.mrf.mxu0
      %v2296 = vadd.f32 0.0, %v2295
      %v2297 = vpop.f32.mrf.mxu0
      %v2298 = vadd.f32 0.0, %v2297
      %2299 = vmatmul.bf16.gmra.mxu0 %v1803
      %v2300 = vpop.f32.mrf.mxu0
      %v2301 = vadd.f32 0.0, %v2300
      %v2302 = vpop.f32.mrf.mxu0
      %v2303 = vadd.f32 0.0, %v2302
      %2304 = vmatmul.bf16.gmra.mxu0 %v1806
      %v2305 = vpop.f32.mrf.mxu0
      %v2306 = vadd.f32 0.0, %v2305
      %v2307 = vpop.f32.mrf.mxu0
      %v2308 = vadd.f32 0.0, %v2307
      %2309 = vmatmul.bf16.gmra.mxu0 %v1809
      %v2310 = vpop.f32.mrf.mxu0
      %v2311 = vadd.f32 0.0, %v2310
      %v2312 = vpop.f32.mrf.mxu0
      %v2313 = vadd.f32 0.0, %v2312
      %2314 = vmatmul.bf16.gmra.mxu0 %v1812
      %v2315 = vpop.f32.mrf.mxu0
      %v2316 = vadd.f32 0.0, %v2315
      %v2317 = vpop.f32.mrf.mxu0
      %v2318 = vadd.f32 0.0, %v2317
      %2319 = vmatmul.bf16.gmra.mxu0 %v1815
      %v2320 = vpop.f32.mrf.mxu0
      %v2321 = vadd.f32 0.0, %v2320
      %v2322 = vpop.f32.mrf.mxu0
      %v2323 = vadd.f32 0.0, %v2322
      %2324 = vmatmul.bf16.gmra.mxu0 %v1818
      %v2325 = vpop.f32.mrf.mxu0
      %v2326 = vadd.f32 0.0, %v2325
      %v2327 = vpop.f32.mrf.mxu0
      %v2328 = vadd.f32 0.0, %v2327
      %2329 = vmatmul.bf16.gmra.mxu0 %v1821
      %v2330 = vpop.f32.mrf.mxu0
      %v2331 = vadd.f32 0.0, %v2330
      %v2332 = vpop.f32.mrf.mxu0
      %v2333 = vadd.f32 0.0, %v2332
      %2334 = vmatmul.bf16.gmra.mxu0 %v1824
      %v2335 = vpop.f32.mrf.mxu0
      %v2336 = vadd.f32 0.0, %v2335
      %v2337 = vpop.f32.mrf.mxu0
      %v2338 = vadd.f32 0.0, %v2337
      %2339 = vmatmul.bf16.gmra.mxu0 %v1827
      %v2340 = vpop.f32.mrf.mxu0
      %v2341 = vadd.f32 0.0, %v2340
      %v2342 = vpop.f32.mrf.mxu0
      %v2343 = vadd.f32 0.0, %v2342
      %2344 = vmatmul.bf16.gmra.mxu0 %v1830
      %v2345 = vpop.f32.mrf.mxu0
      %v2346 = vadd.f32 0.0, %v2345
      %v2347 = vpop.f32.mrf.mxu0
      %v2348 = vadd.f32 0.0, %v2347
      %2349 = vmatmul.bf16.gmra.mxu0 %v1833
      %v2350 = vpop.f32.mrf.mxu0
      %v2351 = vadd.f32 0.0, %v2350
      %v2352 = vpop.f32.mrf.mxu0
      %v2353 = vadd.f32 0.0, %v2352
      %2354 = vmatmul.bf16.gmra.mxu0 %v1836
      %v2355 = vpop.f32.mrf.mxu0
      %v2356 = vadd.f32 0.0, %v2355
      %v2357 = vpop.f32.mrf.mxu0
      %v2358 = vadd.f32 0.0, %v2357
      %2359 = vmatmul.bf16.gmra.mxu0 %v1839
      %v2360 = vpop.f32.mrf.mxu0
      %v2361 = vadd.f32 0.0, %v2360
      %v2362 = vpop.f32.mrf.mxu0
      %v2363 = vadd.f32 0.0, %v2362
      %2364 = vmatmul.bf16.gmra.mxu0 %v1842
      %v2365 = vpop.f32.mrf.mxu0
      %v2366 = vadd.f32 0.0, %v2365
      %v2367 = vpop.f32.mrf.mxu0
      %v2368 = vadd.f32 0.0, %v2367
      %2369 = vmatmul.bf16.gmra.mxu0 %v1845
      %v2370 = vpop.f32.mrf.mxu0
      %v2371 = vadd.f32 0.0, %v2370
      %v2372 = vpop.f32.mrf.mxu0
      %v2373 = vadd.f32 0.0, %v2372
      %2374 = vmatmul.bf16.gmra.mxu0 %v1848
      %v2375 = vpop.f32.mrf.mxu0
      %v2376 = vadd.f32 0.0, %v2375
      %v2377 = vpop.f32.mrf.mxu0
      %v2378 = vadd.f32 0.0, %v2377
      %2379 = vmatmul.bf16.gmra.mxu0 %v1851
      %v2380 = vpop.f32.mrf.mxu0
      %v2381 = vadd.f32 0.0, %v2380
      %v2382 = vpop.f32.mrf.mxu0
      %v2383 = vadd.f32 0.0, %v2382
      %2384 = vmatmul.bf16.gmra.mxu0 %v1854
      %v2385 = vpop.f32.mrf.mxu0
      %v2386 = vadd.f32 0.0, %v2385
      %v2387 = vpop.f32.mrf.mxu0
      %v2388 = vadd.f32 0.0, %v2387
      %2389 = vmatmul.bf16.gmra.mxu0 %v1857
      %v2390 = vpop.f32.mrf.mxu0
      %v2391 = vadd.f32 0.0, %v2390
      %v2392 = vpop.f32.mrf.mxu0
      %v2393 = vadd.f32 0.0, %v2392
      %2394 = vmatmul.bf16.gmra.mxu0 %v1860
      %v2395 = vpop.f32.mrf.mxu0
      %v2396 = vadd.f32 0.0, %v2395
      %v2397 = vpop.f32.mrf.mxu0
      %v2398 = vadd.f32 0.0, %v2397
      %2399 = vmatmul.bf16.gmra.mxu0 %v1863
      %v2400 = vpop.f32.mrf.mxu0
      %v2401 = vadd.f32 0.0, %v2400
      %v2402 = vpop.f32.mrf.mxu0
      %v2403 = vadd.f32 0.0, %v2402
      %2404 = vmatmul.bf16.gmra.mxu0 %v1866
      %v2405 = vpop.f32.mrf.mxu0
      %v2406 = vadd.f32 0.0, %v2405
      %v2407 = vpop.f32.mrf.mxu0
      %v2408 = vadd.f32 0.0, %v2407
      %2409 = vmatmul.bf16.gmra.mxu0 %v1869
      %v2410 = vpop.f32.mrf.mxu0
      %v2411 = vadd.f32 0.0, %v2410
      %v2412 = vpop.f32.mrf.mxu0
      %v2413 = vadd.f32 0.0, %v2412
      %2414 = vmatmul.bf16.gmra.mxu0 %v1872
      %v2415 = vpop.f32.mrf.mxu0
      %v2416 = vadd.f32 0.0, %v2415
      %v2417 = vpop.f32.mrf.mxu0
      %v2418 = vadd.f32 0.0, %v2417
      %2419 = vmatmul.bf16.gmra.mxu0 %v1875
      %v2420 = vpop.f32.mrf.mxu0
      %v2421 = vadd.f32 0.0, %v2420
      %v2422 = vpop.f32.mrf.mxu0
      %v2423 = vadd.f32 0.0, %v2422
      %2424 = vmatmul.bf16.gmra.mxu0 %v1878
      %v2425 = vpop.f32.mrf.mxu0
      %v2426 = vadd.f32 0.0, %v2425
      %v2427 = vpop.f32.mrf.mxu0
      %v2428 = vadd.f32 0.0, %v2427
      %2429 = vmatmul.bf16.gmra.mxu0 %v1881
      %v2430 = vpop.f32.mrf.mxu0
      %v2431 = vadd.f32 0.0, %v2430
      %v2432 = vpop.f32.mrf.mxu0
      %v2433 = vadd.f32 0.0, %v2432
      %2434 = vmatmul.bf16.gmra.mxu0 %v1884
      %v2435 = vpop.f32.mrf.mxu0
      %v2436 = vadd.f32 0.0, %v2435
      %v2437 = vpop.f32.mrf.mxu0
      %v2438 = vadd.f32 0.0, %v2437
      %2439 = vmatmul.bf16.gmra.mxu0 %v1887
      %v2440 = vpop.f32.mrf.mxu0
      %v2441 = vadd.f32 0.0, %v2440
      %v2442 = vpop.f32.mrf.mxu0
      %v2443 = vadd.f32 0.0, %v2442
      %2444 = vmatmul.bf16.gmra.mxu0 %v1890
      %v2445 = vpop.f32.mrf.mxu0
      %v2446 = vadd.f32 0.0, %v2445
      %v2447 = vpop.f32.mrf.mxu0
      %v2448 = vadd.f32 0.0, %v2447
      %2449 = vmatmul.bf16.gmra.mxu0 %v1893
      %v2450 = vpop.f32.mrf.mxu0
      %v2451 = vadd.f32 0.0, %v2450
      %v2452 = vpop.f32.mrf.mxu0
      %v2453 = vadd.f32 0.0, %v2452
      %2454 = vmatmul.bf16.gmra.mxu0 %v1896
      %v2455 = vpop.f32.mrf.mxu0
      %v2456 = vadd.f32 0.0, %v2455
      %v2457 = vpop.f32.mrf.mxu0
      %v2458 = vadd.f32 0.0, %v2457
      %2459 = vmatmul.bf16.gmra.mxu0 %v1899
      %v2460 = vpop.f32.mrf.mxu0
      %v2461 = vadd.f32 0.0, %v2460
      %v2462 = vpop.f32.mrf.mxu0
      %v2463 = vadd.f32 0.0, %v2462
      %2464 = vmatmul.bf16.gmra.mxu0 %v1902
      %v2465 = vpop.f32.mrf.mxu0
      %v2466 = vadd.f32 0.0, %v2465
      %v2467 = vpop.f32.mrf.mxu0
      %v2468 = vadd.f32 0.0, %v2467
      %2469 = vmatmul.bf16.gmra.mxu0 %v1905
      %v2470 = vpop.f32.mrf.mxu0
      %v2471 = vadd.f32 0.0, %v2470
      %v2472 = vpop.f32.mrf.mxu0
      %v2473 = vadd.f32 0.0, %v2472
      %2474 = vmatmul.bf16.gmra.mxu0 %v1908
      %v2475 = vpop.f32.mrf.mxu0
      %v2476 = vadd.f32 0.0, %v2475
      %v2477 = vpop.f32.mrf.mxu0
      %v2478 = vadd.f32 0.0, %v2477
      %2479 = vmatmul.bf16.gmra.mxu0 %v1911
      %v2480 = vpop.f32.mrf.mxu0
      %v2481 = vadd.f32 0.0, %v2480
      %v2482 = vpop.f32.mrf.mxu0
      %v2483 = vadd.f32 0.0, %v2482
      %2484 = vmatmul.bf16.gmra.mxu0 %v1914
      %v2485 = vpop.f32.mrf.mxu0
      %v2486 = vadd.f32 0.0, %v2485
      %v2487 = vpop.f32.mrf.mxu0
      %v2488 = vadd.f32 0.0, %v2487
      %2489 = vmatmul.bf16.gmra.mxu0 %v1917
      %v2490 = vpop.f32.mrf.mxu0
      %v2491 = vadd.f32 0.0, %v2490
      %v2492 = vpop.f32.mrf.mxu0
      %v2493 = vadd.f32 0.0, %v2492
      %2494 = vmatmul.bf16.gmra.mxu0 %v1920
      %v2495 = vpop.f32.mrf.mxu0
      %v2496 = vadd.f32 0.0, %v2495
      %v2497 = vpop.f32.mrf.mxu0
      %v2498 = vadd.f32 0.0, %v2497
      %2499 = vmatmul.bf16.gmra.mxu0 %v1923
      %v2500 = vpop.f32.mrf.mxu0
      %v2501 = vadd.f32 0.0, %v2500
      %v2502 = vpop.f32.mrf.mxu0
      %v2503 = vadd.f32 0.0, %v2502
      %2504 = vmatmul.bf16.gmra.mxu0 %v1926
      %v2505 = vpop.f32.mrf.mxu0
      %v2506 = vadd.f32 0.0, %v2505
      %v2507 = vpop.f32.mrf.mxu0
      %v2508 = vadd.f32 0.0, %v2507
      %2509 = vmatmul.bf16.gmra.mxu0 %v1929
      %v2510 = vpop.f32.mrf.mxu0
      %v2511 = vadd.f32 0.0, %v2510
      %v2512 = vpop.f32.mrf.mxu0
      %v2513 = vadd.f32 0.0, %v2512
      %2514 = vmatmul.bf16.gmra.mxu0 %v1932
      %v2515 = vpop.f32.mrf.mxu0
      %v2516 = vadd.f32 0.0, %v2515
      %v2517 = vpop.f32.mrf.mxu0
      %v2518 = vadd.f32 0.0, %v2517
      %2519 = vmatmul.bf16.gmra.mxu0 %v1935
      %v2520 = vpop.f32.mrf.mxu0
      %v2521 = vadd.f32 0.0, %v2520
      %v2522 = vpop.f32.mrf.mxu0
      %v2523 = vadd.f32 0.0, %v2522
      %2524 = vmatmul.bf16.gmra.mxu0 %v1938
      %v2525 = vpop.f32.mrf.mxu0
      %v2526 = vadd.f32 0.0, %v2525
      %v2527 = vpop.f32.mrf.mxu0
      %v2528 = vadd.f32 0.0, %v2527
      %2529 = vmatmul.bf16.gmra.mxu0 %v1941
      %v2530 = vpop.f32.mrf.mxu0
      %v2531 = vadd.f32 0.0, %v2530
      %v2532 = vpop.f32.mrf.mxu0
      %v2533 = vadd.f32 0.0, %v2532
      %2534 = vmatmul.bf16.gmra.mxu0 %v1944
      %v2535 = vpop.f32.mrf.mxu0
      %v2536 = vadd.f32 0.0, %v2535
      %v2537 = vpop.f32.mrf.mxu0
      %v2538 = vadd.f32 0.0, %v2537
      %2539 = vmatmul.bf16.gmra.mxu0 %v1947
      %v2540 = vpop.f32.mrf.mxu0
      %v2541 = vadd.f32 0.0, %v2540
      %v2542 = vpop.f32.mrf.mxu0
      %v2543 = vadd.f32 0.0, %v2542
      %2544 = vmatmul.bf16.gmra.mxu0 %v1950
      %v2545 = vpop.f32.mrf.mxu0
      %v2546 = vadd.f32 0.0, %v2545
      %v2547 = vpop.f32.mrf.mxu0
      %v2548 = vadd.f32 0.0, %v2547
      %2549 = vmatmul.bf16.gmra.mxu0 %v1953
      %v2550 = vpop.f32.mrf.mxu0
      %v2551 = vadd.f32 0.0, %v2550
      %v2552 = vpop.f32.mrf.mxu0
      %v2553 = vadd.f32 0.0, %v2552
      %2554 = vmatmul.bf16.gmra.mxu0 %v1956
      %v2555 = vpop.f32.mrf.mxu0
      %v2556 = vadd.f32 0.0, %v2555
      %v2557 = vpop.f32.mrf.mxu0
      %v2558 = vadd.f32 0.0, %v2557
      %2559 = vmatmul.bf16.gmra.mxu0 %v1959
      %v2560 = vpop.f32.mrf.mxu0
      %v2561 = vadd.f32 0.0, %v2560
      %v2562 = vpop.f32.mrf.mxu0
      %v2563 = vadd.f32 0.0, %v2562
      %2564 = vmatmul.bf16.gmra.mxu0 %v1962
      %v2565 = vpop.f32.mrf.mxu0
      %v2566 = vadd.f32 0.0, %v2565
      %v2567 = vpop.f32.mrf.mxu0
      %v2568 = vadd.f32 0.0, %v2567
      %2569 = vmatmul.bf16.gmra.mxu0 %v1965
      %v2570 = vpop.f32.mrf.mxu0
      %v2571 = vadd.f32 0.0, %v2570
      %v2572 = vpop.f32.mrf.mxu0
      %v2573 = vadd.f32 0.0, %v2572
      %2574 = vmatmul.bf16.gmra.mxu0 %v1968
      %v2575 = vpop.f32.mrf.mxu0
      %v2576 = vadd.f32 0.0, %v2575
      %v2577 = vpop.f32.mrf.mxu0
      %v2578 = vadd.f32 0.0, %v2577
      %2579 = vmatmul.bf16.gmra.mxu0 %v1971
      %v2580 = vpop.f32.mrf.mxu0
      %v2581 = vadd.f32 0.0, %v2580
      %v2582 = vpop.f32.mrf.mxu0
      %v2583 = vadd.f32 0.0, %v2582
      %2584 = vmatmul.bf16.gmra.mxu0 %v1974
      %v2585 = vpop.f32.mrf.mxu0
      %v2586 = vadd.f32 0.0, %v2585
      %v2587 = vpop.f32.mrf.mxu0
      %v2588 = vadd.f32 0.0, %v2587
      %2589 = vdwg.mxu0
      %v2590 = vadd.f32 %v749, %v1986
      %v2591 = vadd.f32 %v750, %v1988
      %v2592 = vadd.f32 %v751, %v1991
      %v2593 = vadd.f32 %v752, %v1993
      %v2594 = vadd.f32 %v753, %v1996
      %v2595 = vadd.f32 %v754, %v1998
      %v2596 = vadd.f32 %v755, %v2001
      %v2597 = vadd.f32 %v756, %v2003
      %v2598 = vadd.f32 %v757, %v2006
      %v2599 = vadd.f32 %v758, %v2008
      %v2600 = vadd.f32 %v759, %v2011
      %v2601 = vadd.f32 %v760, %v2013
      %v2602 = vadd.f32 %v761, %v2016
      %v2603 = vadd.f32 %v762, %v2018
      %v2604 = vadd.f32 %v763, %v2021
      %v2605 = vadd.f32 %v764, %v2023
      %v2606 = vadd.f32 %v765, %v2026
      %v2607 = vadd.f32 %v766, %v2028
      %v2608 = vadd.f32 %v767, %v2031
      %v2609 = vadd.f32 %v768, %v2033
      %v2610 = vadd.f32 %v769, %v2036
      %v2611 = vadd.f32 %v770, %v2038
      %v2612 = vadd.f32 %v771, %v2041
      %v2613 = vadd.f32 %v772, %v2043
      %v2614 = vadd.f32 %v773, %v2046
      %v2615 = vadd.f32 %v774, %v2048
      %v2616 = vadd.f32 %v775, %v2051
      %v2617 = vadd.f32 %v776, %v2053
      %v2618 = vadd.f32 %v777, %v2056
      %v2619 = vadd.f32 %v778, %v2058
      %v2620 = vadd.f32 %v779, %v2061
      %v2621 = vadd.f32 %v780, %v2063
      %v2622 = vadd.f32 %v781, %v2066
      %v2623 = vadd.f32 %v782, %v2068
      %v2624 = vadd.f32 %v783, %v2071
      %v2625 = vadd.f32 %v784, %v2073
      %v2626 = vadd.f32 %v785, %v2076
      %v2627 = vadd.f32 %v786, %v2078
      %v2628 = vadd.f32 %v787, %v2081
      %v2629 = vadd.f32 %v788, %v2083
      %v2630 = vadd.f32 %v789, %v2086
      %v2631 = vadd.f32 %v790, %v2088
      %v2632 = vadd.f32 %v791, %v2091
      %v2633 = vadd.f32 %v792, %v2093
      %v2634 = vadd.f32 %v793, %v2096
      %v2635 = vadd.f32 %v794, %v2098
      %v2636 = vadd.f32 %v795, %v2101
      %v2637 = vadd.f32 %v796, %v2103
      %v2638 = vadd.f32 %v797, %v2106
      %v2639 = vadd.f32 %v798, %v2108
      %v2640 = vadd.f32 %v799, %v2111
      %v2641 = vadd.f32 %v800, %v2113
      %v2642 = vadd.f32 %v801, %v2116
      %v2643 = vadd.f32 %v802, %v2118
      %v2644 = vadd.f32 %v803, %v2121
      %v2645 = vadd.f32 %v804, %v2123
      %v2646 = vadd.f32 %v805, %v2126
      %v2647 = vadd.f32 %v806, %v2128
      %v2648 = vadd.f32 %v807, %v2131
      %v2649 = vadd.f32 %v808, %v2133
      %v2650 = vadd.f32 %v809, %v2136
      %v2651 = vadd.f32 %v810, %v2138
      %v2652 = vadd.f32 %v811, %v2141
      %v2653 = vadd.f32 %v812, %v2143
      %v2654 = vadd.f32 %v813, %v2146
      %v2655 = vadd.f32 %v814, %v2148
      %v2656 = vadd.f32 %v815, %v2151
      %v2657 = vadd.f32 %v816, %v2153
      %v2658 = vadd.f32 %v817, %v2156
      %v2659 = vadd.f32 %v818, %v2158
      %v2660 = vadd.f32 %v819, %v2161
      %v2661 = vadd.f32 %v820, %v2163
      %v2662 = vadd.f32 %v821, %v2166
      %v2663 = vadd.f32 %v822, %v2168
      %v2664 = vadd.f32 %v823, %v2171
      %v2665 = vadd.f32 %v824, %v2173
      %v2666 = vadd.f32 %v825, %v2176
      %v2667 = vadd.f32 %v826, %v2178
      %v2668 = vadd.f32 %v827, %v2181
      %v2669 = vadd.f32 %v828, %v2183
      %v2670 = vadd.f32 %v829, %v2186
      %v2671 = vadd.f32 %v830, %v2188
      %v2672 = vadd.f32 %v831, %v2191
      %v2673 = vadd.f32 %v832, %v2193
      %v2674 = vadd.f32 %v833, %v2196
      %v2675 = vadd.f32 %v834, %v2198
      %v2676 = vadd.f32 %v835, %v2201
      %v2677 = vadd.f32 %v836, %v2203
      %v2678 = vadd.f32 %v837, %v2206
      %v2679 = vadd.f32 %v838, %v2208
      %v2680 = vadd.f32 %v839, %v2211
      %v2681 = vadd.f32 %v840, %v2213
      %v2682 = vadd.f32 %v841, %v2216
      %v2683 = vadd.f32 %v842, %v2218
      %v2684 = vadd.f32 %v843, %v2221
      %v2685 = vadd.f32 %v844, %v2223
      %v2686 = vadd.f32 %v845, %v2226
      %v2687 = vadd.f32 %v846, %v2228
      %v2688 = vadd.f32 %v847, %v2231
      %v2689 = vadd.f32 %v848, %v2233
      %v2690 = vadd.f32 %v849, %v2236
      %v2691 = vadd.f32 %v850, %v2238
      %v2692 = vadd.f32 %v851, %v2241
      %v2693 = vadd.f32 %v852, %v2243
      %v2694 = vadd.f32 %v853, %v2246
      %v2695 = vadd.f32 %v854, %v2248
      %v2696 = vadd.f32 %v855, %v2251
      %v2697 = vadd.f32 %v856, %v2253
      %v2698 = vadd.f32 %v857, %v2256
      %v2699 = vadd.f32 %v858, %v2258
      %v2700 = vadd.f32 %v859, %v2261
      %v2701 = vadd.f32 %v860, %v2263
      %v2702 = vadd.f32 %v861, %v2266
      %v2703 = vadd.f32 %v862, %v2268
      %v2704 = vadd.f32 %v863, %v2271
      %v2705 = vadd.f32 %v864, %v2273
      %v2706 = vadd.f32 %v865, %v2276
      %v2707 = vadd.f32 %v866, %v2278
      %v2708 = vadd.f32 %v867, %v2281
      %v2709 = vadd.f32 %v868, %v2283
      %v2710 = vadd.f32 %v869, %v2286
      %v2711 = vadd.f32 %v870, %v2288
      %v2712 = vadd.f32 %v871, %v2291
      %v2713 = vadd.f32 %v872, %v2293
      %v2714 = vadd.f32 %v873, %v2296
      %v2715 = vadd.f32 %v874, %v2298
      %v2716 = vadd.f32 %v875, %v2301
      %v2717 = vadd.f32 %v876, %v2303
      %v2718 = vadd.f32 %v877, %v2306
      %v2719 = vadd.f32 %v878, %v2308
      %v2720 = vadd.f32 %v879, %v2311
      %v2721 = vadd.f32 %v880, %v2313
      %v2722 = vadd.f32 %v881, %v2316
      %v2723 = vadd.f32 %v882, %v2318
      %v2724 = vadd.f32 %v883, %v2321
      %v2725 = vadd.f32 %v884, %v2323
      %v2726 = vadd.f32 %v885, %v2326
      %v2727 = vadd.f32 %v886, %v2328
      %v2728 = vadd.f32 %v887, %v2331
      %v2729 = vadd.f32 %v888, %v2333
      %v2730 = vadd.f32 %v889, %v2336
      %v2731 = vadd.f32 %v890, %v2338
      %v2732 = vadd.f32 %v891, %v2341
      %v2733 = vadd.f32 %v892, %v2343
      %v2734 = vadd.f32 %v893, %v2346
      %v2735 = vadd.f32 %v894, %v2348
      %v2736 = vadd.f32 %v895, %v2351
      %v2737 = vadd.f32 %v896, %v2353
      %v2738 = vadd.f32 %v897, %v2356
      %v2739 = vadd.f32 %v898, %v2358
      %v2740 = vadd.f32 %v899, %v2361
      %v2741 = vadd.f32 %v900, %v2363
      %v2742 = vadd.f32 %v901, %v2366
      %v2743 = vadd.f32 %v902, %v2368
      %v2744 = vadd.f32 %v903, %v2371
      %v2745 = vadd.f32 %v904, %v2373
      %v2746 = vadd.f32 %v905, %v2376
      %v2747 = vadd.f32 %v906, %v2378
      %v2748 = vadd.f32 %v907, %v2381
      %v2749 = vadd.f32 %v908, %v2383
      %v2750 = vadd.f32 %v909, %v2386
      %v2751 = vadd.f32 %v910, %v2388
      %v2752 = vadd.f32 %v911, %v2391
      %v2753 = vadd.f32 %v912, %v2393
      %v2754 = vadd.f32 %v913, %v2396
      %v2755 = vadd.f32 %v914, %v2398
      %v2756 = vadd.f32 %v915, %v2401
      %v2757 = vadd.f32 %v916, %v2403
      %v2758 = vadd.f32 %v917, %v2406
      %v2759 = vadd.f32 %v918, %v2408
      %v2760 = vadd.f32 %v919, %v2411
      %v2761 = vadd.f32 %v920, %v2413
      %v2762 = vadd.f32 %v921, %v2416
      %v2763 = vadd.f32 %v922, %v2418
      %v2764 = vadd.f32 %v923, %v2421
      %v2765 = vadd.f32 %v924, %v2423
      %v2766 = vadd.f32 %v925, %v2426
      %v2767 = vadd.f32 %v926, %v2428
      %v2768 = vadd.f32 %v927, %v2431
      %v2769 = vadd.f32 %v928, %v2433
      %v2770 = vadd.f32 %v929, %v2436
      %v2771 = vadd.f32 %v930, %v2438
      %v2772 = vadd.f32 %v931, %v2441
      %v2773 = vadd.f32 %v932, %v2443
      %v2774 = vadd.f32 %v933, %v2446
      %v2775 = vadd.f32 %v934, %v2448
      %v2776 = vadd.f32 %v935, %v2451
      %v2777 = vadd.f32 %v936, %v2453
      %v2778 = vadd.f32 %v937, %v2456
      %v2779 = vadd.f32 %v938, %v2458
      %v2780 = vadd.f32 %v939, %v2461
      %v2781 = vadd.f32 %v940, %v2463
      %v2782 = vadd.f32 %v941, %v2466
      %v2783 = vadd.f32 %v942, %v2468
      %v2784 = vadd.f32 %v943, %v2471
      %v2785 = vadd.f32 %v944, %v2473
      %v2786 = vadd.f32 %v945, %v2476
      %v2787 = vadd.f32 %v946, %v2478
      %v2788 = vadd.f32 %v947, %v2481
      %v2789 = vadd.f32 %v948, %v2483
      %v2790 = vadd.f32 %v949, %v2486
      %v2791 = vadd.f32 %v950, %v2488
      %v2792 = vadd.f32 %v951, %v2491
      %v2793 = vadd.f32 %v952, %v2493
      %v2794 = vadd.f32 %v953, %v2496
      %v2795 = vadd.f32 %v954, %v2498
      %v2796 = vadd.f32 %v955, %v2501
      %v2797 = vadd.f32 %v956, %v2503
      %v2798 = vadd.f32 %v957, %v2506
      %v2799 = vadd.f32 %v958, %v2508
      %v2800 = vadd.f32 %v959, %v2511
      %v2801 = vadd.f32 %v960, %v2513
      %v2802 = vadd.f32 %v961, %v2516
      %v2803 = vadd.f32 %v962, %v2518
      %v2804 = vadd.f32 %v963, %v2521
      %v2805 = vadd.f32 %v964, %v2523
      %v2806 = vadd.f32 %v965, %v2526
      %v2807 = vadd.f32 %v966, %v2528
      %v2808 = vadd.f32 %v967, %v2531
      %v2809 = vadd.f32 %v968, %v2533
      %v2810 = vadd.f32 %v969, %v2536
      %v2811 = vadd.f32 %v970, %v2538
      %v2812 = vadd.f32 %v971, %v2541
      %v2813 = vadd.f32 %v972, %v2543
      %v2814 = vadd.f32 %v973, %v2546
      %v2815 = vadd.f32 %v974, %v2548
      %v2816 = vadd.f32 %v975, %v2551
      %v2817 = vadd.f32 %v976, %v2553
      %v2818 = vadd.f32 %v977, %v2556
      %v2819 = vadd.f32 %v978, %v2558
      %v2820 = vadd.f32 %v979, %v2561
      %v2821 = vadd.f32 %v980, %v2563
      %v2822 = vadd.f32 %v981, %v2566
      %v2823 = vadd.f32 %v982, %v2568
      %v2824 = vadd.f32 %v983, %v2571
      %v2825 = vadd.f32 %v984, %v2573
      %v2826 = vadd.f32 %v985, %v2576
      %v2827 = vadd.f32 %v986, %v2578
      %v2828 = vadd.f32 %v987, %v2581
      %v2829 = vadd.f32 %v988, %v2583
      %v2830 = vadd.f32 %v989, %v2586
      %v2831 = vadd.f32 %v990, %v2588
      %vm2832 = vcmask 130048
      %2833 = vst.msk [vmem:[#allocation2] sm:$0xff] %vm2832, %v2590
      %2834 = vst.msk [vmem:[#allocation2 + $0x8] sm:$0xff] %vm2832, %v2591
      %2835 = vst.msk [vmem:[#allocation2 + $0x10] sm:$0xff] %vm2832, %v2592
      %2836 = vst.msk [vmem:[#allocation2 + $0x18] sm:$0xff] %vm2832, %v2593
      %2837 = vst.msk [vmem:[#allocation2 + $0x20] sm:$0xff] %vm2832, %v2594
      %2838 = vst.msk [vmem:[#allocation2 + $0x28] sm:$0xff] %vm2832, %v2595
      %2839 = vst.msk [vmem:[#allocation2 + $0x30] sm:$0xff] %vm2832, %v2596
      %2840 = vst.msk [vmem:[#allocation2 + $0x38] sm:$0xff] %vm2832, %v2597
      %2841 = vst.msk [vmem:[#allocation2 + $0x40] sm:$0xff] %vm2832, %v2598
      %2842 = vst.msk [vmem:[#allocation2 + $0x48] sm:$0xff] %vm2832, %v2599
      %2843 = vst.msk [vmem:[#allocation2 + $0x50] sm:$0xff] %vm2832, %v2600
      %2844 = vst.msk [vmem:[#allocation2 + $0x58] sm:$0xff] %vm2832, %v2601
      %2845 = vst.msk [vmem:[#allocation2 + $0x60] sm:$0xff] %vm2832, %v2602
      %2846 = vst.msk [vmem:[#allocation2 + $0x68] sm:$0xff] %vm2832, %v2603
      %2847 = vst.msk [vmem:[#allocation2 + $0x70] sm:$0xff] %vm2832, %v2604
      %2848 = vst.msk [vmem:[#allocation2 + $0x78] sm:$0xff] %vm2832, %v2605
      %2849 = vst.msk [vmem:[#allocation2 + $0x80] sm:$0xff] %vm2832, %v2606
      %2850 = vst.msk [vmem:[#allocation2 + $0x88] sm:$0xff] %vm2832, %v2607
      %2851 = vst.msk [vmem:[#allocation2 + $0x90] sm:$0xff] %vm2832, %v2608
      %2852 = vst.msk [vmem:[#allocation2 + $0x98] sm:$0xff] %vm2832, %v2609
      %2853 = vst.msk [vmem:[#allocation2 + $0xa0] sm:$0xff] %vm2832, %v2610
      %2854 = vst.msk [vmem:[#allocation2 + $0xa8] sm:$0xff] %vm2832, %v2611
      %2855 = vst.msk [vmem:[#allocation2 + $0xb0] sm:$0xff] %vm2832, %v2612
      %2856 = vst.msk [vmem:[#allocation2 + $0xb8] sm:$0xff] %vm2832, %v2613
      %2857 = vst.msk [vmem:[#allocation2 + $0xc0] sm:$0xff] %vm2832, %v2614
      %2858 = vst.msk [vmem:[#allocation2 + $0xc8] sm:$0xff] %vm2832, %v2615
      %2859 = vst.msk [vmem:[#allocation2 + $0xd0] sm:$0xff] %vm2832, %v2616
      %2860 = vst.msk [vmem:[#allocation2 + $0xd8] sm:$0xff] %vm2832, %v2617
      %2861 = vst.msk [vmem:[#allocation2 + $0xe0] sm:$0xff] %vm2832, %v2618
      %2862 = vst.msk [vmem:[#allocation2 + $0xe8] sm:$0xff] %vm2832, %v2619
      %2863 = vst.msk [vmem:[#allocation2 + $0xf0] sm:$0xff] %vm2832, %v2620
      %2864 = vst.msk [vmem:[#allocation2 + $0xf8] sm:$0xff] %vm2832, %v2621
      %2865 = vst.msk [vmem:[#allocation2 + $0x100] sm:$0xff] %vm2832, %v2622
      %2866 = vst.msk [vmem:[#allocation2 + $0x108] sm:$0xff] %vm2832, %v2623
      %2867 = vst.msk [vmem:[#allocation2 + $0x110] sm:$0xff] %vm2832, %v2624
      %2868 = vst.msk [vmem:[#allocation2 + $0x118] sm:$0xff] %vm2832, %v2625
      %2869 = vst.msk [vmem:[#allocation2 + $0x120] sm:$0xff] %vm2832, %v2626
      %2870 = vst.msk [vmem:[#allocation2 + $0x128] sm:$0xff] %vm2832, %v2627
      %2871 = vst.msk [vmem:[#allocation2 + $0x130] sm:$0xff] %vm2832, %v2628
      %2872 = vst.msk [vmem:[#allocation2 + $0x138] sm:$0xff] %vm2832, %v2629
      %2873 = vst.msk [vmem:[#allocation2 + $0x140] sm:$0xff] %vm2832, %v2630
      %2874 = vst.msk [vmem:[#allocation2 + $0x148] sm:$0xff] %vm2832, %v2631
      %2875 = vst.msk [vmem:[#allocation2 + $0x150] sm:$0xff] %vm2832, %v2632
      %2876 = vst.msk [vmem:[#allocation2 + $0x158] sm:$0xff] %vm2832, %v2633
      %2877 = vst.msk [vmem:[#allocation2 + $0x160] sm:$0xff] %vm2832, %v2634
      %2878 = vst.msk [vmem:[#allocation2 + $0x168] sm:$0xff] %vm2832, %v2635
      %2879 = vst.msk [vmem:[#allocation2 + $0x170] sm:$0xff] %vm2832, %v2636
      %2880 = vst.msk [vmem:[#allocation2 + $0x178] sm:$0xff] %vm2832, %v2637
      %2881 = vst.msk [vmem:[#allocation2 + $0x180] sm:$0xff] %vm2832, %v2638
      %2882 = vst.msk [vmem:[#allocation2 + $0x188] sm:$0xff] %vm2832, %v2639
      %2883 = vst.msk [vmem:[#allocation2 + $0x190] sm:$0xff] %vm2832, %v2640
      %2884 = vst.msk [vmem:[#allocation2 + $0x198] sm:$0xff] %vm2832, %v2641
      %2885 = vst.msk [vmem:[#allocation2 + $0x1a0] sm:$0xff] %vm2832, %v2642
      %2886 = vst.msk [vmem:[#allocation2 + $0x1a8] sm:$0xff] %vm2832, %v2643
      %2887 = vst.msk [vmem:[#allocation2 + $0x1b0] sm:$0xff] %vm2832, %v2644
      %2888 = vst.msk [vmem:[#allocation2 + $0x1b8] sm:$0xff] %vm2832, %v2645
      %2889 = vst.msk [vmem:[#allocation2 + $0x1c0] sm:$0xff] %vm2832, %v2646
      %2890 = vst.msk [vmem:[#allocation2 + $0x1c8] sm:$0xff] %vm2832, %v2647
      %2891 = vst.msk [vmem:[#allocation2 + $0x1d0] sm:$0xff] %vm2832, %v2648
      %2892 = vst.msk [vmem:[#allocation2 + $0x1d8] sm:$0xff] %vm2832, %v2649
      %2893 = vst.msk [vmem:[#allocation2 + $0x1e0] sm:$0xff] %vm2832, %v2650
      %2894 = vst.msk [vmem:[#allocation2 + $0x1e8] sm:$0xff] %vm2832, %v2651
      %2895 = vst.msk [vmem:[#allocation2 + $0x1f0] sm:$0xff] %vm2832, %v2652
      %2896 = vst.msk [vmem:[#allocation2 + $0x1f8] sm:$0xff] %vm2832, %v2653
      %2897 = vst.msk [vmem:[#allocation2 + $0x200] sm:$0xff] %vm2832, %v2654
      %2898 = vst.msk [vmem:[#allocation2 + $0x208] sm:$0xff] %vm2832, %v2655
      %2899 = vst.msk [vmem:[#allocation2 + $0x210] sm:$0xff] %vm2832, %v2656
      %2900 = vst.msk [vmem:[#allocation2 + $0x218] sm:$0xff] %vm2832, %v2657
      %2901 = vst.msk [vmem:[#allocation2 + $0x220] sm:$0xff] %vm2832, %v2658
      %2902 = vst.msk [vmem:[#allocation2 + $0x228] sm:$0xff] %vm2832, %v2659
      %2903 = vst.msk [vmem:[#allocation2 + $0x230] sm:$0xff] %vm2832, %v2660
      %2904 = vst.msk [vmem:[#allocation2 + $0x238] sm:$0xff] %vm2832, %v2661
      %2905 = vst.msk [vmem:[#allocation2 + $0x240] sm:$0xff] %vm2832, %v2662
      %2906 = vst.msk [vmem:[#allocation2 + $0x248] sm:$0xff] %vm2832, %v2663
      %2907 = vst.msk [vmem:[#allocation2 + $0x250] sm:$0xff] %vm2832, %v2664
      %2908 = vst.msk [vmem:[#allocation2 + $0x258] sm:$0xff] %vm2832, %v2665
      %2909 = vst.msk [vmem:[#allocation2 + $0x260] sm:$0xff] %vm2832, %v2666
      %2910 = vst.msk [vmem:[#allocation2 + $0x268] sm:$0xff] %vm2832, %v2667
      %2911 = vst.msk [vmem:[#allocation2 + $0x270] sm:$0xff] %vm2832, %v2668
      %2912 = vst.msk [vmem:[#allocation2 + $0x278] sm:$0xff] %vm2832, %v2669
      %2913 = vst.msk [vmem:[#allocation2 + $0x280] sm:$0xff] %vm2832, %v2670
      %2914 = vst.msk [vmem:[#allocation2 + $0x288] sm:$0xff] %vm2832, %v2671
      %2915 = vst.msk [vmem:[#allocation2 + $0x290] sm:$0xff] %vm2832, %v2672
      %2916 = vst.msk [vmem:[#allocation2 + $0x298] sm:$0xff] %vm2832, %v2673
      %2917 = vst.msk [vmem:[#allocation2 + $0x2a0] sm:$0xff] %vm2832, %v2674
      %2918 = vst.msk [vmem:[#allocation2 + $0x2a8] sm:$0xff] %vm2832, %v2675
      %2919 = vst.msk [vmem:[#allocation2 + $0x2b0] sm:$0xff] %vm2832, %v2676
      %2920 = vst.msk [vmem:[#allocation2 + $0x2b8] sm:$0xff] %vm2832, %v2677
      %2921 = vst.msk [vmem:[#allocation2 + $0x2c0] sm:$0xff] %vm2832, %v2678
      %2922 = vst.msk [vmem:[#allocation2 + $0x2c8] sm:$0xff] %vm2832, %v2679
      %2923 = vst.msk [vmem:[#allocation2 + $0x2d0] sm:$0xff] %vm2832, %v2680
      %2924 = vst.msk [vmem:[#allocation2 + $0x2d8] sm:$0xff] %vm2832, %v2681
      %2925 = vst.msk [vmem:[#allocation2 + $0x2e0] sm:$0xff] %vm2832, %v2682
      %2926 = vst.msk [vmem:[#allocation2 + $0x2e8] sm:$0xff] %vm2832, %v2683
      %2927 = vst.msk [vmem:[#allocation2 + $0x2f0] sm:$0xff] %vm2832, %v2684
      %2928 = vst.msk [vmem:[#allocation2 + $0x2f8] sm:$0xff] %vm2832, %v2685
      %2929 = vst.msk [vmem:[#allocation2 + $0x300] sm:$0xff] %vm2832, %v2686
      %2930 = vst.msk [vmem:[#allocation2 + $0x308] sm:$0xff] %vm2832, %v2687
      %2931 = vst.msk [vmem:[#allocation2 + $0x310] sm:$0xff] %vm2832, %v2688
      %2932 = vst.msk [vmem:[#allocation2 + $0x318] sm:$0xff] %vm2832, %v2689
      %2933 = vst.msk [vmem:[#allocation2 + $0x320] sm:$0xff] %vm2832, %v2690
      %2934 = vst.msk [vmem:[#allocation2 + $0x328] sm:$0xff] %vm2832, %v2691
      %2935 = vst.msk [vmem:[#allocation2 + $0x330] sm:$0xff] %vm2832, %v2692
      %2936 = vst.msk [vmem:[#allocation2 + $0x338] sm:$0xff] %vm2832, %v2693
      %2937 = vst.msk [vmem:[#allocation2 + $0x340] sm:$0xff] %vm2832, %v2694
      %2938 = vst.msk [vmem:[#allocation2 + $0x348] sm:$0xff] %vm2832, %v2695
      %2939 = vst.msk [vmem:[#allocation2 + $0x350] sm:$0xff] %vm2832, %v2696
      %2940 = vst.msk [vmem:[#allocation2 + $0x358] sm:$0xff] %vm2832, %v2697
      %2941 = vst.msk [vmem:[#allocation2 + $0x360] sm:$0xff] %vm2832, %v2698
      %2942 = vst.msk [vmem:[#allocation2 + $0x368] sm:$0xff] %vm2832, %v2699
      %2943 = vst.msk [vmem:[#allocation2 + $0x370] sm:$0xff] %vm2832, %v2700
      %2944 = vst.msk [vmem:[#allocation2 + $0x378] sm:$0xff] %vm2832, %v2701
      %2945 = vst.msk [vmem:[#allocation2 + $0x380] sm:$0xff] %vm2832, %v2702
      %2946 = vst.msk [vmem:[#allocation2 + $0x388] sm:$0xff] %vm2832, %v2703
      %2947 = vst.msk [vmem:[#allocation2 + $0x390] sm:$0xff] %vm2832, %v2704
      %2948 = vst.msk [vmem:[#allocation2 + $0x398] sm:$0xff] %vm2832, %v2705
      %2949 = vst.msk [vmem:[#allocation2 + $0x3a0] sm:$0xff] %vm2832, %v2706
      %2950 = vst.msk [vmem:[#allocation2 + $0x3a8] sm:$0xff] %vm2832, %v2707
      %2951 = vst.msk [vmem:[#allocation2 + $0x3b0] sm:$0xff] %vm2832, %v2708
      %2952 = vst.msk [vmem:[#allocation2 + $0x3b8] sm:$0xff] %vm2832, %v2709
      %2953 = vst.msk [vmem:[#allocation2 + $0x3c0] sm:$0xff] %vm2832, %v2710
      %2954 = vst.msk [vmem:[#allocation2 + $0x3c8] sm:$0xff] %vm2832, %v2711
      %2955 = vst.msk [vmem:[#allocation2 + $0x3d0] sm:$0xff] %vm2832, %v2712
      %2956 = vst.msk [vmem:[#allocation2 + $0x3d8] sm:$0xff] %vm2832, %v2713
      %2957 = vst.msk [vmem:[#allocation2 + $0x3e0] sm:$0xff] %vm2832, %v2714
      %2958 = vst.msk [vmem:[#allocation2 + $0x3e8] sm:$0xff] %vm2832, %v2715
      %2959 = vst.msk [vmem:[#allocation2 + $0x3f0] sm:$0xff] %vm2832, %v2716
      %2960 = vst.msk [vmem:[#allocation2 + $0x3f8] sm:$0xff] %vm2832, %v2717
      %2961 = vst.msk [vmem:[#allocation2 + $0x400] sm:$0xff] %vm2832, %v2718
      %2962 = vst.msk [vmem:[#allocation2 + $0x408] sm:$0xff] %vm2832, %v2719
      %2963 = vst.msk [vmem:[#allocation2 + $0x410] sm:$0xff] %vm2832, %v2720
      %2964 = vst.msk [vmem:[#allocation2 + $0x418] sm:$0xff] %vm2832, %v2721
      %2965 = vst.msk [vmem:[#allocation2 + $0x420] sm:$0xff] %vm2832, %v2722
      %2966 = vst.msk [vmem:[#allocation2 + $0x428] sm:$0xff] %vm2832, %v2723
      %2967 = vst.msk [vmem:[#allocation2 + $0x430] sm:$0xff] %vm2832, %v2724
      %2968 = vst.msk [vmem:[#allocation2 + $0x438] sm:$0xff] %vm2832, %v2725
      %2969 = vst.msk [vmem:[#allocation2 + $0x440] sm:$0xff] %vm2832, %v2726
      %2970 = vst.msk [vmem:[#allocation2 + $0x448] sm:$0xff] %vm2832, %v2727
      %2971 = vst.msk [vmem:[#allocation2 + $0x450] sm:$0xff] %vm2832, %v2728
      %2972 = vst.msk [vmem:[#allocation2 + $0x458] sm:$0xff] %vm2832, %v2729
      %2973 = vst.msk [vmem:[#allocation2 + $0x460] sm:$0xff] %vm2832, %v2730
      %2974 = vst.msk [vmem:[#allocation2 + $0x468] sm:$0xff] %vm2832, %v2731
      %2975 = vst.msk [vmem:[#allocation2 + $0x470] sm:$0xff] %vm2832, %v2732
      %2976 = vst.msk [vmem:[#allocation2 + $0x478] sm:$0xff] %vm2832, %v2733
      %2977 = vst.msk [vmem:[#allocation2 + $0x480] sm:$0xff] %vm2832, %v2734
      %2978 = vst.msk [vmem:[#allocation2 + $0x488] sm:$0xff] %vm2832, %v2735
      %2979 = vst.msk [vmem:[#allocation2 + $0x490] sm:$0xff] %vm2832, %v2736
      %2980 = vst.msk [vmem:[#allocation2 + $0x498] sm:$0xff] %vm2832, %v2737
      %2981 = vst.msk [vmem:[#allocation2 + $0x4a0] sm:$0xff] %vm2832, %v2738
      %2982 = vst.msk [vmem:[#allocation2 + $0x4a8] sm:$0xff] %vm2832, %v2739
      %2983 = vst.msk [vmem:[#allocation2 + $0x4b0] sm:$0xff] %vm2832, %v2740
      %2984 = vst.msk [vmem:[#allocation2 + $0x4b8] sm:$0xff] %vm2832, %v2741
      %2985 = vst.msk [vmem:[#allocation2 + $0x4c0] sm:$0xff] %vm2832, %v2742
      %2986 = vst.msk [vmem:[#allocation2 + $0x4c8] sm:$0xff] %vm2832, %v2743
      %2987 = vst.msk [vmem:[#allocation2 + $0x4d0] sm:$0xff] %vm2832, %v2744
      %2988 = vst.msk [vmem:[#allocation2 + $0x4d8] sm:$0xff] %vm2832, %v2745
      %2989 = vst.msk [vmem:[#allocation2 + $0x4e0] sm:$0xff] %vm2832, %v2746
      %2990 = vst.msk [vmem:[#allocation2 + $0x4e8] sm:$0xff] %vm2832, %v2747
      %2991 = vst.msk [vmem:[#allocation2 + $0x4f0] sm:$0xff] %vm2832, %v2748
      %2992 = vst.msk [vmem:[#allocation2 + $0x4f8] sm:$0xff] %vm2832, %v2749
      %2993 = vst.msk [vmem:[#allocation2 + $0x500] sm:$0xff] %vm2832, %v2750
      %2994 = vst.msk [vmem:[#allocation2 + $0x508] sm:$0xff] %vm2832, %v2751
      %2995 = vst.msk [vmem:[#allocation2 + $0x510] sm:$0xff] %vm2832, %v2752
      %2996 = vst.msk [vmem:[#allocation2 + $0x518] sm:$0xff] %vm2832, %v2753
      %2997 = vst.msk [vmem:[#allocation2 + $0x520] sm:$0xff] %vm2832, %v2754
      %2998 = vst.msk [vmem:[#allocation2 + $0x528] sm:$0xff] %vm2832, %v2755
      %2999 = vst.msk [vmem:[#allocation2 + $0x530] sm:$0xff] %vm2832, %v2756
      %3000 = vst.msk [vmem:[#allocation2 + $0x538] sm:$0xff] %vm2832, %v2757
      %3001 = vst.msk [vmem:[#allocation2 + $0x540] sm:$0xff] %vm2832, %v2758
      %3002 = vst.msk [vmem:[#allocation2 + $0x548] sm:$0xff] %vm2832, %v2759
      %3003 = vst.msk [vmem:[#allocation2 + $0x550] sm:$0xff] %vm2832, %v2760
      %3004 = vst.msk [vmem:[#allocation2 + $0x558] sm:$0xff] %vm2832, %v2761
      %3005 = vst.msk [vmem:[#allocation2 + $0x560] sm:$0xff] %vm2832, %v2762
      %3006 = vst.msk [vmem:[#allocation2 + $0x568] sm:$0xff] %vm2832, %v2763
      %3007 = vst.msk [vmem:[#allocation2 + $0x570] sm:$0xff] %vm2832, %v2764
      %3008 = vst.msk [vmem:[#allocation2 + $0x578] sm:$0xff] %vm2832, %v2765
      %3009 = vst.msk [vmem:[#allocation2 + $0x580] sm:$0xff] %vm2832, %v2766
      %3010 = vst.msk [vmem:[#allocation2 + $0x588] sm:$0xff] %vm2832, %v2767
      %3011 = vst.msk [vmem:[#allocation2 + $0x590] sm:$0xff] %vm2832, %v2768
      %3012 = vst.msk [vmem:[#allocation2 + $0x598] sm:$0xff] %vm2832, %v2769
      %3013 = vst.msk [vmem:[#allocation2 + $0x5a0] sm:$0xff] %vm2832, %v2770
      %3014 = vst.msk [vmem:[#allocation2 + $0x5a8] sm:$0xff] %vm2832, %v2771
      %3015 = vst.msk [vmem:[#allocation2 + $0x5b0] sm:$0xff] %vm2832, %v2772
      %3016 = vst.msk [vmem:[#allocation2 + $0x5b8] sm:$0xff] %vm2832, %v2773
      %3017 = vst.msk [vmem:[#allocation2 + $0x5c0] sm:$0xff] %vm2832, %v2774
      %3018 = vst.msk [vmem:[#allocation2 + $0x5c8] sm:$0xff] %vm2832, %v2775
      %3019 = vst.msk [vmem:[#allocation2 + $0x5d0] sm:$0xff] %vm2832, %v2776
      %3020 = vst.msk [vmem:[#allocation2 + $0x5d8] sm:$0xff] %vm2832, %v2777
      %3021 = vst.msk [vmem:[#allocation2 + $0x5e0] sm:$0xff] %vm2832, %v2778
      %3022 = vst.msk [vmem:[#allocation2 + $0x5e8] sm:$0xff] %vm2832, %v2779
      %3023 = vst.msk [vmem:[#allocation2 + $0x5f0] sm:$0xff] %vm2832, %v2780
      %3024 = vst.msk [vmem:[#allocation2 + $0x5f8] sm:$0xff] %vm2832, %v2781
      %3025 = vst.msk [vmem:[#allocation2 + $0x600] sm:$0xff] %vm2832, %v2782
      %3026 = vst.msk [vmem:[#allocation2 + $0x608] sm:$0xff] %vm2832, %v2783
      %3027 = vst.msk [vmem:[#allocation2 + $0x610] sm:$0xff] %vm2832, %v2784
      %3028 = vst.msk [vmem:[#allocation2 + $0x618] sm:$0xff] %vm2832, %v2785
      %3029 = vst.msk [vmem:[#allocation2 + $0x620] sm:$0xff] %vm2832, %v2786
      %3030 = vst.msk [vmem:[#allocation2 + $0x628] sm:$0xff] %vm2832, %v2787
      %3031 = vst.msk [vmem:[#allocation2 + $0x630] sm:$0xff] %vm2832, %v2788
      %3032 = vst.msk [vmem:[#allocation2 + $0x638] sm:$0xff] %vm2832, %v2789
      %3033 = vst.msk [vmem:[#allocation2 + $0x640] sm:$0xff] %vm2832, %v2790
      %3034 = vst.msk [vmem:[#allocation2 + $0x648] sm:$0xff] %vm2832, %v2791
      %3035 = vst.msk [vmem:[#allocation2 + $0x650] sm:$0xff] %vm2832, %v2792
      %3036 = vst.msk [vmem:[#allocation2 + $0x658] sm:$0xff] %vm2832, %v2793
      %3037 = vst.msk [vmem:[#allocation2 + $0x660] sm:$0xff] %vm2832, %v2794
      %3038 = vst.msk [vmem:[#allocation2 + $0x668] sm:$0xff] %vm2832, %v2795
      %3039 = vst.msk [vmem:[#allocation2 + $0x670] sm:$0xff] %vm2832, %v2796
      %3040 = vst.msk [vmem:[#allocation2 + $0x678] sm:$0xff] %vm2832, %v2797
      %3041 = vst.msk [vmem:[#allocation2 + $0x680] sm:$0xff] %vm2832, %v2798
      %3042 = vst.msk [vmem:[#allocation2 + $0x688] sm:$0xff] %vm2832, %v2799
      %3043 = vst.msk [vmem:[#allocation2 + $0x690] sm:$0xff] %vm2832, %v2800
      %3044 = vst.msk [vmem:[#allocation2 + $0x698] sm:$0xff] %vm2832, %v2801
      %3045 = vst.msk [vmem:[#allocation2 + $0x6a0] sm:$0xff] %vm2832, %v2802
      %3046 = vst.msk [vmem:[#allocation2 + $0x6a8] sm:$0xff] %vm2832, %v2803
      %3047 = vst.msk [vmem:[#allocation2 + $0x6b0] sm:$0xff] %vm2832, %v2804
      %3048 = vst.msk [vmem:[#allocation2 + $0x6b8] sm:$0xff] %vm2832, %v2805
      %3049 = vst.msk [vmem:[#allocation2 + $0x6c0] sm:$0xff] %vm2832, %v2806
      %3050 = vst.msk [vmem:[#allocation2 + $0x6c8] sm:$0xff] %vm2832, %v2807
      %3051 = vst.msk [vmem:[#allocation2 + $0x6d0] sm:$0xff] %vm2832, %v2808
      %3052 = vst.msk [vmem:[#allocation2 + $0x6d8] sm:$0xff] %vm2832, %v2809
      %3053 = vst.msk [vmem:[#allocation2 + $0x6e0] sm:$0xff] %vm2832, %v2810
      %3054 = vst.msk [vmem:[#allocation2 + $0x6e8] sm:$0xff] %vm2832, %v2811
      %3055 = vst.msk [vmem:[#allocation2 + $0x6f0] sm:$0xff] %vm2832, %v2812
      %3056 = vst.msk [vmem:[#allocation2 + $0x6f8] sm:$0xff] %vm2832, %v2813
      %3057 = vst.msk [vmem:[#allocation2 + $0x700] sm:$0xff] %vm2832, %v2814
      %3058 = vst.msk [vmem:[#allocation2 + $0x708] sm:$0xff] %vm2832, %v2815
      %3059 = vst.msk [vmem:[#allocation2 + $0x710] sm:$0xff] %vm2832, %v2816
      %3060 = vst.msk [vmem:[#allocation2 + $0x718] sm:$0xff] %vm2832, %v2817
      %3061 = vst.msk [vmem:[#allocation2 + $0x720] sm:$0xff] %vm2832, %v2818
      %3062 = vst.msk [vmem:[#allocation2 + $0x728] sm:$0xff] %vm2832, %v2819
      %3063 = vst.msk [vmem:[#allocation2 + $0x730] sm:$0xff] %vm2832, %v2820
      %3064 = vst.msk [vmem:[#allocation2 + $0x738] sm:$0xff] %vm2832, %v2821
      %3065 = vst.msk [vmem:[#allocation2 + $0x740] sm:$0xff] %vm2832, %v2822
      %3066 = vst.msk [vmem:[#allocation2 + $0x748] sm:$0xff] %vm2832, %v2823
      %3067 = vst.msk [vmem:[#allocation2 + $0x750] sm:$0xff] %vm2832, %v2824
      %3068 = vst.msk [vmem:[#allocation2 + $0x758] sm:$0xff] %vm2832, %v2825
      %3069 = vst.msk [vmem:[#allocation2 + $0x760] sm:$0xff] %vm2832, %v2826
      %3070 = vst.msk [vmem:[#allocation2 + $0x768] sm:$0xff] %vm2832, %v2827
      %3071 = vst.msk [vmem:[#allocation2 + $0x770] sm:$0xff] %vm2832, %v2828
      %3072 = vst.msk [vmem:[#allocation2 + $0x778] sm:$0xff] %vm2832, %v2829
      %3073 = vst.msk [vmem:[#allocation2 + $0x780] sm:$0xff] %vm2832, %v2830
      %3074 = vst.msk [vmem:[#allocation2 + $0x788] sm:$0xff] %vm2832, %v2831
      // Predicated region
      $region37: #{encoder_conv_base_forward.4} parent=31 // pred_check
        %p3075 = pneg %p260
      $region38: #{encoder_conv_base_forward.4} parent=31 // pred_check_branch
        %3077 = sbr.rel (%p3075) target = $region40
      $region39: #{encoder_conv_base_forward.4} parent=31 // pred_region
        %v3078 = vld [vmem:[#allocation2] sm:$0xff]
        %v3079 = vld [vmem:[#allocation2 + $0x8] sm:$0xff]
        %v3080 = vld [vmem:[#allocation2 + $0x10] sm:$0xff]
        %v3081 = vld [vmem:[#allocation2 + $0x18] sm:$0xff]
        %v3082 = vld [vmem:[#allocation2 + $0x20] sm:$0xff]
        %v3083 = vld [vmem:[#allocation2 + $0x28] sm:$0xff]
        %v3084 = vld [vmem:[#allocation2 + $0x30] sm:$0xff]
        %v3085 = vld [vmem:[#allocation2 + $0x38] sm:$0xff]
        %v3086 = vld [vmem:[#allocation2 + $0x40] sm:$0xff]
        %v3087 = vld [vmem:[#allocation2 + $0x48] sm:$0xff]
        %v3088 = vld [vmem:[#allocation2 + $0x50] sm:$0xff]
        %v3089 = vld [vmem:[#allocation2 + $0x58] sm:$0xff]
        %v3090 = vld [vmem:[#allocation2 + $0x60] sm:$0xff]
        %v3091 = vld [vmem:[#allocation2 + $0x68] sm:$0xff]
        %v3092 = vld [vmem:[#allocation2 + $0x70] sm:$0xff]
        %v3093 = vld [vmem:[#allocation2 + $0x78] sm:$0xff]
        %v3094 = vld [vmem:[#allocation2 + $0x80] sm:$0xff]
        %v3095 = vld [vmem:[#allocation2 + $0x88] sm:$0xff]
        %v3096 = vld [vmem:[#allocation2 + $0x90] sm:$0xff]
        %v3097 = vld [vmem:[#allocation2 + $0x98] sm:$0xff]
        %v3098 = vld [vmem:[#allocation2 + $0xa0] sm:$0xff]
        %v3099 = vld [vmem:[#allocation2 + $0xa8] sm:$0xff]
        %v3100 = vld [vmem:[#allocation2 + $0xb0] sm:$0xff]
        %v3101 = vld [vmem:[#allocation2 + $0xb8] sm:$0xff]
        %v3102 = vld [vmem:[#allocation2 + $0xc0] sm:$0xff]
        %v3103 = vld [vmem:[#allocation2 + $0xc8] sm:$0xff]
        %v3104 = vld [vmem:[#allocation2 + $0xd0] sm:$0xff]
        %v3105 = vld [vmem:[#allocation2 + $0xd8] sm:$0xff]
        %v3106 = vld [vmem:[#allocation2 + $0xe0] sm:$0xff]
        %v3107 = vld [vmem:[#allocation2 + $0xe8] sm:$0xff]
        %v3108 = vld [vmem:[#allocation2 + $0xf0] sm:$0xff]
        %v3109 = vld [vmem:[#allocation2 + $0xf8] sm:$0xff]
        %v3110 = vld [vmem:[#allocation2 + $0x100] sm:$0xff]
        %v3111 = vld [vmem:[#allocation2 + $0x108] sm:$0xff]
        %v3112 = vld [vmem:[#allocation2 + $0x110] sm:$0xff]
        %v3113 = vld [vmem:[#allocation2 + $0x118] sm:$0xff]
        %v3114 = vld [vmem:[#allocation2 + $0x120] sm:$0xff]
        %v3115 = vld [vmem:[#allocation2 + $0x128] sm:$0xff]
        %v3116 = vld [vmem:[#allocation2 + $0x130] sm:$0xff]
        %v3117 = vld [vmem:[#allocation2 + $0x138] sm:$0xff]
        %v3118 = vld [vmem:[#allocation2 + $0x140] sm:$0xff]
        %v3119 = vld [vmem:[#allocation2 + $0x148] sm:$0xff]
        %v3120 = vld [vmem:[#allocation2 + $0x150] sm:$0xff]
        %v3121 = vld [vmem:[#allocation2 + $0x158] sm:$0xff]
        %v3122 = vld [vmem:[#allocation2 + $0x160] sm:$0xff]
        %v3123 = vld [vmem:[#allocation2 + $0x168] sm:$0xff]
        %v3124 = vld [vmem:[#allocation2 + $0x170] sm:$0xff]
        %v3125 = vld [vmem:[#allocation2 + $0x178] sm:$0xff]
        %v3126 = vld [vmem:[#allocation2 + $0x180] sm:$0xff]
        %v3127 = vld [vmem:[#allocation2 + $0x188] sm:$0xff]
        %v3128 = vld [vmem:[#allocation2 + $0x190] sm:$0xff]
        %v3129 = vld [vmem:[#allocation2 + $0x198] sm:$0xff]
        %v3130 = vld [vmem:[#allocation2 + $0x1a0] sm:$0xff]
        %v3131 = vld [vmem:[#allocation2 + $0x1a8] sm:$0xff]
        %v3132 = vld [vmem:[#allocation2 + $0x1b0] sm:$0xff]
        %v3133 = vld [vmem:[#allocation2 + $0x1b8] sm:$0xff]
        %v3134 = vld [vmem:[#allocation2 + $0x1c0] sm:$0xff]
        %v3135 = vld [vmem:[#allocation2 + $0x1c8] sm:$0xff]
        %v3136 = vld [vmem:[#allocation2 + $0x1d0] sm:$0xff]
        %v3137 = vld [vmem:[#allocation2 + $0x1d8] sm:$0xff]
        %v3138 = vld [vmem:[#allocation2 + $0x1e0] sm:$0xff]
        %v3139 = vld [vmem:[#allocation2 + $0x1e8] sm:$0xff]
        %v3140 = vld [vmem:[#allocation2 + $0x1f0] sm:$0xff]
        %v3141 = vld [vmem:[#allocation2 + $0x1f8] sm:$0xff]
        %v3142 = vld [vmem:[#allocation2 + $0x200] sm:$0xff]
        %v3143 = vld [vmem:[#allocation2 + $0x208] sm:$0xff]
        %v3144 = vld [vmem:[#allocation2 + $0x210] sm:$0xff]
        %v3145 = vld [vmem:[#allocation2 + $0x218] sm:$0xff]
        %v3146 = vld [vmem:[#allocation2 + $0x220] sm:$0xff]
        %v3147 = vld [vmem:[#allocation2 + $0x228] sm:$0xff]
        %v3148 = vld [vmem:[#allocation2 + $0x230] sm:$0xff]
        %v3149 = vld [vmem:[#allocation2 + $0x238] sm:$0xff]
        %v3150 = vld [vmem:[#allocation2 + $0x240] sm:$0xff]
        %v3151 = vld [vmem:[#allocation2 + $0x248] sm:$0xff]
        %v3152 = vld [vmem:[#allocation2 + $0x250] sm:$0xff]
        %v3153 = vld [vmem:[#allocation2 + $0x258] sm:$0xff]
        %v3154 = vld [vmem:[#allocation2 + $0x260] sm:$0xff]
        %v3155 = vld [vmem:[#allocation2 + $0x268] sm:$0xff]
        %v3156 = vld [vmem:[#allocation2 + $0x270] sm:$0xff]
        %v3157 = vld [vmem:[#allocation2 + $0x278] sm:$0xff]
        %v3158 = vld [vmem:[#allocation2 + $0x280] sm:$0xff]
        %v3159 = vld [vmem:[#allocation2 + $0x288] sm:$0xff]
        %v3160 = vld [vmem:[#allocation2 + $0x290] sm:$0xff]
        %v3161 = vld [vmem:[#allocation2 + $0x298] sm:$0xff]
        %v3162 = vld [vmem:[#allocation2 + $0x2a0] sm:$0xff]
        %v3163 = vld [vmem:[#allocation2 + $0x2a8] sm:$0xff]
        %v3164 = vld [vmem:[#allocation2 + $0x2b0] sm:$0xff]
        %v3165 = vld [vmem:[#allocation2 + $0x2b8] sm:$0xff]
        %v3166 = vld [vmem:[#allocation2 + $0x2c0] sm:$0xff]
        %v3167 = vld [vmem:[#allocation2 + $0x2c8] sm:$0xff]
        %v3168 = vld [vmem:[#allocation2 + $0x2d0] sm:$0xff]
        %v3169 = vld [vmem:[#allocation2 + $0x2d8] sm:$0xff]
        %v3170 = vld [vmem:[#allocation2 + $0x2e0] sm:$0xff]
        %v3171 = vld [vmem:[#allocation2 + $0x2e8] sm:$0xff]
        %v3172 = vld [vmem:[#allocation2 + $0x2f0] sm:$0xff]
        %v3173 = vld [vmem:[#allocation2 + $0x2f8] sm:$0xff]
        %v3174 = vld [vmem:[#allocation2 + $0x300] sm:$0xff]
        %v3175 = vld [vmem:[#allocation2 + $0x308] sm:$0xff]
        %v3176 = vld [vmem:[#allocation2 + $0x310] sm:$0xff]
        %v3177 = vld [vmem:[#allocation2 + $0x318] sm:$0xff]
        %v3178 = vld [vmem:[#allocation2 + $0x320] sm:$0xff]
        %v3179 = vld [vmem:[#allocation2 + $0x328] sm:$0xff]
        %v3180 = vld [vmem:[#allocation2 + $0x330] sm:$0xff]
        %v3181 = vld [vmem:[#allocation2 + $0x338] sm:$0xff]
        %v3182 = vld [vmem:[#allocation2 + $0x340] sm:$0xff]
        %v3183 = vld [vmem:[#allocation2 + $0x348] sm:$0xff]
        %v3184 = vld [vmem:[#allocation2 + $0x350] sm:$0xff]
        %v3185 = vld [vmem:[#allocation2 + $0x358] sm:$0xff]
        %v3186 = vld [vmem:[#allocation2 + $0x360] sm:$0xff]
        %v3187 = vld [vmem:[#allocation2 + $0x368] sm:$0xff]
        %v3188 = vld [vmem:[#allocation2 + $0x370] sm:$0xff]
        %v3189 = vld [vmem:[#allocation2 + $0x378] sm:$0xff]
        %v3190 = vld [vmem:[#allocation2 + $0x380] sm:$0xff]
        %v3191 = vld [vmem:[#allocation2 + $0x388] sm:$0xff]
        %v3192 = vld [vmem:[#allocation2 + $0x390] sm:$0xff]
        %v3193 = vld [vmem:[#allocation2 + $0x398] sm:$0xff]
        %v3194 = vld [vmem:[#allocation2 + $0x3a0] sm:$0xff]
        %v3195 = vld [vmem:[#allocation2 + $0x3a8] sm:$0xff]
        %v3196 = vld [vmem:[#allocation2 + $0x3b0] sm:$0xff]
        %v3197 = vld [vmem:[#allocation2 + $0x3b8] sm:$0xff]
        %v3198 = vld [vmem:[#allocation2 + $0x3c0] sm:$0xff]
        %v3199 = vld [vmem:[#allocation2 + $0x3c8] sm:$0xff]
        %v3200 = vld [vmem:[#allocation2 + $0x3d0] sm:$0xff]
        %v3201 = vld [vmem:[#allocation2 + $0x3d8] sm:$0xff]
        %v3202 = vld [vmem:[#allocation2 + $0x3e0] sm:$0xff]
        %v3203 = vld [vmem:[#allocation2 + $0x3e8] sm:$0xff]
        %v3204 = vld [vmem:[#allocation2 + $0x3f0] sm:$0xff]
        %v3205 = vld [vmem:[#allocation2 + $0x3f8] sm:$0xff]
        %v3206 = vld [vmem:[#allocation2 + $0x400] sm:$0xff]
        %v3207 = vld [vmem:[#allocation2 + $0x408] sm:$0xff]
        %v3208 = vld [vmem:[#allocation2 + $0x410] sm:$0xff]
        %v3209 = vld [vmem:[#allocation2 + $0x418] sm:$0xff]
        %v3210 = vld [vmem:[#allocation2 + $0x420] sm:$0xff]
        %v3211 = vld [vmem:[#allocation2 + $0x428] sm:$0xff]
        %v3212 = vld [vmem:[#allocation2 + $0x430] sm:$0xff]
        %v3213 = vld [vmem:[#allocation2 + $0x438] sm:$0xff]
        %v3214 = vld [vmem:[#allocation2 + $0x440] sm:$0xff]
        %v3215 = vld [vmem:[#allocation2 + $0x448] sm:$0xff]
        %v3216 = vld [vmem:[#allocation2 + $0x450] sm:$0xff]
        %v3217 = vld [vmem:[#allocation2 + $0x458] sm:$0xff]
        %v3218 = vld [vmem:[#allocation2 + $0x460] sm:$0xff]
        %v3219 = vld [vmem:[#allocation2 + $0x468] sm:$0xff]
        %v3220 = vld [vmem:[#allocation2 + $0x470] sm:$0xff]
        %v3221 = vld [vmem:[#allocation2 + $0x478] sm:$0xff]
        %v3222 = vld [vmem:[#allocation2 + $0x480] sm:$0xff]
        %v3223 = vld [vmem:[#allocation2 + $0x488] sm:$0xff]
        %v3224 = vld [vmem:[#allocation2 + $0x490] sm:$0xff]
        %v3225 = vld [vmem:[#allocation2 + $0x498] sm:$0xff]
        %v3226 = vld [vmem:[#allocation2 + $0x4a0] sm:$0xff]
        %v3227 = vld [vmem:[#allocation2 + $0x4a8] sm:$0xff]
        %v3228 = vld [vmem:[#allocation2 + $0x4b0] sm:$0xff]
        %v3229 = vld [vmem:[#allocation2 + $0x4b8] sm:$0xff]
        %v3230 = vld [vmem:[#allocation2 + $0x4c0] sm:$0xff]
        %v3231 = vld [vmem:[#allocation2 + $0x4c8] sm:$0xff]
        %v3232 = vld [vmem:[#allocation2 + $0x4d0] sm:$0xff]
        %v3233 = vld [vmem:[#allocation2 + $0x4d8] sm:$0xff]
        %v3234 = vld [vmem:[#allocation2 + $0x4e0] sm:$0xff]
        %v3235 = vld [vmem:[#allocation2 + $0x4e8] sm:$0xff]
        %v3236 = vld [vmem:[#allocation2 + $0x4f0] sm:$0xff]
        %v3237 = vld [vmem:[#allocation2 + $0x4f8] sm:$0xff]
        %v3238 = vld [vmem:[#allocation2 + $0x500] sm:$0xff]
        %v3239 = vld [vmem:[#allocation2 + $0x508] sm:$0xff]
        %v3240 = vld [vmem:[#allocation2 + $0x510] sm:$0xff]
        %v3241 = vld [vmem:[#allocation2 + $0x518] sm:$0xff]
        %v3242 = vld [vmem:[#allocation2 + $0x520] sm:$0xff]
        %v3243 = vld [vmem:[#allocation2 + $0x528] sm:$0xff]
        %v3244 = vld [vmem:[#allocation2 + $0x530] sm:$0xff]
        %v3245 = vld [vmem:[#allocation2 + $0x538] sm:$0xff]
        %v3246 = vld [vmem:[#allocation2 + $0x540] sm:$0xff]
        %v3247 = vld [vmem:[#allocation2 + $0x548] sm:$0xff]
        %v3248 = vld [vmem:[#allocation2 + $0x550] sm:$0xff]
        %v3249 = vld [vmem:[#allocation2 + $0x558] sm:$0xff]
        %v3250 = vld [vmem:[#allocation2 + $0x560] sm:$0xff]
        %v3251 = vld [vmem:[#allocation2 + $0x568] sm:$0xff]
        %v3252 = vld [vmem:[#allocation2 + $0x570] sm:$0xff]
        %v3253 = vld [vmem:[#allocation2 + $0x578] sm:$0xff]
        %v3254 = vld [vmem:[#allocation2 + $0x580] sm:$0xff]
        %v3255 = vld [vmem:[#allocation2 + $0x588] sm:$0xff]
        %v3256 = vld [vmem:[#allocation2 + $0x590] sm:$0xff]
        %v3257 = vld [vmem:[#allocation2 + $0x598] sm:$0xff]
        %v3258 = vld [vmem:[#allocation2 + $0x5a0] sm:$0xff]
        %v3259 = vld [vmem:[#allocation2 + $0x5a8] sm:$0xff]
        %v3260 = vld [vmem:[#allocation2 + $0x5b0] sm:$0xff]
        %v3261 = vld [vmem:[#allocation2 + $0x5b8] sm:$0xff]
        %v3262 = vld [vmem:[#allocation2 + $0x5c0] sm:$0xff]
        %v3263 = vld [vmem:[#allocation2 + $0x5c8] sm:$0xff]
        %v3264 = vld [vmem:[#allocation2 + $0x5d0] sm:$0xff]
        %v3265 = vld [vmem:[#allocation2 + $0x5d8] sm:$0xff]
        %v3266 = vld [vmem:[#allocation2 + $0x5e0] sm:$0xff]
        %v3267 = vld [vmem:[#allocation2 + $0x5e8] sm:$0xff]
        %v3268 = vld [vmem:[#allocation2 + $0x5f0] sm:$0xff]
        %v3269 = vld [vmem:[#allocation2 + $0x5f8] sm:$0xff]
        %v3270 = vld [vmem:[#allocation2 + $0x600] sm:$0xff]
        %v3271 = vld [vmem:[#allocation2 + $0x608] sm:$0xff]
        %v3272 = vld [vmem:[#allocation2 + $0x610] sm:$0xff]
        %v3273 = vld [vmem:[#allocation2 + $0x618] sm:$0xff]
        %v3274 = vld [vmem:[#allocation2 + $0x620] sm:$0xff]
        %v3275 = vld [vmem:[#allocation2 + $0x628] sm:$0xff]
        %v3276 = vld [vmem:[#allocation2 + $0x630] sm:$0xff]
        %v3277 = vld [vmem:[#allocation2 + $0x638] sm:$0xff]
        %v3278 = vld [vmem:[#allocation2 + $0x640] sm:$0xff]
        %v3279 = vld [vmem:[#allocation2 + $0x648] sm:$0xff]
        %v3280 = vld [vmem:[#allocation2 + $0x650] sm:$0xff]
        %v3281 = vld [vmem:[#allocation2 + $0x658] sm:$0xff]
        %v3282 = vld [vmem:[#allocation2 + $0x660] sm:$0xff]
        %v3283 = vld [vmem:[#allocation2 + $0x668] sm:$0xff]
        %v3284 = vld [vmem:[#allocation2 + $0x670] sm:$0xff]
        %v3285 = vld [vmem:[#allocation2 + $0x678] sm:$0xff]
        %v3286 = vld [vmem:[#allocation2 + $0x680] sm:$0xff]
        %v3287 = vld [vmem:[#allocation2 + $0x688] sm:$0xff]
        %v3288 = vld [vmem:[#allocation2 + $0x690] sm:$0xff]
        %v3289 = vld [vmem:[#allocation2 + $0x698] sm:$0xff]
        %v3290 = vld [vmem:[#allocation2 + $0x6a0] sm:$0xff]
        %v3291 = vld [vmem:[#allocation2 + $0x6a8] sm:$0xff]
        %v3292 = vld [vmem:[#allocation2 + $0x6b0] sm:$0xff]
        %v3293 = vld [vmem:[#allocation2 + $0x6b8] sm:$0xff]
        %v3294 = vld [vmem:[#allocation2 + $0x6c0] sm:$0xff]
        %v3295 = vld [vmem:[#allocation2 + $0x6c8] sm:$0xff]
        %v3296 = vld [vmem:[#allocation2 + $0x6d0] sm:$0xff]
        %v3297 = vld [vmem:[#allocation2 + $0x6d8] sm:$0xff]
        %v3298 = vld [vmem:[#allocation2 + $0x6e0] sm:$0xff]
        %v3299 = vld [vmem:[#allocation2 + $0x6e8] sm:$0xff]
        %v3300 = vld [vmem:[#allocation2 + $0x6f0] sm:$0xff]
        %v3301 = vld [vmem:[#allocation2 + $0x6f8] sm:$0xff]
        %v3302 = vld [vmem:[#allocation2 + $0x700] sm:$0xff]
        %v3303 = vld [vmem:[#allocation2 + $0x708] sm:$0xff]
        %v3304 = vld [vmem:[#allocation2 + $0x710] sm:$0xff]
        %v3305 = vld [vmem:[#allocation2 + $0x718] sm:$0xff]
        %v3306 = vld [vmem:[#allocation2 + $0x720] sm:$0xff]
        %v3307 = vld [vmem:[#allocation2 + $0x728] sm:$0xff]
        %v3308 = vld [vmem:[#allocation2 + $0x730] sm:$0xff]
        %v3309 = vld [vmem:[#allocation2 + $0x738] sm:$0xff]
        %v3310 = vld [vmem:[#allocation2 + $0x740] sm:$0xff]
        %v3311 = vld [vmem:[#allocation2 + $0x748] sm:$0xff]
        %v3312 = vld [vmem:[#allocation2 + $0x750] sm:$0xff]
        %v3313 = vld [vmem:[#allocation2 + $0x758] sm:$0xff]
        %v3314 = vld [vmem:[#allocation2 + $0x760] sm:$0xff]
        %v3315 = vld [vmem:[#allocation2 + $0x768] sm:$0xff]
        %v3316 = vld [vmem:[#allocation2 + $0x770] sm:$0xff]
        %v3317 = vld [vmem:[#allocation2 + $0x778] sm:$0xff]
        %v3318 = vld [vmem:[#allocation2 + $0x780] sm:$0xff]
        %v3319 = vld [vmem:[#allocation2 + $0x788] sm:$0xff]
        %v3320 = vld [vmem:[%s249] sm:$0x1]
        %v3322 = vperm.slane %v3320, 0
        %v3324 = vadd.f32 %v3078, %v3322
        %v3325 = vadd.f32 %v3079, %v3322
        %v3326 = vadd.f32 %v3080, %v3322
        %v3327 = vadd.f32 %v3081, %v3322
        %v3328 = vadd.f32 %v3082, %v3322
        %v3329 = vadd.f32 %v3083, %v3322
        %v3330 = vadd.f32 %v3084, %v3322
        %v3331 = vadd.f32 %v3085, %v3322
        %v3332 = vadd.f32 %v3086, %v3322
        %v3333 = vadd.f32 %v3087, %v3322
        %v3334 = vadd.f32 %v3088, %v3322
        %v3335 = vadd.f32 %v3089, %v3322
        %v3336 = vadd.f32 %v3090, %v3322
        %v3337 = vadd.f32 %v3091, %v3322
        %v3338 = vadd.f32 %v3092, %v3322
        %v3339 = vadd.f32 %v3093, %v3322
        %v3340 = vadd.f32 %v3094, %v3322
        %v3341 = vadd.f32 %v3095, %v3322
        %v3342 = vadd.f32 %v3096, %v3322
        %v3343 = vadd.f32 %v3097, %v3322
        %v3344 = vadd.f32 %v3098, %v3322
        %v3345 = vadd.f32 %v3099, %v3322
        %v3346 = vadd.f32 %v3100, %v3322
        %v3347 = vadd.f32 %v3101, %v3322
        %v3348 = vadd.f32 %v3102, %v3322
        %v3349 = vadd.f32 %v3103, %v3322
        %v3350 = vadd.f32 %v3104, %v3322
        %v3351 = vadd.f32 %v3105, %v3322
        %v3352 = vadd.f32 %v3106, %v3322
        %v3353 = vadd.f32 %v3107, %v3322
        %v3354 = vadd.f32 %v3108, %v3322
        %v3355 = vadd.f32 %v3109, %v3322
        %v3356 = vadd.f32 %v3110, %v3322
        %v3357 = vadd.f32 %v3111, %v3322
        %v3358 = vadd.f32 %v3112, %v3322
        %v3359 = vadd.f32 %v3113, %v3322
        %v3360 = vadd.f32 %v3114, %v3322
        %v3361 = vadd.f32 %v3115, %v3322
        %v3362 = vadd.f32 %v3116, %v3322
        %v3363 = vadd.f32 %v3117, %v3322
        %v3364 = vadd.f32 %v3118, %v3322
        %v3365 = vadd.f32 %v3119, %v3322
        %v3366 = vadd.f32 %v3120, %v3322
        %v3367 = vadd.f32 %v3121, %v3322
        %v3368 = vadd.f32 %v3122, %v3322
        %v3369 = vadd.f32 %v3123, %v3322
        %v3370 = vadd.f32 %v3124, %v3322
        %v3371 = vadd.f32 %v3125, %v3322
        %v3372 = vadd.f32 %v3126, %v3322
        %v3373 = vadd.f32 %v3127, %v3322
        %v3374 = vadd.f32 %v3128, %v3322
        %v3375 = vadd.f32 %v3129, %v3322
        %v3376 = vadd.f32 %v3130, %v3322
        %v3377 = vadd.f32 %v3131, %v3322
        %v3378 = vadd.f32 %v3132, %v3322
        %v3379 = vadd.f32 %v3133, %v3322
        %v3380 = vadd.f32 %v3134, %v3322
        %v3381 = vadd.f32 %v3135, %v3322
        %v3382 = vadd.f32 %v3136, %v3322
        %v3383 = vadd.f32 %v3137, %v3322
        %v3384 = vadd.f32 %v3138, %v3322
        %v3385 = vadd.f32 %v3139, %v3322
        %v3386 = vadd.f32 %v3140, %v3322
        %v3387 = vadd.f32 %v3141, %v3322
        %v3388 = vadd.f32 %v3142, %v3322
        %v3389 = vadd.f32 %v3143, %v3322
        %v3390 = vadd.f32 %v3144, %v3322
        %v3391 = vadd.f32 %v3145, %v3322
        %v3392 = vadd.f32 %v3146, %v3322
        %v3393 = vadd.f32 %v3147, %v3322
        %v3394 = vadd.f32 %v3148, %v3322
        %v3395 = vadd.f32 %v3149, %v3322
        %v3396 = vadd.f32 %v3150, %v3322
        %v3397 = vadd.f32 %v3151, %v3322
        %v3398 = vadd.f32 %v3152, %v3322
        %v3399 = vadd.f32 %v3153, %v3322
        %v3400 = vadd.f32 %v3154, %v3322
        %v3401 = vadd.f32 %v3155, %v3322
        %v3402 = vadd.f32 %v3156, %v3322
        %v3403 = vadd.f32 %v3157, %v3322
        %v3404 = vadd.f32 %v3158, %v3322
        %v3405 = vadd.f32 %v3159, %v3322
        %v3406 = vadd.f32 %v3160, %v3322
        %v3407 = vadd.f32 %v3161, %v3322
        %v3408 = vadd.f32 %v3162, %v3322
        %v3409 = vadd.f32 %v3163, %v3322
        %v3410 = vadd.f32 %v3164, %v3322
        %v3411 = vadd.f32 %v3165, %v3322
        %v3412 = vadd.f32 %v3166, %v3322
        %v3413 = vadd.f32 %v3167, %v3322
        %v3414 = vadd.f32 %v3168, %v3322
        %v3415 = vadd.f32 %v3169, %v3322
        %v3416 = vadd.f32 %v3170, %v3322
        %v3417 = vadd.f32 %v3171, %v3322
        %v3418 = vadd.f32 %v3172, %v3322
        %v3419 = vadd.f32 %v3173, %v3322
        %v3420 = vadd.f32 %v3174, %v3322
        %v3421 = vadd.f32 %v3175, %v3322
        %v3422 = vadd.f32 %v3176, %v3322
        %v3423 = vadd.f32 %v3177, %v3322
        %v3424 = vadd.f32 %v3178, %v3322
        %v3425 = vadd.f32 %v3179, %v3322
        %v3426 = vadd.f32 %v3180, %v3322
        %v3427 = vadd.f32 %v3181, %v3322
        %v3428 = vadd.f32 %v3182, %v3322
        %v3429 = vadd.f32 %v3183, %v3322
        %v3430 = vadd.f32 %v3184, %v3322
        %v3431 = vadd.f32 %v3185, %v3322
        %v3432 = vadd.f32 %v3186, %v3322
        %v3433 = vadd.f32 %v3187, %v3322
        %v3434 = vadd.f32 %v3188, %v3322
        %v3435 = vadd.f32 %v3189, %v3322
        %v3436 = vadd.f32 %v3190, %v3322
        %v3437 = vadd.f32 %v3191, %v3322
        %v3438 = vadd.f32 %v3192, %v3322
        %v3439 = vadd.f32 %v3193, %v3322
        %v3440 = vadd.f32 %v3194, %v3322
        %v3441 = vadd.f32 %v3195, %v3322
        %v3442 = vadd.f32 %v3196, %v3322
        %v3443 = vadd.f32 %v3197, %v3322
        %v3444 = vadd.f32 %v3198, %v3322
        %v3445 = vadd.f32 %v3199, %v3322
        %v3446 = vadd.f32 %v3200, %v3322
        %v3447 = vadd.f32 %v3201, %v3322
        %v3448 = vadd.f32 %v3202, %v3322
        %v3449 = vadd.f32 %v3203, %v3322
        %v3450 = vadd.f32 %v3204, %v3322
        %v3451 = vadd.f32 %v3205, %v3322
        %v3452 = vadd.f32 %v3206, %v3322
        %v3453 = vadd.f32 %v3207, %v3322
        %v3454 = vadd.f32 %v3208, %v3322
        %v3455 = vadd.f32 %v3209, %v3322
        %v3456 = vadd.f32 %v3210, %v3322
        %v3457 = vadd.f32 %v3211, %v3322
        %v3458 = vadd.f32 %v3212, %v3322
        %v3459 = vadd.f32 %v3213, %v3322
        %v3460 = vadd.f32 %v3214, %v3322
        %v3461 = vadd.f32 %v3215, %v3322
        %v3462 = vadd.f32 %v3216, %v3322
        %v3463 = vadd.f32 %v3217, %v3322
        %v3464 = vadd.f32 %v3218, %v3322
        %v3465 = vadd.f32 %v3219, %v3322
        %v3466 = vadd.f32 %v3220, %v3322
        %v3467 = vadd.f32 %v3221, %v3322
        %v3468 = vadd.f32 %v3222, %v3322
        %v3469 = vadd.f32 %v3223, %v3322
        %v3470 = vadd.f32 %v3224, %v3322
        %v3471 = vadd.f32 %v3225, %v3322
        %v3472 = vadd.f32 %v3226, %v3322
        %v3473 = vadd.f32 %v3227, %v3322
        %v3474 = vadd.f32 %v3228, %v3322
        %v3475 = vadd.f32 %v3229, %v3322
        %v3476 = vadd.f32 %v3230, %v3322
        %v3477 = vadd.f32 %v3231, %v3322
        %v3478 = vadd.f32 %v3232, %v3322
        %v3479 = vadd.f32 %v3233, %v3322
        %v3480 = vadd.f32 %v3234, %v3322
        %v3481 = vadd.f32 %v3235, %v3322
        %v3482 = vadd.f32 %v3236, %v3322
        %v3483 = vadd.f32 %v3237, %v3322
        %v3484 = vadd.f32 %v3238, %v3322
        %v3485 = vadd.f32 %v3239, %v3322
        %v3486 = vadd.f32 %v3240, %v3322
        %v3487 = vadd.f32 %v3241, %v3322
        %v3488 = vadd.f32 %v3242, %v3322
        %v3489 = vadd.f32 %v3243, %v3322
        %v3490 = vadd.f32 %v3244, %v3322
        %v3491 = vadd.f32 %v3245, %v3322
        %v3492 = vadd.f32 %v3246, %v3322
        %v3493 = vadd.f32 %v3247, %v3322
        %v3494 = vadd.f32 %v3248, %v3322
        %v3495 = vadd.f32 %v3249, %v3322
        %v3496 = vadd.f32 %v3250, %v3322
        %v3497 = vadd.f32 %v3251, %v3322
        %v3498 = vadd.f32 %v3252, %v3322
        %v3499 = vadd.f32 %v3253, %v3322
        %v3500 = vadd.f32 %v3254, %v3322
        %v3501 = vadd.f32 %v3255, %v3322
        %v3502 = vadd.f32 %v3256, %v3322
        %v3503 = vadd.f32 %v3257, %v3322
        %v3504 = vadd.f32 %v3258, %v3322
        %v3505 = vadd.f32 %v3259, %v3322
        %v3506 = vadd.f32 %v3260, %v3322
        %v3507 = vadd.f32 %v3261, %v3322
        %v3508 = vadd.f32 %v3262, %v3322
        %v3509 = vadd.f32 %v3263, %v3322
        %v3510 = vadd.f32 %v3264, %v3322
        %v3511 = vadd.f32 %v3265, %v3322
        %v3512 = vadd.f32 %v3266, %v3322
        %v3513 = vadd.f32 %v3267, %v3322
        %v3514 = vadd.f32 %v3268, %v3322
        %v3515 = vadd.f32 %v3269, %v3322
        %v3516 = vadd.f32 %v3270, %v3322
        %v3517 = vadd.f32 %v3271, %v3322
        %v3518 = vadd.f32 %v3272, %v3322
        %v3519 = vadd.f32 %v3273, %v3322
        %v3520 = vadd.f32 %v3274, %v3322
        %v3521 = vadd.f32 %v3275, %v3322
        %v3522 = vadd.f32 %v3276, %v3322
        %v3523 = vadd.f32 %v3277, %v3322
        %v3524 = vadd.f32 %v3278, %v3322
        %v3525 = vadd.f32 %v3279, %v3322
        %v3526 = vadd.f32 %v3280, %v3322
        %v3527 = vadd.f32 %v3281, %v3322
        %v3528 = vadd.f32 %v3282, %v3322
        %v3529 = vadd.f32 %v3283, %v3322
        %v3530 = vadd.f32 %v3284, %v3322
        %v3531 = vadd.f32 %v3285, %v3322
        %v3532 = vadd.f32 %v3286, %v3322
        %v3533 = vadd.f32 %v3287, %v3322
        %v3534 = vadd.f32 %v3288, %v3322
        %v3535 = vadd.f32 %v3289, %v3322
        %v3536 = vadd.f32 %v3290, %v3322
        %v3537 = vadd.f32 %v3291, %v3322
        %v3538 = vadd.f32 %v3292, %v3322
        %v3539 = vadd.f32 %v3293, %v3322
        %v3540 = vadd.f32 %v3294, %v3322
        %v3541 = vadd.f32 %v3295, %v3322
        %v3542 = vadd.f32 %v3296, %v3322
        %v3543 = vadd.f32 %v3297, %v3322
        %v3544 = vadd.f32 %v3298, %v3322
        %v3545 = vadd.f32 %v3299, %v3322
        %v3546 = vadd.f32 %v3300, %v3322
        %v3547 = vadd.f32 %v3301, %v3322
        %v3548 = vadd.f32 %v3302, %v3322
        %v3549 = vadd.f32 %v3303, %v3322
        %v3550 = vadd.f32 %v3304, %v3322
        %v3551 = vadd.f32 %v3305, %v3322
        %v3552 = vadd.f32 %v3306, %v3322
        %v3553 = vadd.f32 %v3307, %v3322
        %v3554 = vadd.f32 %v3308, %v3322
        %v3555 = vadd.f32 %v3309, %v3322
        %v3556 = vadd.f32 %v3310, %v3322
        %v3557 = vadd.f32 %v3311, %v3322
        %v3558 = vadd.f32 %v3312, %v3322
        %v3559 = vadd.f32 %v3313, %v3322
        %v3560 = vadd.f32 %v3314, %v3322
        %v3561 = vadd.f32 %v3315, %v3322
        %v3562 = vadd.f32 %v3316, %v3322
        %v3563 = vadd.f32 %v3317, %v3322
        %v3564 = vadd.f32 %v3318, %v3322
        %v3565 = vadd.f32 %v3319, %v3322
        %3566 = vst.msk [vmem:[%s257] sm:$0xff] %vm2832, %v3324
        %3567 = vst.msk [vmem:[%s257 + $0x8] sm:$0xff] %vm2832, %v3325
        %3568 = vst.msk [vmem:[%s257 + $0x10] sm:$0xff] %vm2832, %v3326
        %3569 = vst.msk [vmem:[%s257 + $0x18] sm:$0xff] %vm2832, %v3327
        %3570 = vst.msk [vmem:[%s257 + $0x20] sm:$0xff] %vm2832, %v3328
        %3571 = vst.msk [vmem:[%s257 + $0x28] sm:$0xff] %vm2832, %v3329
        %3572 = vst.msk [vmem:[%s257 + $0x30] sm:$0xff] %vm2832, %v3330
        %3573 = vst.msk [vmem:[%s257 + $0x38] sm:$0xff] %vm2832, %v3331
        %3574 = vst.msk [vmem:[%s257 + $0x40] sm:$0xff] %vm2832, %v3332
        %3575 = vst.msk [vmem:[%s257 + $0x48] sm:$0xff] %vm2832, %v3333
        %3576 = vst.msk [vmem:[%s257 + $0x50] sm:$0xff] %vm2832, %v3334
        %3577 = vst.msk [vmem:[%s257 + $0x58] sm:$0xff] %vm2832, %v3335
        %3578 = vst.msk [vmem:[%s257 + $0x60] sm:$0xff] %vm2832, %v3336
        %3579 = vst.msk [vmem:[%s257 + $0x68] sm:$0xff] %vm2832, %v3337
        %3580 = vst.msk [vmem:[%s257 + $0x70] sm:$0xff] %vm2832, %v3338
        %3581 = vst.msk [vmem:[%s257 + $0x78] sm:$0xff] %vm2832, %v3339
        %3582 = vst.msk [vmem:[%s257 + $0x80] sm:$0xff] %vm2832, %v3340
        %3583 = vst.msk [vmem:[%s257 + $0x88] sm:$0xff] %vm2832, %v3341
        %3584 = vst.msk [vmem:[%s257 + $0x90] sm:$0xff] %vm2832, %v3342
        %3585 = vst.msk [vmem:[%s257 + $0x98] sm:$0xff] %vm2832, %v3343
        %3586 = vst.msk [vmem:[%s257 + $0xa0] sm:$0xff] %vm2832, %v3344
        %3587 = vst.msk [vmem:[%s257 + $0xa8] sm:$0xff] %vm2832, %v3345
        %3588 = vst.msk [vmem:[%s257 + $0xb0] sm:$0xff] %vm2832, %v3346
        %3589 = vst.msk [vmem:[%s257 + $0xb8] sm:$0xff] %vm2832, %v3347
        %3590 = vst.msk [vmem:[%s257 + $0xc0] sm:$0xff] %vm2832, %v3348
        %3591 = vst.msk [vmem:[%s257 + $0xc8] sm:$0xff] %vm2832, %v3349
        %3592 = vst.msk [vmem:[%s257 + $0xd0] sm:$0xff] %vm2832, %v3350
        %3593 = vst.msk [vmem:[%s257 + $0xd8] sm:$0xff] %vm2832, %v3351
        %3594 = vst.msk [vmem:[%s257 + $0xe0] sm:$0xff] %vm2832, %v3352
        %3595 = vst.msk [vmem:[%s257 + $0xe8] sm:$0xff] %vm2832, %v3353
        %3596 = vst.msk [vmem:[%s257 + $0xf0] sm:$0xff] %vm2832, %v3354
        %3597 = vst.msk [vmem:[%s257 + $0xf8] sm:$0xff] %vm2832, %v3355
        %3598 = vst.msk [vmem:[%s257 + $0x100] sm:$0xff] %vm2832, %v3356
        %3599 = vst.msk [vmem:[%s257 + $0x108] sm:$0xff] %vm2832, %v3357
        %3600 = vst.msk [vmem:[%s257 + $0x110] sm:$0xff] %vm2832, %v3358
        %3601 = vst.msk [vmem:[%s257 + $0x118] sm:$0xff] %vm2832, %v3359
        %3602 = vst.msk [vmem:[%s257 + $0x120] sm:$0xff] %vm2832, %v3360
        %3603 = vst.msk [vmem:[%s257 + $0x128] sm:$0xff] %vm2832, %v3361
        %3604 = vst.msk [vmem:[%s257 + $0x130] sm:$0xff] %vm2832, %v3362
        %3605 = vst.msk [vmem:[%s257 + $0x138] sm:$0xff] %vm2832, %v3363
        %3606 = vst.msk [vmem:[%s257 + $0x140] sm:$0xff] %vm2832, %v3364
        %3607 = vst.msk [vmem:[%s257 + $0x148] sm:$0xff] %vm2832, %v3365
        %3608 = vst.msk [vmem:[%s257 + $0x150] sm:$0xff] %vm2832, %v3366
        %3609 = vst.msk [vmem:[%s257 + $0x158] sm:$0xff] %vm2832, %v3367
        %3610 = vst.msk [vmem:[%s257 + $0x160] sm:$0xff] %vm2832, %v3368
        %3611 = vst.msk [vmem:[%s257 + $0x168] sm:$0xff] %vm2832, %v3369
        %3612 = vst.msk [vmem:[%s257 + $0x170] sm:$0xff] %vm2832, %v3370
        %3613 = vst.msk [vmem:[%s257 + $0x178] sm:$0xff] %vm2832, %v3371
        %3614 = vst.msk [vmem:[%s257 + $0x180] sm:$0xff] %vm2832, %v3372
        %3615 = vst.msk [vmem:[%s257 + $0x188] sm:$0xff] %vm2832, %v3373
        %3616 = vst.msk [vmem:[%s257 + $0x190] sm:$0xff] %vm2832, %v3374
        %3617 = vst.msk [vmem:[%s257 + $0x198] sm:$0xff] %vm2832, %v3375
        %3618 = vst.msk [vmem:[%s257 + $0x1a0] sm:$0xff] %vm2832, %v3376
        %3619 = vst.msk [vmem:[%s257 + $0x1a8] sm:$0xff] %vm2832, %v3377
        %3620 = vst.msk [vmem:[%s257 + $0x1b0] sm:$0xff] %vm2832, %v3378
        %3621 = vst.msk [vmem:[%s257 + $0x1b8] sm:$0xff] %vm2832, %v3379
        %3622 = vst.msk [vmem:[%s257 + $0x1c0] sm:$0xff] %vm2832, %v3380
        %3623 = vst.msk [vmem:[%s257 + $0x1c8] sm:$0xff] %vm2832, %v3381
        %3624 = vst.msk [vmem:[%s257 + $0x1d0] sm:$0xff] %vm2832, %v3382
        %3625 = vst.msk [vmem:[%s257 + $0x1d8] sm:$0xff] %vm2832, %v3383
        %3626 = vst.msk [vmem:[%s257 + $0x1e0] sm:$0xff] %vm2832, %v3384
        %3627 = vst.msk [vmem:[%s257 + $0x1e8] sm:$0xff] %vm2832, %v3385
        %3628 = vst.msk [vmem:[%s257 + $0x1f0] sm:$0xff] %vm2832, %v3386
        %3629 = vst.msk [vmem:[%s257 + $0x1f8] sm:$0xff] %vm2832, %v3387
        %3630 = vst.msk [vmem:[%s257 + $0x200] sm:$0xff] %vm2832, %v3388
        %3631 = vst.msk [vmem:[%s257 + $0x208] sm:$0xff] %vm2832, %v3389
        %3632 = vst.msk [vmem:[%s257 + $0x210] sm:$0xff] %vm2832, %v3390
        %3633 = vst.msk [vmem:[%s257 + $0x218] sm:$0xff] %vm2832, %v3391
        %3634 = vst.msk [vmem:[%s257 + $0x220] sm:$0xff] %vm2832, %v3392
        %3635 = vst.msk [vmem:[%s257 + $0x228] sm:$0xff] %vm2832, %v3393
        %3636 = vst.msk [vmem:[%s257 + $0x230] sm:$0xff] %vm2832, %v3394
        %3637 = vst.msk [vmem:[%s257 + $0x238] sm:$0xff] %vm2832, %v3395
        %3638 = vst.msk [vmem:[%s257 + $0x240] sm:$0xff] %vm2832, %v3396
        %3639 = vst.msk [vmem:[%s257 + $0x248] sm:$0xff] %vm2832, %v3397
        %3640 = vst.msk [vmem:[%s257 + $0x250] sm:$0xff] %vm2832, %v3398
        %3641 = vst.msk [vmem:[%s257 + $0x258] sm:$0xff] %vm2832, %v3399
        %3642 = vst.msk [vmem:[%s257 + $0x260] sm:$0xff] %vm2832, %v3400
        %3643 = vst.msk [vmem:[%s257 + $0x268] sm:$0xff] %vm2832, %v3401
        %3644 = vst.msk [vmem:[%s257 + $0x270] sm:$0xff] %vm2832, %v3402
        %3645 = vst.msk [vmem:[%s257 + $0x278] sm:$0xff] %vm2832, %v3403
        %3646 = vst.msk [vmem:[%s257 + $0x280] sm:$0xff] %vm2832, %v3404
        %3647 = vst.msk [vmem:[%s257 + $0x288] sm:$0xff] %vm2832, %v3405
        %3648 = vst.msk [vmem:[%s257 + $0x290] sm:$0xff] %vm2832, %v3406
        %3649 = vst.msk [vmem:[%s257 + $0x298] sm:$0xff] %vm2832, %v3407
        %3650 = vst.msk [vmem:[%s257 + $0x2a0] sm:$0xff] %vm2832, %v3408
        %3651 = vst.msk [vmem:[%s257 + $0x2a8] sm:$0xff] %vm2832, %v3409
        %3652 = vst.msk [vmem:[%s257 + $0x2b0] sm:$0xff] %vm2832, %v3410
        %3653 = vst.msk [vmem:[%s257 + $0x2b8] sm:$0xff] %vm2832, %v3411
        %3654 = vst.msk [vmem:[%s257 + $0x2c0] sm:$0xff] %vm2832, %v3412
        %3655 = vst.msk [vmem:[%s257 + $0x2c8] sm:$0xff] %vm2832, %v3413
        %3656 = vst.msk [vmem:[%s257 + $0x2d0] sm:$0xff] %vm2832, %v3414
        %3657 = vst.msk [vmem:[%s257 + $0x2d8] sm:$0xff] %vm2832, %v3415
        %3658 = vst.msk [vmem:[%s257 + $0x2e0] sm:$0xff] %vm2832, %v3416
        %3659 = vst.msk [vmem:[%s257 + $0x2e8] sm:$0xff] %vm2832, %v3417
        %3660 = vst.msk [vmem:[%s257 + $0x2f0] sm:$0xff] %vm2832, %v3418
        %3661 = vst.msk [vmem:[%s257 + $0x2f8] sm:$0xff] %vm2832, %v3419
        %3662 = vst.msk [vmem:[%s257 + $0x300] sm:$0xff] %vm2832, %v3420
        %3663 = vst.msk [vmem:[%s257 + $0x308] sm:$0xff] %vm2832, %v3421
        %3664 = vst.msk [vmem:[%s257 + $0x310] sm:$0xff] %vm2832, %v3422
        %3665 = vst.msk [vmem:[%s257 + $0x318] sm:$0xff] %vm2832, %v3423
        %3666 = vst.msk [vmem:[%s257 + $0x320] sm:$0xff] %vm2832, %v3424
        %3667 = vst.msk [vmem:[%s257 + $0x328] sm:$0xff] %vm2832, %v3425
        %3668 = vst.msk [vmem:[%s257 + $0x330] sm:$0xff] %vm2832, %v3426
        %3669 = vst.msk [vmem:[%s257 + $0x338] sm:$0xff] %vm2832, %v3427
        %3670 = vst.msk [vmem:[%s257 + $0x340] sm:$0xff] %vm2832, %v3428
        %3671 = vst.msk [vmem:[%s257 + $0x348] sm:$0xff] %vm2832, %v3429
        %3672 = vst.msk [vmem:[%s257 + $0x350] sm:$0xff] %vm2832, %v3430
        %3673 = vst.msk [vmem:[%s257 + $0x358] sm:$0xff] %vm2832, %v3431
        %3674 = vst.msk [vmem:[%s257 + $0x360] sm:$0xff] %vm2832, %v3432
        %3675 = vst.msk [vmem:[%s257 + $0x368] sm:$0xff] %vm2832, %v3433
        %3676 = vst.msk [vmem:[%s257 + $0x370] sm:$0xff] %vm2832, %v3434
        %3677 = vst.msk [vmem:[%s257 + $0x378] sm:$0xff] %vm2832, %v3435
        %3678 = vst.msk [vmem:[%s257 + $0x380] sm:$0xff] %vm2832, %v3436
        %3679 = vst.msk [vmem:[%s257 + $0x388] sm:$0xff] %vm2832, %v3437
        %3680 = vst.msk [vmem:[%s257 + $0x390] sm:$0xff] %vm2832, %v3438
        %3681 = vst.msk [vmem:[%s257 + $0x398] sm:$0xff] %vm2832, %v3439
        %3682 = vst.msk [vmem:[%s257 + $0x3a0] sm:$0xff] %vm2832, %v3440
        %3683 = vst.msk [vmem:[%s257 + $0x3a8] sm:$0xff] %vm2832, %v3441
        %3684 = vst.msk [vmem:[%s257 + $0x3b0] sm:$0xff] %vm2832, %v3442
        %3685 = vst.msk [vmem:[%s257 + $0x3b8] sm:$0xff] %vm2832, %v3443
        %3686 = vst.msk [vmem:[%s257 + $0x3c0] sm:$0xff] %vm2832, %v3444
        %3687 = vst.msk [vmem:[%s257 + $0x3c8] sm:$0xff] %vm2832, %v3445
        %3688 = vst.msk [vmem:[%s257 + $0x3d0] sm:$0xff] %vm2832, %v3446
        %3689 = vst.msk [vmem:[%s257 + $0x3d8] sm:$0xff] %vm2832, %v3447
        %3690 = vst.msk [vmem:[%s257 + $0x3e0] sm:$0xff] %vm2832, %v3448
        %3691 = vst.msk [vmem:[%s257 + $0x3e8] sm:$0xff] %vm2832, %v3449
        %3692 = vst.msk [vmem:[%s257 + $0x3f0] sm:$0xff] %vm2832, %v3450
        %3693 = vst.msk [vmem:[%s257 + $0x3f8] sm:$0xff] %vm2832, %v3451
        %3694 = vst.msk [vmem:[%s257 + $0x400] sm:$0xff] %vm2832, %v3452
        %3695 = vst.msk [vmem:[%s257 + $0x408] sm:$0xff] %vm2832, %v3453
        %3696 = vst.msk [vmem:[%s257 + $0x410] sm:$0xff] %vm2832, %v3454
        %3697 = vst.msk [vmem:[%s257 + $0x418] sm:$0xff] %vm2832, %v3455
        %3698 = vst.msk [vmem:[%s257 + $0x420] sm:$0xff] %vm2832, %v3456
        %3699 = vst.msk [vmem:[%s257 + $0x428] sm:$0xff] %vm2832, %v3457
        %3700 = vst.msk [vmem:[%s257 + $0x430] sm:$0xff] %vm2832, %v3458
        %3701 = vst.msk [vmem:[%s257 + $0x438] sm:$0xff] %vm2832, %v3459
        %3702 = vst.msk [vmem:[%s257 + $0x440] sm:$0xff] %vm2832, %v3460
        %3703 = vst.msk [vmem:[%s257 + $0x448] sm:$0xff] %vm2832, %v3461
        %3704 = vst.msk [vmem:[%s257 + $0x450] sm:$0xff] %vm2832, %v3462
        %3705 = vst.msk [vmem:[%s257 + $0x458] sm:$0xff] %vm2832, %v3463
        %3706 = vst.msk [vmem:[%s257 + $0x460] sm:$0xff] %vm2832, %v3464
        %3707 = vst.msk [vmem:[%s257 + $0x468] sm:$0xff] %vm2832, %v3465
        %3708 = vst.msk [vmem:[%s257 + $0x470] sm:$0xff] %vm2832, %v3466
        %3709 = vst.msk [vmem:[%s257 + $0x478] sm:$0xff] %vm2832, %v3467
        %3710 = vst.msk [vmem:[%s257 + $0x480] sm:$0xff] %vm2832, %v3468
        %3711 = vst.msk [vmem:[%s257 + $0x488] sm:$0xff] %vm2832, %v3469
        %3712 = vst.msk [vmem:[%s257 + $0x490] sm:$0xff] %vm2832, %v3470
        %3713 = vst.msk [vmem:[%s257 + $0x498] sm:$0xff] %vm2832, %v3471
        %3714 = vst.msk [vmem:[%s257 + $0x4a0] sm:$0xff] %vm2832, %v3472
        %3715 = vst.msk [vmem:[%s257 + $0x4a8] sm:$0xff] %vm2832, %v3473
        %3716 = vst.msk [vmem:[%s257 + $0x4b0] sm:$0xff] %vm2832, %v3474
        %3717 = vst.msk [vmem:[%s257 + $0x4b8] sm:$0xff] %vm2832, %v3475
        %3718 = vst.msk [vmem:[%s257 + $0x4c0] sm:$0xff] %vm2832, %v3476
        %3719 = vst.msk [vmem:[%s257 + $0x4c8] sm:$0xff] %vm2832, %v3477
        %3720 = vst.msk [vmem:[%s257 + $0x4d0] sm:$0xff] %vm2832, %v3478
        %3721 = vst.msk [vmem:[%s257 + $0x4d8] sm:$0xff] %vm2832, %v3479
        %3722 = vst.msk [vmem:[%s257 + $0x4e0] sm:$0xff] %vm2832, %v3480
        %3723 = vst.msk [vmem:[%s257 + $0x4e8] sm:$0xff] %vm2832, %v3481
        %3724 = vst.msk [vmem:[%s257 + $0x4f0] sm:$0xff] %vm2832, %v3482
        %3725 = vst.msk [vmem:[%s257 + $0x4f8] sm:$0xff] %vm2832, %v3483
        %3726 = vst.msk [vmem:[%s257 + $0x500] sm:$0xff] %vm2832, %v3484
        %3727 = vst.msk [vmem:[%s257 + $0x508] sm:$0xff] %vm2832, %v3485
        %3728 = vst.msk [vmem:[%s257 + $0x510] sm:$0xff] %vm2832, %v3486
        %3729 = vst.msk [vmem:[%s257 + $0x518] sm:$0xff] %vm2832, %v3487
        %3730 = vst.msk [vmem:[%s257 + $0x520] sm:$0xff] %vm2832, %v3488
        %3731 = vst.msk [vmem:[%s257 + $0x528] sm:$0xff] %vm2832, %v3489
        %3732 = vst.msk [vmem:[%s257 + $0x530] sm:$0xff] %vm2832, %v3490
        %3733 = vst.msk [vmem:[%s257 + $0x538] sm:$0xff] %vm2832, %v3491
        %3734 = vst.msk [vmem:[%s257 + $0x540] sm:$0xff] %vm2832, %v3492
        %3735 = vst.msk [vmem:[%s257 + $0x548] sm:$0xff] %vm2832, %v3493
        %3736 = vst.msk [vmem:[%s257 + $0x550] sm:$0xff] %vm2832, %v3494
        %3737 = vst.msk [vmem:[%s257 + $0x558] sm:$0xff] %vm2832, %v3495
        %3738 = vst.msk [vmem:[%s257 + $0x560] sm:$0xff] %vm2832, %v3496
        %3739 = vst.msk [vmem:[%s257 + $0x568] sm:$0xff] %vm2832, %v3497
        %3740 = vst.msk [vmem:[%s257 + $0x570] sm:$0xff] %vm2832, %v3498
        %3741 = vst.msk [vmem:[%s257 + $0x578] sm:$0xff] %vm2832, %v3499
        %3742 = vst.msk [vmem:[%s257 + $0x580] sm:$0xff] %vm2832, %v3500
        %3743 = vst.msk [vmem:[%s257 + $0x588] sm:$0xff] %vm2832, %v3501
        %3744 = vst.msk [vmem:[%s257 + $0x590] sm:$0xff] %vm2832, %v3502
        %3745 = vst.msk [vmem:[%s257 + $0x598] sm:$0xff] %vm2832, %v3503
        %3746 = vst.msk [vmem:[%s257 + $0x5a0] sm:$0xff] %vm2832, %v3504
        %3747 = vst.msk [vmem:[%s257 + $0x5a8] sm:$0xff] %vm2832, %v3505
        %3748 = vst.msk [vmem:[%s257 + $0x5b0] sm:$0xff] %vm2832, %v3506
        %3749 = vst.msk [vmem:[%s257 + $0x5b8] sm:$0xff] %vm2832, %v3507
        %3750 = vst.msk [vmem:[%s257 + $0x5c0] sm:$0xff] %vm2832, %v3508
        %3751 = vst.msk [vmem:[%s257 + $0x5c8] sm:$0xff] %vm2832, %v3509
        %3752 = vst.msk [vmem:[%s257 + $0x5d0] sm:$0xff] %vm2832, %v3510
        %3753 = vst.msk [vmem:[%s257 + $0x5d8] sm:$0xff] %vm2832, %v3511
        %3754 = vst.msk [vmem:[%s257 + $0x5e0] sm:$0xff] %vm2832, %v3512
        %3755 = vst.msk [vmem:[%s257 + $0x5e8] sm:$0xff] %vm2832, %v3513
        %3756 = vst.msk [vmem:[%s257 + $0x5f0] sm:$0xff] %vm2832, %v3514
        %3757 = vst.msk [vmem:[%s257 + $0x5f8] sm:$0xff] %vm2832, %v3515
        %3758 = vst.msk [vmem:[%s257 + $0x600] sm:$0xff] %vm2832, %v3516
        %3759 = vst.msk [vmem:[%s257 + $0x608] sm:$0xff] %vm2832, %v3517
        %3760 = vst.msk [vmem:[%s257 + $0x610] sm:$0xff] %vm2832, %v3518
        %3761 = vst.msk [vmem:[%s257 + $0x618] sm:$0xff] %vm2832, %v3519
        %3762 = vst.msk [vmem:[%s257 + $0x620] sm:$0xff] %vm2832, %v3520
        %3763 = vst.msk [vmem:[%s257 + $0x628] sm:$0xff] %vm2832, %v3521
        %3764 = vst.msk [vmem:[%s257 + $0x630] sm:$0xff] %vm2832, %v3522
        %3765 = vst.msk [vmem:[%s257 + $0x638] sm:$0xff] %vm2832, %v3523
        %3766 = vst.msk [vmem:[%s257 + $0x640] sm:$0xff] %vm2832, %v3524
        %3767 = vst.msk [vmem:[%s257 + $0x648] sm:$0xff] %vm2832, %v3525
        %3768 = vst.msk [vmem:[%s257 + $0x650] sm:$0xff] %vm2832, %v3526
        %3769 = vst.msk [vmem:[%s257 + $0x658] sm:$0xff] %vm2832, %v3527
        %3770 = vst.msk [vmem:[%s257 + $0x660] sm:$0xff] %vm2832, %v3528
        %3771 = vst.msk [vmem:[%s257 + $0x668] sm:$0xff] %vm2832, %v3529
        %3772 = vst.msk [vmem:[%s257 + $0x670] sm:$0xff] %vm2832, %v3530
        %3773 = vst.msk [vmem:[%s257 + $0x678] sm:$0xff] %vm2832, %v3531
        %3774 = vst.msk [vmem:[%s257 + $0x680] sm:$0xff] %vm2832, %v3532
        %3775 = vst.msk [vmem:[%s257 + $0x688] sm:$0xff] %vm2832, %v3533
        %3776 = vst.msk [vmem:[%s257 + $0x690] sm:$0xff] %vm2832, %v3534
        %3777 = vst.msk [vmem:[%s257 + $0x698] sm:$0xff] %vm2832, %v3535
        %3778 = vst.msk [vmem:[%s257 + $0x6a0] sm:$0xff] %vm2832, %v3536
        %3779 = vst.msk [vmem:[%s257 + $0x6a8] sm:$0xff] %vm2832, %v3537
        %3780 = vst.msk [vmem:[%s257 + $0x6b0] sm:$0xff] %vm2832, %v3538
        %3781 = vst.msk [vmem:[%s257 + $0x6b8] sm:$0xff] %vm2832, %v3539
        %3782 = vst.msk [vmem:[%s257 + $0x6c0] sm:$0xff] %vm2832, %v3540
        %3783 = vst.msk [vmem:[%s257 + $0x6c8] sm:$0xff] %vm2832, %v3541
        %3784 = vst.msk [vmem:[%s257 + $0x6d0] sm:$0xff] %vm2832, %v3542
        %3785 = vst.msk [vmem:[%s257 + $0x6d8] sm:$0xff] %vm2832, %v3543
        %3786 = vst.msk [vmem:[%s257 + $0x6e0] sm:$0xff] %vm2832, %v3544
        %3787 = vst.msk [vmem:[%s257 + $0x6e8] sm:$0xff] %vm2832, %v3545
        %3788 = vst.msk [vmem:[%s257 + $0x6f0] sm:$0xff] %vm2832, %v3546
        %3789 = vst.msk [vmem:[%s257 + $0x6f8] sm:$0xff] %vm2832, %v3547
        %3790 = vst.msk [vmem:[%s257 + $0x700] sm:$0xff] %vm2832, %v3548
        %3791 = vst.msk [vmem:[%s257 + $0x708] sm:$0xff] %vm2832, %v3549
        %3792 = vst.msk [vmem:[%s257 + $0x710] sm:$0xff] %vm2832, %v3550
        %3793 = vst.msk [vmem:[%s257 + $0x718] sm:$0xff] %vm2832, %v3551
        %3794 = vst.msk [vmem:[%s257 + $0x720] sm:$0xff] %vm2832, %v3552
        %3795 = vst.msk [vmem:[%s257 + $0x728] sm:$0xff] %vm2832, %v3553
        %3796 = vst.msk [vmem:[%s257 + $0x730] sm:$0xff] %vm2832, %v3554
        %3797 = vst.msk [vmem:[%s257 + $0x738] sm:$0xff] %vm2832, %v3555
        %3798 = vst.msk [vmem:[%s257 + $0x740] sm:$0xff] %vm2832, %v3556
        %3799 = vst.msk [vmem:[%s257 + $0x748] sm:$0xff] %vm2832, %v3557
        %3800 = vst.msk [vmem:[%s257 + $0x750] sm:$0xff] %vm2832, %v3558
        %3801 = vst.msk [vmem:[%s257 + $0x758] sm:$0xff] %vm2832, %v3559
        %3802 = vst.msk [vmem:[%s257 + $0x760] sm:$0xff] %vm2832, %v3560
        %3803 = vst.msk [vmem:[%s257 + $0x768] sm:$0xff] %vm2832, %v3561
        %3804 = vst.msk [vmem:[%s257 + $0x770] sm:$0xff] %vm2832, %v3562
        %3805 = vst.msk [vmem:[%s257 + $0x778] sm:$0xff] %vm2832, %v3563
        %3806 = vst.msk [vmem:[%s257 + $0x780] sm:$0xff] %vm2832, %v3564
        %3807 = vst.msk [vmem:[%s257 + $0x788] sm:$0xff] %vm2832, %v3565
      $region40: #{encoder_conv_base_forward.4} parent=31 // pred_fallthru
        _
      %s3808 = smul.u32 242, %s19
      %p3809 = scmp.lt.s32.totalorder %s3808, 967
      %s3810 = scalar_select %p3809, %s3808, 967
      %p3811 = scmp.lt.s32.totalorder %s20, 0
      %s3812 = scalar_select %p3811, %s20, 0
      %s3813 = sadd.s32 %s3812, %s3810
      %s3814 = smul.addr %s3813, 8
      %s3815 = scalar_lea.vmem %s3, %s3814
      // Predicated region
      $region41: #{encoder_conv_base_forward.4} parent=31 // pred_check
        %p3816 = pneg %p135
      $region42: #{encoder_conv_base_forward.4} parent=31 // pred_check_branch
        %3818 = sbr.rel (%p3816) target = $region44
      $region43: #{encoder_conv_base_forward.4} parent=31 // pred_region
        %s3819 = smul.u32 242, %s19
      $region44: #{encoder_conv_base_forward.4} parent=31 // pred_fallthru
        _
    $region32: #{encoder_conv_base_forward.4} parent=5 // pred_fallthru
      _
    %p3820 = scmp.le.s32.totalorder 2, %s9
    // Predicated region
    $region45: #{encoder_conv_base_forward.4} parent=5 // pred_check
      %p3821 = pneg %p3820
    $region46: #{encoder_conv_base_forward.4} parent=5 // pred_check_branch
      %3823 = sbr.rel (%p3821) target = $region48
    $region47: #{encoder_conv_base_forward.4} parent=5 // pred_region
      %s3824 = ssub.s32 %s9, 2
      // Predicated region
      $region49: #{encoder_conv_base_forward.4} parent=47 // pred_check
        %p3825 = pneg %p141
      $region50: #{encoder_conv_base_forward.4} parent=47 // pred_check_branch
        %3827 = sbr.rel (%p3825) target = $region52
      $region51: #{encoder_conv_base_forward.4} parent=47 // pred_region
        %s3828 = smul.u32 242, %s22
        %p3829 = scmp.lt.s32.totalorder %s3828, 967
        %s3830 = scalar_select %p3829, %s3828, 967
        %p3831 = scmp.lt.s32.totalorder %s23, 0
        %s3832 = scalar_select %p3831, %s23, 0
        %s3833 = sadd.s32 %s3832, %s3830
        %s3834 = smul.addr %s3833, 8
        %s3835 = scalar_lea.vmem %s3, %s3834
      $region52: #{encoder_conv_base_forward.4} parent=47 // pred_fallthru
        _
    $region48: #{encoder_conv_base_forward.4} parent=5 // pred_fallthru
      _
  $region6: #{encoder_conv_base_forward.4} parent=0 // loop_footer
    %s13 = sadd.s32 1, %s9
  $region7: #{encoder_conv_base_forward.4} parent=0 // loop_footer_branch
    %8 = sbr.rel target = $region3
  $region8: #{encoder_conv_base_forward.4} parent=0 // loop_exit
    _

// kernel: encoder_conv_base_forward.5
$region0: #{encoder_conv_base_forward.5}
  #allocation0 [shape = 'u32[]', space=smem, size = 0x4, offset = 0x4, fixed_abs, tag = 'smem constant byte address 0x4 - core index']
  #allocation1 [shape = 'u32[72,128]{1,0:T(1,128)}', space=vmem, size = 0x9000, scoped, tag = 'internal scratch']
  #allocation2 [shape = 'f32[456,32]{1,0:T(8,128)}', space=vmem, size = 0x39000, scoped, tag = 'scratch operand']
  %s0 = inlined_call_operand.vmem [shape: bf16[456,400], index: 0, kind: input, shape index: {}]
  %s1 = inlined_call_operand.vmem [shape: bf16[400,32], index: 1, kind: input, shape index: {}]
  %s2 = inlined_call_operand.vmem [shape: f32[1,32], index: 2, kind: input, shape index: {}]
  %s3 = inlined_call_operand.vmem [shape: f32[456,32], index: 3, kind: output, shape index: {}]
  %s4 = sld [smem:[#allocation0]]
  $region30: #{encoder_conv_base_forward.5} parent=0
    _
  %s6 = ssub.s32 1, %s4
  %s7 = scalar_select 0, %s6, %s4
  // Predicated region
  $region2: #{encoder_conv_base_forward.5} parent=0 // pred_check
    _
  $region3: #{encoder_conv_base_forward.5} parent=0 // pred_check_branch
    %9 = sbr.rel (0) target = $region5
  $region4: #{encoder_conv_base_forward.5} parent=0 // pred_region
    _
  $region5: #{encoder_conv_base_forward.5} parent=0 // pred_fallthru
    _
  // Predicated region
  $region6: #{encoder_conv_base_forward.5} parent=0 // pred_check
    _
  $region7: #{encoder_conv_base_forward.5} parent=0 // pred_check_branch
    %11 = sbr.rel (0) target = $region9
  $region8: #{encoder_conv_base_forward.5} parent=0 // pred_region
    _
  $region9: #{encoder_conv_base_forward.5} parent=0 // pred_fallthru
    _
  // Predicated region
  $region10: #{encoder_conv_base_forward.5} parent=0 // pred_check
    _
  $region11: #{encoder_conv_base_forward.5} parent=0 // pred_check_branch
    %13 = sbr.rel (0) target = $region13
  $region12: #{encoder_conv_base_forward.5} parent=0 // pred_region
    _
  $region13: #{encoder_conv_base_forward.5} parent=0 // pred_fallthru
    _
  %p15 = scmp.eq.s32.totalorder 0, 0
  // Predicated region
  $region14: #{encoder_conv_base_forward.5} parent=0 // pred_check
    %p16 = pneg %p15
  $region15: #{encoder_conv_base_forward.5} parent=0 // pred_check_branch
    %18 = sbr.rel (%p16) target = $region17
  $region16: #{encoder_conv_base_forward.5} parent=0 // pred_region
    %vm19 = vcmask 261120
    %20 = vst.msk [vmem:[#allocation2] sm:$0xff] %vm19, 0.0
    %21 = vst.msk [vmem:[#allocation2 + $0x8] sm:$0xff] %vm19, 0.0
    %22 = vst.msk [vmem:[#allocation2 + $0x10] sm:$0xff] %vm19, 0.0
    %23 = vst.msk [vmem:[#allocation2 + $0x18] sm:$0xff] %vm19, 0.0
    %24 = vst.msk [vmem:[#allocation2 + $0x20] sm:$0xff] %vm19, 0.0
    %25 = vst.msk [vmem:[#allocation2 + $0x28] sm:$0xff] %vm19, 0.0
    %26 = vst.msk [vmem:[#allocation2 + $0x30] sm:$0xff] %vm19, 0.0
    %27 = vst.msk [vmem:[#allocation2 + $0x38] sm:$0xff] %vm19, 0.0
    %28 = vst.msk [vmem:[#allocation2 + $0x40] sm:$0xff] %vm19, 0.0
    %29 = vst.msk [vmem:[#allocation2 + $0x48] sm:$0xff] %vm19, 0.0
    %30 = vst.msk [vmem:[#allocation2 + $0x50] sm:$0xff] %vm19, 0.0
    %31 = vst.msk [vmem:[#allocation2 + $0x58] sm:$0xff] %vm19, 0.0
    %32 = vst.msk [vmem:[#allocation2 + $0x60] sm:$0xff] %vm19, 0.0
    %33 = vst.msk [vmem:[#allocation2 + $0x68] sm:$0xff] %vm19, 0.0
    %34 = vst.msk [vmem:[#allocation2 + $0x70] sm:$0xff] %vm19, 0.0
    %35 = vst.msk [vmem:[#allocation2 + $0x78] sm:$0xff] %vm19, 0.0
    %36 = vst.msk [vmem:[#allocation2 + $0x80] sm:$0xff] %vm19, 0.0
    %37 = vst.msk [vmem:[#allocation2 + $0x88] sm:$0xff] %vm19, 0.0
    %38 = vst.msk [vmem:[#allocation2 + $0x90] sm:$0xff] %vm19, 0.0
    %39 = vst.msk [vmem:[#allocation2 + $0x98] sm:$0xff] %vm19, 0.0
    %40 = vst.msk [vmem:[#allocation2 + $0xa0] sm:$0xff] %vm19, 0.0
    %41 = vst.msk [vmem:[#allocation2 + $0xa8] sm:$0xff] %vm19, 0.0
    %42 = vst.msk [vmem:[#allocation2 + $0xb0] sm:$0xff] %vm19, 0.0
    %43 = vst.msk [vmem:[#allocation2 + $0xb8] sm:$0xff] %vm19, 0.0
    %44 = vst.msk [vmem:[#allocation2 + $0xc0] sm:$0xff] %vm19, 0.0
    %45 = vst.msk [vmem:[#allocation2 + $0xc8] sm:$0xff] %vm19, 0.0
    %46 = vst.msk [vmem:[#allocation2 + $0xd0] sm:$0xff] %vm19, 0.0
    %47 = vst.msk [vmem:[#allocation2 + $0xd8] sm:$0xff] %vm19, 0.0
    %48 = vst.msk [vmem:[#allocation2 + $0xe0] sm:$0xff] %vm19, 0.0
    %49 = vst.msk [vmem:[#allocation2 + $0xe8] sm:$0xff] %vm19, 0.0
    %50 = vst.msk [vmem:[#allocation2 + $0xf0] sm:$0xff] %vm19, 0.0
    %51 = vst.msk [vmem:[#allocation2 + $0xf8] sm:$0xff] %vm19, 0.0
    %52 = vst.msk [vmem:[#allocation2 + $0x100] sm:$0xff] %vm19, 0.0
    %53 = vst.msk [vmem:[#allocation2 + $0x108] sm:$0xff] %vm19, 0.0
    %54 = vst.msk [vmem:[#allocation2 + $0x110] sm:$0xff] %vm19, 0.0
    %55 = vst.msk [vmem:[#allocation2 + $0x118] sm:$0xff] %vm19, 0.0
    %56 = vst.msk [vmem:[#allocation2 + $0x120] sm:$0xff] %vm19, 0.0
    %57 = vst.msk [vmem:[#allocation2 + $0x128] sm:$0xff] %vm19, 0.0
    %58 = vst.msk [vmem:[#allocation2 + $0x130] sm:$0xff] %vm19, 0.0
    %59 = vst.msk [vmem:[#allocation2 + $0x138] sm:$0xff] %vm19, 0.0
    %60 = vst.msk [vmem:[#allocation2 + $0x140] sm:$0xff] %vm19, 0.0
    %61 = vst.msk [vmem:[#allocation2 + $0x148] sm:$0xff] %vm19, 0.0
    %62 = vst.msk [vmem:[#allocation2 + $0x150] sm:$0xff] %vm19, 0.0
    %63 = vst.msk [vmem:[#allocation2 + $0x158] sm:$0xff] %vm19, 0.0
    %64 = vst.msk [vmem:[#allocation2 + $0x160] sm:$0xff] %vm19, 0.0
    %65 = vst.msk [vmem:[#allocation2 + $0x168] sm:$0xff] %vm19, 0.0
    %66 = vst.msk [vmem:[#allocation2 + $0x170] sm:$0xff] %vm19, 0.0
    %67 = vst.msk [vmem:[#allocation2 + $0x178] sm:$0xff] %vm19, 0.0
    %68 = vst.msk [vmem:[#allocation2 + $0x180] sm:$0xff] %vm19, 0.0
    %69 = vst.msk [vmem:[#allocation2 + $0x188] sm:$0xff] %vm19, 0.0
    %70 = vst.msk [vmem:[#allocation2 + $0x190] sm:$0xff] %vm19, 0.0
    %71 = vst.msk [vmem:[#allocation2 + $0x198] sm:$0xff] %vm19, 0.0
    %72 = vst.msk [vmem:[#allocation2 + $0x1a0] sm:$0xff] %vm19, 0.0
    %73 = vst.msk [vmem:[#allocation2 + $0x1a8] sm:$0xff] %vm19, 0.0
    %74 = vst.msk [vmem:[#allocation2 + $0x1b0] sm:$0xff] %vm19, 0.0
    %75 = vst.msk [vmem:[#allocation2 + $0x1b8] sm:$0xff] %vm19, 0.0
    %76 = vst.msk [vmem:[#allocation2 + $0x1c0] sm:$0xff] %vm19, 0.0
  $region17: #{encoder_conv_base_forward.5} parent=0 // pred_fallthru
    _
  %v77 = vld [vmem:[%s0] sm:$0xff]
  %v78 = vld [vmem:[%s0 + $0x8] sm:$0xff]
  %v79 = vld [vmem:[%s0 + $0x10] sm:$0xff]
  %v80 = vld [vmem:[%s0 + $0x18] sm:$0xff]
  %v81 = vld [vmem:[%s0 + $0x20] sm:$0xff]
  %v82 = vld [vmem:[%s0 + $0x28] sm:$0xff]
  %v83 = vld [vmem:[%s0 + $0x30] sm:$0xff]
  %v84 = vld [vmem:[%s0 + $0x38] sm:$0xff]
  %v85 = vld [vmem:[%s0 + $0x40] sm:$0xff]
  %v86 = vld [vmem:[%s0 + $0x48] sm:$0xff]
  %v87 = vld [vmem:[%s0 + $0x50] sm:$0xff]
  %v88 = vld [vmem:[%s0 + $0x58] sm:$0xff]
  %v89 = vld [vmem:[%s0 + $0x60] sm:$0xff]
  %v90 = vld [vmem:[%s0 + $0x68] sm:$0xff]
  %v91 = vld [vmem:[%s0 + $0x70] sm:$0xff]
  %v92 = vld [vmem:[%s0 + $0x78] sm:$0xff]
  %v93 = vld [vmem:[%s0 + $0x80] sm:$0xff]
  %v94 = vld [vmem:[%s0 + $0x88] sm:$0xff]
  %v95 = vld [vmem:[%s0 + $0x90] sm:$0xff]
  %v96 = vld [vmem:[%s0 + $0x98] sm:$0xff]
  %v97 = vld [vmem:[%s0 + $0xa0] sm:$0xff]
  %v98 = vld [vmem:[%s0 + $0xa8] sm:$0xff]
  %v99 = vld [vmem:[%s0 + $0xb0] sm:$0xff]
  %v100 = vld [vmem:[%s0 + $0xb8] sm:$0xff]
  %v101 = vld [vmem:[%s0 + $0xc0] sm:$0xff]
  %v102 = vld [vmem:[%s0 + $0xc8] sm:$0xff]
  %v103 = vld [vmem:[%s0 + $0xd0] sm:$0xff]
  %v104 = vld [vmem:[%s0 + $0xd8] sm:$0xff]
  %v105 = vld [vmem:[%s0 + $0xe0] sm:$0xff]
  %v106 = vld [vmem:[%s0 + $0xe8] sm:$0xff]
  %v107 = vld [vmem:[%s0 + $0xf0] sm:$0xff]
  %v108 = vld [vmem:[%s0 + $0xf8] sm:$0xff]
  %v109 = vld [vmem:[%s0 + $0x100] sm:$0xff]
  %v110 = vld [vmem:[%s0 + $0x108] sm:$0xff]
  %v111 = vld [vmem:[%s0 + $0x110] sm:$0xff]
  %v112 = vld [vmem:[%s0 + $0x118] sm:$0xff]
  %v113 = vld [vmem:[%s0 + $0x120] sm:$0xff]
  %v114 = vld [vmem:[%s0 + $0x128] sm:$0xff]
  %v115 = vld [vmem:[%s0 + $0x130] sm:$0xff]
  %v116 = vld [vmem:[%s0 + $0x138] sm:$0xff]
  %v117 = vld [vmem:[%s0 + $0x140] sm:$0xff]
  %v118 = vld [vmem:[%s0 + $0x148] sm:$0xff]
  %v119 = vld [vmem:[%s0 + $0x150] sm:$0xff]
  %v120 = vld [vmem:[%s0 + $0x158] sm:$0xff]
  %v121 = vld [vmem:[%s0 + $0x160] sm:$0xff]
  %v122 = vld [vmem:[%s0 + $0x168] sm:$0xff]
  %v123 = vld [vmem:[%s0 + $0x170] sm:$0xff]
  %v124 = vld [vmem:[%s0 + $0x178] sm:$0xff]
  %v125 = vld [vmem:[%s0 + $0x180] sm:$0xff]
  %v126 = vld [vmem:[%s0 + $0x188] sm:$0xff]
  %v127 = vld [vmem:[%s0 + $0x190] sm:$0xff]
  %v128 = vld [vmem:[%s0 + $0x198] sm:$0xff]
  %v129 = vld [vmem:[%s0 + $0x1a0] sm:$0xff]
  %v130 = vld [vmem:[%s0 + $0x1a8] sm:$0xff]
  %v131 = vld [vmem:[%s0 + $0x1b0] sm:$0xff]
  %v132 = vld [vmem:[%s0 + $0x1b8] sm:$0xff]
  %v133 = vld [vmem:[%s0 + $0x1c0] sm:$0xff]
  %v134 = vld [vmem:[%s0 + $0x1c8] sm:$0xff]
  %v135 = vld [vmem:[%s0 + $0x1d0] sm:$0xff]
  %v136 = vld [vmem:[%s0 + $0x1d8] sm:$0xff]
  %v137 = vld [vmem:[%s0 + $0x1e0] sm:$0xff]
  %v138 = vld [vmem:[%s0 + $0x1e8] sm:$0xff]
  %v139 = vld [vmem:[%s0 + $0x1f0] sm:$0xff]
  %v140 = vld [vmem:[%s0 + $0x1f8] sm:$0xff]
  %v141 = vld [vmem:[%s0 + $0x200] sm:$0xff]
  %v142 = vld [vmem:[%s0 + $0x208] sm:$0xff]
  %v143 = vld [vmem:[%s0 + $0x210] sm:$0xff]
  %v144 = vld [vmem:[%s0 + $0x218] sm:$0xff]
  %v145 = vld [vmem:[%s0 + $0x220] sm:$0xff]
  %v146 = vld [vmem:[%s0 + $0x228] sm:$0xff]
  %v147 = vld [vmem:[%s0 + $0x230] sm:$0xff]
  %v148 = vld [vmem:[%s0 + $0x238] sm:$0xff]
  %v149 = vld [vmem:[%s0 + $0x240] sm:$0xff]
  %v150 = vld [vmem:[%s0 + $0x248] sm:$0xff]
  %v151 = vld [vmem:[%s0 + $0x250] sm:$0xff]
  %v152 = vld [vmem:[%s0 + $0x258] sm:$0xff]
  %v153 = vld [vmem:[%s0 + $0x260] sm:$0xff]
  %v154 = vld [vmem:[%s0 + $0x268] sm:$0xff]
  %v155 = vld [vmem:[%s0 + $0x270] sm:$0xff]
  %v156 = vld [vmem:[%s0 + $0x278] sm:$0xff]
  %v157 = vld [vmem:[%s0 + $0x280] sm:$0xff]
  %v158 = vld [vmem:[%s0 + $0x288] sm:$0xff]
  %v159 = vld [vmem:[%s0 + $0x290] sm:$0xff]
  %v160 = vld [vmem:[%s0 + $0x298] sm:$0xff]
  %v161 = vld [vmem:[%s0 + $0x2a0] sm:$0xff]
  %v162 = vld [vmem:[%s0 + $0x2a8] sm:$0xff]
  %v163 = vld [vmem:[%s0 + $0x2b0] sm:$0xff]
  %v164 = vld [vmem:[%s0 + $0x2b8] sm:$0xff]
  %v165 = vld [vmem:[%s0 + $0x2c0] sm:$0xff]
  %v166 = vld [vmem:[%s0 + $0x2c8] sm:$0xff]
  %v167 = vld [vmem:[%s0 + $0x2d0] sm:$0xff]
  %v168 = vld [vmem:[%s0 + $0x2d8] sm:$0xff]
  %v169 = vld [vmem:[%s0 + $0x2e0] sm:$0xff]
  %v170 = vld [vmem:[%s0 + $0x2e8] sm:$0xff]
  %v171 = vld [vmem:[%s0 + $0x2f0] sm:$0xff]
  %v172 = vld [vmem:[%s0 + $0x2f8] sm:$0xff]
  %v173 = vld [vmem:[%s0 + $0x300] sm:$0xff]
  %v174 = vld [vmem:[%s0 + $0x308] sm:$0xff]
  %v175 = vld [vmem:[%s0 + $0x310] sm:$0xff]
  %v176 = vld [vmem:[%s0 + $0x318] sm:$0xff]
  %v177 = vld [vmem:[%s0 + $0x320] sm:$0xff]
  %v178 = vld [vmem:[%s0 + $0x328] sm:$0xff]
  %v179 = vld [vmem:[%s0 + $0x330] sm:$0xff]
  %v180 = vld [vmem:[%s0 + $0x338] sm:$0xff]
  %v181 = vld [vmem:[%s0 + $0x340] sm:$0xff]
  %v182 = vld [vmem:[%s0 + $0x348] sm:$0xff]
  %v183 = vld [vmem:[%s0 + $0x350] sm:$0xff]
  %v184 = vld [vmem:[%s0 + $0x358] sm:$0xff]
  %v185 = vld [vmem:[%s0 + $0x360] sm:$0xff]
  %v186 = vld [vmem:[%s0 + $0x368] sm:$0xff]
  %v187 = vld [vmem:[%s0 + $0x370] sm:$0xff]
  %v188 = vld [vmem:[%s0 + $0x378] sm:$0xff]
  %v189 = vld [vmem:[%s0 + $0x380] sm:$0xff]
  %v190 = vld [vmem:[%s0 + $0x388] sm:$0xff]
  %v191 = vunpack.c.l.bf16 %v77
  %v192 = vunpack.c.h.bf16 %v77
  %v193 = vunpack.c.l.bf16 %v78
  %v194 = vunpack.c.h.bf16 %v78
  %v195 = vunpack.c.l.bf16 %v79
  %v196 = vunpack.c.h.bf16 %v79
  %v197 = vunpack.c.l.bf16 %v80
  %v198 = vunpack.c.h.bf16 %v80
  %v199 = vunpack.c.l.bf16 %v81
  %v200 = vunpack.c.h.bf16 %v81
  %v201 = vunpack.c.l.bf16 %v82
  %v202 = vunpack.c.h.bf16 %v82
  %v203 = vunpack.c.l.bf16 %v83
  %v204 = vunpack.c.h.bf16 %v83
  %v205 = vunpack.c.l.bf16 %v84
  %v206 = vunpack.c.h.bf16 %v84
  %v207 = vunpack.c.l.bf16 %v85
  %v208 = vunpack.c.h.bf16 %v85
  %v209 = vunpack.c.l.bf16 %v86
  %v210 = vunpack.c.h.bf16 %v86
  %v211 = vunpack.c.l.bf16 %v87
  %v212 = vunpack.c.h.bf16 %v87
  %v213 = vunpack.c.l.bf16 %v88
  %v214 = vunpack.c.h.bf16 %v88
  %v215 = vunpack.c.l.bf16 %v89
  %v216 = vunpack.c.h.bf16 %v89
  %v217 = vunpack.c.l.bf16 %v90
  %v218 = vunpack.c.h.bf16 %v90
  %v219 = vunpack.c.l.bf16 %v91
  %v220 = vunpack.c.h.bf16 %v91
  %v221 = vunpack.c.l.bf16 %v92
  %v222 = vunpack.c.h.bf16 %v92
  %v223 = vunpack.c.l.bf16 %v93
  %v224 = vunpack.c.h.bf16 %v93
  %v225 = vunpack.c.l.bf16 %v94
  %v226 = vunpack.c.h.bf16 %v94
  %v227 = vunpack.c.l.bf16 %v95
  %v228 = vunpack.c.h.bf16 %v95
  %v229 = vunpack.c.l.bf16 %v96
  %v230 = vunpack.c.h.bf16 %v96
  %v231 = vunpack.c.l.bf16 %v97
  %v232 = vunpack.c.h.bf16 %v97
  %v233 = vunpack.c.l.bf16 %v98
  %v234 = vunpack.c.h.bf16 %v98
  %v235 = vunpack.c.l.bf16 %v99
  %v236 = vunpack.c.h.bf16 %v99
  %v237 = vunpack.c.l.bf16 %v100
  %v238 = vunpack.c.h.bf16 %v100
  %v239 = vunpack.c.l.bf16 %v101
  %v240 = vunpack.c.h.bf16 %v101
  %v241 = vunpack.c.l.bf16 %v102
  %v242 = vunpack.c.h.bf16 %v102
  %v243 = vunpack.c.l.bf16 %v103
  %v244 = vunpack.c.h.bf16 %v103
  %v245 = vunpack.c.l.bf16 %v104
  %v246 = vunpack.c.h.bf16 %v104
  %v247 = vunpack.c.l.bf16 %v105
  %v248 = vunpack.c.h.bf16 %v105
  %v249 = vunpack.c.l.bf16 %v106
  %v250 = vunpack.c.h.bf16 %v106
  %v251 = vunpack.c.l.bf16 %v107
  %v252 = vunpack.c.h.bf16 %v107
  %v253 = vunpack.c.l.bf16 %v108
  %v254 = vunpack.c.h.bf16 %v108
  %v255 = vunpack.c.l.bf16 %v109
  %v256 = vunpack.c.h.bf16 %v109
  %v257 = vunpack.c.l.bf16 %v110
  %v258 = vunpack.c.h.bf16 %v110
  %v259 = vunpack.c.l.bf16 %v111
  %v260 = vunpack.c.h.bf16 %v111
  %v261 = vunpack.c.l.bf16 %v112
  %v262 = vunpack.c.h.bf16 %v112
  %v263 = vunpack.c.l.bf16 %v113
  %v264 = vunpack.c.h.bf16 %v113
  %v265 = vunpack.c.l.bf16 %v114
  %v266 = vunpack.c.h.bf16 %v114
  %v267 = vunpack.c.l.bf16 %v115
  %v268 = vunpack.c.h.bf16 %v115
  %v269 = vunpack.c.l.bf16 %v116
  %v270 = vunpack.c.h.bf16 %v116
  %v271 = vunpack.c.l.bf16 %v117
  %v272 = vunpack.c.h.bf16 %v117
  %v273 = vunpack.c.l.bf16 %v118
  %v274 = vunpack.c.h.bf16 %v118
  %v275 = vunpack.c.l.bf16 %v119
  %v276 = vunpack.c.h.bf16 %v119
  %v277 = vunpack.c.l.bf16 %v120
  %v278 = vunpack.c.h.bf16 %v120
  %v279 = vunpack.c.l.bf16 %v121
  %v280 = vunpack.c.h.bf16 %v121
  %v281 = vunpack.c.l.bf16 %v122
  %v282 = vunpack.c.h.bf16 %v122
  %v283 = vunpack.c.l.bf16 %v123
  %v284 = vunpack.c.h.bf16 %v123
  %v285 = vunpack.c.l.bf16 %v124
  %v286 = vunpack.c.h.bf16 %v124
  %v287 = vunpack.c.l.bf16 %v125
  %v288 = vunpack.c.h.bf16 %v125
  %v289 = vunpack.c.l.bf16 %v126
  %v290 = vunpack.c.h.bf16 %v126
  %v291 = vunpack.c.l.bf16 %v127
  %v292 = vunpack.c.h.bf16 %v127
  %v293 = vunpack.c.l.bf16 %v128
  %v294 = vunpack.c.h.bf16 %v128
  %v295 = vunpack.c.l.bf16 %v129
  %v296 = vunpack.c.h.bf16 %v129
  %v297 = vunpack.c.l.bf16 %v130
  %v298 = vunpack.c.h.bf16 %v130
  %v299 = vunpack.c.l.bf16 %v131
  %v300 = vunpack.c.h.bf16 %v131
  %v301 = vunpack.c.l.bf16 %v132
  %v302 = vunpack.c.h.bf16 %v132
  %v303 = vunpack.c.l.bf16 %v133
  %v304 = vunpack.c.h.bf16 %v133
  %v305 = vunpack.c.l.bf16 %v134
  %v306 = vunpack.c.h.bf16 %v134
  %v307 = vunpack.c.l.bf16 %v135
  %v308 = vunpack.c.h.bf16 %v135
  %v309 = vunpack.c.l.bf16 %v136
  %v310 = vunpack.c.h.bf16 %v136
  %v311 = vunpack.c.l.bf16 %v137
  %v312 = vunpack.c.h.bf16 %v137
  %v313 = vunpack.c.l.bf16 %v138
  %v314 = vunpack.c.h.bf16 %v138
  %v315 = vunpack.c.l.bf16 %v139
  %v316 = vunpack.c.h.bf16 %v139
  %v317 = vunpack.c.l.bf16 %v140
  %v318 = vunpack.c.h.bf16 %v140
  %v319 = vunpack.c.l.bf16 %v141
  %v320 = vunpack.c.h.bf16 %v141
  %v321 = vunpack.c.l.bf16 %v142
  %v322 = vunpack.c.h.bf16 %v142
  %v323 = vunpack.c.l.bf16 %v143
  %v324 = vunpack.c.h.bf16 %v143
  %v325 = vunpack.c.l.bf16 %v144
  %v326 = vunpack.c.h.bf16 %v144
  %v327 = vunpack.c.l.bf16 %v145
  %v328 = vunpack.c.h.bf16 %v145
  %v329 = vunpack.c.l.bf16 %v146
  %v330 = vunpack.c.h.bf16 %v146
  %v331 = vunpack.c.l.bf16 %v147
  %v332 = vunpack.c.h.bf16 %v147
  %v333 = vunpack.c.l.bf16 %v148
  %v334 = vunpack.c.h.bf16 %v148
  %v335 = vunpack.c.l.bf16 %v149
  %v336 = vunpack.c.h.bf16 %v149
  %v337 = vunpack.c.l.bf16 %v150
  %v338 = vunpack.c.h.bf16 %v150
  %v339 = vunpack.c.l.bf16 %v151
  %v340 = vunpack.c.h.bf16 %v151
  %v341 = vunpack.c.l.bf16 %v152
  %v342 = vunpack.c.h.bf16 %v152
  %v343 = vunpack.c.l.bf16 %v153
  %v344 = vunpack.c.h.bf16 %v153
  %v345 = vunpack.c.l.bf16 %v154
  %v346 = vunpack.c.h.bf16 %v154
  %v347 = vunpack.c.l.bf16 %v155
  %v348 = vunpack.c.h.bf16 %v155
  %v349 = vunpack.c.l.bf16 %v156
  %v350 = vunpack.c.h.bf16 %v156
  %v351 = vunpack.c.l.bf16 %v157
  %v352 = vunpack.c.h.bf16 %v157
  %v353 = vunpack.c.l.bf16 %v158
  %v354 = vunpack.c.h.bf16 %v158
  %v355 = vunpack.c.l.bf16 %v159
  %v356 = vunpack.c.h.bf16 %v159
  %v357 = vunpack.c.l.bf16 %v160
  %v358 = vunpack.c.h.bf16 %v160
  %v359 = vunpack.c.l.bf16 %v161
  %v360 = vunpack.c.h.bf16 %v161
  %v361 = vunpack.c.l.bf16 %v162
  %v362 = vunpack.c.h.bf16 %v162
  %v363 = vunpack.c.l.bf16 %v163
  %v364 = vunpack.c.h.bf16 %v163
  %v365 = vunpack.c.l.bf16 %v164
  %v366 = vunpack.c.h.bf16 %v164
  %v367 = vunpack.c.l.bf16 %v165
  %v368 = vunpack.c.h.bf16 %v165
  %v369 = vunpack.c.l.bf16 %v166
  %v370 = vunpack.c.h.bf16 %v166
  %v371 = vunpack.c.l.bf16 %v167
  %v372 = vunpack.c.h.bf16 %v167
  %v373 = vunpack.c.l.bf16 %v168
  %v374 = vunpack.c.h.bf16 %v168
  %v375 = vunpack.c.l.bf16 %v169
  %v376 = vunpack.c.h.bf16 %v169
  %v377 = vunpack.c.l.bf16 %v170
  %v378 = vunpack.c.h.bf16 %v170
  %v379 = vunpack.c.l.bf16 %v171
  %v380 = vunpack.c.h.bf16 %v171
  %v381 = vunpack.c.l.bf16 %v172
  %v382 = vunpack.c.h.bf16 %v172
  %v383 = vunpack.c.l.bf16 %v173
  %v384 = vunpack.c.h.bf16 %v173
  %v385 = vunpack.c.l.bf16 %v174
  %v386 = vunpack.c.h.bf16 %v174
  %v387 = vunpack.c.l.bf16 %v175
  %v388 = vunpack.c.h.bf16 %v175
  %v389 = vunpack.c.l.bf16 %v176
  %v390 = vunpack.c.h.bf16 %v176
  %v391 = vunpack.c.l.bf16 %v177
  %v392 = vunpack.c.h.bf16 %v177
  %v393 = vunpack.c.l.bf16 %v178
  %v394 = vunpack.c.h.bf16 %v178
  %v395 = vunpack.c.l.bf16 %v179
  %v396 = vunpack.c.h.bf16 %v179
  %v397 = vunpack.c.l.bf16 %v180
  %v398 = vunpack.c.h.bf16 %v180
  %v399 = vunpack.c.l.bf16 %v181
  %v400 = vunpack.c.h.bf16 %v181
  %v401 = vunpack.c.l.bf16 %v182
  %v402 = vunpack.c.h.bf16 %v182
  %v403 = vunpack.c.l.bf16 %v183
  %v404 = vunpack.c.h.bf16 %v183
  %v405 = vunpack.c.l.bf16 %v184
  %v406 = vunpack.c.h.bf16 %v184
  %v407 = vunpack.c.l.bf16 %v185
  %v408 = vunpack.c.h.bf16 %v185
  %v409 = vunpack.c.l.bf16 %v186
  %v410 = vunpack.c.h.bf16 %v186
  %v411 = vunpack.c.l.bf16 %v187
  %v412 = vunpack.c.h.bf16 %v187
  %v413 = vunpack.c.l.bf16 %v188
  %v414 = vunpack.c.h.bf16 %v188
  %v415 = vunpack.c.l.bf16 %v189
  %v416 = vunpack.c.h.bf16 %v189
  %v417 = vunpack.c.l.bf16 %v190
  %v418 = vunpack.c.h.bf16 %v190
  %vm419 = vcmp.ge.f32.partialorder %v191, 0.0
  %vm420 = vcmp.ge.f32.partialorder %v192, 0.0
  %vm421 = vcmp.ge.f32.partialorder %v193, 0.0
  %vm422 = vcmp.ge.f32.partialorder %v194, 0.0
  %vm423 = vcmp.ge.f32.partialorder %v195, 0.0
  %vm424 = vcmp.ge.f32.partialorder %v196, 0.0
  %vm425 = vcmp.ge.f32.partialorder %v197, 0.0
  %vm426 = vcmp.ge.f32.partialorder %v198, 0.0
  %vm427 = vcmp.ge.f32.partialorder %v199, 0.0
  %vm428 = vcmp.ge.f32.partialorder %v200, 0.0
  %vm429 = vcmp.ge.f32.partialorder %v201, 0.0
  %vm430 = vcmp.ge.f32.partialorder %v202, 0.0
  %vm431 = vcmp.ge.f32.partialorder %v203, 0.0
  %vm432 = vcmp.ge.f32.partialorder %v204, 0.0
  %vm433 = vcmp.ge.f32.partialorder %v205, 0.0
  %vm434 = vcmp.ge.f32.partialorder %v206, 0.0
  %vm435 = vcmp.ge.f32.partialorder %v207, 0.0
  %vm436 = vcmp.ge.f32.partialorder %v208, 0.0
  %vm437 = vcmp.ge.f32.partialorder %v209, 0.0
  %vm438 = vcmp.ge.f32.partialorder %v210, 0.0
  %vm439 = vcmp.ge.f32.partialorder %v211, 0.0
  %vm440 = vcmp.ge.f32.partialorder %v212, 0.0
  %vm441 = vcmp.ge.f32.partialorder %v213, 0.0
  %vm442 = vcmp.ge.f32.partialorder %v214, 0.0
  %vm443 = vcmp.ge.f32.partialorder %v215, 0.0
  %vm444 = vcmp.ge.f32.partialorder %v216, 0.0
  %vm445 = vcmp.ge.f32.partialorder %v217, 0.0
  %vm446 = vcmp.ge.f32.partialorder %v218, 0.0
  %vm447 = vcmp.ge.f32.partialorder %v219, 0.0
  %vm448 = vcmp.ge.f32.partialorder %v220, 0.0
  %vm449 = vcmp.ge.f32.partialorder %v221, 0.0
  %vm450 = vcmp.ge.f32.partialorder %v222, 0.0
  %vm451 = vcmp.ge.f32.partialorder %v223, 0.0
  %vm452 = vcmp.ge.f32.partialorder %v224, 0.0
  %vm453 = vcmp.ge.f32.partialorder %v225, 0.0
  %vm454 = vcmp.ge.f32.partialorder %v226, 0.0
  %vm455 = vcmp.ge.f32.partialorder %v227, 0.0
  %vm456 = vcmp.ge.f32.partialorder %v228, 0.0
  %vm457 = vcmp.ge.f32.partialorder %v229, 0.0
  %vm458 = vcmp.ge.f32.partialorder %v230, 0.0
  %vm459 = vcmp.ge.f32.partialorder %v231, 0.0
  %vm460 = vcmp.ge.f32.partialorder %v232, 0.0
  %vm461 = vcmp.ge.f32.partialorder %v233, 0.0
  %vm462 = vcmp.ge.f32.partialorder %v234, 0.0
  %vm463 = vcmp.ge.f32.partialorder %v235, 0.0
  %vm464 = vcmp.ge.f32.partialorder %v236, 0.0
  %vm465 = vcmp.ge.f32.partialorder %v237, 0.0
  %vm466 = vcmp.ge.f32.partialorder %v238, 0.0
  %vm467 = vcmp.ge.f32.partialorder %v239, 0.0
  %vm468 = vcmp.ge.f32.partialorder %v240, 0.0
  %vm469 = vcmp.ge.f32.partialorder %v241, 0.0
  %vm470 = vcmp.ge.f32.partialorder %v242, 0.0
  %vm471 = vcmp.ge.f32.partialorder %v243, 0.0
  %vm472 = vcmp.ge.f32.partialorder %v244, 0.0
  %vm473 = vcmp.ge.f32.partialorder %v245, 0.0
  %vm474 = vcmp.ge.f32.partialorder %v246, 0.0
  %vm475 = vcmp.ge.f32.partialorder %v247, 0.0
  %vm476 = vcmp.ge.f32.partialorder %v248, 0.0
  %vm477 = vcmp.ge.f32.partialorder %v249, 0.0
  %vm478 = vcmp.ge.f32.partialorder %v250, 0.0
  %vm479 = vcmp.ge.f32.partialorder %v251, 0.0
  %vm480 = vcmp.ge.f32.partialorder %v252, 0.0
  %vm481 = vcmp.ge.f32.partialorder %v253, 0.0
  %vm482 = vcmp.ge.f32.partialorder %v254, 0.0
  %vm483 = vcmp.ge.f32.partialorder %v255, 0.0
  %vm484 = vcmp.ge.f32.partialorder %v256, 0.0
  %vm485 = vcmp.ge.f32.partialorder %v257, 0.0
  %vm486 = vcmp.ge.f32.partialorder %v258, 0.0
  %vm487 = vcmp.ge.f32.partialorder %v259, 0.0
  %vm488 = vcmp.ge.f32.partialorder %v260, 0.0
  %vm489 = vcmp.ge.f32.partialorder %v261, 0.0
  %vm490 = vcmp.ge.f32.partialorder %v262, 0.0
  %vm491 = vcmp.ge.f32.partialorder %v263, 0.0
  %vm492 = vcmp.ge.f32.partialorder %v264, 0.0
  %vm493 = vcmp.ge.f32.partialorder %v265, 0.0
  %vm494 = vcmp.ge.f32.partialorder %v266, 0.0
  %vm495 = vcmp.ge.f32.partialorder %v267, 0.0
  %vm496 = vcmp.ge.f32.partialorder %v268, 0.0
  %vm497 = vcmp.ge.f32.partialorder %v269, 0.0
  %vm498 = vcmp.ge.f32.partialorder %v270, 0.0
  %vm499 = vcmp.ge.f32.partialorder %v271, 0.0
  %vm500 = vcmp.ge.f32.partialorder %v272, 0.0
  %vm501 = vcmp.ge.f32.partialorder %v273, 0.0
  %vm502 = vcmp.ge.f32.partialorder %v274, 0.0
  %vm503 = vcmp.ge.f32.partialorder %v275, 0.0
  %vm504 = vcmp.ge.f32.partialorder %v276, 0.0
  %vm505 = vcmp.ge.f32.partialorder %v277, 0.0
  %vm506 = vcmp.ge.f32.partialorder %v278, 0.0
  %vm507 = vcmp.ge.f32.partialorder %v279, 0.0
  %vm508 = vcmp.ge.f32.partialorder %v280, 0.0
  %vm509 = vcmp.ge.f32.partialorder %v281, 0.0
  %vm510 = vcmp.ge.f32.partialorder %v282, 0.0
  %vm511 = vcmp.ge.f32.partialorder %v283, 0.0
  %vm512 = vcmp.ge.f32.partialorder %v284, 0.0
  %vm513 = vcmp.ge.f32.partialorder %v285, 0.0
  %vm514 = vcmp.ge.f32.partialorder %v286, 0.0
  %vm515 = vcmp.ge.f32.partialorder %v287, 0.0
  %vm516 = vcmp.ge.f32.partialorder %v288, 0.0
  %vm517 = vcmp.ge.f32.partialorder %v289, 0.0
  %vm518 = vcmp.ge.f32.partialorder %v290, 0.0
  %vm519 = vcmp.ge.f32.partialorder %v291, 0.0
  %vm520 = vcmp.ge.f32.partialorder %v292, 0.0
  %vm521 = vcmp.ge.f32.partialorder %v293, 0.0
  %vm522 = vcmp.ge.f32.partialorder %v294, 0.0
  %vm523 = vcmp.ge.f32.partialorder %v295, 0.0
  %vm524 = vcmp.ge.f32.partialorder %v296, 0.0
  %vm525 = vcmp.ge.f32.partialorder %v297, 0.0
  %vm526 = vcmp.ge.f32.partialorder %v298, 0.0
  %vm527 = vcmp.ge.f32.partialorder %v299, 0.0
  %vm528 = vcmp.ge.f32.partialorder %v300, 0.0
  %vm529 = vcmp.ge.f32.partialorder %v301, 0.0
  %vm530 = vcmp.ge.f32.partialorder %v302, 0.0
  %vm531 = vcmp.ge.f32.partialorder %v303, 0.0
  %vm532 = vcmp.ge.f32.partialorder %v304, 0.0
  %vm533 = vcmp.ge.f32.partialorder %v305, 0.0
  %vm534 = vcmp.ge.f32.partialorder %v306, 0.0
  %vm535 = vcmp.ge.f32.partialorder %v307, 0.0
  %vm536 = vcmp.ge.f32.partialorder %v308, 0.0
  %vm537 = vcmp.ge.f32.partialorder %v309, 0.0
  %vm538 = vcmp.ge.f32.partialorder %v310, 0.0
  %vm539 = vcmp.ge.f32.partialorder %v311, 0.0
  %vm540 = vcmp.ge.f32.partialorder %v312, 0.0
  %vm541 = vcmp.ge.f32.partialorder %v313, 0.0
  %vm542 = vcmp.ge.f32.partialorder %v314, 0.0
  %vm543 = vcmp.ge.f32.partialorder %v315, 0.0
  %vm544 = vcmp.ge.f32.partialorder %v316, 0.0
  %vm545 = vcmp.ge.f32.partialorder %v317, 0.0
  %vm546 = vcmp.ge.f32.partialorder %v318, 0.0
  %vm547 = vcmp.ge.f32.partialorder %v319, 0.0
  %vm548 = vcmp.ge.f32.partialorder %v320, 0.0
  %vm549 = vcmp.ge.f32.partialorder %v321, 0.0
  %vm550 = vcmp.ge.f32.partialorder %v322, 0.0
  %vm551 = vcmp.ge.f32.partialorder %v323, 0.0
  %vm552 = vcmp.ge.f32.partialorder %v324, 0.0
  %vm553 = vcmp.ge.f32.partialorder %v325, 0.0
  %vm554 = vcmp.ge.f32.partialorder %v326, 0.0
  %vm555 = vcmp.ge.f32.partialorder %v327, 0.0
  %vm556 = vcmp.ge.f32.partialorder %v328, 0.0
  %vm557 = vcmp.ge.f32.partialorder %v329, 0.0
  %vm558 = vcmp.ge.f32.partialorder %v330, 0.0
  %vm559 = vcmp.ge.f32.partialorder %v331, 0.0
  %vm560 = vcmp.ge.f32.partialorder %v332, 0.0
  %vm561 = vcmp.ge.f32.partialorder %v333, 0.0
  %vm562 = vcmp.ge.f32.partialorder %v334, 0.0
  %vm563 = vcmp.ge.f32.partialorder %v335, 0.0
  %vm564 = vcmp.ge.f32.partialorder %v336, 0.0
  %vm565 = vcmp.ge.f32.partialorder %v337, 0.0
  %vm566 = vcmp.ge.f32.partialorder %v338, 0.0
  %vm567 = vcmp.ge.f32.partialorder %v339, 0.0
  %vm568 = vcmp.ge.f32.partialorder %v340, 0.0
  %vm569 = vcmp.ge.f32.partialorder %v341, 0.0
  %vm570 = vcmp.ge.f32.partialorder %v342, 0.0
  %vm571 = vcmp.ge.f32.partialorder %v343, 0.0
  %vm572 = vcmp.ge.f32.partialorder %v344, 0.0
  %vm573 = vcmp.ge.f32.partialorder %v345, 0.0
  %vm574 = vcmp.ge.f32.partialorder %v346, 0.0
  %vm575 = vcmp.ge.f32.partialorder %v347, 0.0
  %vm576 = vcmp.ge.f32.partialorder %v348, 0.0
  %vm577 = vcmp.ge.f32.partialorder %v349, 0.0
  %vm578 = vcmp.ge.f32.partialorder %v350, 0.0
  %vm579 = vcmp.ge.f32.partialorder %v351, 0.0
  %vm580 = vcmp.ge.f32.partialorder %v352, 0.0
  %vm581 = vcmp.ge.f32.partialorder %v353, 0.0
  %vm582 = vcmp.ge.f32.partialorder %v354, 0.0
  %vm583 = vcmp.ge.f32.partialorder %v355, 0.0
  %vm584 = vcmp.ge.f32.partialorder %v356, 0.0
  %vm585 = vcmp.ge.f32.partialorder %v357, 0.0
  %vm586 = vcmp.ge.f32.partialorder %v358, 0.0
  %vm587 = vcmp.ge.f32.partialorder %v359, 0.0
  %vm588 = vcmp.ge.f32.partialorder %v360, 0.0
  %vm589 = vcmp.ge.f32.partialorder %v361, 0.0
  %vm590 = vcmp.ge.f32.partialorder %v362, 0.0
  %vm591 = vcmp.ge.f32.partialorder %v363, 0.0
  %vm592 = vcmp.ge.f32.partialorder %v364, 0.0
  %vm593 = vcmp.ge.f32.partialorder %v365, 0.0
  %vm594 = vcmp.ge.f32.partialorder %v366, 0.0
  %vm595 = vcmp.ge.f32.partialorder %v367, 0.0
  %vm596 = vcmp.ge.f32.partialorder %v368, 0.0
  %vm597 = vcmp.ge.f32.partialorder %v369, 0.0
  %vm598 = vcmp.ge.f32.partialorder %v370, 0.0
  %vm599 = vcmp.ge.f32.partialorder %v371, 0.0
  %vm600 = vcmp.ge.f32.partialorder %v372, 0.0
  %vm601 = vcmp.ge.f32.partialorder %v373, 0.0
  %vm602 = vcmp.ge.f32.partialorder %v374, 0.0
  %vm603 = vcmp.ge.f32.partialorder %v375, 0.0
  %vm604 = vcmp.ge.f32.partialorder %v376, 0.0
  %vm605 = vcmp.ge.f32.partialorder %v377, 0.0
  %vm606 = vcmp.ge.f32.partialorder %v378, 0.0
  %vm607 = vcmp.ge.f32.partialorder %v379, 0.0
  %vm608 = vcmp.ge.f32.partialorder %v380, 0.0
  %vm609 = vcmp.ge.f32.partialorder %v381, 0.0
  %vm610 = vcmp.ge.f32.partialorder %v382, 0.0
  %vm611 = vcmp.ge.f32.partialorder %v383, 0.0
  %vm612 = vcmp.ge.f32.partialorder %v384, 0.0
  %vm613 = vcmp.ge.f32.partialorder %v385, 0.0
  %vm614 = vcmp.ge.f32.partialorder %v386, 0.0
  %vm615 = vcmp.ge.f32.partialorder %v387, 0.0
  %vm616 = vcmp.ge.f32.partialorder %v388, 0.0
  %vm617 = vcmp.ge.f32.partialorder %v389, 0.0
  %vm618 = vcmp.ge.f32.partialorder %v390, 0.0
  %vm619 = vcmp.ge.f32.partialorder %v391, 0.0
  %vm620 = vcmp.ge.f32.partialorder %v392, 0.0
  %vm621 = vcmp.ge.f32.partialorder %v393, 0.0
  %vm622 = vcmp.ge.f32.partialorder %v394, 0.0
  %vm623 = vcmp.ge.f32.partialorder %v395, 0.0
  %vm624 = vcmp.ge.f32.partialorder %v396, 0.0
  %vm625 = vcmp.ge.f32.partialorder %v397, 0.0
  %vm626 = vcmp.ge.f32.partialorder %v398, 0.0
  %vm627 = vcmp.ge.f32.partialorder %v399, 0.0
  %vm628 = vcmp.ge.f32.partialorder %v400, 0.0
  %vm629 = vcmp.ge.f32.partialorder %v401, 0.0
  %vm630 = vcmp.ge.f32.partialorder %v402, 0.0
  %vm631 = vcmp.ge.f32.partialorder %v403, 0.0
  %vm632 = vcmp.ge.f32.partialorder %v404, 0.0
  %vm633 = vcmp.ge.f32.partialorder %v405, 0.0
  %vm634 = vcmp.ge.f32.partialorder %v406, 0.0
  %vm635 = vcmp.ge.f32.partialorder %v407, 0.0
  %vm636 = vcmp.ge.f32.partialorder %v408, 0.0
  %vm637 = vcmp.ge.f32.partialorder %v409, 0.0
  %vm638 = vcmp.ge.f32.partialorder %v410, 0.0
  %vm639 = vcmp.ge.f32.partialorder %v411, 0.0
  %vm640 = vcmp.ge.f32.partialorder %v412, 0.0
  %vm641 = vcmp.ge.f32.partialorder %v413, 0.0
  %vm642 = vcmp.ge.f32.partialorder %v414, 0.0
  %vm643 = vcmp.ge.f32.partialorder %v415, 0.0
  %vm644 = vcmp.ge.f32.partialorder %v416, 0.0
  %vm645 = vcmp.ge.f32.partialorder %v417, 0.0
  %vm646 = vcmp.ge.f32.partialorder %v418, 0.0
  %v647 = vmul.f32 %v191, 0.2
  %v648 = vmul.f32 %v192, 0.2
  %v649 = vmul.f32 %v193, 0.2
  %v650 = vmul.f32 %v194, 0.2
  %v651 = vmul.f32 %v195, 0.2
  %v652 = vmul.f32 %v196, 0.2
  %v653 = vmul.f32 %v197, 0.2
  %v654 = vmul.f32 %v198, 0.2
  %v655 = vmul.f32 %v199, 0.2
  %v656 = vmul.f32 %v200, 0.2
  %v657 = vmul.f32 %v201, 0.2
  %v658 = vmul.f32 %v202, 0.2
  %v659 = vmul.f32 %v203, 0.2
  %v660 = vmul.f32 %v204, 0.2
  %v661 = vmul.f32 %v205, 0.2
  %v662 = vmul.f32 %v206, 0.2
  %v663 = vmul.f32 %v207, 0.2
  %v664 = vmul.f32 %v208, 0.2
  %v665 = vmul.f32 %v209, 0.2
  %v666 = vmul.f32 %v210, 0.2
  %v667 = vmul.f32 %v211, 0.2
  %v668 = vmul.f32 %v212, 0.2
  %v669 = vmul.f32 %v213, 0.2
  %v670 = vmul.f32 %v214, 0.2
  %v671 = vmul.f32 %v215, 0.2
  %v672 = vmul.f32 %v216, 0.2
  %v673 = vmul.f32 %v217, 0.2
  %v674 = vmul.f32 %v218, 0.2
  %v675 = vmul.f32 %v219, 0.2
  %v676 = vmul.f32 %v220, 0.2
  %v677 = vmul.f32 %v221, 0.2
  %v678 = vmul.f32 %v222, 0.2
  %v679 = vmul.f32 %v223, 0.2
  %v680 = vmul.f32 %v224, 0.2
  %v681 = vmul.f32 %v225, 0.2
  %v682 = vmul.f32 %v226, 0.2
  %v683 = vmul.f32 %v227, 0.2
  %v684 = vmul.f32 %v228, 0.2
  %v685 = vmul.f32 %v229, 0.2
  %v686 = vmul.f32 %v230, 0.2
  %v687 = vmul.f32 %v231, 0.2
  %v688 = vmul.f32 %v232, 0.2
  %v689 = vmul.f32 %v233, 0.2
  %v690 = vmul.f32 %v234, 0.2
  %v691 = vmul.f32 %v235, 0.2
  %v692 = vmul.f32 %v236, 0.2
  %v693 = vmul.f32 %v237, 0.2
  %v694 = vmul.f32 %v238, 0.2
  %v695 = vmul.f32 %v239, 0.2
  %v696 = vmul.f32 %v240, 0.2
  %v697 = vmul.f32 %v241, 0.2
  %v698 = vmul.f32 %v242, 0.2
  %v699 = vmul.f32 %v243, 0.2
  %v700 = vmul.f32 %v244, 0.2
  %v701 = vmul.f32 %v245, 0.2
  %v702 = vmul.f32 %v246, 0.2
  %v703 = vmul.f32 %v247, 0.2
  %v704 = vmul.f32 %v248, 0.2
  %v705 = vmul.f32 %v249, 0.2
  %v706 = vmul.f32 %v250, 0.2
  %v707 = vmul.f32 %v251, 0.2
  %v708 = vmul.f32 %v252, 0.2
  %v709 = vmul.f32 %v253, 0.2
  %v710 = vmul.f32 %v254, 0.2
  %v711 = vmul.f32 %v255, 0.2
  %v712 = vmul.f32 %v256, 0.2
  %v713 = vmul.f32 %v257, 0.2
  %v714 = vmul.f32 %v258, 0.2
  %v715 = vmul.f32 %v259, 0.2
  %v716 = vmul.f32 %v260, 0.2
  %v717 = vmul.f32 %v261, 0.2
  %v718 = vmul.f32 %v262, 0.2
  %v719 = vmul.f32 %v263, 0.2
  %v720 = vmul.f32 %v264, 0.2
  %v721 = vmul.f32 %v265, 0.2
  %v722 = vmul.f32 %v266, 0.2
  %v723 = vmul.f32 %v267, 0.2
  %v724 = vmul.f32 %v268, 0.2
  %v725 = vmul.f32 %v269, 0.2
  %v726 = vmul.f32 %v270, 0.2
  %v727 = vmul.f32 %v271, 0.2
  %v728 = vmul.f32 %v272, 0.2
  %v729 = vmul.f32 %v273, 0.2
  %v730 = vmul.f32 %v274, 0.2
  %v731 = vmul.f32 %v275, 0.2
  %v732 = vmul.f32 %v276, 0.2
  %v733 = vmul.f32 %v277, 0.2
  %v734 = vmul.f32 %v278, 0.2
  %v735 = vmul.f32 %v279, 0.2
  %v736 = vmul.f32 %v280, 0.2
  %v737 = vmul.f32 %v281, 0.2
  %v738 = vmul.f32 %v282, 0.2
  %v739 = vmul.f32 %v283, 0.2
  %v740 = vmul.f32 %v284, 0.2
  %v741 = vmul.f32 %v285, 0.2
  %v742 = vmul.f32 %v286, 0.2
  %v743 = vmul.f32 %v287, 0.2
  %v744 = vmul.f32 %v288, 0.2
  %v745 = vmul.f32 %v289, 0.2
  %v746 = vmul.f32 %v290, 0.2
  %v747 = vmul.f32 %v291, 0.2
  %v748 = vmul.f32 %v292, 0.2
  %v749 = vmul.f32 %v293, 0.2
  %v750 = vmul.f32 %v294, 0.2
  %v751 = vmul.f32 %v295, 0.2
  %v752 = vmul.f32 %v296, 0.2
  %v753 = vmul.f32 %v297, 0.2
  %v754 = vmul.f32 %v298, 0.2
  %v755 = vmul.f32 %v299, 0.2
  %v756 = vmul.f32 %v300, 0.2
  %v757 = vmul.f32 %v301, 0.2
  %v758 = vmul.f32 %v302, 0.2
  %v759 = vmul.f32 %v303, 0.2
  %v760 = vmul.f32 %v304, 0.2
  %v761 = vmul.f32 %v305, 0.2
  %v762 = vmul.f32 %v306, 0.2
  %v763 = vmul.f32 %v307, 0.2
  %v764 = vmul.f32 %v308, 0.2
  %v765 = vmul.f32 %v309, 0.2
  %v766 = vmul.f32 %v310, 0.2
  %v767 = vmul.f32 %v311, 0.2
  %v768 = vmul.f32 %v312, 0.2
  %v769 = vmul.f32 %v313, 0.2
  %v770 = vmul.f32 %v314, 0.2
  %v771 = vmul.f32 %v315, 0.2
  %v772 = vmul.f32 %v316, 0.2
  %v773 = vmul.f32 %v317, 0.2
  %v774 = vmul.f32 %v318, 0.2
  %v775 = vmul.f32 %v319, 0.2
  %v776 = vmul.f32 %v320, 0.2
  %v777 = vmul.f32 %v321, 0.2
  %v778 = vmul.f32 %v322, 0.2
  %v779 = vmul.f32 %v323, 0.2
  %v780 = vmul.f32 %v324, 0.2
  %v781 = vmul.f32 %v325, 0.2
  %v782 = vmul.f32 %v326, 0.2
  %v783 = vmul.f32 %v327, 0.2
  %v784 = vmul.f32 %v328, 0.2
  %v785 = vmul.f32 %v329, 0.2
  %v786 = vmul.f32 %v330, 0.2
  %v787 = vmul.f32 %v331, 0.2
  %v788 = vmul.f32 %v332, 0.2
  %v789 = vmul.f32 %v333, 0.2
  %v790 = vmul.f32 %v334, 0.2
  %v791 = vmul.f32 %v335, 0.2
  %v792 = vmul.f32 %v336, 0.2
  %v793 = vmul.f32 %v337, 0.2
  %v794 = vmul.f32 %v338, 0.2
  %v795 = vmul.f32 %v339, 0.2
  %v796 = vmul.f32 %v340, 0.2
  %v797 = vmul.f32 %v341, 0.2
  %v798 = vmul.f32 %v342, 0.2
  %v799 = vmul.f32 %v343, 0.2
  %v800 = vmul.f32 %v344, 0.2
  %v801 = vmul.f32 %v345, 0.2
  %v802 = vmul.f32 %v346, 0.2
  %v803 = vmul.f32 %v347, 0.2
  %v804 = vmul.f32 %v348, 0.2
  %v805 = vmul.f32 %v349, 0.2
  %v806 = vmul.f32 %v350, 0.2
  %v807 = vmul.f32 %v351, 0.2
  %v808 = vmul.f32 %v352, 0.2
  %v809 = vmul.f32 %v353, 0.2
  %v810 = vmul.f32 %v354, 0.2
  %v811 = vmul.f32 %v355, 0.2
  %v812 = vmul.f32 %v356, 0.2
  %v813 = vmul.f32 %v357, 0.2
  %v814 = vmul.f32 %v358, 0.2
  %v815 = vmul.f32 %v359, 0.2
  %v816 = vmul.f32 %v360, 0.2
  %v817 = vmul.f32 %v361, 0.2
  %v818 = vmul.f32 %v362, 0.2
  %v819 = vmul.f32 %v363, 0.2
  %v820 = vmul.f32 %v364, 0.2
  %v821 = vmul.f32 %v365, 0.2
  %v822 = vmul.f32 %v366, 0.2
  %v823 = vmul.f32 %v367, 0.2
  %v824 = vmul.f32 %v368, 0.2
  %v825 = vmul.f32 %v369, 0.2
  %v826 = vmul.f32 %v370, 0.2
  %v827 = vmul.f32 %v371, 0.2
  %v828 = vmul.f32 %v372, 0.2
  %v829 = vmul.f32 %v373, 0.2
  %v830 = vmul.f32 %v374, 0.2
  %v831 = vmul.f32 %v375, 0.2
  %v832 = vmul.f32 %v376, 0.2
  %v833 = vmul.f32 %v377, 0.2
  %v834 = vmul.f32 %v378, 0.2
  %v835 = vmul.f32 %v379, 0.2
  %v836 = vmul.f32 %v380, 0.2
  %v837 = vmul.f32 %v381, 0.2
  %v838 = vmul.f32 %v382, 0.2
  %v839 = vmul.f32 %v383, 0.2
  %v840 = vmul.f32 %v384, 0.2
  %v841 = vmul.f32 %v385, 0.2
  %v842 = vmul.f32 %v386, 0.2
  %v843 = vmul.f32 %v387, 0.2
  %v844 = vmul.f32 %v388, 0.2
  %v845 = vmul.f32 %v389, 0.2
  %v846 = vmul.f32 %v390, 0.2
  %v847 = vmul.f32 %v391, 0.2
  %v848 = vmul.f32 %v392, 0.2
  %v849 = vmul.f32 %v393, 0.2
  %v850 = vmul.f32 %v394, 0.2
  %v851 = vmul.f32 %v395, 0.2
  %v852 = vmul.f32 %v396, 0.2
  %v853 = vmul.f32 %v397, 0.2
  %v854 = vmul.f32 %v398, 0.2
  %v855 = vmul.f32 %v399, 0.2
  %v856 = vmul.f32 %v400, 0.2
  %v857 = vmul.f32 %v401, 0.2
  %v858 = vmul.f32 %v402, 0.2
  %v859 = vmul.f32 %v403, 0.2
  %v860 = vmul.f32 %v404, 0.2
  %v861 = vmul.f32 %v405, 0.2
  %v862 = vmul.f32 %v406, 0.2
  %v863 = vmul.f32 %v407, 0.2
  %v864 = vmul.f32 %v408, 0.2
  %v865 = vmul.f32 %v409, 0.2
  %v866 = vmul.f32 %v410, 0.2
  %v867 = vmul.f32 %v411, 0.2
  %v868 = vmul.f32 %v412, 0.2
  %v869 = vmul.f32 %v413, 0.2
  %v870 = vmul.f32 %v414, 0.2
  %v871 = vmul.f32 %v415, 0.2
  %v872 = vmul.f32 %v416, 0.2
  %v873 = vmul.f32 %v417, 0.2
  %v874 = vmul.f32 %v418, 0.2
  %v875 = vsel %vm419, %v191, %v647
  %v876 = vsel %vm420, %v192, %v648
  %v877 = vsel %vm421, %v193, %v649
  %v878 = vsel %vm422, %v194, %v650
  %v879 = vsel %vm423, %v195, %v651
  %v880 = vsel %vm424, %v196, %v652
  %v881 = vsel %vm425, %v197, %v653
  %v882 = vsel %vm426, %v198, %v654
  %v883 = vsel %vm427, %v199, %v655
  %v884 = vsel %vm428, %v200, %v656
  %v885 = vsel %vm429, %v201, %v657
  %v886 = vsel %vm430, %v202, %v658
  %v887 = vsel %vm431, %v203, %v659
  %v888 = vsel %vm432, %v204, %v660
  %v889 = vsel %vm433, %v205, %v661
  %v890 = vsel %vm434, %v206, %v662
  %v891 = vsel %vm435, %v207, %v663
  %v892 = vsel %vm436, %v208, %v664
  %v893 = vsel %vm437, %v209, %v665
  %v894 = vsel %vm438, %v210, %v666
  %v895 = vsel %vm439, %v211, %v667
  %v896 = vsel %vm440, %v212, %v668
  %v897 = vsel %vm441, %v213, %v669
  %v898 = vsel %vm442, %v214, %v670
  %v899 = vsel %vm443, %v215, %v671
  %v900 = vsel %vm444, %v216, %v672
  %v901 = vsel %vm445, %v217, %v673
  %v902 = vsel %vm446, %v218, %v674
  %v903 = vsel %vm447, %v219, %v675
  %v904 = vsel %vm448, %v220, %v676
  %v905 = vsel %vm449, %v221, %v677
  %v906 = vsel %vm450, %v222, %v678
  %v907 = vsel %vm451, %v223, %v679
  %v908 = vsel %vm452, %v224, %v680
  %v909 = vsel %vm453, %v225, %v681
  %v910 = vsel %vm454, %v226, %v682
  %v911 = vsel %vm455, %v227, %v683
  %v912 = vsel %vm456, %v228, %v684
  %v913 = vsel %vm457, %v229, %v685
  %v914 = vsel %vm458, %v230, %v686
  %v915 = vsel %vm459, %v231, %v687
  %v916 = vsel %vm460, %v232, %v688
  %v917 = vsel %vm461, %v233, %v689
  %v918 = vsel %vm462, %v234, %v690
  %v919 = vsel %vm463, %v235, %v691
  %v920 = vsel %vm464, %v236, %v692
  %v921 = vsel %vm465, %v237, %v693
  %v922 = vsel %vm466, %v238, %v694
  %v923 = vsel %vm467, %v239, %v695
  %v924 = vsel %vm468, %v240, %v696
  %v925 = vsel %vm469, %v241, %v697
  %v926 = vsel %vm470, %v242, %v698
  %v927 = vsel %vm471, %v243, %v699
  %v928 = vsel %vm472, %v244, %v700
  %v929 = vsel %vm473, %v245, %v701
  %v930 = vsel %vm474, %v246, %v702
  %v931 = vsel %vm475, %v247, %v703
  %v932 = vsel %vm476, %v248, %v704
  %v933 = vsel %vm477, %v249, %v705
  %v934 = vsel %vm478, %v250, %v706
  %v935 = vsel %vm479, %v251, %v707
  %v936 = vsel %vm480, %v252, %v708
  %v937 = vsel %vm481, %v253, %v709
  %v938 = vsel %vm482, %v254, %v710
  %v939 = vsel %vm483, %v255, %v711
  %v940 = vsel %vm484, %v256, %v712
  %v941 = vsel %vm485, %v257, %v713
  %v942 = vsel %vm486, %v258, %v714
  %v943 = vsel %vm487, %v259, %v715
  %v944 = vsel %vm488, %v260, %v716
  %v945 = vsel %vm489, %v261, %v717
  %v946 = vsel %vm490, %v262, %v718
  %v947 = vsel %vm491, %v263, %v719
  %v948 = vsel %vm492, %v264, %v720
  %v949 = vsel %vm493, %v265, %v721
  %v950 = vsel %vm494, %v266, %v722
  %v951 = vsel %vm495, %v267, %v723
  %v952 = vsel %vm496, %v268, %v724
  %v953 = vsel %vm497, %v269, %v725
  %v954 = vsel %vm498, %v270, %v726
  %v955 = vsel %vm499, %v271, %v727
  %v956 = vsel %vm500, %v272, %v728
  %v957 = vsel %vm501, %v273, %v729
  %v958 = vsel %vm502, %v274, %v730
  %v959 = vsel %vm503, %v275, %v731
  %v960 = vsel %vm504, %v276, %v732
  %v961 = vsel %vm505, %v277, %v733
  %v962 = vsel %vm506, %v278, %v734
  %v963 = vsel %vm507, %v279, %v735
  %v964 = vsel %vm508, %v280, %v736
  %v965 = vsel %vm509, %v281, %v737
  %v966 = vsel %vm510, %v282, %v738
  %v967 = vsel %vm511, %v283, %v739
  %v968 = vsel %vm512, %v284, %v740
  %v969 = vsel %vm513, %v285, %v741
  %v970 = vsel %vm514, %v286, %v742
  %v971 = vsel %vm515, %v287, %v743
  %v972 = vsel %vm516, %v288, %v744
  %v973 = vsel %vm517, %v289, %v745
  %v974 = vsel %vm518, %v290, %v746
  %v975 = vsel %vm519, %v291, %v747
  %v976 = vsel %vm520, %v292, %v748
  %v977 = vsel %vm521, %v293, %v749
  %v978 = vsel %vm522, %v294, %v750
  %v979 = vsel %vm523, %v295, %v751
  %v980 = vsel %vm524, %v296, %v752
  %v981 = vsel %vm525, %v297, %v753
  %v982 = vsel %vm526, %v298, %v754
  %v983 = vsel %vm527, %v299, %v755
  %v984 = vsel %vm528, %v300, %v756
  %v985 = vsel %vm529, %v301, %v757
  %v986 = vsel %vm530, %v302, %v758
  %v987 = vsel %vm531, %v303, %v759
  %v988 = vsel %vm532, %v304, %v760
  %v989 = vsel %vm533, %v305, %v761
  %v990 = vsel %vm534, %v306, %v762
  %v991 = vsel %vm535, %v307, %v763
  %v992 = vsel %vm536, %v308, %v764
  %v993 = vsel %vm537, %v309, %v765
  %v994 = vsel %vm538, %v310, %v766
  %v995 = vsel %vm539, %v311, %v767
  %v996 = vsel %vm540, %v312, %v768
  %v997 = vsel %vm541, %v313, %v769
  %v998 = vsel %vm542, %v314, %v770
  %v999 = vsel %vm543, %v315, %v771
  %v1000 = vsel %vm544, %v316, %v772
  %v1001 = vsel %vm545, %v317, %v773
  %v1002 = vsel %vm546, %v318, %v774
  %v1003 = vsel %vm547, %v319, %v775
  %v1004 = vsel %vm548, %v320, %v776
  %v1005 = vsel %vm549, %v321, %v777
  %v1006 = vsel %vm550, %v322, %v778
  %v1007 = vsel %vm551, %v323, %v779
  %v1008 = vsel %vm552, %v324, %v780
  %v1009 = vsel %vm553, %v325, %v781
  %v1010 = vsel %vm554, %v326, %v782
  %v1011 = vsel %vm555, %v327, %v783
  %v1012 = vsel %vm556, %v328, %v784
  %v1013 = vsel %vm557, %v329, %v785
  %v1014 = vsel %vm558, %v330, %v786
  %v1015 = vsel %vm559, %v331, %v787
  %v1016 = vsel %vm560, %v332, %v788
  %v1017 = vsel %vm561, %v333, %v789
  %v1018 = vsel %vm562, %v334, %v790
  %v1019 = vsel %vm563, %v335, %v791
  %v1020 = vsel %vm564, %v336, %v792
  %v1021 = vsel %vm565, %v337, %v793
  %v1022 = vsel %vm566, %v338, %v794
  %v1023 = vsel %vm567, %v339, %v795
  %v1024 = vsel %vm568, %v340, %v796
  %v1025 = vsel %vm569, %v341, %v797
  %v1026 = vsel %vm570, %v342, %v798
  %v1027 = vsel %vm571, %v343, %v799
  %v1028 = vsel %vm572, %v344, %v800
  %v1029 = vsel %vm573, %v345, %v801
  %v1030 = vsel %vm574, %v346, %v802
  %v1031 = vsel %vm575, %v347, %v803
  %v1032 = vsel %vm576, %v348, %v804
  %v1033 = vsel %vm577, %v349, %v805
  %v1034 = vsel %vm578, %v350, %v806
  %v1035 = vsel %vm579, %v351, %v807
  %v1036 = vsel %vm580, %v352, %v808
  %v1037 = vsel %vm581, %v353, %v809
  %v1038 = vsel %vm582, %v354, %v810
  %v1039 = vsel %vm583, %v355, %v811
  %v1040 = vsel %vm584, %v356, %v812
  %v1041 = vsel %vm585, %v357, %v813
  %v1042 = vsel %vm586, %v358, %v814
  %v1043 = vsel %vm587, %v359, %v815
  %v1044 = vsel %vm588, %v360, %v816
  %v1045 = vsel %vm589, %v361, %v817
  %v1046 = vsel %vm590, %v362, %v818
  %v1047 = vsel %vm591, %v363, %v819
  %v1048 = vsel %vm592, %v364, %v820
  %v1049 = vsel %vm593, %v365, %v821
  %v1050 = vsel %vm594, %v366, %v822
  %v1051 = vsel %vm595, %v367, %v823
  %v1052 = vsel %vm596, %v368, %v824
  %v1053 = vsel %vm597, %v369, %v825
  %v1054 = vsel %vm598, %v370, %v826
  %v1055 = vsel %vm599, %v371, %v827
  %v1056 = vsel %vm600, %v372, %v828
  %v1057 = vsel %vm601, %v373, %v829
  %v1058 = vsel %vm602, %v374, %v830
  %v1059 = vsel %vm603, %v375, %v831
  %v1060 = vsel %vm604, %v376, %v832
  %v1061 = vsel %vm605, %v377, %v833
  %v1062 = vsel %vm606, %v378, %v834
  %v1063 = vsel %vm607, %v379, %v835
  %v1064 = vsel %vm608, %v380, %v836
  %v1065 = vsel %vm609, %v381, %v837
  %v1066 = vsel %vm610, %v382, %v838
  %v1067 = vsel %vm611, %v383, %v839
  %v1068 = vsel %vm612, %v384, %v840
  %v1069 = vsel %vm613, %v385, %v841
  %v1070 = vsel %vm614, %v386, %v842
  %v1071 = vsel %vm615, %v387, %v843
  %v1072 = vsel %vm616, %v388, %v844
  %v1073 = vsel %vm617, %v389, %v845
  %v1074 = vsel %vm618, %v390, %v846
  %v1075 = vsel %vm619, %v391, %v847
  %v1076 = vsel %vm620, %v392, %v848
  %v1077 = vsel %vm621, %v393, %v849
  %v1078 = vsel %vm622, %v394, %v850
  %v1079 = vsel %vm623, %v395, %v851
  %v1080 = vsel %vm624, %v396, %v852
  %v1081 = vsel %vm625, %v397, %v853
  %v1082 = vsel %vm626, %v398, %v854
  %v1083 = vsel %vm627, %v399, %v855
  %v1084 = vsel %vm628, %v400, %v856
  %v1085 = vsel %vm629, %v401, %v857
  %v1086 = vsel %vm630, %v402, %v858
  %v1087 = vsel %vm631, %v403, %v859
  %v1088 = vsel %vm632, %v404, %v860
  %v1089 = vsel %vm633, %v405, %v861
  %v1090 = vsel %vm634, %v406, %v862
  %v1091 = vsel %vm635, %v407, %v863
  %v1092 = vsel %vm636, %v408, %v864
  %v1093 = vsel %vm637, %v409, %v865
  %v1094 = vsel %vm638, %v410, %v866
  %v1095 = vsel %vm639, %v411, %v867
  %v1096 = vsel %vm640, %v412, %v868
  %v1097 = vsel %vm641, %v413, %v869
  %v1098 = vsel %vm642, %v414, %v870
  %v1099 = vsel %vm643, %v415, %v871
  %v1100 = vsel %vm644, %v416, %v872
  %v1101 = vsel %vm645, %v417, %v873
  %v1102 = vsel %vm646, %v418, %v874
  %v1103 = vpack.c.bf16 %v879, %v875
  %v1104 = vpack.c.bf16 %v880, %v876
  %v1105 = vpack.c.bf16 %v881, %v877
  %v1106 = vpack.c.bf16 %v882, %v878
  %v1107 = vpack.c.bf16 %v887, %v883
  %v1108 = vpack.c.bf16 %v888, %v884
  %v1109 = vpack.c.bf16 %v889, %v885
  %v1110 = vpack.c.bf16 %v890, %v886
  %v1111 = vpack.c.bf16 %v895, %v891
  %v1112 = vpack.c.bf16 %v896, %v892
  %v1113 = vpack.c.bf16 %v897, %v893
  %v1114 = vpack.c.bf16 %v898, %v894
  %v1115 = vpack.c.bf16 %v903, %v899
  %v1116 = vpack.c.bf16 %v904, %v900
  %v1117 = vpack.c.bf16 %v905, %v901
  %v1118 = vpack.c.bf16 %v906, %v902
  %v1119 = vpack.c.bf16 %v911, %v907
  %v1120 = vpack.c.bf16 %v912, %v908
  %v1121 = vpack.c.bf16 %v913, %v909
  %v1122 = vpack.c.bf16 %v914, %v910
  %v1123 = vpack.c.bf16 %v919, %v915
  %v1124 = vpack.c.bf16 %v920, %v916
  %v1125 = vpack.c.bf16 %v921, %v917
  %v1126 = vpack.c.bf16 %v922, %v918
  %v1127 = vpack.c.bf16 %v927, %v923
  %v1128 = vpack.c.bf16 %v928, %v924
  %v1129 = vpack.c.bf16 %v929, %v925
  %v1130 = vpack.c.bf16 %v930, %v926
  %v1131 = vpack.c.bf16 %v935, %v931
  %v1132 = vpack.c.bf16 %v936, %v932
  %v1133 = vpack.c.bf16 %v937, %v933
  %v1134 = vpack.c.bf16 %v938, %v934
  %v1135 = vpack.c.bf16 %v943, %v939
  %v1136 = vpack.c.bf16 %v944, %v940
  %v1137 = vpack.c.bf16 %v945, %v941
  %v1138 = vpack.c.bf16 %v946, %v942
  %v1139 = vpack.c.bf16 %v951, %v947
  %v1140 = vpack.c.bf16 %v952, %v948
  %v1141 = vpack.c.bf16 %v953, %v949
  %v1142 = vpack.c.bf16 %v954, %v950
  %v1143 = vpack.c.bf16 %v959, %v955
  %v1144 = vpack.c.bf16 %v960, %v956
  %v1145 = vpack.c.bf16 %v961, %v957
  %v1146 = vpack.c.bf16 %v962, %v958
  %v1147 = vpack.c.bf16 %v967, %v963
  %v1148 = vpack.c.bf16 %v968, %v964
  %v1149 = vpack.c.bf16 %v969, %v965
  %v1150 = vpack.c.bf16 %v970, %v966
  %v1151 = vpack.c.bf16 %v975, %v971
  %v1152 = vpack.c.bf16 %v976, %v972
  %v1153 = vpack.c.bf16 %v977, %v973
  %v1154 = vpack.c.bf16 %v978, %v974
  %v1155 = vpack.c.bf16 %v983, %v979
  %v1156 = vpack.c.bf16 %v984, %v980
  %v1157 = vpack.c.bf16 %v985, %v981
  %v1158 = vpack.c.bf16 %v986, %v982
  %v1159 = vpack.c.bf16 %v991, %v987
  %v1160 = vpack.c.bf16 %v992, %v988
  %v1161 = vpack.c.bf16 %v993, %v989
  %v1162 = vpack.c.bf16 %v994, %v990
  %v1163 = vpack.c.bf16 %v999, %v995
  %v1164 = vpack.c.bf16 %v1000, %v996
  %v1165 = vpack.c.bf16 %v1001, %v997
  %v1166 = vpack.c.bf16 %v1002, %v998
  %v1167 = vpack.c.bf16 %v1007, %v1003
  %v1168 = vpack.c.bf16 %v1008, %v1004
  %v1169 = vpack.c.bf16 %v1009, %v1005
  %v1170 = vpack.c.bf16 %v1010, %v1006
  %v1171 = vpack.c.bf16 %v1015, %v1011
  %v1172 = vpack.c.bf16 %v1016, %v1012
  %v1173 = vpack.c.bf16 %v1017, %v1013
  %v1174 = vpack.c.bf16 %v1018, %v1014
  %v1175 = vpack.c.bf16 %v1023, %v1019
  %v1176 = vpack.c.bf16 %v1024, %v1020
  %v1177 = vpack.c.bf16 %v1025, %v1021
  %v1178 = vpack.c.bf16 %v1026, %v1022
  %v1179 = vpack.c.bf16 %v1031, %v1027
  %v1180 = vpack.c.bf16 %v1032, %v1028
  %v1181 = vpack.c.bf16 %v1033, %v1029
  %v1182 = vpack.c.bf16 %v1034, %v1030
  %v1183 = vpack.c.bf16 %v1039, %v1035
  %v1184 = vpack.c.bf16 %v1040, %v1036
  %v1185 = vpack.c.bf16 %v1041, %v1037
  %v1186 = vpack.c.bf16 %v1042, %v1038
  %v1187 = vpack.c.bf16 %v1047, %v1043
  %v1188 = vpack.c.bf16 %v1048, %v1044
  %v1189 = vpack.c.bf16 %v1049, %v1045
  %v1190 = vpack.c.bf16 %v1050, %v1046
  %v1191 = vpack.c.bf16 %v1055, %v1051
  %v1192 = vpack.c.bf16 %v1056, %v1052
  %v1193 = vpack.c.bf16 %v1057, %v1053
  %v1194 = vpack.c.bf16 %v1058, %v1054
  %v1195 = vpack.c.bf16 %v1063, %v1059
  %v1196 = vpack.c.bf16 %v1064, %v1060
  %v1197 = vpack.c.bf16 %v1065, %v1061
  %v1198 = vpack.c.bf16 %v1066, %v1062
  %v1199 = vpack.c.bf16 %v1071, %v1067
  %v1200 = vpack.c.bf16 %v1072, %v1068
  %v1201 = vpack.c.bf16 %v1073, %v1069
  %v1202 = vpack.c.bf16 %v1074, %v1070
  %v1203 = vpack.c.bf16 %v1079, %v1075
  %v1204 = vpack.c.bf16 %v1080, %v1076
  %v1205 = vpack.c.bf16 %v1081, %v1077
  %v1206 = vpack.c.bf16 %v1082, %v1078
  %v1207 = vpack.c.bf16 %v1087, %v1083
  %v1208 = vpack.c.bf16 %v1088, %v1084
  %v1209 = vpack.c.bf16 %v1089, %v1085
  %v1210 = vpack.c.bf16 %v1090, %v1086
  %v1211 = vpack.c.bf16 %v1095, %v1091
  %v1212 = vpack.c.bf16 %v1096, %v1092
  %v1213 = vpack.c.bf16 %v1097, %v1093
  %v1214 = vpack.c.bf16 %v1098, %v1094
  %v1215 = vpack.c.bf16 %v1099, %v1099
  %v1216 = vpack.c.bf16 %v1100, %v1100
  %v1217 = vpack.c.bf16 %v1101, %v1101
  %v1218 = vpack.c.bf16 %v1102, %v1102
  %v1219 = vld [vmem:[#allocation2] sm:$0xff]
  %v1220 = vld [vmem:[#allocation2 + $0x8] sm:$0xff]
  %v1221 = vld [vmem:[#allocation2 + $0x10] sm:$0xff]
  %v1222 = vld [vmem:[#allocation2 + $0x18] sm:$0xff]
  %v1223 = vld [vmem:[#allocation2 + $0x20] sm:$0xff]
  %v1224 = vld [vmem:[#allocation2 + $0x28] sm:$0xff]
  %v1225 = vld [vmem:[#allocation2 + $0x30] sm:$0xff]
  %v1226 = vld [vmem:[#allocation2 + $0x38] sm:$0xff]
  %v1227 = vld [vmem:[#allocation2 + $0x40] sm:$0xff]
  %v1228 = vld [vmem:[#allocation2 + $0x48] sm:$0xff]
  %v1229 = vld [vmem:[#allocation2 + $0x50] sm:$0xff]
  %v1230 = vld [vmem:[#allocation2 + $0x58] sm:$0xff]
  %v1231 = vld [vmem:[#allocation2 + $0x60] sm:$0xff]
  %v1232 = vld [vmem:[#allocation2 + $0x68] sm:$0xff]
  %v1233 = vld [vmem:[#allocation2 + $0x70] sm:$0xff]
  %v1234 = vld [vmem:[#allocation2 + $0x78] sm:$0xff]
  %v1235 = vld [vmem:[#allocation2 + $0x80] sm:$0xff]
  %v1236 = vld [vmem:[#allocation2 + $0x88] sm:$0xff]
  %v1237 = vld [vmem:[#allocation2 + $0x90] sm:$0xff]
  %v1238 = vld [vmem:[#allocation2 + $0x98] sm:$0xff]
  %v1239 = vld [vmem:[#allocation2 + $0xa0] sm:$0xff]
  %v1240 = vld [vmem:[#allocation2 + $0xa8] sm:$0xff]
  %v1241 = vld [vmem:[#allocation2 + $0xb0] sm:$0xff]
  %v1242 = vld [vmem:[#allocation2 + $0xb8] sm:$0xff]
  %v1243 = vld [vmem:[#allocation2 + $0xc0] sm:$0xff]
  %v1244 = vld [vmem:[#allocation2 + $0xc8] sm:$0xff]
  %v1245 = vld [vmem:[#allocation2 + $0xd0] sm:$0xff]
  %v1246 = vld [vmem:[#allocation2 + $0xd8] sm:$0xff]
  %v1247 = vld [vmem:[#allocation2 + $0xe0] sm:$0xff]
  %v1248 = vld [vmem:[#allocation2 + $0xe8] sm:$0xff]
  %v1249 = vld [vmem:[#allocation2 + $0xf0] sm:$0xff]
  %v1250 = vld [vmem:[#allocation2 + $0xf8] sm:$0xff]
  %v1251 = vld [vmem:[#allocation2 + $0x100] sm:$0xff]
  %v1252 = vld [vmem:[#allocation2 + $0x108] sm:$0xff]
  %v1253 = vld [vmem:[#allocation2 + $0x110] sm:$0xff]
  %v1254 = vld [vmem:[#allocation2 + $0x118] sm:$0xff]
  %v1255 = vld [vmem:[#allocation2 + $0x120] sm:$0xff]
  %v1256 = vld [vmem:[#allocation2 + $0x128] sm:$0xff]
  %v1257 = vld [vmem:[#allocation2 + $0x130] sm:$0xff]
  %v1258 = vld [vmem:[#allocation2 + $0x138] sm:$0xff]
  %v1259 = vld [vmem:[#allocation2 + $0x140] sm:$0xff]
  %v1260 = vld [vmem:[#allocation2 + $0x148] sm:$0xff]
  %v1261 = vld [vmem:[#allocation2 + $0x150] sm:$0xff]
  %v1262 = vld [vmem:[#allocation2 + $0x158] sm:$0xff]
  %v1263 = vld [vmem:[#allocation2 + $0x160] sm:$0xff]
  %v1264 = vld [vmem:[#allocation2 + $0x168] sm:$0xff]
  %v1265 = vld [vmem:[#allocation2 + $0x170] sm:$0xff]
  %v1266 = vld [vmem:[#allocation2 + $0x178] sm:$0xff]
  %v1267 = vld [vmem:[#allocation2 + $0x180] sm:$0xff]
  %v1268 = vld [vmem:[#allocation2 + $0x188] sm:$0xff]
  %v1269 = vld [vmem:[#allocation2 + $0x190] sm:$0xff]
  %v1270 = vld [vmem:[#allocation2 + $0x198] sm:$0xff]
  %v1271 = vld [vmem:[#allocation2 + $0x1a0] sm:$0xff]
  %v1272 = vld [vmem:[#allocation2 + $0x1a8] sm:$0xff]
  %v1273 = vld [vmem:[#allocation2 + $0x1b0] sm:$0xff]
  %v1274 = vld [vmem:[#allocation2 + $0x1b8] sm:$0xff]
  %v1275 = vld [vmem:[#allocation2 + $0x1c0] sm:$0xff]
  %v1276 = vld [vmem:[%s1] sm:$0xf]
  %v1277 = vld [vmem:[%s1 + $0x4] sm:$0xf]
  %v1278 = vld [vmem:[%s1 + $0x8] sm:$0xf]
  %v1279 = vld [vmem:[%s1 + $0xc] sm:$0xf]
  %v1280 = vld [vmem:[%s1 + $0x10] sm:$0xf]
  %v1281 = vld [vmem:[%s1 + $0x14] sm:$0xf]
  %v1282 = vld [vmem:[%s1 + $0x18] sm:$0xf]
  %v1283 = vld [vmem:[%s1 + $0x1c] sm:$0xf]
  %v1284 = vld [vmem:[%s1 + $0x20] sm:$0xf]
  %v1285 = vld [vmem:[%s1 + $0x24] sm:$0xf]
  %v1286 = vld [vmem:[%s1 + $0x28] sm:$0xf]
  %v1287 = vld [vmem:[%s1 + $0x2c] sm:$0xf]
  %v1288 = vld [vmem:[%s1 + $0x30] sm:$0xf]
  %v1289 = vld [vmem:[%s1 + $0x34] sm:$0xf]
  %v1290 = vld [vmem:[%s1 + $0x38] sm:$0xf]
  %v1291 = vld [vmem:[%s1 + $0x3c] sm:$0xf]
  %v1292 = vld [vmem:[%s1 + $0x40] sm:$0xf]
  %v1293 = vld [vmem:[%s1 + $0x44] sm:$0xf]
  %v1294 = vld [vmem:[%s1 + $0x48] sm:$0xf]
  %v1295 = vld [vmem:[%s1 + $0x4c] sm:$0xf]
  %v1296 = vld [vmem:[%s1 + $0x50] sm:$0xf]
  %v1297 = vld [vmem:[%s1 + $0x54] sm:$0xf]
  %v1298 = vld [vmem:[%s1 + $0x58] sm:$0xf]
  %v1299 = vld [vmem:[%s1 + $0x5c] sm:$0xf]
  %v1300 = vld [vmem:[%s1 + $0x60] sm:$0xf]
  %v1301 = vld [vmem:[%s1 + $0x64] sm:$0xf]
  %v1302 = vld [vmem:[%s1 + $0x68] sm:$0xf]
  %v1303 = vld [vmem:[%s1 + $0x6c] sm:$0xf]
  %v1304 = vld [vmem:[%s1 + $0x70] sm:$0xf]
  %v1305 = vld [vmem:[%s1 + $0x74] sm:$0xf]
  %v1306 = vld [vmem:[%s1 + $0x78] sm:$0xf]
  %v1307 = vld [vmem:[%s1 + $0x7c] sm:$0xf]
  %v1308 = vld [vmem:[%s1 + $0x80] sm:$0xf]
  %v1309 = vld [vmem:[%s1 + $0x84] sm:$0xf]
  %v1310 = vld [vmem:[%s1 + $0x88] sm:$0xf]
  %v1311 = vld [vmem:[%s1 + $0x8c] sm:$0xf]
  %v1312 = vld [vmem:[%s1 + $0x90] sm:$0xf]
  %v1313 = vld [vmem:[%s1 + $0x94] sm:$0xf]
  %v1314 = vld [vmem:[%s1 + $0x98] sm:$0xf]
  %v1315 = vld [vmem:[%s1 + $0x9c] sm:$0xf]
  %v1316 = vld [vmem:[%s1 + $0xa0] sm:$0xf]
  %v1317 = vld [vmem:[%s1 + $0xa4] sm:$0xf]
  %v1318 = vld [vmem:[%s1 + $0xa8] sm:$0xf]
  %v1319 = vld [vmem:[%s1 + $0xac] sm:$0xf]
  %v1320 = vld [vmem:[%s1 + $0xb0] sm:$0xf]
  %v1321 = vld [vmem:[%s1 + $0xb4] sm:$0xf]
  %v1322 = vld [vmem:[%s1 + $0xb8] sm:$0xf]
  %v1323 = vld [vmem:[%s1 + $0xbc] sm:$0xf]
  %v1324 = vld [vmem:[%s1 + $0xc0] sm:$0xf]
  %v1325 = vld [vmem:[%s1 + $0xc4] sm:$0xf]
  %v1376 = vunpack.c.l.b16 %v1276
  %v1377 = vunpack.c.l.b16 %v1277
  %v1378 = vunpack.c.l.b16 %v1278
  %v1379 = vunpack.c.l.b16 %v1279
  %v1380 = vunpack.c.l.b16 %v1280
  %v1381 = vunpack.c.l.b16 %v1281
  %v1382 = vunpack.c.l.b16 %v1282
  %v1383 = vunpack.c.l.b16 %v1283
  %v1384 = vunpack.c.l.b16 %v1284
  %v1385 = vunpack.c.l.b16 %v1285
  %v1386 = vunpack.c.l.b16 %v1286
  %v1387 = vunpack.c.l.b16 %v1287
  %v1388 = vunpack.c.l.b16 %v1288
  %v1389 = vunpack.c.l.b16 %v1289
  %v1390 = vunpack.c.l.b16 %v1290
  %v1391 = vunpack.c.l.b16 %v1291
  %v1392 = vunpack.c.l.b16 %v1292
  %v1393 = vunpack.c.l.b16 %v1293
  %v1394 = vunpack.c.l.b16 %v1294
  %v1395 = vunpack.c.l.b16 %v1295
  %v1396 = vunpack.c.l.b16 %v1296
  %v1397 = vunpack.c.l.b16 %v1297
  %v1398 = vunpack.c.l.b16 %v1298
  %v1399 = vunpack.c.l.b16 %v1299
  %v1400 = vunpack.c.l.b16 %v1300
  %v1401 = vunpack.c.l.b16 %v1301
  %v1402 = vunpack.c.l.b16 %v1302
  %v1403 = vunpack.c.l.b16 %v1303
  %v1404 = vunpack.c.l.b16 %v1304
  %v1405 = vunpack.c.l.b16 %v1305
  %v1406 = vunpack.c.l.b16 %v1306
  %v1407 = vunpack.c.l.b16 %v1307
  %v1408 = vunpack.c.l.b16 %v1308
  %v1409 = vunpack.c.l.b16 %v1309
  %v1410 = vunpack.c.l.b16 %v1310
  %v1411 = vunpack.c.l.b16 %v1311
  %v1412 = vunpack.c.l.b16 %v1312
  %v1413 = vunpack.c.l.b16 %v1313
  %v1414 = vunpack.c.l.b16 %v1314
  %v1415 = vunpack.c.l.b16 %v1315
  %v1416 = vunpack.c.l.b16 %v1316
  %v1417 = vunpack.c.l.b16 %v1317
  %v1418 = vunpack.c.l.b16 %v1318
  %v1419 = vunpack.c.l.b16 %v1319
  %v1420 = vunpack.c.l.b16 %v1320
  %v1421 = vunpack.c.l.b16 %v1321
  %v1422 = vunpack.c.l.b16 %v1322
  %v1423 = vunpack.c.l.b16 %v1323
  %v1424 = vunpack.c.l.b16 %v1324
  %v1425 = vunpack.c.l.b16 %v1325
  %v1426 = vpack.c.b16 %v1377, %v1376
  %v1427 = vpack.c.b16 %v1379, %v1378
  %v1428 = vpack.c.b16 %v1381, %v1380
  %v1429 = vpack.c.b16 %v1383, %v1382
  %v1430 = vpack.c.b16 %v1385, %v1384
  %v1431 = vpack.c.b16 %v1387, %v1386
  %v1432 = vpack.c.b16 %v1389, %v1388
  %v1433 = vpack.c.b16 %v1391, %v1390
  %v1434 = vpack.c.b16 %v1393, %v1392
  %v1435 = vpack.c.b16 %v1395, %v1394
  %v1436 = vpack.c.b16 %v1397, %v1396
  %v1437 = vpack.c.b16 %v1399, %v1398
  %v1438 = vpack.c.b16 %v1401, %v1400
  %v1439 = vpack.c.b16 %v1403, %v1402
  %v1440 = vpack.c.b16 %v1405, %v1404
  %v1441 = vpack.c.b16 %v1407, %v1406
  %v1442 = vpack.c.b16 %v1409, %v1408
  %v1443 = vpack.c.b16 %v1411, %v1410
  %v1444 = vpack.c.b16 %v1413, %v1412
  %v1445 = vpack.c.b16 %v1415, %v1414
  %v1446 = vpack.c.b16 %v1417, %v1416
  %v1447 = vpack.c.b16 %v1419, %v1418
  %v1448 = vpack.c.b16 %v1421, %v1420
  %v1449 = vpack.c.b16 %v1423, %v1422
  %v1450 = vpack.c.b16 %v1425, %v1424
  %vm1476 = vcmask 130048
  %v1478 = vsel %vm1476, %v1106, 0
  %v1481 = vsel %vm1476, %v1110, 0
  %v1484 = vsel %vm1476, %v1114, 0
  %v1487 = vsel %vm1476, %v1118, 0
  %v1490 = vsel %vm1476, %v1122, 0
  %v1493 = vsel %vm1476, %v1126, 0
  %v1496 = vsel %vm1476, %v1130, 0
  %v1499 = vsel %vm1476, %v1134, 0
  %v1502 = vsel %vm1476, %v1138, 0
  %v1505 = vsel %vm1476, %v1142, 0
  %v1508 = vsel %vm1476, %v1146, 0
  %v1511 = vsel %vm1476, %v1150, 0
  %v1514 = vsel %vm1476, %v1154, 0
  %v1517 = vsel %vm1476, %v1158, 0
  %v1520 = vsel %vm1476, %v1162, 0
  %v1523 = vsel %vm1476, %v1166, 0
  %v1526 = vsel %vm1476, %v1170, 0
  %v1529 = vsel %vm1476, %v1174, 0
  %v1532 = vsel %vm1476, %v1178, 0
  %v1535 = vsel %vm1476, %v1182, 0
  %v1538 = vsel %vm1476, %v1186, 0
  %v1541 = vsel %vm1476, %v1190, 0
  %v1544 = vsel %vm1476, %v1194, 0
  %v1547 = vsel %vm1476, %v1198, 0
  %v1550 = vsel %vm1476, %v1202, 0
  %v1553 = vsel %vm1476, %v1206, 0
  %v1556 = vsel %vm1476, %v1210, 0
  %v1559 = vsel %vm1476, %v1214, 0
  %v1562 = vsel %vm1476, %v1218, 0
  %1564 = vmatpush.bf16.msra.mxu0 %v1433
  %1565 = vmatpush.bf16.msra.mxu0 %v1432
  %1566 = vmatpush.bf16.msra.mxu0 %v1431
  %1567 = vmatpush.bf16.msra.mxu0 %v1430
  %1568 = vmatpush.bf16.msra.mxu0 %v1429
  %1569 = vmatpush.bf16.msra.mxu0 %v1428
  %1570 = vmatpush.bf16.msra.mxu0 %v1427
  %1571 = vmatpush.bf16.msra.mxu0 %v1426
  %1572 = vmatmul.bf16.gmra.mxu0 %v1103
  %v1573 = vpop.f32.mrf.mxu0
  %v1574 = vadd.f32 0.0, %v1573
  %v1575 = vpop.f32.mrf.mxu0
  %v1576 = vadd.f32 0.0, %v1575
  %1577 = vmatmul.bf16.gmra.mxu0 %v1107
  %v1578 = vpop.f32.mrf.mxu0
  %v1579 = vadd.f32 0.0, %v1578
  %v1580 = vpop.f32.mrf.mxu0
  %v1581 = vadd.f32 0.0, %v1580
  %1582 = vmatmul.bf16.gmra.mxu0 %v1111
  %v1583 = vpop.f32.mrf.mxu0
  %v1584 = vadd.f32 0.0, %v1583
  %v1585 = vpop.f32.mrf.mxu0
  %v1586 = vadd.f32 0.0, %v1585
  %1587 = vmatmul.bf16.gmra.mxu0 %v1115
  %v1588 = vpop.f32.mrf.mxu0
  %v1589 = vadd.f32 0.0, %v1588
  %v1590 = vpop.f32.mrf.mxu0
  %v1591 = vadd.f32 0.0, %v1590
  %1592 = vmatmul.bf16.gmra.mxu0 %v1119
  %v1593 = vpop.f32.mrf.mxu0
  %v1594 = vadd.f32 0.0, %v1593
  %v1595 = vpop.f32.mrf.mxu0
  %v1596 = vadd.f32 0.0, %v1595
  %1597 = vmatmul.bf16.gmra.mxu0 %v1123
  %v1598 = vpop.f32.mrf.mxu0
  %v1599 = vadd.f32 0.0, %v1598
  %v1600 = vpop.f32.mrf.mxu0
  %v1601 = vadd.f32 0.0, %v1600
  %1602 = vmatmul.bf16.gmra.mxu0 %v1127
  %v1603 = vpop.f32.mrf.mxu0
  %v1604 = vadd.f32 0.0, %v1603
  %v1605 = vpop.f32.mrf.mxu0
  %v1606 = vadd.f32 0.0, %v1605
  %1607 = vmatmul.bf16.gmra.mxu0 %v1131
  %v1608 = vpop.f32.mrf.mxu0
  %v1609 = vadd.f32 0.0, %v1608
  %v1610 = vpop.f32.mrf.mxu0
  %v1611 = vadd.f32 0.0, %v1610
  %1612 = vmatmul.bf16.gmra.mxu0 %v1135
  %v1613 = vpop.f32.mrf.mxu0
  %v1614 = vadd.f32 0.0, %v1613
  %v1615 = vpop.f32.mrf.mxu0
  %v1616 = vadd.f32 0.0, %v1615
  %1617 = vmatmul.bf16.gmra.mxu0 %v1139
  %v1618 = vpop.f32.mrf.mxu0
  %v1619 = vadd.f32 0.0, %v1618
  %v1620 = vpop.f32.mrf.mxu0
  %v1621 = vadd.f32 0.0, %v1620
  %1622 = vmatmul.bf16.gmra.mxu0 %v1143
  %v1623 = vpop.f32.mrf.mxu0
  %v1624 = vadd.f32 0.0, %v1623
  %v1625 = vpop.f32.mrf.mxu0
  %v1626 = vadd.f32 0.0, %v1625
  %1627 = vmatmul.bf16.gmra.mxu0 %v1147
  %v1628 = vpop.f32.mrf.mxu0
  %v1629 = vadd.f32 0.0, %v1628
  %v1630 = vpop.f32.mrf.mxu0
  %v1631 = vadd.f32 0.0, %v1630
  %1632 = vmatmul.bf16.gmra.mxu0 %v1151
  %v1633 = vpop.f32.mrf.mxu0
  %v1634 = vadd.f32 0.0, %v1633
  %v1635 = vpop.f32.mrf.mxu0
  %v1636 = vadd.f32 0.0, %v1635
  %1637 = vmatmul.bf16.gmra.mxu0 %v1155
  %v1638 = vpop.f32.mrf.mxu0
  %v1639 = vadd.f32 0.0, %v1638
  %v1640 = vpop.f32.mrf.mxu0
  %v1641 = vadd.f32 0.0, %v1640
  %1642 = vmatmul.bf16.gmra.mxu0 %v1159
  %v1643 = vpop.f32.mrf.mxu0
  %v1644 = vadd.f32 0.0, %v1643
  %v1645 = vpop.f32.mrf.mxu0
  %v1646 = vadd.f32 0.0, %v1645
  %1647 = vmatmul.bf16.gmra.mxu0 %v1163
  %v1648 = vpop.f32.mrf.mxu0
  %v1649 = vadd.f32 0.0, %v1648
  %v1650 = vpop.f32.mrf.mxu0
  %v1651 = vadd.f32 0.0, %v1650
  %1652 = vmatmul.bf16.gmra.mxu0 %v1167
  %v1653 = vpop.f32.mrf.mxu0
  %v1654 = vadd.f32 0.0, %v1653
  %v1655 = vpop.f32.mrf.mxu0
  %v1656 = vadd.f32 0.0, %v1655
  %1657 = vmatmul.bf16.gmra.mxu0 %v1171
  %v1658 = vpop.f32.mrf.mxu0
  %v1659 = vadd.f32 0.0, %v1658
  %v1660 = vpop.f32.mrf.mxu0
  %v1661 = vadd.f32 0.0, %v1660
  %1662 = vmatmul.bf16.gmra.mxu0 %v1175
  %v1663 = vpop.f32.mrf.mxu0
  %v1664 = vadd.f32 0.0, %v1663
  %v1665 = vpop.f32.mrf.mxu0
  %v1666 = vadd.f32 0.0, %v1665
  %1667 = vmatmul.bf16.gmra.mxu0 %v1179
  %v1668 = vpop.f32.mrf.mxu0
  %v1669 = vadd.f32 0.0, %v1668
  %v1670 = vpop.f32.mrf.mxu0
  %v1671 = vadd.f32 0.0, %v1670
  %1672 = vmatmul.bf16.gmra.mxu0 %v1183
  %v1673 = vpop.f32.mrf.mxu0
  %v1674 = vadd.f32 0.0, %v1673
  %v1675 = vpop.f32.mrf.mxu0
  %v1676 = vadd.f32 0.0, %v1675
  %1677 = vmatmul.bf16.gmra.mxu0 %v1187
  %v1678 = vpop.f32.mrf.mxu0
  %v1679 = vadd.f32 0.0, %v1678
  %v1680 = vpop.f32.mrf.mxu0
  %v1681 = vadd.f32 0.0, %v1680
  %1682 = vmatmul.bf16.gmra.mxu0 %v1191
  %v1683 = vpop.f32.mrf.mxu0
  %v1684 = vadd.f32 0.0, %v1683
  %v1685 = vpop.f32.mrf.mxu0
  %v1686 = vadd.f32 0.0, %v1685
  %1687 = vmatmul.bf16.gmra.mxu0 %v1195
  %v1688 = vpop.f32.mrf.mxu0
  %v1689 = vadd.f32 0.0, %v1688
  %v1690 = vpop.f32.mrf.mxu0
  %v1691 = vadd.f32 0.0, %v1690
  %1692 = vmatmul.bf16.gmra.mxu0 %v1199
  %v1693 = vpop.f32.mrf.mxu0
  %v1694 = vadd.f32 0.0, %v1693
  %v1695 = vpop.f32.mrf.mxu0
  %v1696 = vadd.f32 0.0, %v1695
  %1697 = vmatmul.bf16.gmra.mxu0 %v1203
  %v1698 = vpop.f32.mrf.mxu0
  %v1699 = vadd.f32 0.0, %v1698
  %v1700 = vpop.f32.mrf.mxu0
  %v1701 = vadd.f32 0.0, %v1700
  %1702 = vmatmul.bf16.gmra.mxu0 %v1207
  %v1703 = vpop.f32.mrf.mxu0
  %v1704 = vadd.f32 0.0, %v1703
  %v1705 = vpop.f32.mrf.mxu0
  %v1706 = vadd.f32 0.0, %v1705
  %1707 = vmatmul.bf16.gmra.mxu0 %v1211
  %v1708 = vpop.f32.mrf.mxu0
  %v1709 = vadd.f32 0.0, %v1708
  %v1710 = vpop.f32.mrf.mxu0
  %v1711 = vadd.f32 0.0, %v1710
  %1712 = vmatmul.bf16.gmra.mxu0 %v1215
  %v1713 = vpop.f32.mrf.mxu0
  %v1714 = vadd.f32 0.0, %v1713
  %v1715 = vpop.f32.mrf.mxu0
  %1716 = vdwg.mxu0
  %1717 = vmatpush.bf16.msra.mxu0 %v1441
  %1718 = vmatpush.bf16.msra.mxu0 %v1440
  %1719 = vmatpush.bf16.msra.mxu0 %v1439
  %1720 = vmatpush.bf16.msra.mxu0 %v1438
  %1721 = vmatpush.bf16.msra.mxu0 %v1437
  %1722 = vmatpush.bf16.msra.mxu0 %v1436
  %1723 = vmatpush.bf16.msra.mxu0 %v1435
  %1724 = vmatpush.bf16.msra.mxu0 %v1434
  %1725 = vmatmul.bf16.gmra.mxu0 %v1104
  %v1726 = vpop.f32.mrf.mxu0
  %v1727 = vadd.f32 %v1574, %v1726
  %v1728 = vpop.f32.mrf.mxu0
  %v1729 = vadd.f32 %v1576, %v1728
  %1730 = vmatmul.bf16.gmra.mxu0 %v1108
  %v1731 = vpop.f32.mrf.mxu0
  %v1732 = vadd.f32 %v1579, %v1731
  %v1733 = vpop.f32.mrf.mxu0
  %v1734 = vadd.f32 %v1581, %v1733
  %1735 = vmatmul.bf16.gmra.mxu0 %v1112
  %v1736 = vpop.f32.mrf.mxu0
  %v1737 = vadd.f32 %v1584, %v1736
  %v1738 = vpop.f32.mrf.mxu0
  %v1739 = vadd.f32 %v1586, %v1738
  %1740 = vmatmul.bf16.gmra.mxu0 %v1116
  %v1741 = vpop.f32.mrf.mxu0
  %v1742 = vadd.f32 %v1589, %v1741
  %v1743 = vpop.f32.mrf.mxu0
  %v1744 = vadd.f32 %v1591, %v1743
  %1745 = vmatmul.bf16.gmra.mxu0 %v1120
  %v1746 = vpop.f32.mrf.mxu0
  %v1747 = vadd.f32 %v1594, %v1746
  %v1748 = vpop.f32.mrf.mxu0
  %v1749 = vadd.f32 %v1596, %v1748
  %1750 = vmatmul.bf16.gmra.mxu0 %v1124
  %v1751 = vpop.f32.mrf.mxu0
  %v1752 = vadd.f32 %v1599, %v1751
  %v1753 = vpop.f32.mrf.mxu0
  %v1754 = vadd.f32 %v1601, %v1753
  %1755 = vmatmul.bf16.gmra.mxu0 %v1128
  %v1756 = vpop.f32.mrf.mxu0
  %v1757 = vadd.f32 %v1604, %v1756
  %v1758 = vpop.f32.mrf.mxu0
  %v1759 = vadd.f32 %v1606, %v1758
  %1760 = vmatmul.bf16.gmra.mxu0 %v1132
  %v1761 = vpop.f32.mrf.mxu0
  %v1762 = vadd.f32 %v1609, %v1761
  %v1763 = vpop.f32.mrf.mxu0
  %v1764 = vadd.f32 %v1611, %v1763
  %1765 = vmatmul.bf16.gmra.mxu0 %v1136
  %v1766 = vpop.f32.mrf.mxu0
  %v1767 = vadd.f32 %v1614, %v1766
  %v1768 = vpop.f32.mrf.mxu0
  %v1769 = vadd.f32 %v1616, %v1768
  %1770 = vmatmul.bf16.gmra.mxu0 %v1140
  %v1771 = vpop.f32.mrf.mxu0
  %v1772 = vadd.f32 %v1619, %v1771
  %v1773 = vpop.f32.mrf.mxu0
  %v1774 = vadd.f32 %v1621, %v1773
  %1775 = vmatmul.bf16.gmra.mxu0 %v1144
  %v1776 = vpop.f32.mrf.mxu0
  %v1777 = vadd.f32 %v1624, %v1776
  %v1778 = vpop.f32.mrf.mxu0
  %v1779 = vadd.f32 %v1626, %v1778
  %1780 = vmatmul.bf16.gmra.mxu0 %v1148
  %v1781 = vpop.f32.mrf.mxu0
  %v1782 = vadd.f32 %v1629, %v1781
  %v1783 = vpop.f32.mrf.mxu0
  %v1784 = vadd.f32 %v1631, %v1783
  %1785 = vmatmul.bf16.gmra.mxu0 %v1152
  %v1786 = vpop.f32.mrf.mxu0
  %v1787 = vadd.f32 %v1634, %v1786
  %v1788 = vpop.f32.mrf.mxu0
  %v1789 = vadd.f32 %v1636, %v1788
  %1790 = vmatmul.bf16.gmra.mxu0 %v1156
  %v1791 = vpop.f32.mrf.mxu0
  %v1792 = vadd.f32 %v1639, %v1791
  %v1793 = vpop.f32.mrf.mxu0
  %v1794 = vadd.f32 %v1641, %v1793
  %1795 = vmatmul.bf16.gmra.mxu0 %v1160
  %v1796 = vpop.f32.mrf.mxu0
  %v1797 = vadd.f32 %v1644, %v1796
  %v1798 = vpop.f32.mrf.mxu0
  %v1799 = vadd.f32 %v1646, %v1798
  %1800 = vmatmul.bf16.gmra.mxu0 %v1164
  %v1801 = vpop.f32.mrf.mxu0
  %v1802 = vadd.f32 %v1649, %v1801
  %v1803 = vpop.f32.mrf.mxu0
  %v1804 = vadd.f32 %v1651, %v1803
  %1805 = vmatmul.bf16.gmra.mxu0 %v1168
  %v1806 = vpop.f32.mrf.mxu0
  %v1807 = vadd.f32 %v1654, %v1806
  %v1808 = vpop.f32.mrf.mxu0
  %v1809 = vadd.f32 %v1656, %v1808
  %1810 = vmatmul.bf16.gmra.mxu0 %v1172
  %v1811 = vpop.f32.mrf.mxu0
  %v1812 = vadd.f32 %v1659, %v1811
  %v1813 = vpop.f32.mrf.mxu0
  %v1814 = vadd.f32 %v1661, %v1813
  %1815 = vmatmul.bf16.gmra.mxu0 %v1176
  %v1816 = vpop.f32.mrf.mxu0
  %v1817 = vadd.f32 %v1664, %v1816
  %v1818 = vpop.f32.mrf.mxu0
  %v1819 = vadd.f32 %v1666, %v1818
  %1820 = vmatmul.bf16.gmra.mxu0 %v1180
  %v1821 = vpop.f32.mrf.mxu0
  %v1822 = vadd.f32 %v1669, %v1821
  %v1823 = vpop.f32.mrf.mxu0
  %v1824 = vadd.f32 %v1671, %v1823
  %1825 = vmatmul.bf16.gmra.mxu0 %v1184
  %v1826 = vpop.f32.mrf.mxu0
  %v1827 = vadd.f32 %v1674, %v1826
  %v1828 = vpop.f32.mrf.mxu0
  %v1829 = vadd.f32 %v1676, %v1828
  %1830 = vmatmul.bf16.gmra.mxu0 %v1188
  %v1831 = vpop.f32.mrf.mxu0
  %v1832 = vadd.f32 %v1679, %v1831
  %v1833 = vpop.f32.mrf.mxu0
  %v1834 = vadd.f32 %v1681, %v1833
  %1835 = vmatmul.bf16.gmra.mxu0 %v1192
  %v1836 = vpop.f32.mrf.mxu0
  %v1837 = vadd.f32 %v1684, %v1836
  %v1838 = vpop.f32.mrf.mxu0
  %v1839 = vadd.f32 %v1686, %v1838
  %1840 = vmatmul.bf16.gmra.mxu0 %v1196
  %v1841 = vpop.f32.mrf.mxu0
  %v1842 = vadd.f32 %v1689, %v1841
  %v1843 = vpop.f32.mrf.mxu0
  %v1844 = vadd.f32 %v1691, %v1843
  %1845 = vmatmul.bf16.gmra.mxu0 %v1200
  %v1846 = vpop.f32.mrf.mxu0
  %v1847 = vadd.f32 %v1694, %v1846
  %v1848 = vpop.f32.mrf.mxu0
  %v1849 = vadd.f32 %v1696, %v1848
  %1850 = vmatmul.bf16.gmra.mxu0 %v1204
  %v1851 = vpop.f32.mrf.mxu0
  %v1852 = vadd.f32 %v1699, %v1851
  %v1853 = vpop.f32.mrf.mxu0
  %v1854 = vadd.f32 %v1701, %v1853
  %1855 = vmatmul.bf16.gmra.mxu0 %v1208
  %v1856 = vpop.f32.mrf.mxu0
  %v1857 = vadd.f32 %v1704, %v1856
  %v1858 = vpop.f32.mrf.mxu0
  %v1859 = vadd.f32 %v1706, %v1858
  %1860 = vmatmul.bf16.gmra.mxu0 %v1212
  %v1861 = vpop.f32.mrf.mxu0
  %v1862 = vadd.f32 %v1709, %v1861
  %v1863 = vpop.f32.mrf.mxu0
  %v1864 = vadd.f32 %v1711, %v1863
  %1865 = vmatmul.bf16.gmra.mxu0 %v1216
  %v1866 = vpop.f32.mrf.mxu0
  %v1867 = vadd.f32 %v1714, %v1866
  %v1868 = vpop.f32.mrf.mxu0
  %1869 = vdwg.mxu0
  %1870 = vmatpush.bf16.msra.mxu0 %v1449
  %1871 = vmatpush.bf16.msra.mxu0 %v1448
  %1872 = vmatpush.bf16.msra.mxu0 %v1447
  %1873 = vmatpush.bf16.msra.mxu0 %v1446
  %1874 = vmatpush.bf16.msra.mxu0 %v1445
  %1875 = vmatpush.bf16.msra.mxu0 %v1444
  %1876 = vmatpush.bf16.msra.mxu0 %v1443
  %1877 = vmatpush.bf16.msra.mxu0 %v1442
  %1878 = vmatmul.bf16.gmra.mxu0 %v1105
  %v1879 = vpop.f32.mrf.mxu0
  %v1880 = vadd.f32 %v1727, %v1879
  %v1881 = vpop.f32.mrf.mxu0
  %v1882 = vadd.f32 %v1729, %v1881
  %1883 = vmatmul.bf16.gmra.mxu0 %v1109
  %v1884 = vpop.f32.mrf.mxu0
  %v1885 = vadd.f32 %v1732, %v1884
  %v1886 = vpop.f32.mrf.mxu0
  %v1887 = vadd.f32 %v1734, %v1886
  %1888 = vmatmul.bf16.gmra.mxu0 %v1113
  %v1889 = vpop.f32.mrf.mxu0
  %v1890 = vadd.f32 %v1737, %v1889
  %v1891 = vpop.f32.mrf.mxu0
  %v1892 = vadd.f32 %v1739, %v1891
  %1893 = vmatmul.bf16.gmra.mxu0 %v1117
  %v1894 = vpop.f32.mrf.mxu0
  %v1895 = vadd.f32 %v1742, %v1894
  %v1896 = vpop.f32.mrf.mxu0
  %v1897 = vadd.f32 %v1744, %v1896
  %1898 = vmatmul.bf16.gmra.mxu0 %v1121
  %v1899 = vpop.f32.mrf.mxu0
  %v1900 = vadd.f32 %v1747, %v1899
  %v1901 = vpop.f32.mrf.mxu0
  %v1902 = vadd.f32 %v1749, %v1901
  %1903 = vmatmul.bf16.gmra.mxu0 %v1125
  %v1904 = vpop.f32.mrf.mxu0
  %v1905 = vadd.f32 %v1752, %v1904
  %v1906 = vpop.f32.mrf.mxu0
  %v1907 = vadd.f32 %v1754, %v1906
  %1908 = vmatmul.bf16.gmra.mxu0 %v1129
  %v1909 = vpop.f32.mrf.mxu0
  %v1910 = vadd.f32 %v1757, %v1909
  %v1911 = vpop.f32.mrf.mxu0
  %v1912 = vadd.f32 %v1759, %v1911
  %1913 = vmatmul.bf16.gmra.mxu0 %v1133
  %v1914 = vpop.f32.mrf.mxu0
  %v1915 = vadd.f32 %v1762, %v1914
  %v1916 = vpop.f32.mrf.mxu0
  %v1917 = vadd.f32 %v1764, %v1916
  %1918 = vmatmul.bf16.gmra.mxu0 %v1137
  %v1919 = vpop.f32.mrf.mxu0
  %v1920 = vadd.f32 %v1767, %v1919
  %v1921 = vpop.f32.mrf.mxu0
  %v1922 = vadd.f32 %v1769, %v1921
  %1923 = vmatmul.bf16.gmra.mxu0 %v1141
  %v1924 = vpop.f32.mrf.mxu0
  %v1925 = vadd.f32 %v1772, %v1924
  %v1926 = vpop.f32.mrf.mxu0
  %v1927 = vadd.f32 %v1774, %v1926
  %1928 = vmatmul.bf16.gmra.mxu0 %v1145
  %v1929 = vpop.f32.mrf.mxu0
  %v1930 = vadd.f32 %v1777, %v1929
  %v1931 = vpop.f32.mrf.mxu0
  %v1932 = vadd.f32 %v1779, %v1931
  %1933 = vmatmul.bf16.gmra.mxu0 %v1149
  %v1934 = vpop.f32.mrf.mxu0
  %v1935 = vadd.f32 %v1782, %v1934
  %v1936 = vpop.f32.mrf.mxu0
  %v1937 = vadd.f32 %v1784, %v1936
  %1938 = vmatmul.bf16.gmra.mxu0 %v1153
  %v1939 = vpop.f32.mrf.mxu0
  %v1940 = vadd.f32 %v1787, %v1939
  %v1941 = vpop.f32.mrf.mxu0
  %v1942 = vadd.f32 %v1789, %v1941
  %1943 = vmatmul.bf16.gmra.mxu0 %v1157
  %v1944 = vpop.f32.mrf.mxu0
  %v1945 = vadd.f32 %v1792, %v1944
  %v1946 = vpop.f32.mrf.mxu0
  %v1947 = vadd.f32 %v1794, %v1946
  %1948 = vmatmul.bf16.gmra.mxu0 %v1161
  %v1949 = vpop.f32.mrf.mxu0
  %v1950 = vadd.f32 %v1797, %v1949
  %v1951 = vpop.f32.mrf.mxu0
  %v1952 = vadd.f32 %v1799, %v1951
  %1953 = vmatmul.bf16.gmra.mxu0 %v1165
  %v1954 = vpop.f32.mrf.mxu0
  %v1955 = vadd.f32 %v1802, %v1954
  %v1956 = vpop.f32.mrf.mxu0
  %v1957 = vadd.f32 %v1804, %v1956
  %1958 = vmatmul.bf16.gmra.mxu0 %v1169
  %v1959 = vpop.f32.mrf.mxu0
  %v1960 = vadd.f32 %v1807, %v1959
  %v1961 = vpop.f32.mrf.mxu0
  %v1962 = vadd.f32 %v1809, %v1961
  %1963 = vmatmul.bf16.gmra.mxu0 %v1173
  %v1964 = vpop.f32.mrf.mxu0
  %v1965 = vadd.f32 %v1812, %v1964
  %v1966 = vpop.f32.mrf.mxu0
  %v1967 = vadd.f32 %v1814, %v1966
  %1968 = vmatmul.bf16.gmra.mxu0 %v1177
  %v1969 = vpop.f32.mrf.mxu0
  %v1970 = vadd.f32 %v1817, %v1969
  %v1971 = vpop.f32.mrf.mxu0
  %v1972 = vadd.f32 %v1819, %v1971
  %1973 = vmatmul.bf16.gmra.mxu0 %v1181
  %v1974 = vpop.f32.mrf.mxu0
  %v1975 = vadd.f32 %v1822, %v1974
  %v1976 = vpop.f32.mrf.mxu0
  %v1977 = vadd.f32 %v1824, %v1976
  %1978 = vmatmul.bf16.gmra.mxu0 %v1185
  %v1979 = vpop.f32.mrf.mxu0
  %v1980 = vadd.f32 %v1827, %v1979
  %v1981 = vpop.f32.mrf.mxu0
  %v1982 = vadd.f32 %v1829, %v1981
  %1983 = vmatmul.bf16.gmra.mxu0 %v1189
  %v1984 = vpop.f32.mrf.mxu0
  %v1985 = vadd.f32 %v1832, %v1984
  %v1986 = vpop.f32.mrf.mxu0
  %v1987 = vadd.f32 %v1834, %v1986
  %1988 = vmatmul.bf16.gmra.mxu0 %v1193
  %v1989 = vpop.f32.mrf.mxu0
  %v1990 = vadd.f32 %v1837, %v1989
  %v1991 = vpop.f32.mrf.mxu0
  %v1992 = vadd.f32 %v1839, %v1991
  %1993 = vmatmul.bf16.gmra.mxu0 %v1197
  %v1994 = vpop.f32.mrf.mxu0
  %v1995 = vadd.f32 %v1842, %v1994
  %v1996 = vpop.f32.mrf.mxu0
  %v1997 = vadd.f32 %v1844, %v1996
  %1998 = vmatmul.bf16.gmra.mxu0 %v1201
  %v1999 = vpop.f32.mrf.mxu0
  %v2000 = vadd.f32 %v1847, %v1999
  %v2001 = vpop.f32.mrf.mxu0
  %v2002 = vadd.f32 %v1849, %v2001
  %2003 = vmatmul.bf16.gmra.mxu0 %v1205
  %v2004 = vpop.f32.mrf.mxu0
  %v2005 = vadd.f32 %v1852, %v2004
  %v2006 = vpop.f32.mrf.mxu0
  %v2007 = vadd.f32 %v1854, %v2006
  %2008 = vmatmul.bf16.gmra.mxu0 %v1209
  %v2009 = vpop.f32.mrf.mxu0
  %v2010 = vadd.f32 %v1857, %v2009
  %v2011 = vpop.f32.mrf.mxu0
  %v2012 = vadd.f32 %v1859, %v2011
  %2013 = vmatmul.bf16.gmra.mxu0 %v1213
  %v2014 = vpop.f32.mrf.mxu0
  %v2015 = vadd.f32 %v1862, %v2014
  %v2016 = vpop.f32.mrf.mxu0
  %v2017 = vadd.f32 %v1864, %v2016
  %2018 = vmatmul.bf16.gmra.mxu0 %v1217
  %v2019 = vpop.f32.mrf.mxu0
  %v2020 = vadd.f32 %v1867, %v2019
  %v2021 = vpop.f32.mrf.mxu0
  %2022 = vdwg.mxu0
  %2023 = vmatpush.bf16.msra.mxu0 0
  %2024 = vmatpush.bf16.msra.mxu0 0
  %2025 = vmatpush.bf16.msra.mxu0 0
  %2026 = vmatpush.bf16.msra.mxu0 0
  %2027 = vmatpush.bf16.msra.mxu0 0
  %2028 = vmatpush.bf16.msra.mxu0 0
  %2029 = vmatpush.bf16.msra.mxu0 0
  %2030 = vmatpush.bf16.msra.mxu0 %v1450
  %2031 = vmatmul.bf16.gmra.mxu0 %v1478
  %v2032 = vpop.f32.mrf.mxu0
  %v2033 = vadd.f32 %v1880, %v2032
  %v2034 = vpop.f32.mrf.mxu0
  %v2035 = vadd.f32 %v1882, %v2034
  %2036 = vmatmul.bf16.gmra.mxu0 %v1481
  %v2037 = vpop.f32.mrf.mxu0
  %v2038 = vadd.f32 %v1885, %v2037
  %v2039 = vpop.f32.mrf.mxu0
  %v2040 = vadd.f32 %v1887, %v2039
  %2041 = vmatmul.bf16.gmra.mxu0 %v1484
  %v2042 = vpop.f32.mrf.mxu0
  %v2043 = vadd.f32 %v1890, %v2042
  %v2044 = vpop.f32.mrf.mxu0
  %v2045 = vadd.f32 %v1892, %v2044
  %2046 = vmatmul.bf16.gmra.mxu0 %v1487
  %v2047 = vpop.f32.mrf.mxu0
  %v2048 = vadd.f32 %v1895, %v2047
  %v2049 = vpop.f32.mrf.mxu0
  %v2050 = vadd.f32 %v1897, %v2049
  %2051 = vmatmul.bf16.gmra.mxu0 %v1490
  %v2052 = vpop.f32.mrf.mxu0
  %v2053 = vadd.f32 %v1900, %v2052
  %v2054 = vpop.f32.mrf.mxu0
  %v2055 = vadd.f32 %v1902, %v2054
  %2056 = vmatmul.bf16.gmra.mxu0 %v1493
  %v2057 = vpop.f32.mrf.mxu0
  %v2058 = vadd.f32 %v1905, %v2057
  %v2059 = vpop.f32.mrf.mxu0
  %v2060 = vadd.f32 %v1907, %v2059
  %2061 = vmatmul.bf16.gmra.mxu0 %v1496
  %v2062 = vpop.f32.mrf.mxu0
  %v2063 = vadd.f32 %v1910, %v2062
  %v2064 = vpop.f32.mrf.mxu0
  %v2065 = vadd.f32 %v1912, %v2064
  %2066 = vmatmul.bf16.gmra.mxu0 %v1499
  %v2067 = vpop.f32.mrf.mxu0
  %v2068 = vadd.f32 %v1915, %v2067
  %v2069 = vpop.f32.mrf.mxu0
  %v2070 = vadd.f32 %v1917, %v2069
  %2071 = vmatmul.bf16.gmra.mxu0 %v1502
  %v2072 = vpop.f32.mrf.mxu0
  %v2073 = vadd.f32 %v1920, %v2072
  %v2074 = vpop.f32.mrf.mxu0
  %v2075 = vadd.f32 %v1922, %v2074
  %2076 = vmatmul.bf16.gmra.mxu0 %v1505
  %v2077 = vpop.f32.mrf.mxu0
  %v2078 = vadd.f32 %v1925, %v2077
  %v2079 = vpop.f32.mrf.mxu0
  %v2080 = vadd.f32 %v1927, %v2079
  %2081 = vmatmul.bf16.gmra.mxu0 %v1508
  %v2082 = vpop.f32.mrf.mxu0
  %v2083 = vadd.f32 %v1930, %v2082
  %v2084 = vpop.f32.mrf.mxu0
  %v2085 = vadd.f32 %v1932, %v2084
  %2086 = vmatmul.bf16.gmra.mxu0 %v1511
  %v2087 = vpop.f32.mrf.mxu0
  %v2088 = vadd.f32 %v1935, %v2087
  %v2089 = vpop.f32.mrf.mxu0
  %v2090 = vadd.f32 %v1937, %v2089
  %2091 = vmatmul.bf16.gmra.mxu0 %v1514
  %v2092 = vpop.f32.mrf.mxu0
  %v2093 = vadd.f32 %v1940, %v2092
  %v2094 = vpop.f32.mrf.mxu0
  %v2095 = vadd.f32 %v1942, %v2094
  %2096 = vmatmul.bf16.gmra.mxu0 %v1517
  %v2097 = vpop.f32.mrf.mxu0
  %v2098 = vadd.f32 %v1945, %v2097
  %v2099 = vpop.f32.mrf.mxu0
  %v2100 = vadd.f32 %v1947, %v2099
  %2101 = vmatmul.bf16.gmra.mxu0 %v1520
  %v2102 = vpop.f32.mrf.mxu0
  %v2103 = vadd.f32 %v1950, %v2102
  %v2104 = vpop.f32.mrf.mxu0
  %v2105 = vadd.f32 %v1952, %v2104
  %2106 = vmatmul.bf16.gmra.mxu0 %v1523
  %v2107 = vpop.f32.mrf.mxu0
  %v2108 = vadd.f32 %v1955, %v2107
  %v2109 = vpop.f32.mrf.mxu0
  %v2110 = vadd.f32 %v1957, %v2109
  %2111 = vmatmul.bf16.gmra.mxu0 %v1526
  %v2112 = vpop.f32.mrf.mxu0
  %v2113 = vadd.f32 %v1960, %v2112
  %v2114 = vpop.f32.mrf.mxu0
  %v2115 = vadd.f32 %v1962, %v2114
  %2116 = vmatmul.bf16.gmra.mxu0 %v1529
  %v2117 = vpop.f32.mrf.mxu0
  %v2118 = vadd.f32 %v1965, %v2117
  %v2119 = vpop.f32.mrf.mxu0
  %v2120 = vadd.f32 %v1967, %v2119
  %2121 = vmatmul.bf16.gmra.mxu0 %v1532
  %v2122 = vpop.f32.mrf.mxu0
  %v2123 = vadd.f32 %v1970, %v2122
  %v2124 = vpop.f32.mrf.mxu0
  %v2125 = vadd.f32 %v1972, %v2124
  %2126 = vmatmul.bf16.gmra.mxu0 %v1535
  %v2127 = vpop.f32.mrf.mxu0
  %v2128 = vadd.f32 %v1975, %v2127
  %v2129 = vpop.f32.mrf.mxu0
  %v2130 = vadd.f32 %v1977, %v2129
  %2131 = vmatmul.bf16.gmra.mxu0 %v1538
  %v2132 = vpop.f32.mrf.mxu0
  %v2133 = vadd.f32 %v1980, %v2132
  %v2134 = vpop.f32.mrf.mxu0
  %v2135 = vadd.f32 %v1982, %v2134
  %2136 = vmatmul.bf16.gmra.mxu0 %v1541
  %v2137 = vpop.f32.mrf.mxu0
  %v2138 = vadd.f32 %v1985, %v2137
  %v2139 = vpop.f32.mrf.mxu0
  %v2140 = vadd.f32 %v1987, %v2139
  %2141 = vmatmul.bf16.gmra.mxu0 %v1544
  %v2142 = vpop.f32.mrf.mxu0
  %v2143 = vadd.f32 %v1990, %v2142
  %v2144 = vpop.f32.mrf.mxu0
  %v2145 = vadd.f32 %v1992, %v2144
  %2146 = vmatmul.bf16.gmra.mxu0 %v1547
  %v2147 = vpop.f32.mrf.mxu0
  %v2148 = vadd.f32 %v1995, %v2147
  %v2149 = vpop.f32.mrf.mxu0
  %v2150 = vadd.f32 %v1997, %v2149
  %2151 = vmatmul.bf16.gmra.mxu0 %v1550
  %v2152 = vpop.f32.mrf.mxu0
  %v2153 = vadd.f32 %v2000, %v2152
  %v2154 = vpop.f32.mrf.mxu0
  %v2155 = vadd.f32 %v2002, %v2154
  %2156 = vmatmul.bf16.gmra.mxu0 %v1553
  %v2157 = vpop.f32.mrf.mxu0
  %v2158 = vadd.f32 %v2005, %v2157
  %v2159 = vpop.f32.mrf.mxu0
  %v2160 = vadd.f32 %v2007, %v2159
  %2161 = vmatmul.bf16.gmra.mxu0 %v1556
  %v2162 = vpop.f32.mrf.mxu0
  %v2163 = vadd.f32 %v2010, %v2162
  %v2164 = vpop.f32.mrf.mxu0
  %v2165 = vadd.f32 %v2012, %v2164
  %2166 = vmatmul.bf16.gmra.mxu0 %v1559
  %v2167 = vpop.f32.mrf.mxu0
  %v2168 = vadd.f32 %v2015, %v2167
  %v2169 = vpop.f32.mrf.mxu0
  %v2170 = vadd.f32 %v2017, %v2169
  %2171 = vmatmul.bf16.gmra.mxu0 %v1562
  %v2172 = vpop.f32.mrf.mxu0
  %v2173 = vadd.f32 %v2020, %v2172
  %v2174 = vpop.f32.mrf.mxu0
  %2175 = vdwg.mxu0
  %v2176 = vadd.f32 %v1219, %v2033
  %v2177 = vadd.f32 %v1220, %v2035
  %v2178 = vadd.f32 %v1221, %v2038
  %v2179 = vadd.f32 %v1222, %v2040
  %v2180 = vadd.f32 %v1223, %v2043
  %v2181 = vadd.f32 %v1224, %v2045
  %v2182 = vadd.f32 %v1225, %v2048
  %v2183 = vadd.f32 %v1226, %v2050
  %v2184 = vadd.f32 %v1227, %v2053
  %v2185 = vadd.f32 %v1228, %v2055
  %v2186 = vadd.f32 %v1229, %v2058
  %v2187 = vadd.f32 %v1230, %v2060
  %v2188 = vadd.f32 %v1231, %v2063
  %v2189 = vadd.f32 %v1232, %v2065
  %v2190 = vadd.f32 %v1233, %v2068
  %v2191 = vadd.f32 %v1234, %v2070
  %v2192 = vadd.f32 %v1235, %v2073
  %v2193 = vadd.f32 %v1236, %v2075
  %v2194 = vadd.f32 %v1237, %v2078
  %v2195 = vadd.f32 %v1238, %v2080
  %v2196 = vadd.f32 %v1239, %v2083
  %v2197 = vadd.f32 %v1240, %v2085
  %v2198 = vadd.f32 %v1241, %v2088
  %v2199 = vadd.f32 %v1242, %v2090
  %v2200 = vadd.f32 %v1243, %v2093
  %v2201 = vadd.f32 %v1244, %v2095
  %v2202 = vadd.f32 %v1245, %v2098
  %v2203 = vadd.f32 %v1246, %v2100
  %v2204 = vadd.f32 %v1247, %v2103
  %v2205 = vadd.f32 %v1248, %v2105
  %v2206 = vadd.f32 %v1249, %v2108
  %v2207 = vadd.f32 %v1250, %v2110
  %v2208 = vadd.f32 %v1251, %v2113
  %v2209 = vadd.f32 %v1252, %v2115
  %v2210 = vadd.f32 %v1253, %v2118
  %v2211 = vadd.f32 %v1254, %v2120
  %v2212 = vadd.f32 %v1255, %v2123
  %v2213 = vadd.f32 %v1256, %v2125
  %v2214 = vadd.f32 %v1257, %v2128
  %v2215 = vadd.f32 %v1258, %v2130
  %v2216 = vadd.f32 %v1259, %v2133
  %v2217 = vadd.f32 %v1260, %v2135
  %v2218 = vadd.f32 %v1261, %v2138
  %v2219 = vadd.f32 %v1262, %v2140
  %v2220 = vadd.f32 %v1263, %v2143
  %v2221 = vadd.f32 %v1264, %v2145
  %v2222 = vadd.f32 %v1265, %v2148
  %v2223 = vadd.f32 %v1266, %v2150
  %v2224 = vadd.f32 %v1267, %v2153
  %v2225 = vadd.f32 %v1268, %v2155
  %v2226 = vadd.f32 %v1269, %v2158
  %v2227 = vadd.f32 %v1270, %v2160
  %v2228 = vadd.f32 %v1271, %v2163
  %v2229 = vadd.f32 %v1272, %v2165
  %v2230 = vadd.f32 %v1273, %v2168
  %v2231 = vadd.f32 %v1274, %v2170
  %v2232 = vadd.f32 %v1275, %v2173
  %vm2233 = vcmask 261120
  %2234 = vst.msk [vmem:[#allocation2] sm:$0xff] %vm2233, %v2176
  %2235 = vst.msk [vmem:[#allocation2 + $0x8] sm:$0xff] %vm2233, %v2177
  %2236 = vst.msk [vmem:[#allocation2 + $0x10] sm:$0xff] %vm2233, %v2178
  %2237 = vst.msk [vmem:[#allocation2 + $0x18] sm:$0xff] %vm2233, %v2179
  %2238 = vst.msk [vmem:[#allocation2 + $0x20] sm:$0xff] %vm2233, %v2180
  %2239 = vst.msk [vmem:[#allocation2 + $0x28] sm:$0xff] %vm2233, %v2181
  %2240 = vst.msk [vmem:[#allocation2 + $0x30] sm:$0xff] %vm2233, %v2182
  %2241 = vst.msk [vmem:[#allocation2 + $0x38] sm:$0xff] %vm2233, %v2183
  %2242 = vst.msk [vmem:[#allocation2 + $0x40] sm:$0xff] %vm2233, %v2184
  %2243 = vst.msk [vmem:[#allocation2 + $0x48] sm:$0xff] %vm2233, %v2185
  %2244 = vst.msk [vmem:[#allocation2 + $0x50] sm:$0xff] %vm2233, %v2186
  %2245 = vst.msk [vmem:[#allocation2 + $0x58] sm:$0xff] %vm2233, %v2187
  %2246 = vst.msk [vmem:[#allocation2 + $0x60] sm:$0xff] %vm2233, %v2188
  %2247 = vst.msk [vmem:[#allocation2 + $0x68] sm:$0xff] %vm2233, %v2189
  %2248 = vst.msk [vmem:[#allocation2 + $0x70] sm:$0xff] %vm2233, %v2190
  %2249 = vst.msk [vmem:[#allocation2 + $0x78] sm:$0xff] %vm2233, %v2191
  %2250 = vst.msk [vmem:[#allocation2 + $0x80] sm:$0xff] %vm2233, %v2192
  %2251 = vst.msk [vmem:[#allocation2 + $0x88] sm:$0xff] %vm2233, %v2193
  %2252 = vst.msk [vmem:[#allocation2 + $0x90] sm:$0xff] %vm2233, %v2194
  %2253 = vst.msk [vmem:[#allocation2 + $0x98] sm:$0xff] %vm2233, %v2195
  %2254 = vst.msk [vmem:[#allocation2 + $0xa0] sm:$0xff] %vm2233, %v2196
  %2255 = vst.msk [vmem:[#allocation2 + $0xa8] sm:$0xff] %vm2233, %v2197
  %2256 = vst.msk [vmem:[#allocation2 + $0xb0] sm:$0xff] %vm2233, %v2198
  %2257 = vst.msk [vmem:[#allocation2 + $0xb8] sm:$0xff] %vm2233, %v2199
  %2258 = vst.msk [vmem:[#allocation2 + $0xc0] sm:$0xff] %vm2233, %v2200
  %2259 = vst.msk [vmem:[#allocation2 + $0xc8] sm:$0xff] %vm2233, %v2201
  %2260 = vst.msk [vmem:[#allocation2 + $0xd0] sm:$0xff] %vm2233, %v2202
  %2261 = vst.msk [vmem:[#allocation2 + $0xd8] sm:$0xff] %vm2233, %v2203
  %2262 = vst.msk [vmem:[#allocation2 + $0xe0] sm:$0xff] %vm2233, %v2204
  %2263 = vst.msk [vmem:[#allocation2 + $0xe8] sm:$0xff] %vm2233, %v2205
  %2264 = vst.msk [vmem:[#allocation2 + $0xf0] sm:$0xff] %vm2233, %v2206
  %2265 = vst.msk [vmem:[#allocation2 + $0xf8] sm:$0xff] %vm2233, %v2207
  %2266 = vst.msk [vmem:[#allocation2 + $0x100] sm:$0xff] %vm2233, %v2208
  %2267 = vst.msk [vmem:[#allocation2 + $0x108] sm:$0xff] %vm2233, %v2209
  %2268 = vst.msk [vmem:[#allocation2 + $0x110] sm:$0xff] %vm2233, %v2210
  %2269 = vst.msk [vmem:[#allocation2 + $0x118] sm:$0xff] %vm2233, %v2211
  %2270 = vst.msk [vmem:[#allocation2 + $0x120] sm:$0xff] %vm2233, %v2212
  %2271 = vst.msk [vmem:[#allocation2 + $0x128] sm:$0xff] %vm2233, %v2213
  %2272 = vst.msk [vmem:[#allocation2 + $0x130] sm:$0xff] %vm2233, %v2214
  %2273 = vst.msk [vmem:[#allocation2 + $0x138] sm:$0xff] %vm2233, %v2215
  %2274 = vst.msk [vmem:[#allocation2 + $0x140] sm:$0xff] %vm2233, %v2216
  %2275 = vst.msk [vmem:[#allocation2 + $0x148] sm:$0xff] %vm2233, %v2217
  %2276 = vst.msk [vmem:[#allocation2 + $0x150] sm:$0xff] %vm2233, %v2218
  %2277 = vst.msk [vmem:[#allocation2 + $0x158] sm:$0xff] %vm2233, %v2219
  %2278 = vst.msk [vmem:[#allocation2 + $0x160] sm:$0xff] %vm2233, %v2220
  %2279 = vst.msk [vmem:[#allocation2 + $0x168] sm:$0xff] %vm2233, %v2221
  %2280 = vst.msk [vmem:[#allocation2 + $0x170] sm:$0xff] %vm2233, %v2222
  %2281 = vst.msk [vmem:[#allocation2 + $0x178] sm:$0xff] %vm2233, %v2223
  %2282 = vst.msk [vmem:[#allocation2 + $0x180] sm:$0xff] %vm2233, %v2224
  %2283 = vst.msk [vmem:[#allocation2 + $0x188] sm:$0xff] %vm2233, %v2225
  %2284 = vst.msk [vmem:[#allocation2 + $0x190] sm:$0xff] %vm2233, %v2226
  %2285 = vst.msk [vmem:[#allocation2 + $0x198] sm:$0xff] %vm2233, %v2227
  %2286 = vst.msk [vmem:[#allocation2 + $0x1a0] sm:$0xff] %vm2233, %v2228
  %2287 = vst.msk [vmem:[#allocation2 + $0x1a8] sm:$0xff] %vm2233, %v2229
  %2288 = vst.msk [vmem:[#allocation2 + $0x1b0] sm:$0xff] %vm2233, %v2230
  %2289 = vst.msk [vmem:[#allocation2 + $0x1b8] sm:$0xff] %vm2233, %v2231
  %2290 = vst.msk [vmem:[#allocation2 + $0x1c0] sm:$0xff] %vm2233, %v2232
  // Predicated region
  $region18: #{encoder_conv_base_forward.5} parent=0 // pred_check
    %p2291 = pneg %p15
  $region19: #{encoder_conv_base_forward.5} parent=0 // pred_check_branch
    %2293 = sbr.rel (%p2291) target = $region21
  $region20: #{encoder_conv_base_forward.5} parent=0 // pred_region
    %v2294 = vld [vmem:[#allocation2] sm:$0xff]
    %v2295 = vld [vmem:[#allocation2 + $0x8] sm:$0xff]
    %v2296 = vld [vmem:[#allocation2 + $0x10] sm:$0xff]
    %v2297 = vld [vmem:[#allocation2 + $0x18] sm:$0xff]
    %v2298 = vld [vmem:[#allocation2 + $0x20] sm:$0xff]
    %v2299 = vld [vmem:[#allocation2 + $0x28] sm:$0xff]
    %v2300 = vld [vmem:[#allocation2 + $0x30] sm:$0xff]
    %v2301 = vld [vmem:[#allocation2 + $0x38] sm:$0xff]
    %v2302 = vld [vmem:[#allocation2 + $0x40] sm:$0xff]
    %v2303 = vld [vmem:[#allocation2 + $0x48] sm:$0xff]
    %v2304 = vld [vmem:[#allocation2 + $0x50] sm:$0xff]
    %v2305 = vld [vmem:[#allocation2 + $0x58] sm:$0xff]
    %v2306 = vld [vmem:[#allocation2 + $0x60] sm:$0xff]
    %v2307 = vld [vmem:[#allocation2 + $0x68] sm:$0xff]
    %v2308 = vld [vmem:[#allocation2 + $0x70] sm:$0xff]
    %v2309 = vld [vmem:[#allocation2 + $0x78] sm:$0xff]
    %v2310 = vld [vmem:[#allocation2 + $0x80] sm:$0xff]
    %v2311 = vld [vmem:[#allocation2 + $0x88] sm:$0xff]
    %v2312 = vld [vmem:[#allocation2 + $0x90] sm:$0xff]
    %v2313 = vld [vmem:[#allocation2 + $0x98] sm:$0xff]
    %v2314 = vld [vmem:[#allocation2 + $0xa0] sm:$0xff]
    %v2315 = vld [vmem:[#allocation2 + $0xa8] sm:$0xff]
    %v2316 = vld [vmem:[#allocation2 + $0xb0] sm:$0xff]
    %v2317 = vld [vmem:[#allocation2 + $0xb8] sm:$0xff]
    %v2318 = vld [vmem:[#allocation2 + $0xc0] sm:$0xff]
    %v2319 = vld [vmem:[#allocation2 + $0xc8] sm:$0xff]
    %v2320 = vld [vmem:[#allocation2 + $0xd0] sm:$0xff]
    %v2321 = vld [vmem:[#allocation2 + $0xd8] sm:$0xff]
    %v2322 = vld [vmem:[#allocation2 + $0xe0] sm:$0xff]
    %v2323 = vld [vmem:[#allocation2 + $0xe8] sm:$0xff]
    %v2324 = vld [vmem:[#allocation2 + $0xf0] sm:$0xff]
    %v2325 = vld [vmem:[#allocation2 + $0xf8] sm:$0xff]
    %v2326 = vld [vmem:[#allocation2 + $0x100] sm:$0xff]
    %v2327 = vld [vmem:[#allocation2 + $0x108] sm:$0xff]
    %v2328 = vld [vmem:[#allocation2 + $0x110] sm:$0xff]
    %v2329 = vld [vmem:[#allocation2 + $0x118] sm:$0xff]
    %v2330 = vld [vmem:[#allocation2 + $0x120] sm:$0xff]
    %v2331 = vld [vmem:[#allocation2 + $0x128] sm:$0xff]
    %v2332 = vld [vmem:[#allocation2 + $0x130] sm:$0xff]
    %v2333 = vld [vmem:[#allocation2 + $0x138] sm:$0xff]
    %v2334 = vld [vmem:[#allocation2 + $0x140] sm:$0xff]
    %v2335 = vld [vmem:[#allocation2 + $0x148] sm:$0xff]
    %v2336 = vld [vmem:[#allocation2 + $0x150] sm:$0xff]
    %v2337 = vld [vmem:[#allocation2 + $0x158] sm:$0xff]
    %v2338 = vld [vmem:[#allocation2 + $0x160] sm:$0xff]
    %v2339 = vld [vmem:[#allocation2 + $0x168] sm:$0xff]
    %v2340 = vld [vmem:[#allocation2 + $0x170] sm:$0xff]
    %v2341 = vld [vmem:[#allocation2 + $0x178] sm:$0xff]
    %v2342 = vld [vmem:[#allocation2 + $0x180] sm:$0xff]
    %v2343 = vld [vmem:[#allocation2 + $0x188] sm:$0xff]
    %v2344 = vld [vmem:[#allocation2 + $0x190] sm:$0xff]
    %v2345 = vld [vmem:[#allocation2 + $0x198] sm:$0xff]
    %v2346 = vld [vmem:[#allocation2 + $0x1a0] sm:$0xff]
    %v2347 = vld [vmem:[#allocation2 + $0x1a8] sm:$0xff]
    %v2348 = vld [vmem:[#allocation2 + $0x1b0] sm:$0xff]
    %v2349 = vld [vmem:[#allocation2 + $0x1b8] sm:$0xff]
    %v2350 = vld [vmem:[#allocation2 + $0x1c0] sm:$0xff]
    %v2351 = vld [vmem:[%s2] sm:$0x1]
    %v2353 = vperm.slane %v2351, 0
    %v2355 = vadd.f32 %v2294, %v2353
    %v2356 = vadd.f32 %v2295, %v2353
    %v2357 = vadd.f32 %v2296, %v2353
    %v2358 = vadd.f32 %v2297, %v2353
    %v2359 = vadd.f32 %v2298, %v2353
    %v2360 = vadd.f32 %v2299, %v2353
    %v2361 = vadd.f32 %v2300, %v2353
    %v2362 = vadd.f32 %v2301, %v2353
    %v2363 = vadd.f32 %v2302, %v2353
    %v2364 = vadd.f32 %v2303, %v2353
    %v2365 = vadd.f32 %v2304, %v2353
    %v2366 = vadd.f32 %v2305, %v2353
    %v2367 = vadd.f32 %v2306, %v2353
    %v2368 = vadd.f32 %v2307, %v2353
    %v2369 = vadd.f32 %v2308, %v2353
    %v2370 = vadd.f32 %v2309, %v2353
    %v2371 = vadd.f32 %v2310, %v2353
    %v2372 = vadd.f32 %v2311, %v2353
    %v2373 = vadd.f32 %v2312, %v2353
    %v2374 = vadd.f32 %v2313, %v2353
    %v2375 = vadd.f32 %v2314, %v2353
    %v2376 = vadd.f32 %v2315, %v2353
    %v2377 = vadd.f32 %v2316, %v2353
    %v2378 = vadd.f32 %v2317, %v2353
    %v2379 = vadd.f32 %v2318, %v2353
    %v2380 = vadd.f32 %v2319, %v2353
    %v2381 = vadd.f32 %v2320, %v2353
    %v2382 = vadd.f32 %v2321, %v2353
    %v2383 = vadd.f32 %v2322, %v2353
    %v2384 = vadd.f32 %v2323, %v2353
    %v2385 = vadd.f32 %v2324, %v2353
    %v2386 = vadd.f32 %v2325, %v2353
    %v2387 = vadd.f32 %v2326, %v2353
    %v2388 = vadd.f32 %v2327, %v2353
    %v2389 = vadd.f32 %v2328, %v2353
    %v2390 = vadd.f32 %v2329, %v2353
    %v2391 = vadd.f32 %v2330, %v2353
    %v2392 = vadd.f32 %v2331, %v2353
    %v2393 = vadd.f32 %v2332, %v2353
    %v2394 = vadd.f32 %v2333, %v2353
    %v2395 = vadd.f32 %v2334, %v2353
    %v2396 = vadd.f32 %v2335, %v2353
    %v2397 = vadd.f32 %v2336, %v2353
    %v2398 = vadd.f32 %v2337, %v2353
    %v2399 = vadd.f32 %v2338, %v2353
    %v2400 = vadd.f32 %v2339, %v2353
    %v2401 = vadd.f32 %v2340, %v2353
    %v2402 = vadd.f32 %v2341, %v2353
    %v2403 = vadd.f32 %v2342, %v2353
    %v2404 = vadd.f32 %v2343, %v2353
    %v2405 = vadd.f32 %v2344, %v2353
    %v2406 = vadd.f32 %v2345, %v2353
    %v2407 = vadd.f32 %v2346, %v2353
    %v2408 = vadd.f32 %v2347, %v2353
    %v2409 = vadd.f32 %v2348, %v2353
    %v2410 = vadd.f32 %v2349, %v2353
    %v2411 = vadd.f32 %v2350, %v2353
    %2412 = vst.msk [vmem:[%s3] sm:$0xff] %vm2233, %v2355
    %2413 = vst.msk [vmem:[%s3 + $0x8] sm:$0xff] %vm2233, %v2356
    %2414 = vst.msk [vmem:[%s3 + $0x10] sm:$0xff] %vm2233, %v2357
    %2415 = vst.msk [vmem:[%s3 + $0x18] sm:$0xff] %vm2233, %v2358
    %2416 = vst.msk [vmem:[%s3 + $0x20] sm:$0xff] %vm2233, %v2359
    %2417 = vst.msk [vmem:[%s3 + $0x28] sm:$0xff] %vm2233, %v2360
    %2418 = vst.msk [vmem:[%s3 + $0x30] sm:$0xff] %vm2233, %v2361
    %2419 = vst.msk [vmem:[%s3 + $0x38] sm:$0xff] %vm2233, %v2362
    %2420 = vst.msk [vmem:[%s3 + $0x40] sm:$0xff] %vm2233, %v2363
    %2421 = vst.msk [vmem:[%s3 + $0x48] sm:$0xff] %vm2233, %v2364
    %2422 = vst.msk [vmem:[%s3 + $0x50] sm:$0xff] %vm2233, %v2365
    %2423 = vst.msk [vmem:[%s3 + $0x58] sm:$0xff] %vm2233, %v2366
    %2424 = vst.msk [vmem:[%s3 + $0x60] sm:$0xff] %vm2233, %v2367
    %2425 = vst.msk [vmem:[%s3 + $0x68] sm:$0xff] %vm2233, %v2368
    %2426 = vst.msk [vmem:[%s3 + $0x70] sm:$0xff] %vm2233, %v2369
    %2427 = vst.msk [vmem:[%s3 + $0x78] sm:$0xff] %vm2233, %v2370
    %2428 = vst.msk [vmem:[%s3 + $0x80] sm:$0xff] %vm2233, %v2371
    %2429 = vst.msk [vmem:[%s3 + $0x88] sm:$0xff] %vm2233, %v2372
    %2430 = vst.msk [vmem:[%s3 + $0x90] sm:$0xff] %vm2233, %v2373
    %2431 = vst.msk [vmem:[%s3 + $0x98] sm:$0xff] %vm2233, %v2374
    %2432 = vst.msk [vmem:[%s3 + $0xa0] sm:$0xff] %vm2233, %v2375
    %2433 = vst.msk [vmem:[%s3 + $0xa8] sm:$0xff] %vm2233, %v2376
    %2434 = vst.msk [vmem:[%s3 + $0xb0] sm:$0xff] %vm2233, %v2377
    %2435 = vst.msk [vmem:[%s3 + $0xb8] sm:$0xff] %vm2233, %v2378
    %2436 = vst.msk [vmem:[%s3 + $0xc0] sm:$0xff] %vm2233, %v2379
    %2437 = vst.msk [vmem:[%s3 + $0xc8] sm:$0xff] %vm2233, %v2380
    %2438 = vst.msk [vmem:[%s3 + $0xd0] sm:$0xff] %vm2233, %v2381
    %2439 = vst.msk [vmem:[%s3 + $0xd8] sm:$0xff] %vm2233, %v2382
    %2440 = vst.msk [vmem:[%s3 + $0xe0] sm:$0xff] %vm2233, %v2383
    %2441 = vst.msk [vmem:[%s3 + $0xe8] sm:$0xff] %vm2233, %v2384
    %2442 = vst.msk [vmem:[%s3 + $0xf0] sm:$0xff] %vm2233, %v2385
    %2443 = vst.msk [vmem:[%s3 + $0xf8] sm:$0xff] %vm2233, %v2386
    %2444 = vst.msk [vmem:[%s3 + $0x100] sm:$0xff] %vm2233, %v2387
    %2445 = vst.msk [vmem:[%s3 + $0x108] sm:$0xff] %vm2233, %v2388
    %2446 = vst.msk [vmem:[%s3 + $0x110] sm:$0xff] %vm2233, %v2389
    %2447 = vst.msk [vmem:[%s3 + $0x118] sm:$0xff] %vm2233, %v2390
    %2448 = vst.msk [vmem:[%s3 + $0x120] sm:$0xff] %vm2233, %v2391
    %2449 = vst.msk [vmem:[%s3 + $0x128] sm:$0xff] %vm2233, %v2392
    %2450 = vst.msk [vmem:[%s3 + $0x130] sm:$0xff] %vm2233, %v2393
    %2451 = vst.msk [vmem:[%s3 + $0x138] sm:$0xff] %vm2233, %v2394
    %2452 = vst.msk [vmem:[%s3 + $0x140] sm:$0xff] %vm2233, %v2395
    %2453 = vst.msk [vmem:[%s3 + $0x148] sm:$0xff] %vm2233, %v2396
    %2454 = vst.msk [vmem:[%s3 + $0x150] sm:$0xff] %vm2233, %v2397
    %2455 = vst.msk [vmem:[%s3 + $0x158] sm:$0xff] %vm2233, %v2398
    %2456 = vst.msk [vmem:[%s3 + $0x160] sm:$0xff] %vm2233, %v2399
    %2457 = vst.msk [vmem:[%s3 + $0x168] sm:$0xff] %vm2233, %v2400
    %2458 = vst.msk [vmem:[%s3 + $0x170] sm:$0xff] %vm2233, %v2401
    %2459 = vst.msk [vmem:[%s3 + $0x178] sm:$0xff] %vm2233, %v2402
    %2460 = vst.msk [vmem:[%s3 + $0x180] sm:$0xff] %vm2233, %v2403
    %2461 = vst.msk [vmem:[%s3 + $0x188] sm:$0xff] %vm2233, %v2404
    %2462 = vst.msk [vmem:[%s3 + $0x190] sm:$0xff] %vm2233, %v2405
    %2463 = vst.msk [vmem:[%s3 + $0x198] sm:$0xff] %vm2233, %v2406
    %2464 = vst.msk [vmem:[%s3 + $0x1a0] sm:$0xff] %vm2233, %v2407
    %2465 = vst.msk [vmem:[%s3 + $0x1a8] sm:$0xff] %vm2233, %v2408
    %2466 = vst.msk [vmem:[%s3 + $0x1b0] sm:$0xff] %vm2233, %v2409
    %2467 = vst.msk [vmem:[%s3 + $0x1b8] sm:$0xff] %vm2233, %v2410
    %2468 = vst.msk [vmem:[%s3 + $0x1c0] sm:$0xff] %vm2233, %v2411
  $region21: #{encoder_conv_base_forward.5} parent=0 // pred_fallthru
    _
  // Predicated region
  $region22: #{encoder_conv_base_forward.5} parent=0 // pred_check
    _
  $region23: #{encoder_conv_base_forward.5} parent=0 // pred_check_branch
    %2470 = sbr.rel (0) target = $region25
  $region24: #{encoder_conv_base_forward.5} parent=0 // pred_region
    _
  $region25: #{encoder_conv_base_forward.5} parent=0 // pred_fallthru
    _
  // Predicated region
  $region26: #{encoder_conv_base_forward.5} parent=0 // pred_check
    _
  $region27: #{encoder_conv_base_forward.5} parent=0 // pred_check_branch
    %2472 = sbr.rel (0) target = $region29
  $region28: #{encoder_conv_base_forward.5} parent=0 // pred_region
    _
  $region29: #{encoder_conv_base_forward.5} parent=0 // pred_fallthru
    _

// kernel: encoder_conv_base_forward.6
$region0: #{encoder_conv_base_forward.6}
  #allocation0 [shape = 'u32[]', space=smem, size = 0x4, offset = 0x4, fixed_abs, tag = 'smem constant byte address 0x4 - core index']
  #allocation1 [shape = 'u32[72,128]{1,0:T(1,128)}', space=vmem, size = 0x9000, scoped, tag = 'internal scratch']
  #allocation2 [shape = 'f32[32,64]{1,0:T(8,128)}', space=vmem, size = 0x4000, scoped, tag = 'scratch operand']
  %s0 = inlined_call_operand.vmem [shape: bf16[32,512], index: 0, kind: input, shape index: {}]
  %s1 = inlined_call_operand.vmem [shape: bf16[512,64], index: 1, kind: input, shape index: {}]
  %s2 = inlined_call_operand.vmem [shape: f32[1,64], index: 2, kind: input, shape index: {}]
  %s3 = inlined_call_operand.vmem [shape: f32[32,64], index: 3, kind: output, shape index: {}]
  %s4 = sld [smem:[#allocation0]]
  $region30: #{encoder_conv_base_forward.6} parent=0
    _
  %s6 = ssub.s32 1, %s4
  %s7 = scalar_select 0, %s6, %s4
  // Predicated region
  $region2: #{encoder_conv_base_forward.6} parent=0 // pred_check
    _
  $region3: #{encoder_conv_base_forward.6} parent=0 // pred_check_branch
    %9 = sbr.rel (0) target = $region5
  $region4: #{encoder_conv_base_forward.6} parent=0 // pred_region
    _
  $region5: #{encoder_conv_base_forward.6} parent=0 // pred_fallthru
    _
  // Predicated region
  $region6: #{encoder_conv_base_forward.6} parent=0 // pred_check
    _
  $region7: #{encoder_conv_base_forward.6} parent=0 // pred_check_branch
    %11 = sbr.rel (0) target = $region9
  $region8: #{encoder_conv_base_forward.6} parent=0 // pred_region
    _
  $region9: #{encoder_conv_base_forward.6} parent=0 // pred_fallthru
    _
  // Predicated region
  $region10: #{encoder_conv_base_forward.6} parent=0 // pred_check
    _
  $region11: #{encoder_conv_base_forward.6} parent=0 // pred_check_branch
    %13 = sbr.rel (0) target = $region13
  $region12: #{encoder_conv_base_forward.6} parent=0 // pred_region
    _
  $region13: #{encoder_conv_base_forward.6} parent=0 // pred_fallthru
    _
  %p14 = scmp.eq.s32.totalorder 0, 0
  // Predicated region
  $region14: #{encoder_conv_base_forward.6} parent=0 // pred_check
    %p15 = pneg %p14
  $region15: #{encoder_conv_base_forward.6} parent=0 // pred_check_branch
    %17 = sbr.rel (%p15) target = $region17
  $region16: #{encoder_conv_base_forward.6} parent=0 // pred_region
    %vm18 = vcmask 523264
    %19 = vst.msk [vmem:[#allocation2] sm:$0xff] %vm18, 0.0
    %20 = vst.msk [vmem:[#allocation2 + $0x8] sm:$0xff] %vm18, 0.0
    %21 = vst.msk [vmem:[#allocation2 + $0x10] sm:$0xff] %vm18, 0.0
    %22 = vst.msk [vmem:[#allocation2 + $0x18] sm:$0xff] %vm18, 0.0
  $region17: #{encoder_conv_base_forward.6} parent=0 // pred_fallthru
    _
  %v23 = vld [vmem:[%s0] sm:$0xff]
  %v24 = vld [vmem:[%s0 + $0x8] sm:$0xff]
  %v25 = vld [vmem:[%s0 + $0x10] sm:$0xff]
  %v26 = vld [vmem:[%s0 + $0x18] sm:$0xff]
  %v27 = vld [vmem:[%s0 + $0x20] sm:$0xff]
  %v28 = vld [vmem:[%s0 + $0x28] sm:$0xff]
  %v29 = vld [vmem:[%s0 + $0x30] sm:$0xff]
  %v30 = vld [vmem:[%s0 + $0x38] sm:$0xff]
  %v31 = vunpack.c.l.bf16 %v23
  %v32 = vunpack.c.h.bf16 %v23
  %v33 = vunpack.c.l.bf16 %v24
  %v34 = vunpack.c.h.bf16 %v24
  %v35 = vunpack.c.l.bf16 %v25
  %v36 = vunpack.c.h.bf16 %v25
  %v37 = vunpack.c.l.bf16 %v26
  %v38 = vunpack.c.h.bf16 %v26
  %v39 = vunpack.c.l.bf16 %v27
  %v40 = vunpack.c.h.bf16 %v27
  %v41 = vunpack.c.l.bf16 %v28
  %v42 = vunpack.c.h.bf16 %v28
  %v43 = vunpack.c.l.bf16 %v29
  %v44 = vunpack.c.h.bf16 %v29
  %v45 = vunpack.c.l.bf16 %v30
  %v46 = vunpack.c.h.bf16 %v30
  %vm47 = vcmp.ge.f32.partialorder %v31, 0.0
  %vm48 = vcmp.ge.f32.partialorder %v32, 0.0
  %vm49 = vcmp.ge.f32.partialorder %v33, 0.0
  %vm50 = vcmp.ge.f32.partialorder %v34, 0.0
  %vm51 = vcmp.ge.f32.partialorder %v35, 0.0
  %vm52 = vcmp.ge.f32.partialorder %v36, 0.0
  %vm53 = vcmp.ge.f32.partialorder %v37, 0.0
  %vm54 = vcmp.ge.f32.partialorder %v38, 0.0
  %vm55 = vcmp.ge.f32.partialorder %v39, 0.0
  %vm56 = vcmp.ge.f32.partialorder %v40, 0.0
  %vm57 = vcmp.ge.f32.partialorder %v41, 0.0
  %vm58 = vcmp.ge.f32.partialorder %v42, 0.0
  %vm59 = vcmp.ge.f32.partialorder %v43, 0.0
  %vm60 = vcmp.ge.f32.partialorder %v44, 0.0
  %vm61 = vcmp.ge.f32.partialorder %v45, 0.0
  %vm62 = vcmp.ge.f32.partialorder %v46, 0.0
  %v63 = vmul.f32 %v31, 0.2
  %v64 = vmul.f32 %v32, 0.2
  %v65 = vmul.f32 %v33, 0.2
  %v66 = vmul.f32 %v34, 0.2
  %v67 = vmul.f32 %v35, 0.2
  %v68 = vmul.f32 %v36, 0.2
  %v69 = vmul.f32 %v37, 0.2
  %v70 = vmul.f32 %v38, 0.2
  %v71 = vmul.f32 %v39, 0.2
  %v72 = vmul.f32 %v40, 0.2
  %v73 = vmul.f32 %v41, 0.2
  %v74 = vmul.f32 %v42, 0.2
  %v75 = vmul.f32 %v43, 0.2
  %v76 = vmul.f32 %v44, 0.2
  %v77 = vmul.f32 %v45, 0.2
  %v78 = vmul.f32 %v46, 0.2
  %v79 = vsel %vm47, %v31, %v63
  %v80 = vsel %vm48, %v32, %v64
  %v81 = vsel %vm49, %v33, %v65
  %v82 = vsel %vm50, %v34, %v66
  %v83 = vsel %vm51, %v35, %v67
  %v84 = vsel %vm52, %v36, %v68
  %v85 = vsel %vm53, %v37, %v69
  %v86 = vsel %vm54, %v38, %v70
  %v87 = vsel %vm55, %v39, %v71
  %v88 = vsel %vm56, %v40, %v72
  %v89 = vsel %vm57, %v41, %v73
  %v90 = vsel %vm58, %v42, %v74
  %v91 = vsel %vm59, %v43, %v75
  %v92 = vsel %vm60, %v44, %v76
  %v93 = vsel %vm61, %v45, %v77
  %v94 = vsel %vm62, %v46, %v78
  %v95 = vpack.c.bf16 %v83, %v79
  %v96 = vpack.c.bf16 %v84, %v80
  %v97 = vpack.c.bf16 %v85, %v81
  %v98 = vpack.c.bf16 %v86, %v82
  %v99 = vpack.c.bf16 %v91, %v87
  %v100 = vpack.c.bf16 %v92, %v88
  %v101 = vpack.c.bf16 %v93, %v89
  %v102 = vpack.c.bf16 %v94, %v90
  %v103 = vld [vmem:[#allocation2] sm:$0xff]
  %v104 = vld [vmem:[#allocation2 + $0x8] sm:$0xff]
  %v105 = vld [vmem:[#allocation2 + $0x10] sm:$0xff]
  %v106 = vld [vmem:[#allocation2 + $0x18] sm:$0xff]
  %v107 = vld [vmem:[%s1] sm:$0xf]
  %v108 = vld [vmem:[%s1 + $0x4] sm:$0xf]
  %v109 = vld [vmem:[%s1 + $0x8] sm:$0xf]
  %v110 = vld [vmem:[%s1 + $0xc] sm:$0xf]
  %v111 = vld [vmem:[%s1 + $0x10] sm:$0xf]
  %v112 = vld [vmem:[%s1 + $0x14] sm:$0xf]
  %v113 = vld [vmem:[%s1 + $0x18] sm:$0xf]
  %v114 = vld [vmem:[%s1 + $0x1c] sm:$0xf]
  %v115 = vld [vmem:[%s1 + $0x20] sm:$0xf]
  %v116 = vld [vmem:[%s1 + $0x24] sm:$0xf]
  %v117 = vld [vmem:[%s1 + $0x28] sm:$0xf]
  %v118 = vld [vmem:[%s1 + $0x2c] sm:$0xf]
  %v119 = vld [vmem:[%s1 + $0x30] sm:$0xf]
  %v120 = vld [vmem:[%s1 + $0x34] sm:$0xf]
  %v121 = vld [vmem:[%s1 + $0x38] sm:$0xf]
  %v122 = vld [vmem:[%s1 + $0x3c] sm:$0xf]
  %v123 = vld [vmem:[%s1 + $0x40] sm:$0xf]
  %v124 = vld [vmem:[%s1 + $0x44] sm:$0xf]
  %v125 = vld [vmem:[%s1 + $0x48] sm:$0xf]
  %v126 = vld [vmem:[%s1 + $0x4c] sm:$0xf]
  %v127 = vld [vmem:[%s1 + $0x50] sm:$0xf]
  %v128 = vld [vmem:[%s1 + $0x54] sm:$0xf]
  %v129 = vld [vmem:[%s1 + $0x58] sm:$0xf]
  %v130 = vld [vmem:[%s1 + $0x5c] sm:$0xf]
  %v131 = vld [vmem:[%s1 + $0x60] sm:$0xf]
  %v132 = vld [vmem:[%s1 + $0x64] sm:$0xf]
  %v133 = vld [vmem:[%s1 + $0x68] sm:$0xf]
  %v134 = vld [vmem:[%s1 + $0x6c] sm:$0xf]
  %v135 = vld [vmem:[%s1 + $0x70] sm:$0xf]
  %v136 = vld [vmem:[%s1 + $0x74] sm:$0xf]
  %v137 = vld [vmem:[%s1 + $0x78] sm:$0xf]
  %v138 = vld [vmem:[%s1 + $0x7c] sm:$0xf]
  %v139 = vld [vmem:[%s1 + $0x80] sm:$0xf]
  %v140 = vld [vmem:[%s1 + $0x84] sm:$0xf]
  %v141 = vld [vmem:[%s1 + $0x88] sm:$0xf]
  %v142 = vld [vmem:[%s1 + $0x8c] sm:$0xf]
  %v143 = vld [vmem:[%s1 + $0x90] sm:$0xf]
  %v144 = vld [vmem:[%s1 + $0x94] sm:$0xf]
  %v145 = vld [vmem:[%s1 + $0x98] sm:$0xf]
  %v146 = vld [vmem:[%s1 + $0x9c] sm:$0xf]
  %v147 = vld [vmem:[%s1 + $0xa0] sm:$0xf]
  %v148 = vld [vmem:[%s1 + $0xa4] sm:$0xf]
  %v149 = vld [vmem:[%s1 + $0xa8] sm:$0xf]
  %v150 = vld [vmem:[%s1 + $0xac] sm:$0xf]
  %v151 = vld [vmem:[%s1 + $0xb0] sm:$0xf]
  %v152 = vld [vmem:[%s1 + $0xb4] sm:$0xf]
  %v153 = vld [vmem:[%s1 + $0xb8] sm:$0xf]
  %v154 = vld [vmem:[%s1 + $0xbc] sm:$0xf]
  %v155 = vld [vmem:[%s1 + $0xc0] sm:$0xf]
  %v156 = vld [vmem:[%s1 + $0xc4] sm:$0xf]
  %v157 = vld [vmem:[%s1 + $0xc8] sm:$0xf]
  %v158 = vld [vmem:[%s1 + $0xcc] sm:$0xf]
  %v159 = vld [vmem:[%s1 + $0xd0] sm:$0xf]
  %v160 = vld [vmem:[%s1 + $0xd4] sm:$0xf]
  %v161 = vld [vmem:[%s1 + $0xd8] sm:$0xf]
  %v162 = vld [vmem:[%s1 + $0xdc] sm:$0xf]
  %v163 = vld [vmem:[%s1 + $0xe0] sm:$0xf]
  %v164 = vld [vmem:[%s1 + $0xe4] sm:$0xf]
  %v165 = vld [vmem:[%s1 + $0xe8] sm:$0xf]
  %v166 = vld [vmem:[%s1 + $0xec] sm:$0xf]
  %v167 = vld [vmem:[%s1 + $0xf0] sm:$0xf]
  %v168 = vld [vmem:[%s1 + $0xf4] sm:$0xf]
  %v169 = vld [vmem:[%s1 + $0xf8] sm:$0xf]
  %v170 = vld [vmem:[%s1 + $0xfc] sm:$0xf]
  %v235 = vunpack.c.l.b16 %v107
  %v236 = vunpack.c.l.b16 %v108
  %v237 = vunpack.c.l.b16 %v109
  %v238 = vunpack.c.l.b16 %v110
  %v239 = vunpack.c.l.b16 %v111
  %v240 = vunpack.c.l.b16 %v112
  %v241 = vunpack.c.l.b16 %v113
  %v242 = vunpack.c.l.b16 %v114
  %v243 = vunpack.c.l.b16 %v115
  %v244 = vunpack.c.l.b16 %v116
  %v245 = vunpack.c.l.b16 %v117
  %v246 = vunpack.c.l.b16 %v118
  %v247 = vunpack.c.l.b16 %v119
  %v248 = vunpack.c.l.b16 %v120
  %v249 = vunpack.c.l.b16 %v121
  %v250 = vunpack.c.l.b16 %v122
  %v251 = vunpack.c.l.b16 %v123
  %v252 = vunpack.c.l.b16 %v124
  %v253 = vunpack.c.l.b16 %v125
  %v254 = vunpack.c.l.b16 %v126
  %v255 = vunpack.c.l.b16 %v127
  %v256 = vunpack.c.l.b16 %v128
  %v257 = vunpack.c.l.b16 %v129
  %v258 = vunpack.c.l.b16 %v130
  %v259 = vunpack.c.l.b16 %v131
  %v260 = vunpack.c.l.b16 %v132
  %v261 = vunpack.c.l.b16 %v133
  %v262 = vunpack.c.l.b16 %v134
  %v263 = vunpack.c.l.b16 %v135
  %v264 = vunpack.c.l.b16 %v136
  %v265 = vunpack.c.l.b16 %v137
  %v266 = vunpack.c.l.b16 %v138
  %v267 = vunpack.c.l.b16 %v139
  %v268 = vunpack.c.l.b16 %v140
  %v269 = vunpack.c.l.b16 %v141
  %v270 = vunpack.c.l.b16 %v142
  %v271 = vunpack.c.l.b16 %v143
  %v272 = vunpack.c.l.b16 %v144
  %v273 = vunpack.c.l.b16 %v145
  %v274 = vunpack.c.l.b16 %v146
  %v275 = vunpack.c.l.b16 %v147
  %v276 = vunpack.c.l.b16 %v148
  %v277 = vunpack.c.l.b16 %v149
  %v278 = vunpack.c.l.b16 %v150
  %v279 = vunpack.c.l.b16 %v151
  %v280 = vunpack.c.l.b16 %v152
  %v281 = vunpack.c.l.b16 %v153
  %v282 = vunpack.c.l.b16 %v154
  %v283 = vunpack.c.l.b16 %v155
  %v284 = vunpack.c.l.b16 %v156
  %v285 = vunpack.c.l.b16 %v157
  %v286 = vunpack.c.l.b16 %v158
  %v287 = vunpack.c.l.b16 %v159
  %v288 = vunpack.c.l.b16 %v160
  %v289 = vunpack.c.l.b16 %v161
  %v290 = vunpack.c.l.b16 %v162
  %v291 = vunpack.c.l.b16 %v163
  %v292 = vunpack.c.l.b16 %v164
  %v293 = vunpack.c.l.b16 %v165
  %v294 = vunpack.c.l.b16 %v166
  %v295 = vunpack.c.l.b16 %v167
  %v296 = vunpack.c.l.b16 %v168
  %v297 = vunpack.c.l.b16 %v169
  %v298 = vunpack.c.l.b16 %v170
  %v299 = vpack.c.b16 %v236, %v235
  %v300 = vpack.c.b16 %v238, %v237
  %v301 = vpack.c.b16 %v240, %v239
  %v302 = vpack.c.b16 %v242, %v241
  %v303 = vpack.c.b16 %v244, %v243
  %v304 = vpack.c.b16 %v246, %v245
  %v305 = vpack.c.b16 %v248, %v247
  %v306 = vpack.c.b16 %v250, %v249
  %v307 = vpack.c.b16 %v252, %v251
  %v308 = vpack.c.b16 %v254, %v253
  %v309 = vpack.c.b16 %v256, %v255
  %v310 = vpack.c.b16 %v258, %v257
  %v311 = vpack.c.b16 %v260, %v259
  %v312 = vpack.c.b16 %v262, %v261
  %v313 = vpack.c.b16 %v264, %v263
  %v314 = vpack.c.b16 %v266, %v265
  %v315 = vpack.c.b16 %v268, %v267
  %v316 = vpack.c.b16 %v270, %v269
  %v317 = vpack.c.b16 %v272, %v271
  %v318 = vpack.c.b16 %v274, %v273
  %v319 = vpack.c.b16 %v276, %v275
  %v320 = vpack.c.b16 %v278, %v277
  %v321 = vpack.c.b16 %v280, %v279
  %v322 = vpack.c.b16 %v282, %v281
  %v323 = vpack.c.b16 %v284, %v283
  %v324 = vpack.c.b16 %v286, %v285
  %v325 = vpack.c.b16 %v288, %v287
  %v326 = vpack.c.b16 %v290, %v289
  %v327 = vpack.c.b16 %v292, %v291
  %v328 = vpack.c.b16 %v294, %v293
  %v329 = vpack.c.b16 %v296, %v295
  %v330 = vpack.c.b16 %v298, %v297
  %363 = vmatpush.bf16.msra.mxu0 %v306
  %364 = vmatpush.bf16.msra.mxu0 %v305
  %365 = vmatpush.bf16.msra.mxu0 %v304
  %366 = vmatpush.bf16.msra.mxu0 %v303
  %367 = vmatpush.bf16.msra.mxu0 %v302
  %368 = vmatpush.bf16.msra.mxu0 %v301
  %369 = vmatpush.bf16.msra.mxu0 %v300
  %370 = vmatpush.bf16.msra.mxu0 %v299
  %371 = vmatmul.bf16.gmra.mxu0 %v95
  %v372 = vpop.f32.mrf.mxu0
  %v373 = vadd.f32 0.0, %v372
  %v374 = vpop.f32.mrf.mxu0
  %v375 = vadd.f32 0.0, %v374
  %376 = vmatmul.bf16.gmra.mxu0 %v99
  %v377 = vpop.f32.mrf.mxu0
  %v378 = vadd.f32 0.0, %v377
  %v379 = vpop.f32.mrf.mxu0
  %v380 = vadd.f32 0.0, %v379
  %381 = vdwg.mxu0
  %382 = vmatpush.bf16.msra.mxu0 %v314
  %383 = vmatpush.bf16.msra.mxu0 %v313
  %384 = vmatpush.bf16.msra.mxu0 %v312
  %385 = vmatpush.bf16.msra.mxu0 %v311
  %386 = vmatpush.bf16.msra.mxu0 %v310
  %387 = vmatpush.bf16.msra.mxu0 %v309
  %388 = vmatpush.bf16.msra.mxu0 %v308
  %389 = vmatpush.bf16.msra.mxu0 %v307
  %390 = vmatmul.bf16.gmra.mxu0 %v96
  %v391 = vpop.f32.mrf.mxu0
  %v392 = vadd.f32 %v373, %v391
  %v393 = vpop.f32.mrf.mxu0
  %v394 = vadd.f32 %v375, %v393
  %395 = vmatmul.bf16.gmra.mxu0 %v100
  %v396 = vpop.f32.mrf.mxu0
  %v397 = vadd.f32 %v378, %v396
  %v398 = vpop.f32.mrf.mxu0
  %v399 = vadd.f32 %v380, %v398
  %400 = vdwg.mxu0
  %401 = vmatpush.bf16.msra.mxu0 %v322
  %402 = vmatpush.bf16.msra.mxu0 %v321
  %403 = vmatpush.bf16.msra.mxu0 %v320
  %404 = vmatpush.bf16.msra.mxu0 %v319
  %405 = vmatpush.bf16.msra.mxu0 %v318
  %406 = vmatpush.bf16.msra.mxu0 %v317
  %407 = vmatpush.bf16.msra.mxu0 %v316
  %408 = vmatpush.bf16.msra.mxu0 %v315
  %409 = vmatmul.bf16.gmra.mxu0 %v97
  %v410 = vpop.f32.mrf.mxu0
  %v411 = vadd.f32 %v392, %v410
  %v412 = vpop.f32.mrf.mxu0
  %v413 = vadd.f32 %v394, %v412
  %414 = vmatmul.bf16.gmra.mxu0 %v101
  %v415 = vpop.f32.mrf.mxu0
  %v416 = vadd.f32 %v397, %v415
  %v417 = vpop.f32.mrf.mxu0
  %v418 = vadd.f32 %v399, %v417
  %419 = vdwg.mxu0
  %420 = vmatpush.bf16.msra.mxu0 %v330
  %421 = vmatpush.bf16.msra.mxu0 %v329
  %422 = vmatpush.bf16.msra.mxu0 %v328
  %423 = vmatpush.bf16.msra.mxu0 %v327
  %424 = vmatpush.bf16.msra.mxu0 %v326
  %425 = vmatpush.bf16.msra.mxu0 %v325
  %426 = vmatpush.bf16.msra.mxu0 %v324
  %427 = vmatpush.bf16.msra.mxu0 %v323
  %428 = vmatmul.bf16.gmra.mxu0 %v98
  %v429 = vpop.f32.mrf.mxu0
  %v430 = vadd.f32 %v411, %v429
  %v431 = vpop.f32.mrf.mxu0
  %v432 = vadd.f32 %v413, %v431
  %433 = vmatmul.bf16.gmra.mxu0 %v102
  %v434 = vpop.f32.mrf.mxu0
  %v435 = vadd.f32 %v416, %v434
  %v436 = vpop.f32.mrf.mxu0
  %v437 = vadd.f32 %v418, %v436
  %438 = vdwg.mxu0
  %v439 = vadd.f32 %v103, %v430
  %v440 = vadd.f32 %v104, %v432
  %v441 = vadd.f32 %v105, %v435
  %v442 = vadd.f32 %v106, %v437
  %vm443 = vcmask 523264
  %444 = vst.msk [vmem:[#allocation2] sm:$0xff] %vm443, %v439
  %445 = vst.msk [vmem:[#allocation2 + $0x8] sm:$0xff] %vm443, %v440
  %446 = vst.msk [vmem:[#allocation2 + $0x10] sm:$0xff] %vm443, %v441
  %447 = vst.msk [vmem:[#allocation2 + $0x18] sm:$0xff] %vm443, %v442
  // Predicated region
  $region18: #{encoder_conv_base_forward.6} parent=0 // pred_check
    %p448 = pneg %p14
  $region19: #{encoder_conv_base_forward.6} parent=0 // pred_check_branch
    %450 = sbr.rel (%p448) target = $region21
  $region20: #{encoder_conv_base_forward.6} parent=0 // pred_region
    %v451 = vld [vmem:[#allocation2] sm:$0xff]
    %v452 = vld [vmem:[#allocation2 + $0x8] sm:$0xff]
    %v453 = vld [vmem:[#allocation2 + $0x10] sm:$0xff]
    %v454 = vld [vmem:[#allocation2 + $0x18] sm:$0xff]
    %v455 = vld [vmem:[%s2] sm:$0x1]
    %v457 = vperm.slane %v455, 0
    %v459 = vadd.f32 %v451, %v457
    %v460 = vadd.f32 %v452, %v457
    %v461 = vadd.f32 %v453, %v457
    %v462 = vadd.f32 %v454, %v457
    %463 = vst.msk [vmem:[%s3] sm:$0xff] %vm443, %v459
    %464 = vst.msk [vmem:[%s3 + $0x8] sm:$0xff] %vm443, %v460
    %465 = vst.msk [vmem:[%s3 + $0x10] sm:$0xff] %vm443, %v461
    %466 = vst.msk [vmem:[%s3 + $0x18] sm:$0xff] %vm443, %v462
  $region21: #{encoder_conv_base_forward.6} parent=0 // pred_fallthru
    _
  // Predicated region
  $region22: #{encoder_conv_base_forward.6} parent=0 // pred_check
    _
  $region23: #{encoder_conv_base_forward.6} parent=0 // pred_check_branch
    %468 = sbr.rel (0) target = $region25
  $region24: #{encoder_conv_base_forward.6} parent=0 // pred_region
    _
  $region25: #{encoder_conv_base_forward.6} parent=0 // pred_fallthru
    _
  // Predicated region
  $region26: #{encoder_conv_base_forward.6} parent=0 // pred_check
    _
  $region27: #{encoder_conv_base_forward.6} parent=0 // pred_check_branch
    %470 = sbr.rel (0) target = $region29
  $region28: #{encoder_conv_base_forward.6} parent=0 // pred_region
    _
  $region29: #{encoder_conv_base_forward.6} parent=0 // pred_fallthru
    _

// kernel: encoder_conv_base_forward.7
$region0: #{encoder_conv_base_forward.7}
  #allocation0 [shape = 'u32[]', space=smem, size = 0x4, offset = 0x4, fixed_abs, tag = 'smem constant byte address 0x4 - core index']
  #allocation1 [shape = 'u32[72,128]{1,0:T(1,128)}', space=vmem, size = 0x9000, scoped, tag = 'internal scratch']
  %s0 = inlined_call_operand.vmem [shape: bf16[32,1024], index: 0, kind: input, shape index: {}]
  %s1 = inlined_call_operand.vmem [shape: bf16[1024,128], index: 1, kind: input, shape index: {}]
  %s2 = inlined_call_operand.vmem [shape: f32[1,128], index: 2, kind: input, shape index: {}]
  %s3 = inlined_call_operand.vmem [shape: bf16[4,128,128], index: 3, kind: input, shape index: {}]
  %s4 = inlined_call_operand.vmem [shape: f32[1,128], index: 4, kind: input, shape index: {}]
  %s5 = inlined_call_operand.vmem [shape: f32[8,128], index: 5, kind: output, shape index: {}]
  %s6 = sld [smem:[#allocation0]]
  $region30: #{encoder_conv_base_forward.7} parent=0
    _
  %s8 = ssub.s32 1, %s6
  %s9 = scalar_select 0, %s8, %s6
  // Predicated region
  $region2: #{encoder_conv_base_forward.7} parent=0 // pred_check
    _
  $region3: #{encoder_conv_base_forward.7} parent=0 // pred_check_branch
    %11 = sbr.rel (0) target = $region5
  $region4: #{encoder_conv_base_forward.7} parent=0 // pred_region
    _
  $region5: #{encoder_conv_base_forward.7} parent=0 // pred_fallthru
    _
  // Predicated region
  $region6: #{encoder_conv_base_forward.7} parent=0 // pred_check
    _
  $region7: #{encoder_conv_base_forward.7} parent=0 // pred_check_branch
    %13 = sbr.rel (0) target = $region9
  $region8: #{encoder_conv_base_forward.7} parent=0 // pred_region
    _
  $region9: #{encoder_conv_base_forward.7} parent=0 // pred_fallthru
    _
  // Predicated region
  $region10: #{encoder_conv_base_forward.7} parent=0 // pred_check
    _
  $region11: #{encoder_conv_base_forward.7} parent=0 // pred_check_branch
    %15 = sbr.rel (0) target = $region13
  $region12: #{encoder_conv_base_forward.7} parent=0 // pred_region
    _
  $region13: #{encoder_conv_base_forward.7} parent=0 // pred_fallthru
    _
  // Predicated region
  $region14: #{encoder_conv_base_forward.7} parent=0 // pred_check
    _
  $region15: #{encoder_conv_base_forward.7} parent=0 // pred_check_branch
    %17 = sbr.rel (0) target = $region17
  $region16: #{encoder_conv_base_forward.7} parent=0 // pred_region
    _
  $region17: #{encoder_conv_base_forward.7} parent=0 // pred_fallthru
    _
  // Predicated region
  $region18: #{encoder_conv_base_forward.7} parent=0 // pred_check
    _
  $region19: #{encoder_conv_base_forward.7} parent=0 // pred_check_branch
    %19 = sbr.rel (0) target = $region21
  $region20: #{encoder_conv_base_forward.7} parent=0 // pred_region
    _
  $region21: #{encoder_conv_base_forward.7} parent=0 // pred_fallthru
    _
  %v20 = vld [vmem:[%s0] sm:$0xff]
  %v21 = vld [vmem:[%s0 + $0x8] sm:$0xff]
  %v22 = vld [vmem:[%s0 + $0x10] sm:$0xff]
  %v23 = vld [vmem:[%s0 + $0x18] sm:$0xff]
  %v24 = vld [vmem:[%s0 + $0x20] sm:$0xff]
  %v25 = vld [vmem:[%s0 + $0x28] sm:$0xff]
  %v26 = vld [vmem:[%s0 + $0x30] sm:$0xff]
  %v27 = vld [vmem:[%s0 + $0x38] sm:$0xff]
  %v28 = vld [vmem:[%s0 + $0x40] sm:$0xff]
  %v29 = vld [vmem:[%s0 + $0x48] sm:$0xff]
  %v30 = vld [vmem:[%s0 + $0x50] sm:$0xff]
  %v31 = vld [vmem:[%s0 + $0x58] sm:$0xff]
  %v32 = vld [vmem:[%s0 + $0x60] sm:$0xff]
  %v33 = vld [vmem:[%s0 + $0x68] sm:$0xff]
  %v34 = vld [vmem:[%s0 + $0x70] sm:$0xff]
  %v35 = vld [vmem:[%s0 + $0x78] sm:$0xff]
  %v36 = vunpack.c.l.bf16 %v20
  %v37 = vunpack.c.h.bf16 %v20
  %v38 = vunpack.c.l.bf16 %v21
  %v39 = vunpack.c.h.bf16 %v21
  %v40 = vunpack.c.l.bf16 %v22
  %v41 = vunpack.c.h.bf16 %v22
  %v42 = vunpack.c.l.bf16 %v23
  %v43 = vunpack.c.h.bf16 %v23
  %v44 = vunpack.c.l.bf16 %v24
  %v45 = vunpack.c.h.bf16 %v24
  %v46 = vunpack.c.l.bf16 %v25
  %v47 = vunpack.c.h.bf16 %v25
  %v48 = vunpack.c.l.bf16 %v26
  %v49 = vunpack.c.h.bf16 %v26
  %v50 = vunpack.c.l.bf16 %v27
  %v51 = vunpack.c.h.bf16 %v27
  %v52 = vunpack.c.l.bf16 %v28
  %v53 = vunpack.c.h.bf16 %v28
  %v54 = vunpack.c.l.bf16 %v29
  %v55 = vunpack.c.h.bf16 %v29
  %v56 = vunpack.c.l.bf16 %v30
  %v57 = vunpack.c.h.bf16 %v30
  %v58 = vunpack.c.l.bf16 %v31
  %v59 = vunpack.c.h.bf16 %v31
  %v60 = vunpack.c.l.bf16 %v32
  %v61 = vunpack.c.h.bf16 %v32
  %v62 = vunpack.c.l.bf16 %v33
  %v63 = vunpack.c.h.bf16 %v33
  %v64 = vunpack.c.l.bf16 %v34
  %v65 = vunpack.c.h.bf16 %v34
  %v66 = vunpack.c.l.bf16 %v35
  %v67 = vunpack.c.h.bf16 %v35
  %vm68 = vcmp.ge.f32.partialorder %v36, 0.0
  %vm69 = vcmp.ge.f32.partialorder %v37, 0.0
  %vm70 = vcmp.ge.f32.partialorder %v38, 0.0
  %vm71 = vcmp.ge.f32.partialorder %v39, 0.0
  %vm72 = vcmp.ge.f32.partialorder %v40, 0.0
  %vm73 = vcmp.ge.f32.partialorder %v41, 0.0
  %vm74 = vcmp.ge.f32.partialorder %v42, 0.0
  %vm75 = vcmp.ge.f32.partialorder %v43, 0.0
  %vm76 = vcmp.ge.f32.partialorder %v44, 0.0
  %vm77 = vcmp.ge.f32.partialorder %v45, 0.0
  %vm78 = vcmp.ge.f32.partialorder %v46, 0.0
  %vm79 = vcmp.ge.f32.partialorder %v47, 0.0
  %vm80 = vcmp.ge.f32.partialorder %v48, 0.0
  %vm81 = vcmp.ge.f32.partialorder %v49, 0.0
  %vm82 = vcmp.ge.f32.partialorder %v50, 0.0
  %vm83 = vcmp.ge.f32.partialorder %v51, 0.0
  %vm84 = vcmp.ge.f32.partialorder %v52, 0.0
  %vm85 = vcmp.ge.f32.partialorder %v53, 0.0
  %vm86 = vcmp.ge.f32.partialorder %v54, 0.0
  %vm87 = vcmp.ge.f32.partialorder %v55, 0.0
  %vm88 = vcmp.ge.f32.partialorder %v56, 0.0
  %vm89 = vcmp.ge.f32.partialorder %v57, 0.0
  %vm90 = vcmp.ge.f32.partialorder %v58, 0.0
  %vm91 = vcmp.ge.f32.partialorder %v59, 0.0
  %vm92 = vcmp.ge.f32.partialorder %v60, 0.0
  %vm93 = vcmp.ge.f32.partialorder %v61, 0.0
  %vm94 = vcmp.ge.f32.partialorder %v62, 0.0
  %vm95 = vcmp.ge.f32.partialorder %v63, 0.0
  %vm96 = vcmp.ge.f32.partialorder %v64, 0.0
  %vm97 = vcmp.ge.f32.partialorder %v65, 0.0
  %vm98 = vcmp.ge.f32.partialorder %v66, 0.0
  %vm99 = vcmp.ge.f32.partialorder %v67, 0.0
  %v100 = vmul.f32 %v36, 0.2
  %v101 = vmul.f32 %v37, 0.2
  %v102 = vmul.f32 %v38, 0.2
  %v103 = vmul.f32 %v39, 0.2
  %v104 = vmul.f32 %v40, 0.2
  %v105 = vmul.f32 %v41, 0.2
  %v106 = vmul.f32 %v42, 0.2
  %v107 = vmul.f32 %v43, 0.2
  %v108 = vmul.f32 %v44, 0.2
  %v109 = vmul.f32 %v45, 0.2
  %v110 = vmul.f32 %v46, 0.2
  %v111 = vmul.f32 %v47, 0.2
  %v112 = vmul.f32 %v48, 0.2
  %v113 = vmul.f32 %v49, 0.2
  %v114 = vmul.f32 %v50, 0.2
  %v115 = vmul.f32 %v51, 0.2
  %v116 = vmul.f32 %v52, 0.2
  %v117 = vmul.f32 %v53, 0.2
  %v118 = vmul.f32 %v54, 0.2
  %v119 = vmul.f32 %v55, 0.2
  %v120 = vmul.f32 %v56, 0.2
  %v121 = vmul.f32 %v57, 0.2
  %v122 = vmul.f32 %v58, 0.2
  %v123 = vmul.f32 %v59, 0.2
  %v124 = vmul.f32 %v60, 0.2
  %v125 = vmul.f32 %v61, 0.2
  %v126 = vmul.f32 %v62, 0.2
  %v127 = vmul.f32 %v63, 0.2
  %v128 = vmul.f32 %v64, 0.2
  %v129 = vmul.f32 %v65, 0.2
  %v130 = vmul.f32 %v66, 0.2
  %v131 = vmul.f32 %v67, 0.2
  %v132 = vsel %vm68, %v36, %v100
  %v133 = vsel %vm69, %v37, %v101
  %v134 = vsel %vm70, %v38, %v102
  %v135 = vsel %vm71, %v39, %v103
  %v136 = vsel %vm72, %v40, %v104
  %v137 = vsel %vm73, %v41, %v105
  %v138 = vsel %vm74, %v42, %v106
  %v139 = vsel %vm75, %v43, %v107
  %v140 = vsel %vm76, %v44, %v108
  %v141 = vsel %vm77, %v45, %v109
  %v142 = vsel %vm78, %v46, %v110
  %v143 = vsel %vm79, %v47, %v111
  %v144 = vsel %vm80, %v48, %v112
  %v145 = vsel %vm81, %v49, %v113
  %v146 = vsel %vm82, %v50, %v114
  %v147 = vsel %vm83, %v51, %v115
  %v148 = vsel %vm84, %v52, %v116
  %v149 = vsel %vm85, %v53, %v117
  %v150 = vsel %vm86, %v54, %v118
  %v151 = vsel %vm87, %v55, %v119
  %v152 = vsel %vm88, %v56, %v120
  %v153 = vsel %vm89, %v57, %v121
  %v154 = vsel %vm90, %v58, %v122
  %v155 = vsel %vm91, %v59, %v123
  %v156 = vsel %vm92, %v60, %v124
  %v157 = vsel %vm93, %v61, %v125
  %v158 = vsel %vm94, %v62, %v126
  %v159 = vsel %vm95, %v63, %v127
  %v160 = vsel %vm96, %v64, %v128
  %v161 = vsel %vm97, %v65, %v129
  %v162 = vsel %vm98, %v66, %v130
  %v163 = vsel %vm99, %v67, %v131
  %v164 = vpack.c.bf16 %v140, %v132
  %v165 = vpack.c.bf16 %v141, %v133
  %v166 = vpack.c.bf16 %v142, %v134
  %v167 = vpack.c.bf16 %v143, %v135
  %v168 = vpack.c.bf16 %v144, %v136
  %v169 = vpack.c.bf16 %v145, %v137
  %v170 = vpack.c.bf16 %v146, %v138
  %v171 = vpack.c.bf16 %v147, %v139
  %v172 = vpack.c.bf16 %v156, %v148
  %v173 = vpack.c.bf16 %v157, %v149
  %v174 = vpack.c.bf16 %v158, %v150
  %v175 = vpack.c.bf16 %v159, %v151
  %v176 = vpack.c.bf16 %v160, %v152
  %v177 = vpack.c.bf16 %v161, %v153
  %v178 = vpack.c.bf16 %v162, %v154
  %v179 = vpack.c.bf16 %v163, %v155
  %v180 = vld [vmem:[%s1] sm:$0xf]
  %v181 = vld [vmem:[%s1 + $0x4] sm:$0xf]
  %v182 = vld [vmem:[%s1 + $0x8] sm:$0xf]
  %v183 = vld [vmem:[%s1 + $0xc] sm:$0xf]
  %v184 = vld [vmem:[%s1 + $0x10] sm:$0xf]
  %v185 = vld [vmem:[%s1 + $0x14] sm:$0xf]
  %v186 = vld [vmem:[%s1 + $0x18] sm:$0xf]
  %v187 = vld [vmem:[%s1 + $0x1c] sm:$0xf]
  %v188 = vld [vmem:[%s1 + $0x20] sm:$0xf]
  %v189 = vld [vmem:[%s1 + $0x24] sm:$0xf]
  %v190 = vld [vmem:[%s1 + $0x28] sm:$0xf]
  %v191 = vld [vmem:[%s1 + $0x2c] sm:$0xf]
  %v192 = vld [vmem:[%s1 + $0x30] sm:$0xf]
  %v193 = vld [vmem:[%s1 + $0x34] sm:$0xf]
  %v194 = vld [vmem:[%s1 + $0x38] sm:$0xf]
  %v195 = vld [vmem:[%s1 + $0x3c] sm:$0xf]
  %v196 = vld [vmem:[%s1 + $0x40] sm:$0xf]
  %v197 = vld [vmem:[%s1 + $0x44] sm:$0xf]
  %v198 = vld [vmem:[%s1 + $0x48] sm:$0xf]
  %v199 = vld [vmem:[%s1 + $0x4c] sm:$0xf]
  %v200 = vld [vmem:[%s1 + $0x50] sm:$0xf]
  %v201 = vld [vmem:[%s1 + $0x54] sm:$0xf]
  %v202 = vld [vmem:[%s1 + $0x58] sm:$0xf]
  %v203 = vld [vmem:[%s1 + $0x5c] sm:$0xf]
  %v204 = vld [vmem:[%s1 + $0x60] sm:$0xf]
  %v205 = vld [vmem:[%s1 + $0x64] sm:$0xf]
  %v206 = vld [vmem:[%s1 + $0x68] sm:$0xf]
  %v207 = vld [vmem:[%s1 + $0x6c] sm:$0xf]
  %v208 = vld [vmem:[%s1 + $0x70] sm:$0xf]
  %v209 = vld [vmem:[%s1 + $0x74] sm:$0xf]
  %v210 = vld [vmem:[%s1 + $0x78] sm:$0xf]
  %v211 = vld [vmem:[%s1 + $0x7c] sm:$0xf]
  %v212 = vld [vmem:[%s1 + $0x80] sm:$0xf]
  %v213 = vld [vmem:[%s1 + $0x84] sm:$0xf]
  %v214 = vld [vmem:[%s1 + $0x88] sm:$0xf]
  %v215 = vld [vmem:[%s1 + $0x8c] sm:$0xf]
  %v216 = vld [vmem:[%s1 + $0x90] sm:$0xf]
  %v217 = vld [vmem:[%s1 + $0x94] sm:$0xf]
  %v218 = vld [vmem:[%s1 + $0x98] sm:$0xf]
  %v219 = vld [vmem:[%s1 + $0x9c] sm:$0xf]
  %v220 = vld [vmem:[%s1 + $0xa0] sm:$0xf]
  %v221 = vld [vmem:[%s1 + $0xa4] sm:$0xf]
  %v222 = vld [vmem:[%s1 + $0xa8] sm:$0xf]
  %v223 = vld [vmem:[%s1 + $0xac] sm:$0xf]
  %v224 = vld [vmem:[%s1 + $0xb0] sm:$0xf]
  %v225 = vld [vmem:[%s1 + $0xb4] sm:$0xf]
  %v226 = vld [vmem:[%s1 + $0xb8] sm:$0xf]
  %v227 = vld [vmem:[%s1 + $0xbc] sm:$0xf]
  %v228 = vld [vmem:[%s1 + $0xc0] sm:$0xf]
  %v229 = vld [vmem:[%s1 + $0xc4] sm:$0xf]
  %v230 = vld [vmem:[%s1 + $0xc8] sm:$0xf]
  %v231 = vld [vmem:[%s1 + $0xcc] sm:$0xf]
  %v232 = vld [vmem:[%s1 + $0xd0] sm:$0xf]
  %v233 = vld [vmem:[%s1 + $0xd4] sm:$0xf]
  %v234 = vld [vmem:[%s1 + $0xd8] sm:$0xf]
  %v235 = vld [vmem:[%s1 + $0xdc] sm:$0xf]
  %v236 = vld [vmem:[%s1 + $0xe0] sm:$0xf]
  %v237 = vld [vmem:[%s1 + $0xe4] sm:$0xf]
  %v238 = vld [vmem:[%s1 + $0xe8] sm:$0xf]
  %v239 = vld [vmem:[%s1 + $0xec] sm:$0xf]
  %v240 = vld [vmem:[%s1 + $0xf0] sm:$0xf]
  %v241 = vld [vmem:[%s1 + $0xf4] sm:$0xf]
  %v242 = vld [vmem:[%s1 + $0xf8] sm:$0xf]
  %v243 = vld [vmem:[%s1 + $0xfc] sm:$0xf]
  %v244 = vld [vmem:[%s1 + $0x100] sm:$0xf]
  %v245 = vld [vmem:[%s1 + $0x104] sm:$0xf]
  %v246 = vld [vmem:[%s1 + $0x108] sm:$0xf]
  %v247 = vld [vmem:[%s1 + $0x10c] sm:$0xf]
  %v248 = vld [vmem:[%s1 + $0x110] sm:$0xf]
  %v249 = vld [vmem:[%s1 + $0x114] sm:$0xf]
  %v250 = vld [vmem:[%s1 + $0x118] sm:$0xf]
  %v251 = vld [vmem:[%s1 + $0x11c] sm:$0xf]
  %v252 = vld [vmem:[%s1 + $0x120] sm:$0xf]
  %v253 = vld [vmem:[%s1 + $0x124] sm:$0xf]
  %v254 = vld [vmem:[%s1 + $0x128] sm:$0xf]
  %v255 = vld [vmem:[%s1 + $0x12c] sm:$0xf]
  %v256 = vld [vmem:[%s1 + $0x130] sm:$0xf]
  %v257 = vld [vmem:[%s1 + $0x134] sm:$0xf]
  %v258 = vld [vmem:[%s1 + $0x138] sm:$0xf]
  %v259 = vld [vmem:[%s1 + $0x13c] sm:$0xf]
  %v260 = vld [vmem:[%s1 + $0x140] sm:$0xf]
  %v261 = vld [vmem:[%s1 + $0x144] sm:$0xf]
  %v262 = vld [vmem:[%s1 + $0x148] sm:$0xf]
  %v263 = vld [vmem:[%s1 + $0x14c] sm:$0xf]
  %v264 = vld [vmem:[%s1 + $0x150] sm:$0xf]
  %v265 = vld [vmem:[%s1 + $0x154] sm:$0xf]
  %v266 = vld [vmem:[%s1 + $0x158] sm:$0xf]
  %v267 = vld [vmem:[%s1 + $0x15c] sm:$0xf]
  %v268 = vld [vmem:[%s1 + $0x160] sm:$0xf]
  %v269 = vld [vmem:[%s1 + $0x164] sm:$0xf]
  %v270 = vld [vmem:[%s1 + $0x168] sm:$0xf]
  %v271 = vld [vmem:[%s1 + $0x16c] sm:$0xf]
  %v272 = vld [vmem:[%s1 + $0x170] sm:$0xf]
  %v273 = vld [vmem:[%s1 + $0x174] sm:$0xf]
  %v274 = vld [vmem:[%s1 + $0x178] sm:$0xf]
  %v275 = vld [vmem:[%s1 + $0x17c] sm:$0xf]
  %v276 = vld [vmem:[%s1 + $0x180] sm:$0xf]
  %v277 = vld [vmem:[%s1 + $0x184] sm:$0xf]
  %v278 = vld [vmem:[%s1 + $0x188] sm:$0xf]
  %v279 = vld [vmem:[%s1 + $0x18c] sm:$0xf]
  %v280 = vld [vmem:[%s1 + $0x190] sm:$0xf]
  %v281 = vld [vmem:[%s1 + $0x194] sm:$0xf]
  %v282 = vld [vmem:[%s1 + $0x198] sm:$0xf]
  %v283 = vld [vmem:[%s1 + $0x19c] sm:$0xf]
  %v284 = vld [vmem:[%s1 + $0x1a0] sm:$0xf]
  %v285 = vld [vmem:[%s1 + $0x1a4] sm:$0xf]
  %v286 = vld [vmem:[%s1 + $0x1a8] sm:$0xf]
  %v287 = vld [vmem:[%s1 + $0x1ac] sm:$0xf]
  %v288 = vld [vmem:[%s1 + $0x1b0] sm:$0xf]
  %v289 = vld [vmem:[%s1 + $0x1b4] sm:$0xf]
  %v290 = vld [vmem:[%s1 + $0x1b8] sm:$0xf]
  %v291 = vld [vmem:[%s1 + $0x1bc] sm:$0xf]
  %v292 = vld [vmem:[%s1 + $0x1c0] sm:$0xf]
  %v293 = vld [vmem:[%s1 + $0x1c4] sm:$0xf]
  %v294 = vld [vmem:[%s1 + $0x1c8] sm:$0xf]
  %v295 = vld [vmem:[%s1 + $0x1cc] sm:$0xf]
  %v296 = vld [vmem:[%s1 + $0x1d0] sm:$0xf]
  %v297 = vld [vmem:[%s1 + $0x1d4] sm:$0xf]
  %v298 = vld [vmem:[%s1 + $0x1d8] sm:$0xf]
  %v299 = vld [vmem:[%s1 + $0x1dc] sm:$0xf]
  %v300 = vld [vmem:[%s1 + $0x1e0] sm:$0xf]
  %v301 = vld [vmem:[%s1 + $0x1e4] sm:$0xf]
  %v302 = vld [vmem:[%s1 + $0x1e8] sm:$0xf]
  %v303 = vld [vmem:[%s1 + $0x1ec] sm:$0xf]
  %v304 = vld [vmem:[%s1 + $0x1f0] sm:$0xf]
  %v305 = vld [vmem:[%s1 + $0x1f4] sm:$0xf]
  %v306 = vld [vmem:[%s1 + $0x1f8] sm:$0xf]
  %v307 = vld [vmem:[%s1 + $0x1fc] sm:$0xf]
  %v308 = vld [vmem:[%s2] sm:$0x1]
  %v310 = vperm.slane %v308, 0
  %v440 = vunpack.c.l.b16 %v180
  %v441 = vunpack.c.l.b16 %v181
  %v442 = vunpack.c.l.b16 %v182
  %v443 = vunpack.c.l.b16 %v183
  %v444 = vunpack.c.l.b16 %v184
  %v445 = vunpack.c.l.b16 %v185
  %v446 = vunpack.c.l.b16 %v186
  %v447 = vunpack.c.l.b16 %v187
  %v448 = vunpack.c.l.b16 %v188
  %v449 = vunpack.c.l.b16 %v189
  %v450 = vunpack.c.l.b16 %v190
  %v451 = vunpack.c.l.b16 %v191
  %v452 = vunpack.c.l.b16 %v192
  %v453 = vunpack.c.l.b16 %v193
  %v454 = vunpack.c.l.b16 %v194
  %v455 = vunpack.c.l.b16 %v195
  %v456 = vunpack.c.l.b16 %v196
  %v457 = vunpack.c.l.b16 %v197
  %v458 = vunpack.c.l.b16 %v198
  %v459 = vunpack.c.l.b16 %v199
  %v460 = vunpack.c.l.b16 %v200
  %v461 = vunpack.c.l.b16 %v201
  %v462 = vunpack.c.l.b16 %v202
  %v463 = vunpack.c.l.b16 %v203
  %v464 = vunpack.c.l.b16 %v204
  %v465 = vunpack.c.l.b16 %v205
  %v466 = vunpack.c.l.b16 %v206
  %v467 = vunpack.c.l.b16 %v207
  %v468 = vunpack.c.l.b16 %v208
  %v469 = vunpack.c.l.b16 %v209
  %v470 = vunpack.c.l.b16 %v210
  %v471 = vunpack.c.l.b16 %v211
  %v472 = vunpack.c.l.b16 %v212
  %v473 = vunpack.c.l.b16 %v213
  %v474 = vunpack.c.l.b16 %v214
  %v475 = vunpack.c.l.b16 %v215
  %v476 = vunpack.c.l.b16 %v216
  %v477 = vunpack.c.l.b16 %v217
  %v478 = vunpack.c.l.b16 %v218
  %v479 = vunpack.c.l.b16 %v219
  %v480 = vunpack.c.l.b16 %v220
  %v481 = vunpack.c.l.b16 %v221
  %v482 = vunpack.c.l.b16 %v222
  %v483 = vunpack.c.l.b16 %v223
  %v484 = vunpack.c.l.b16 %v224
  %v485 = vunpack.c.l.b16 %v225
  %v486 = vunpack.c.l.b16 %v226
  %v487 = vunpack.c.l.b16 %v227
  %v488 = vunpack.c.l.b16 %v228
  %v489 = vunpack.c.l.b16 %v229
  %v490 = vunpack.c.l.b16 %v230
  %v491 = vunpack.c.l.b16 %v231
  %v492 = vunpack.c.l.b16 %v232
  %v493 = vunpack.c.l.b16 %v233
  %v494 = vunpack.c.l.b16 %v234
  %v495 = vunpack.c.l.b16 %v235
  %v496 = vunpack.c.l.b16 %v236
  %v497 = vunpack.c.l.b16 %v237
  %v498 = vunpack.c.l.b16 %v238
  %v499 = vunpack.c.l.b16 %v239
  %v500 = vunpack.c.l.b16 %v240
  %v501 = vunpack.c.l.b16 %v241
  %v502 = vunpack.c.l.b16 %v242
  %v503 = vunpack.c.l.b16 %v243
  %v504 = vunpack.c.l.b16 %v244
  %v505 = vunpack.c.l.b16 %v245
  %v506 = vunpack.c.l.b16 %v246
  %v507 = vunpack.c.l.b16 %v247
  %v508 = vunpack.c.l.b16 %v248
  %v509 = vunpack.c.l.b16 %v249
  %v510 = vunpack.c.l.b16 %v250
  %v511 = vunpack.c.l.b16 %v251
  %v512 = vunpack.c.l.b16 %v252
  %v513 = vunpack.c.l.b16 %v253
  %v514 = vunpack.c.l.b16 %v254
  %v515 = vunpack.c.l.b16 %v255
  %v516 = vunpack.c.l.b16 %v256
  %v517 = vunpack.c.l.b16 %v257
  %v518 = vunpack.c.l.b16 %v258
  %v519 = vunpack.c.l.b16 %v259
  %v520 = vunpack.c.l.b16 %v260
  %v521 = vunpack.c.l.b16 %v261
  %v522 = vunpack.c.l.b16 %v262
  %v523 = vunpack.c.l.b16 %v263
  %v524 = vunpack.c.l.b16 %v264
  %v525 = vunpack.c.l.b16 %v265
  %v526 = vunpack.c.l.b16 %v266
  %v527 = vunpack.c.l.b16 %v267
  %v528 = vunpack.c.l.b16 %v268
  %v529 = vunpack.c.l.b16 %v269
  %v530 = vunpack.c.l.b16 %v270
  %v531 = vunpack.c.l.b16 %v271
  %v532 = vunpack.c.l.b16 %v272
  %v533 = vunpack.c.l.b16 %v273
  %v534 = vunpack.c.l.b16 %v274
  %v535 = vunpack.c.l.b16 %v275
  %v536 = vunpack.c.l.b16 %v276
  %v537 = vunpack.c.l.b16 %v277
  %v538 = vunpack.c.l.b16 %v278
  %v539 = vunpack.c.l.b16 %v279
  %v540 = vunpack.c.l.b16 %v280
  %v541 = vunpack.c.l.b16 %v281
  %v542 = vunpack.c.l.b16 %v282
  %v543 = vunpack.c.l.b16 %v283
  %v544 = vunpack.c.l.b16 %v284
  %v545 = vunpack.c.l.b16 %v285
  %v546 = vunpack.c.l.b16 %v286
  %v547 = vunpack.c.l.b16 %v287
  %v548 = vunpack.c.l.b16 %v288
  %v549 = vunpack.c.l.b16 %v289
  %v550 = vunpack.c.l.b16 %v290
  %v551 = vunpack.c.l.b16 %v291
  %v552 = vunpack.c.l.b16 %v292
  %v553 = vunpack.c.l.b16 %v293
  %v554 = vunpack.c.l.b16 %v294
  %v555 = vunpack.c.l.b16 %v295
  %v556 = vunpack.c.l.b16 %v296
  %v557 = vunpack.c.l.b16 %v297
  %v558 = vunpack.c.l.b16 %v298
  %v559 = vunpack.c.l.b16 %v299
  %v560 = vunpack.c.l.b16 %v300
  %v561 = vunpack.c.l.b16 %v301
  %v562 = vunpack.c.l.b16 %v302
  %v563 = vunpack.c.l.b16 %v303
  %v564 = vunpack.c.l.b16 %v304
  %v565 = vunpack.c.l.b16 %v305
  %v566 = vunpack.c.l.b16 %v306
  %v567 = vunpack.c.l.b16 %v307
  %v568 = vpack.c.b16 %v441, %v440
  %v569 = vpack.c.b16 %v443, %v442
  %v570 = vpack.c.b16 %v445, %v444
  %v571 = vpack.c.b16 %v447, %v446
  %v572 = vpack.c.b16 %v449, %v448
  %v573 = vpack.c.b16 %v451, %v450
  %v574 = vpack.c.b16 %v453, %v452
  %v575 = vpack.c.b16 %v455, %v454
  %v576 = vpack.c.b16 %v457, %v456
  %v577 = vpack.c.b16 %v459, %v458
  %v578 = vpack.c.b16 %v461, %v460
  %v579 = vpack.c.b16 %v463, %v462
  %v580 = vpack.c.b16 %v465, %v464
  %v581 = vpack.c.b16 %v467, %v466
  %v582 = vpack.c.b16 %v469, %v468
  %v583 = vpack.c.b16 %v471, %v470
  %v584 = vpack.c.b16 %v473, %v472
  %v585 = vpack.c.b16 %v475, %v474
  %v586 = vpack.c.b16 %v477, %v476
  %v587 = vpack.c.b16 %v479, %v478
  %v588 = vpack.c.b16 %v481, %v480
  %v589 = vpack.c.b16 %v483, %v482
  %v590 = vpack.c.b16 %v485, %v484
  %v591 = vpack.c.b16 %v487, %v486
  %v592 = vpack.c.b16 %v489, %v488
  %v593 = vpack.c.b16 %v491, %v490
  %v594 = vpack.c.b16 %v493, %v492
  %v595 = vpack.c.b16 %v495, %v494
  %v596 = vpack.c.b16 %v497, %v496
  %v597 = vpack.c.b16 %v499, %v498
  %v598 = vpack.c.b16 %v501, %v500
  %v599 = vpack.c.b16 %v503, %v502
  %v600 = vpack.c.b16 %v505, %v504
  %v601 = vpack.c.b16 %v507, %v506
  %v602 = vpack.c.b16 %v509, %v508
  %v603 = vpack.c.b16 %v511, %v510
  %v604 = vpack.c.b16 %v513, %v512
  %v605 = vpack.c.b16 %v515, %v514
  %v606 = vpack.c.b16 %v517, %v516
  %v607 = vpack.c.b16 %v519, %v518
  %v608 = vpack.c.b16 %v521, %v520
  %v609 = vpack.c.b16 %v523, %v522
  %v610 = vpack.c.b16 %v525, %v524
  %v611 = vpack.c.b16 %v527, %v526
  %v612 = vpack.c.b16 %v529, %v528
  %v613 = vpack.c.b16 %v531, %v530
  %v614 = vpack.c.b16 %v533, %v532
  %v615 = vpack.c.b16 %v535, %v534
  %v616 = vpack.c.b16 %v537, %v536
  %v617 = vpack.c.b16 %v539, %v538
  %v618 = vpack.c.b16 %v541, %v540
  %v619 = vpack.c.b16 %v543, %v542
  %v620 = vpack.c.b16 %v545, %v544
  %v621 = vpack.c.b16 %v547, %v546
  %v622 = vpack.c.b16 %v549, %v548
  %v623 = vpack.c.b16 %v551, %v550
  %v624 = vpack.c.b16 %v553, %v552
  %v625 = vpack.c.b16 %v555, %v554
  %v626 = vpack.c.b16 %v557, %v556
  %v627 = vpack.c.b16 %v559, %v558
  %v628 = vpack.c.b16 %v561, %v560
  %v629 = vpack.c.b16 %v563, %v562
  %v630 = vpack.c.b16 %v565, %v564
  %v631 = vpack.c.b16 %v567, %v566
  %696 = vmatpush.bf16.msra.mxu0 %v575
  %697 = vmatpush.bf16.msra.mxu0 %v574
  %698 = vmatpush.bf16.msra.mxu0 %v573
  %699 = vmatpush.bf16.msra.mxu0 %v572
  %700 = vmatpush.bf16.msra.mxu0 %v571
  %701 = vmatpush.bf16.msra.mxu0 %v570
  %702 = vmatpush.bf16.msra.mxu0 %v569
  %703 = vmatpush.bf16.msra.mxu0 %v568
  %704 = vmatmul.bf16.gmra.mxu0 %v164
  %v705 = vpop.f32.mrf.mxu0
  %v706 = vadd.f32 %v310, %v705
  %v707 = vpop.f32.mrf.mxu0
  %v708 = vadd.f32 %v310, %v707
  %709 = vmatmul.bf16.gmra.mxu0 %v172
  %v710 = vpop.f32.mrf.mxu0
  %v711 = vadd.f32 %v310, %v710
  %v712 = vpop.f32.mrf.mxu0
  %v713 = vadd.f32 %v310, %v712
  %714 = vdwg.mxu0
  %715 = vmatpush.bf16.msra.mxu0 %v583
  %716 = vmatpush.bf16.msra.mxu0 %v582
  %717 = vmatpush.bf16.msra.mxu0 %v581
  %718 = vmatpush.bf16.msra.mxu0 %v580
  %719 = vmatpush.bf16.msra.mxu0 %v579
  %720 = vmatpush.bf16.msra.mxu0 %v578
  %721 = vmatpush.bf16.msra.mxu0 %v577
  %722 = vmatpush.bf16.msra.mxu0 %v576
  %723 = vmatmul.bf16.gmra.mxu0 %v165
  %v724 = vpop.f32.mrf.mxu0
  %v725 = vadd.f32 %v706, %v724
  %v726 = vpop.f32.mrf.mxu0
  %v727 = vadd.f32 %v708, %v726
  %728 = vmatmul.bf16.gmra.mxu0 %v173
  %v729 = vpop.f32.mrf.mxu0
  %v730 = vadd.f32 %v711, %v729
  %v731 = vpop.f32.mrf.mxu0
  %v732 = vadd.f32 %v713, %v731
  %733 = vdwg.mxu0
  %734 = vmatpush.bf16.msra.mxu0 %v591
  %735 = vmatpush.bf16.msra.mxu0 %v590
  %736 = vmatpush.bf16.msra.mxu0 %v589
  %737 = vmatpush.bf16.msra.mxu0 %v588
  %738 = vmatpush.bf16.msra.mxu0 %v587
  %739 = vmatpush.bf16.msra.mxu0 %v586
  %740 = vmatpush.bf16.msra.mxu0 %v585
  %741 = vmatpush.bf16.msra.mxu0 %v584
  %742 = vmatmul.bf16.gmra.mxu0 %v166
  %v743 = vpop.f32.mrf.mxu0
  %v744 = vadd.f32 %v725, %v743
  %v745 = vpop.f32.mrf.mxu0
  %v746 = vadd.f32 %v727, %v745
  %747 = vmatmul.bf16.gmra.mxu0 %v174
  %v748 = vpop.f32.mrf.mxu0
  %v749 = vadd.f32 %v730, %v748
  %v750 = vpop.f32.mrf.mxu0
  %v751 = vadd.f32 %v732, %v750
  %752 = vdwg.mxu0
  %753 = vmatpush.bf16.msra.mxu0 %v599
  %754 = vmatpush.bf16.msra.mxu0 %v598
  %755 = vmatpush.bf16.msra.mxu0 %v597
  %756 = vmatpush.bf16.msra.mxu0 %v596
  %757 = vmatpush.bf16.msra.mxu0 %v595
  %758 = vmatpush.bf16.msra.mxu0 %v594
  %759 = vmatpush.bf16.msra.mxu0 %v593
  %760 = vmatpush.bf16.msra.mxu0 %v592
  %761 = vmatmul.bf16.gmra.mxu0 %v167
  %v762 = vpop.f32.mrf.mxu0
  %v763 = vadd.f32 %v744, %v762
  %v764 = vpop.f32.mrf.mxu0
  %v765 = vadd.f32 %v746, %v764
  %766 = vmatmul.bf16.gmra.mxu0 %v175
  %v767 = vpop.f32.mrf.mxu0
  %v768 = vadd.f32 %v749, %v767
  %v769 = vpop.f32.mrf.mxu0
  %v770 = vadd.f32 %v751, %v769
  %771 = vdwg.mxu0
  %772 = vmatpush.bf16.msra.mxu0 %v607
  %773 = vmatpush.bf16.msra.mxu0 %v606
  %774 = vmatpush.bf16.msra.mxu0 %v605
  %775 = vmatpush.bf16.msra.mxu0 %v604
  %776 = vmatpush.bf16.msra.mxu0 %v603
  %777 = vmatpush.bf16.msra.mxu0 %v602
  %778 = vmatpush.bf16.msra.mxu0 %v601
  %779 = vmatpush.bf16.msra.mxu0 %v600
  %780 = vmatmul.bf16.gmra.mxu0 %v168
  %v781 = vpop.f32.mrf.mxu0
  %v782 = vadd.f32 %v763, %v781
  %v783 = vpop.f32.mrf.mxu0
  %v784 = vadd.f32 %v765, %v783
  %785 = vmatmul.bf16.gmra.mxu0 %v176
  %v786 = vpop.f32.mrf.mxu0
  %v787 = vadd.f32 %v768, %v786
  %v788 = vpop.f32.mrf.mxu0
  %v789 = vadd.f32 %v770, %v788
  %790 = vdwg.mxu0
  %791 = vmatpush.bf16.msra.mxu0 %v615
  %792 = vmatpush.bf16.msra.mxu0 %v614
  %793 = vmatpush.bf16.msra.mxu0 %v613
  %794 = vmatpush.bf16.msra.mxu0 %v612
  %795 = vmatpush.bf16.msra.mxu0 %v611
  %796 = vmatpush.bf16.msra.mxu0 %v610
  %797 = vmatpush.bf16.msra.mxu0 %v609
  %798 = vmatpush.bf16.msra.mxu0 %v608
  %799 = vmatmul.bf16.gmra.mxu0 %v169
  %v800 = vpop.f32.mrf.mxu0
  %v801 = vadd.f32 %v782, %v800
  %v802 = vpop.f32.mrf.mxu0
  %v803 = vadd.f32 %v784, %v802
  %804 = vmatmul.bf16.gmra.mxu0 %v177
  %v805 = vpop.f32.mrf.mxu0
  %v806 = vadd.f32 %v787, %v805
  %v807 = vpop.f32.mrf.mxu0
  %v808 = vadd.f32 %v789, %v807
  %809 = vdwg.mxu0
  %810 = vmatpush.bf16.msra.mxu0 %v623
  %811 = vmatpush.bf16.msra.mxu0 %v622
  %812 = vmatpush.bf16.msra.mxu0 %v621
  %813 = vmatpush.bf16.msra.mxu0 %v620
  %814 = vmatpush.bf16.msra.mxu0 %v619
  %815 = vmatpush.bf16.msra.mxu0 %v618
  %816 = vmatpush.bf16.msra.mxu0 %v617
  %817 = vmatpush.bf16.msra.mxu0 %v616
  %818 = vmatmul.bf16.gmra.mxu0 %v170
  %v819 = vpop.f32.mrf.mxu0
  %v820 = vadd.f32 %v801, %v819
  %v821 = vpop.f32.mrf.mxu0
  %v822 = vadd.f32 %v803, %v821
  %823 = vmatmul.bf16.gmra.mxu0 %v178
  %v824 = vpop.f32.mrf.mxu0
  %v825 = vadd.f32 %v806, %v824
  %v826 = vpop.f32.mrf.mxu0
  %v827 = vadd.f32 %v808, %v826
  %828 = vdwg.mxu0
  %829 = vmatpush.bf16.msra.mxu0 %v631
  %830 = vmatpush.bf16.msra.mxu0 %v630
  %831 = vmatpush.bf16.msra.mxu0 %v629
  %832 = vmatpush.bf16.msra.mxu0 %v628
  %833 = vmatpush.bf16.msra.mxu0 %v627
  %834 = vmatpush.bf16.msra.mxu0 %v626
  %835 = vmatpush.bf16.msra.mxu0 %v625
  %836 = vmatpush.bf16.msra.mxu0 %v624
  %837 = vmatmul.bf16.gmra.mxu0 %v171
  %v838 = vpop.f32.mrf.mxu0
  %v839 = vadd.f32 %v820, %v838
  %v840 = vpop.f32.mrf.mxu0
  %v841 = vadd.f32 %v822, %v840
  %842 = vmatmul.bf16.gmra.mxu0 %v179
  %v843 = vpop.f32.mrf.mxu0
  %v844 = vadd.f32 %v825, %v843
  %v845 = vpop.f32.mrf.mxu0
  %v846 = vadd.f32 %v827, %v845
  %847 = vdwg.mxu0
  %v848 = vpack.c.bf16 %v839, %v839
  %v849 = vpack.c.bf16 %v841, %v841
  %v850 = vpack.c.bf16 %v844, %v844
  %v851 = vpack.c.bf16 %v846, %v846
  %v852 = vunpack.c.l.bf16 %v848
  %v853 = vunpack.c.l.bf16 %v849
  %v854 = vunpack.c.l.bf16 %v850
  %v855 = vunpack.c.l.bf16 %v851
  %vm856 = vcmp.ge.f32.partialorder %v852, 0.0
  %vm857 = vcmp.ge.f32.partialorder %v853, 0.0
  %vm858 = vcmp.ge.f32.partialorder %v854, 0.0
  %vm859 = vcmp.ge.f32.partialorder %v855, 0.0
  %v860 = vmul.f32 %v852, 0.2
  %v861 = vmul.f32 %v853, 0.2
  %v862 = vmul.f32 %v854, 0.2
  %v863 = vmul.f32 %v855, 0.2
  %v864 = vsel %vm856, %v852, %v860
  %v865 = vsel %vm857, %v853, %v861
  %v866 = vsel %vm858, %v854, %v862
  %v867 = vsel %vm859, %v855, %v863
  %v868 = vpack.c.bf16 %v864, %v864
  %v869 = vld [vmem:[%s3] sm:$0xf]
  %v870 = vld [vmem:[%s3 + $0x4] sm:$0xf]
  %v871 = vld [vmem:[%s3 + $0x8] sm:$0xf]
  %v872 = vld [vmem:[%s3 + $0xc] sm:$0xf]
  %v873 = vld [vmem:[%s3 + $0x10] sm:$0xf]
  %v874 = vld [vmem:[%s3 + $0x14] sm:$0xf]
  %v875 = vld [vmem:[%s3 + $0x18] sm:$0xf]
  %v876 = vld [vmem:[%s3 + $0x1c] sm:$0xf]
  %v877 = vld [vmem:[%s3 + $0x20] sm:$0xf]
  %v878 = vld [vmem:[%s3 + $0x24] sm:$0xf]
  %v879 = vld [vmem:[%s3 + $0x28] sm:$0xf]
  %v880 = vld [vmem:[%s3 + $0x2c] sm:$0xf]
  %v881 = vld [vmem:[%s3 + $0x30] sm:$0xf]
  %v882 = vld [vmem:[%s3 + $0x34] sm:$0xf]
  %v883 = vld [vmem:[%s3 + $0x38] sm:$0xf]
  %v884 = vld [vmem:[%s3 + $0x3c] sm:$0xf]
  %v885 = vpack.c.bf16 %v865, %v865
  %s886 = scalar_lea.vmem %s3, 64
  %v887 = vld [vmem:[%s886] sm:$0xf]
  %v888 = vld [vmem:[%s886 + $0x4] sm:$0xf]
  %v889 = vld [vmem:[%s886 + $0x8] sm:$0xf]
  %v890 = vld [vmem:[%s886 + $0xc] sm:$0xf]
  %v891 = vld [vmem:[%s886 + $0x10] sm:$0xf]
  %v892 = vld [vmem:[%s886 + $0x14] sm:$0xf]
  %v893 = vld [vmem:[%s886 + $0x18] sm:$0xf]
  %v894 = vld [vmem:[%s886 + $0x1c] sm:$0xf]
  %v895 = vld [vmem:[%s886 + $0x20] sm:$0xf]
  %v896 = vld [vmem:[%s886 + $0x24] sm:$0xf]
  %v897 = vld [vmem:[%s886 + $0x28] sm:$0xf]
  %v898 = vld [vmem:[%s886 + $0x2c] sm:$0xf]
  %v899 = vld [vmem:[%s886 + $0x30] sm:$0xf]
  %v900 = vld [vmem:[%s886 + $0x34] sm:$0xf]
  %v901 = vld [vmem:[%s886 + $0x38] sm:$0xf]
  %v902 = vld [vmem:[%s886 + $0x3c] sm:$0xf]
  %v919 = vunpack.c.l.b16 %v887
  %v920 = vunpack.c.l.b16 %v888
  %v921 = vunpack.c.l.b16 %v889
  %v922 = vunpack.c.l.b16 %v890
  %v923 = vunpack.c.l.b16 %v891
  %v924 = vunpack.c.l.b16 %v892
  %v925 = vunpack.c.l.b16 %v893
  %v926 = vunpack.c.l.b16 %v894
  %v927 = vunpack.c.l.b16 %v895
  %v928 = vunpack.c.l.b16 %v896
  %v929 = vunpack.c.l.b16 %v897
  %v930 = vunpack.c.l.b16 %v898
  %v931 = vunpack.c.l.b16 %v899
  %v932 = vunpack.c.l.b16 %v900
  %v933 = vunpack.c.l.b16 %v901
  %v934 = vunpack.c.l.b16 %v902
  %v935 = vpack.c.b16 %v920, %v919
  %v936 = vpack.c.b16 %v922, %v921
  %v937 = vpack.c.b16 %v924, %v923
  %v938 = vpack.c.b16 %v926, %v925
  %v939 = vpack.c.b16 %v928, %v927
  %v940 = vpack.c.b16 %v930, %v929
  %v941 = vpack.c.b16 %v932, %v931
  %v942 = vpack.c.b16 %v934, %v933
  %951 = vmatpush.bf16.msra.mxu0 %v942
  %952 = vmatpush.bf16.msra.mxu0 %v941
  %953 = vmatpush.bf16.msra.mxu0 %v940
  %954 = vmatpush.bf16.msra.mxu0 %v939
  %955 = vmatpush.bf16.msra.mxu0 %v938
  %956 = vmatpush.bf16.msra.mxu0 %v937
  %957 = vmatpush.bf16.msra.mxu0 %v936
  %958 = vmatpush.bf16.msra.mxu0 %v935
  %959 = vmatmul.bf16.gmra.mxu0 %v885
  %v960 = vpop.f32.mrf.mxu0
  %v961 = vadd.f32 0.0, %v960
  %v962 = vpop.f32.mrf.mxu0
  %963 = vdwg.mxu0
  %v980 = vunpack.c.l.b16 %v869
  %v981 = vunpack.c.l.b16 %v870
  %v982 = vunpack.c.l.b16 %v871
  %v983 = vunpack.c.l.b16 %v872
  %v984 = vunpack.c.l.b16 %v873
  %v985 = vunpack.c.l.b16 %v874
  %v986 = vunpack.c.l.b16 %v875
  %v987 = vunpack.c.l.b16 %v876
  %v988 = vunpack.c.l.b16 %v877
  %v989 = vunpack.c.l.b16 %v878
  %v990 = vunpack.c.l.b16 %v879
  %v991 = vunpack.c.l.b16 %v880
  %v992 = vunpack.c.l.b16 %v881
  %v993 = vunpack.c.l.b16 %v882
  %v994 = vunpack.c.l.b16 %v883
  %v995 = vunpack.c.l.b16 %v884
  %v996 = vpack.c.b16 %v981, %v980
  %v997 = vpack.c.b16 %v983, %v982
  %v998 = vpack.c.b16 %v985, %v984
  %v999 = vpack.c.b16 %v987, %v986
  %v1000 = vpack.c.b16 %v989, %v988
  %v1001 = vpack.c.b16 %v991, %v990
  %v1002 = vpack.c.b16 %v993, %v992
  %v1003 = vpack.c.b16 %v995, %v994
  %1012 = vmatpush.bf16.msra.mxu0 %v1003
  %1013 = vmatpush.bf16.msra.mxu0 %v1002
  %1014 = vmatpush.bf16.msra.mxu0 %v1001
  %1015 = vmatpush.bf16.msra.mxu0 %v1000
  %1016 = vmatpush.bf16.msra.mxu0 %v999
  %1017 = vmatpush.bf16.msra.mxu0 %v998
  %1018 = vmatpush.bf16.msra.mxu0 %v997
  %1019 = vmatpush.bf16.msra.mxu0 %v996
  %1020 = vmatmul.bf16.gmra.mxu0 %v868
  %v1021 = vpop.f32.mrf.mxu0
  %v1022 = vadd.f32 %v961, %v1021
  %v1023 = vpop.f32.mrf.mxu0
  %1024 = vdwg.mxu0
  %v1025 = vpack.c.bf16 %v866, %v866
  %s1026 = scalar_lea.vmem %s3, 128
  %v1027 = vld [vmem:[%s1026] sm:$0xf]
  %v1028 = vld [vmem:[%s1026 + $0x4] sm:$0xf]
  %v1029 = vld [vmem:[%s1026 + $0x8] sm:$0xf]
  %v1030 = vld [vmem:[%s1026 + $0xc] sm:$0xf]
  %v1031 = vld [vmem:[%s1026 + $0x10] sm:$0xf]
  %v1032 = vld [vmem:[%s1026 + $0x14] sm:$0xf]
  %v1033 = vld [vmem:[%s1026 + $0x18] sm:$0xf]
  %v1034 = vld [vmem:[%s1026 + $0x1c] sm:$0xf]
  %v1035 = vld [vmem:[%s1026 + $0x20] sm:$0xf]
  %v1036 = vld [vmem:[%s1026 + $0x24] sm:$0xf]
  %v1037 = vld [vmem:[%s1026 + $0x28] sm:$0xf]
  %v1038 = vld [vmem:[%s1026 + $0x2c] sm:$0xf]
  %v1039 = vld [vmem:[%s1026 + $0x30] sm:$0xf]
  %v1040 = vld [vmem:[%s1026 + $0x34] sm:$0xf]
  %v1041 = vld [vmem:[%s1026 + $0x38] sm:$0xf]
  %v1042 = vld [vmem:[%s1026 + $0x3c] sm:$0xf]
  %v1059 = vunpack.c.l.b16 %v1027
  %v1060 = vunpack.c.l.b16 %v1028
  %v1061 = vunpack.c.l.b16 %v1029
  %v1062 = vunpack.c.l.b16 %v1030
  %v1063 = vunpack.c.l.b16 %v1031
  %v1064 = vunpack.c.l.b16 %v1032
  %v1065 = vunpack.c.l.b16 %v1033
  %v1066 = vunpack.c.l.b16 %v1034
  %v1067 = vunpack.c.l.b16 %v1035
  %v1068 = vunpack.c.l.b16 %v1036
  %v1069 = vunpack.c.l.b16 %v1037
  %v1070 = vunpack.c.l.b16 %v1038
  %v1071 = vunpack.c.l.b16 %v1039
  %v1072 = vunpack.c.l.b16 %v1040
  %v1073 = vunpack.c.l.b16 %v1041
  %v1074 = vunpack.c.l.b16 %v1042
  %v1075 = vpack.c.b16 %v1060, %v1059
  %v1076 = vpack.c.b16 %v1062, %v1061
  %v1077 = vpack.c.b16 %v1064, %v1063
  %v1078 = vpack.c.b16 %v1066, %v1065
  %v1079 = vpack.c.b16 %v1068, %v1067
  %v1080 = vpack.c.b16 %v1070, %v1069
  %v1081 = vpack.c.b16 %v1072, %v1071
  %v1082 = vpack.c.b16 %v1074, %v1073
  %1091 = vmatpush.bf16.msra.mxu0 %v1082
  %1092 = vmatpush.bf16.msra.mxu0 %v1081
  %1093 = vmatpush.bf16.msra.mxu0 %v1080
  %1094 = vmatpush.bf16.msra.mxu0 %v1079
  %1095 = vmatpush.bf16.msra.mxu0 %v1078
  %1096 = vmatpush.bf16.msra.mxu0 %v1077
  %1097 = vmatpush.bf16.msra.mxu0 %v1076
  %1098 = vmatpush.bf16.msra.mxu0 %v1075
  %1099 = vmatmul.bf16.gmra.mxu0 %v1025
  %v1100 = vpop.f32.mrf.mxu0
  %v1101 = vadd.f32 0.0, %v1100
  %v1102 = vpop.f32.mrf.mxu0
  %1103 = vdwg.mxu0
  %v1104 = vadd.f32 %v1022, %v1101
  %v1105 = vpack.c.bf16 %v867, %v867
  %s1106 = scalar_lea.vmem %s3, 192
  %v1107 = vld [vmem:[%s1106] sm:$0xf]
  %v1108 = vld [vmem:[%s1106 + $0x4] sm:$0xf]
  %v1109 = vld [vmem:[%s1106 + $0x8] sm:$0xf]
  %v1110 = vld [vmem:[%s1106 + $0xc] sm:$0xf]
  %v1111 = vld [vmem:[%s1106 + $0x10] sm:$0xf]
  %v1112 = vld [vmem:[%s1106 + $0x14] sm:$0xf]
  %v1113 = vld [vmem:[%s1106 + $0x18] sm:$0xf]
  %v1114 = vld [vmem:[%s1106 + $0x1c] sm:$0xf]
  %v1115 = vld [vmem:[%s1106 + $0x20] sm:$0xf]
  %v1116 = vld [vmem:[%s1106 + $0x24] sm:$0xf]
  %v1117 = vld [vmem:[%s1106 + $0x28] sm:$0xf]
  %v1118 = vld [vmem:[%s1106 + $0x2c] sm:$0xf]
  %v1119 = vld [vmem:[%s1106 + $0x30] sm:$0xf]
  %v1120 = vld [vmem:[%s1106 + $0x34] sm:$0xf]
  %v1121 = vld [vmem:[%s1106 + $0x38] sm:$0xf]
  %v1122 = vld [vmem:[%s1106 + $0x3c] sm:$0xf]
  %v1139 = vunpack.c.l.b16 %v1107
  %v1140 = vunpack.c.l.b16 %v1108
  %v1141 = vunpack.c.l.b16 %v1109
  %v1142 = vunpack.c.l.b16 %v1110
  %v1143 = vunpack.c.l.b16 %v1111
  %v1144 = vunpack.c.l.b16 %v1112
  %v1145 = vunpack.c.l.b16 %v1113
  %v1146 = vunpack.c.l.b16 %v1114
  %v1147 = vunpack.c.l.b16 %v1115
  %v1148 = vunpack.c.l.b16 %v1116
  %v1149 = vunpack.c.l.b16 %v1117
  %v1150 = vunpack.c.l.b16 %v1118
  %v1151 = vunpack.c.l.b16 %v1119
  %v1152 = vunpack.c.l.b16 %v1120
  %v1153 = vunpack.c.l.b16 %v1121
  %v1154 = vunpack.c.l.b16 %v1122
  %v1155 = vpack.c.b16 %v1140, %v1139
  %v1156 = vpack.c.b16 %v1142, %v1141
  %v1157 = vpack.c.b16 %v1144, %v1143
  %v1158 = vpack.c.b16 %v1146, %v1145
  %v1159 = vpack.c.b16 %v1148, %v1147
  %v1160 = vpack.c.b16 %v1150, %v1149
  %v1161 = vpack.c.b16 %v1152, %v1151
  %v1162 = vpack.c.b16 %v1154, %v1153
  %1171 = vmatpush.bf16.msra.mxu0 %v1162
  %1172 = vmatpush.bf16.msra.mxu0 %v1161
  %1173 = vmatpush.bf16.msra.mxu0 %v1160
  %1174 = vmatpush.bf16.msra.mxu0 %v1159
  %1175 = vmatpush.bf16.msra.mxu0 %v1158
  %1176 = vmatpush.bf16.msra.mxu0 %v1157
  %1177 = vmatpush.bf16.msra.mxu0 %v1156
  %1178 = vmatpush.bf16.msra.mxu0 %v1155
  %1179 = vmatmul.bf16.gmra.mxu0 %v1105
  %v1180 = vpop.f32.mrf.mxu0
  %v1181 = vadd.f32 0.0, %v1180
  %v1182 = vpop.f32.mrf.mxu0
  %1183 = vdwg.mxu0
  %v1184 = vadd.f32 %v1104, %v1181
  %v1185 = vld [vmem:[%s4] sm:$0x1]
  %v1187 = vperm.slane %v1185, 0
  %v1189 = vadd.f32 %v1184, %v1187
  %1190 = vst [vmem:[%s5] sm:$0xff] %v1189
  // Predicated region
  $region22: #{encoder_conv_base_forward.7} parent=0 // pred_check
    _
  $region23: #{encoder_conv_base_forward.7} parent=0 // pred_check_branch
    %1192 = sbr.rel (0) target = $region25
  $region24: #{encoder_conv_base_forward.7} parent=0 // pred_region
    _
  $region25: #{encoder_conv_base_forward.7} parent=0 // pred_fallthru
    _
  // Predicated region
  $region26: #{encoder_conv_base_forward.7} parent=0 // pred_check
    _
  $region27: #{encoder_conv_base_forward.7} parent=0 // pred_check_branch
    %1194 = sbr.rel (0) target = $region29
  $region28: #{encoder_conv_base_forward.7} parent=0 // pred_region
    _
  $region29: #{encoder_conv_base_forward.7} parent=0 // pred_fallthru
    _

</llo_original>
